<compile_context>
chip_gen: v7x
topology: tpu7x:2x2x1
jax: 0.10.0
libtpu: 0.0.40
codegen_flags: <defaults>
</compile_context>

<pallas_src>
import functools

import jax
import jax.numpy as jnp
from jax import lax
from jax.experimental import pallas as pl
from jax.experimental.pallas import tpu as pltpu


# ----------------------------- kernel ---------------------------------------


def _basic_block_kernel(*refs, stride, has_proj, row_blocks):
    """One grid step processes one image (N is the grid axis).

    refs (in order):
      x_ref  : (1, H, W, Cin)     bf16 input tile
      w1_ref : (9, Cin, Cout)     bf16 conv1 taps (BN1 scale folded)
      b1_ref : (1, Cout)          f32 BN1 bias
      w2_ref : (9, Cout, Cout)    bf16 conv2 taps (BN2 scale folded)
      bc_ref : (1, Cout)          f32 combined bias (BN2 + BN_sc)
      [wsc_ref: (Cin, Cout)       bf16 1x1 projection (only if has_proj)]
      o_ref  : (1, Ho, Wo, Cout)  bf16 output
      xp_ref : VMEM (H+2,  W+2,  Cin)  bf16 zero-halo staging of x
      hp_ref : VMEM (Ho+2, Wo+2, Cout) bf16 zero-halo staging of conv1 output
    """
    if has_proj:
        (x_ref, w1_ref, b1_ref, w2_ref, bc_ref, wsc_ref,
         o_ref, xp_ref, hp_ref) = refs
    else:
        (x_ref, w1_ref, b1_ref, w2_ref, bc_ref,
         o_ref, xp_ref, hp_ref) = refs
        wsc_ref = None

    H, W, Cin = x_ref.shape[1], x_ref.shape[2], x_ref.shape[3]
    Ho, Wo, Cout = o_ref.shape[1], o_ref.shape[2], o_ref.shape[3]
    s = stride
    bdt = xp_ref.dtype  # bf16

    # ---- stage x into a zero-halo bf16 VMEM scratch (zero borders only) ----
    xp_ref[0:1, :, :] = jnp.zeros((1, W + 2, Cin), bdt)
    xp_ref[H + 1:H + 2, :, :] = jnp.zeros((1, W + 2, Cin), bdt)
    xp_ref[:, 0:1, :] = jnp.zeros((H + 2, 1, Cin), bdt)
    xp_ref[:, W + 1:W + 2, :] = jnp.zeros((H + 2, 1, Cin), bdt)
    xp_ref[1:H + 1, 1:W + 1, :] = x_ref[0]

    # ---- zero the conv2 halo borders (interior written per row block) ----
    hp_ref[0:1, :, :] = jnp.zeros((1, Wo + 2, Cout), bdt)
    hp_ref[Ho + 1:Ho + 2, :, :] = jnp.zeros((1, Wo + 2, Cout), bdt)
    hp_ref[:, 0:1, :] = jnp.zeros((Ho + 2, 1, Cout), bdt)
    hp_ref[:, Wo + 1:Wo + 2, :] = jnp.zeros((Ho + 2, 1, Cout), bdt)

    # ---- conv1 (3x3, stride s) + BN1 bias + ReLU, row-blocked ----
    # TODO(synk): Dropout(p=0.1) after bn1 -> eval-mode identity.
    for (r0, rb) in row_blocks:
        acc = jnp.zeros((rb * Wo, Cout), jnp.float32)
        for kh in range(3):
            for kw in range(3):
                if s == 1:
                    v = xp_ref[r0 + kh:r0 + kh + rb, kw:kw + Wo, :]
                else:
                    v = xp_ref[pl.ds(s * r0 + kh, rb, stride=s),
                               pl.ds(kw, Wo, stride=s), :]
                acc += jnp.dot(v.reshape(rb * Wo, Cin), w1_ref[3 * kh + kw],
                               preferred_element_type=jnp.float32)
        h1 = jnp.maximum(acc + b1_ref[...], 0.0)
        hp_ref[1 + r0:1 + r0 + rb, 1:Wo + 1, :] = (
            h1.reshape(rb, Wo, Cout).astype(bdt))

    # ---- conv2 (3x3, stride 1) + fused shortcut + combined bias + ReLU ----
    # TODO(synk): Dropout(p=0.1) after bn2 / in the shortcut -> identity.
    for (r0, rb) in row_blocks:
        acc = jnp.zeros((rb * Wo, Cout), jnp.float32)
        for kh in range(3):
            for kw in range(3):
                v = hp_ref[r0 + kh:r0 + kh + rb, kw:kw + Wo, :]
                acc += jnp.dot(v.reshape(rb * Wo, Cout), w2_ref[3 * kh + kw],
                               preferred_element_type=jnp.float32)
        if has_proj:
            if s == 1:
                xc = x_ref[0, r0:r0 + rb, :, :]
            else:
                xc = x_ref[0, pl.ds(s * r0, rb, stride=s),
                           pl.ds(0, Wo, stride=s), :]
            acc += jnp.dot(xc.reshape(rb * Wo, Cin), wsc_ref[...],
                           preferred_element_type=jnp.float32)
        else:
            # identity shortcut: direct add of the (already bf16) input block.
            xc = x_ref[0, r0:r0 + rb, :, :]
            acc += xc.reshape(rb * Wo, Cout).astype(jnp.float32)
        out = jnp.maximum(acc + bc_ref[...], 0.0)
        o_ref[0, r0:r0 + rb, :, :] = out.reshape(rb, Wo, Cout).astype(o_ref.dtype)


# ----------------------------- trace-time prep ------------------------------


def _fold_bn(gamma, beta, mean, var, eps=1e-5):
    scale = gamma / jnp.sqrt(var + eps)
    bias = beta - mean * scale
    return scale.astype(jnp.float32), bias.astype(jnp.float32)


def _conv3x3_taps(w, scale):
    """PyTorch OIHW (Cout, Cin, 3, 3) * per-Cout BN scale -> (9, Cin, Cout)."""
    w = w.astype(jnp.float32) * scale[:, None, None, None]
    return jnp.transpose(w, (2, 3, 1, 0)).reshape(9, w.shape[1], w.shape[0])


def _prepare(params, Cin, stride):
    """BN folding into conv weights + shortcut/bias fusion (trace time)."""
    Cout = params["w1"].shape[0]
    has_proj = (stride != 1) or (Cin != Cout)

    s1, b1 = _fold_bn(*params["bn1"])
    s2, b2 = _fold_bn(*params["bn2"])
    w1 = _conv3x3_taps(params["w1"], s1).astype(jnp.bfloat16)
    w2 = _conv3x3_taps(params["w2"], s2).astype(jnp.bfloat16)

    if has_proj:
        ssc, bsc = _fold_bn(*params["bnsc"])
        wsc = jnp.transpose(
            params["wsc"][:, :, 0, 0].astype(jnp.float32) * ssc[:, None],
            (1, 0)).astype(jnp.bfloat16)          # (Cin, Cout)
        bc = b2 + bsc                              # fused bias for conv2+shortcut
    else:
        assert Cin == Cout, "identity shortcut requires Cin == Cout"
        wsc = None
        bc = b2

    return dict(w1=w1, b1=b1.reshape(1, Cout), w2=w2, bc=bc.reshape(1, Cout),
                wsc=wsc, has_proj=has_proj, Cout=Cout)


def _row_blocks(Ho, Wo, target_rows=128):
    """Static (start, size) row blocks bounding the f32 accumulator size."""
    rb = max(1, min(Ho, target_rows // max(Wo, 1)))
    blocks, r = [], 0
    while r < Ho:
        size = min(rb, Ho - r)
        blocks.append((r, size))
        r += size
    return tuple(blocks)


# ----------------------------- public wrappers -------------------------------


def basic_block_forward_nhwc(x_nhwc, params, *, stride=1):
    """NHWC-in / NHWC-out (bf16) fused BasicBlock forward."""
    N, H, W, Cin = x_nhwc.shape
    p = _prepare(params, Cin, stride)
    Cout = p["Cout"]
    Ho = (H - 1) // stride + 1
    Wo = (W - 1) // stride + 1
    row_blocks = _row_blocks(Ho, Wo)

    x = x_nhwc.astype(jnp.bfloat16)

    kernel = functools.partial(_basic_block_kernel, stride=stride,
                               has_proj=p["has_proj"], row_blocks=row_blocks)

    in_arrays = [x, p["w1"], p["b1"], p["w2"], p["bc"]]
    in_specs = [
        pl.BlockSpec((1, H, W, Cin), lambda n: (n, 0, 0, 0)),
        pl.BlockSpec((9, Cin, Cout), lambda n: (0, 0, 0)),
        pl.BlockSpec((1, Cout), lambda n: (0, 0)),
        pl.BlockSpec((9, Cout, Cout), lambda n: (0, 0, 0)),
        pl.BlockSpec((1, Cout), lambda n: (0, 0)),
    ]
    if p["has_proj"]:
        in_arrays.append(p["wsc"])
        in_specs.append(pl.BlockSpec((Cin, Cout), lambda n: (0, 0)))

    out = pl.pallas_call(
        kernel,
        out_shape=jax.ShapeDtypeStruct((N, Ho, Wo, Cout), jnp.bfloat16),
        grid_spec=pltpu.PrefetchScalarGridSpec(
            num_scalar_prefetch=0,
            grid=(N,),
            in_specs=in_specs,
            out_specs=pl.BlockSpec((1, Ho, Wo, Cout), lambda n: (n, 0, 0, 0)),
            scratch_shapes=[
                pltpu.VMEM((H + 2, W + 2, Cin), jnp.bfloat16),
                pltpu.VMEM((Ho + 2, Wo + 2, Cout), jnp.bfloat16),
            ],
        ),
        compiler_params=pltpu.CompilerParams(
            dimension_semantics=("parallel",),
            vmem_limit_bytes=32 * 1024 * 1024,
        ),
    )(*in_arrays)
    return out


def basic_block_forward(x_nchw, params, *, stride=1):
    """NCHW wrapper matching the PyTorch module's I/O layout (bf16 output)."""
    x = jnp.transpose(x_nchw, (0, 2, 3, 1))
    out = basic_block_forward_nhwc(x, params, stride=stride)
    return jnp.transpose(out, (0, 3, 1, 2))


# ----------------------------- references -----------------------------------


def basic_block_reference(x, params, *, stride=1, eps=1e-5):
    """Pure-JAX f32 reference with PyTorch BasicBlock (inference) semantics."""
    hi = lax.Precision.HIGHEST

    def conv(xx, w, s, pad):
        return lax.conv_general_dilated(
            xx, w, (s, s), pad,
            dimension_numbers=("NCHW", "OIHW", "NCHW"), precision=hi)

    def bn(xx, pp):
        gamma, beta, mean, var = pp
        return ((xx - mean[None, :, None, None])
                / jnp.sqrt(var[None, :, None, None] + eps)
                * gamma[None, :, None, None] + beta[None, :, None, None])

    out = jax.nn.relu(bn(conv(x, params["w1"], stride, ((1, 1), (1, 1))),
                         params["bn1"]))
    out = bn(conv(out, params["w2"], 1, ((1, 1), (1, 1))), params["bn2"])
    Cin, Cout = x.shape[1], params["w1"].shape[0]
    if stride != 1 or Cin != Cout:
        sc = bn(conv(x, params["wsc"], stride, ((0, 0), (0, 0))), params["bnsc"])
    else:
        sc = x
    return jax.nn.relu(out + sc)


def basic_block_reference_folded(x_nhwc, params, *, stride=1):
    """Bit-faithful reference of the kernel's bf16-input / f32-accum math."""
    hi = lax.Precision.HIGHEST
    N, H, W, Cin = x_nhwc.shape
    p = _prepare(params, Cin, stride)
    Cout = p["Cout"]
    Ho = (H - 1) // stride + 1
    Wo = (W - 1) // stride + 1
    Hs = stride * (Ho - 1) + 1
    Ws = stride * (Wo - 1) + 1

    x = x_nhwc.astype(jnp.bfloat16).astype(jnp.float32)
    xp = jnp.pad(x, ((0, 0), (1, 1), (1, 1), (0, 0)))
    w1 = p["w1"].astype(jnp.float32)
    w2 = p["w2"].astype(jnp.float32)

    acc1 = jnp.zeros((N, Ho, Wo, Cout), jnp.float32)
    for kh in range(3):
        for kw in range(3):
            v = xp[:, kh:kh + Hs:stride, kw:kw + Ws:stride, :]
            acc1 += jnp.einsum("nhwc,cd->nhwd", v, w1[3 * kh + kw], precision=hi)
    h1 = jnp.maximum(acc1 + p["b1"][0], 0.0)
    h1 = h1.astype(jnp.bfloat16).astype(jnp.float32)   # kernel stages bf16
    h1p = jnp.pad(h1, ((0, 0), (1, 1), (1, 1), (0, 0)))

    acc2 = jnp.zeros((N, Ho, Wo, Cout), jnp.float32)
    for kh in range(3):
        for kw in range(3):
            v = h1p[:, kh:kh + Ho, kw:kw + Wo, :]
            acc2 += jnp.einsum("nhwc,cd->nhwd", v, w2[3 * kh + kw], precision=hi)

    xc = x[:, ::stride, ::stride, :][:, :Ho, :Wo, :]
    if p["has_proj"]:
        acc2 += jnp.einsum("nhwc,cd->nhwd", xc, p["wsc"].astype(jnp.float32),
                           precision=hi)
    else:
        acc2 += xc
    out = jnp.maximum(acc2 + p["bc"][0], 0.0)
    return out.astype(jnp.bfloat16)


# ----------------------------- test harness ---------------------------------


if __name__ == "__main__":
    key = jax.random.PRNGKey(0)

    def bn_params(c, shift):
        r = jnp.arange(c, dtype=jnp.float32)
        gamma = 1.0 + 0.10 * r + shift
        beta = 0.05 * r - shift
        mean = 0.02 * r
        var = 1.0 + 0.03 * r
        return gamma, beta, mean, var

    def make_params(key, cin, planes, has_proj):
        k = jax.random.split(key, 3)
        p = {
            "w1": 0.25 * jax.random.normal(k[0], (planes, cin, 3, 3), jnp.float32),
            "w2": 0.25 * jax.random.normal(k[1], (planes, planes, 3, 3), jnp.float32),
            "bn1": bn_params(planes, 0.00),
            "bn2": bn_params(planes, 0.01),
        }
        if has_proj:
            p["wsc"] = 0.25 * jax.random.normal(k[2], (planes, cin, 1, 1),
                                                jnp.float32)
            p["bnsc"] = bn_params(planes, 0.02)
        return p

    def check(name, x, params, stride):
        out = jax.block_until_ready(basic_block_forward(x, params, stride=stride))
        N, Cin, H, W = x.shape
        planes = params["w1"].shape[0]
        Ho = (H - 1) // stride + 1
        Wo = (W - 1) // stride + 1
        assert out.shape == (N, planes, Ho, Wo), (name, out.shape)
        o32 = out.astype(jnp.float32)

        # Tight check: bit-faithful reference of the kernel's bf16/f32 math.
        x_nhwc = jnp.transpose(x, (0, 2, 3, 1))
        refq = jnp.transpose(
            basic_block_reference_folded(x_nhwc, params, stride=stride),
            (0, 3, 1, 2)).astype(jnp.float32)
        errq = float(jnp.max(jnp.abs(o32 - refq) / (1.0 + jnp.abs(refq))))
        assert errq < 2e-2, f"{name}: rel err vs folded bf16 reference: {errq}"

        # Loose sanity check vs the full-f32 PyTorch-semantics reference
        # (bf16 rounding of inputs/weights/h1 accounts for the tolerance);
        # catches gross BN-folding / layout / fusion bugs.
        ref = basic_block_reference(x, params, stride=stride)
        err = float(jnp.max(jnp.abs(o32 - ref) / (1.0 + jnp.abs(ref))))
        assert err < 2e-1, f"{name}: rel err vs f32 reference: {err}"

    # 1) Projection shortcut (in_planes != planes), stride 1.
    kx, kp = jax.random.split(key)
    x = jax.random.normal(kx, (2, 4, 16, 16), dtype=jnp.float32)
    params = make_params(kp, 4, 8, True)
    check("proj", x, params, stride=1)

    # 2) Identity shortcut (in_planes == planes, stride 1) -> fused direct add.
    kx2, kp2 = jax.random.split(kx)
    x2 = jax.random.normal(kx2, (2, 8, 16, 16), dtype=jnp.float32)
    params2 = make_params(kp2, 8, 8, False)
    check("identity", x2, params2, stride=1)

    print("KERNEL_OK")
</pallas_src>

<mosaic_0001>
module attributes {stable_mosaic.version = 11 : i64} {
  func.func @_basic_block_kernel(%arg0: i32, %arg1: memref<1x16x16x4xbf16, #tpu.memory_space<vmem>>, %arg2: memref<9x4x8xbf16, #tpu.memory_space<vmem>>, %arg3: memref<1x8xf32, #tpu.memory_space<vmem>>, %arg4: memref<9x8x8xbf16, #tpu.memory_space<vmem>>, %arg5: memref<1x8xf32, #tpu.memory_space<vmem>>, %arg6: memref<4x8xbf16, #tpu.memory_space<vmem>>, %arg7: memref<1x16x16x8xbf16, #tpu.memory_space<vmem>>, %arg8: memref<18x18x4xbf16, #tpu.memory_space<vmem>>, %arg9: memref<18x18x8xbf16, #tpu.memory_space<vmem>>) attributes {dimension_semantics = [#tpu.dimension_semantics<parallel>], iteration_bounds = array<i64: 2>, scalar_prefetch = 0 : i64, scratch_operands = 2 : i64, tpu.core_type = #tpu.core_type<tc>, window_params = [{transform_indices = @transform_0, window_bounds = array<i64: 1, 16, 16, 4>}, {pipeline_mode = #tpu.pipeline_mode<synchronous>, transform_indices = @transform_1, window_bounds = array<i64: 9, 4, 8>}, {pipeline_mode = #tpu.pipeline_mode<synchronous>, transform_indices = @transform_2, window_bounds = array<i64: 1, 8>}, {pipeline_mode = #tpu.pipeline_mode<synchronous>, transform_indices = @transform_3, window_bounds = array<i64: 9, 8, 8>}, {pipeline_mode = #tpu.pipeline_mode<synchronous>, transform_indices = @transform_4, window_bounds = array<i64: 1, 8>}, {pipeline_mode = #tpu.pipeline_mode<synchronous>, transform_indices = @transform_5, window_bounds = array<i64: 4, 8>}, {transform_indices = @transform_6, window_bounds = array<i64: 1, 16, 16, 8>}]} {
    %cst = arith.constant 0.000000e+00 : bf16
    %0 = vector.broadcast %cst : bf16 to vector<1x18x4xbf16>
    %c0 = arith.constant 0 : index
    %c0_0 = arith.constant 0 : index
    %c0_1 = arith.constant 0 : index
    %1 = vector.load %arg8[%c0, %c0_0, %c0_1] : memref<18x18x4xbf16, #tpu.memory_space<vmem>>, vector<1x18x4xbf16>
    tpu.vector_store %arg8[%c0, %c0_0, %c0_1], %0 {strides = array<i32>} : memref<18x18x4xbf16, #tpu.memory_space<vmem>>, vector<1x18x4xbf16>,
    %cst_2 = arith.constant 0.000000e+00 : bf16
    %2 = vector.broadcast %cst_2 : bf16 to vector<1x18x4xbf16>
    %c17 = arith.constant 17 : index
    %c0_3 = arith.constant 0 : index
    %c0_4 = arith.constant 0 : index
    %3 = vector.load %arg8[%c17, %c0_3, %c0_4] : memref<18x18x4xbf16, #tpu.memory_space<vmem>>, vector<1x18x4xbf16>
    tpu.vector_store %arg8[%c17, %c0_3, %c0_4], %2 {strides = array<i32>} : memref<18x18x4xbf16, #tpu.memory_space<vmem>>, vector<1x18x4xbf16>,
    %cst_5 = arith.constant 0.000000e+00 : bf16
    %4 = vector.broadcast %cst_5 : bf16 to vector<18x1x4xbf16>
    %c0_6 = arith.constant 0 : index
    %c0_7 = arith.constant 0 : index
    %c0_8 = arith.constant 0 : index
    %5 = vector.load %arg8[%c0_6, %c0_7, %c0_8] : memref<18x18x4xbf16, #tpu.memory_space<vmem>>, vector<18x1x4xbf16>
    tpu.vector_store %arg8[%c0_6, %c0_7, %c0_8], %4 {strides = array<i32>} : memref<18x18x4xbf16, #tpu.memory_space<vmem>>, vector<18x1x4xbf16>,
    %cst_9 = arith.constant 0.000000e+00 : bf16
    %6 = vector.broadcast %cst_9 : bf16 to vector<18x1x4xbf16>
    %c0_10 = arith.constant 0 : index
    %c17_11 = arith.constant 17 : index
    %c0_12 = arith.constant 0 : index
    %7 = vector.load %arg8[%c0_10, %c17_11, %c0_12] : memref<18x18x4xbf16, #tpu.memory_space<vmem>>, vector<18x1x4xbf16>
    tpu.vector_store %arg8[%c0_10, %c17_11, %c0_12], %6 {strides = array<i32>} : memref<18x18x4xbf16, #tpu.memory_space<vmem>>, vector<18x1x4xbf16>,
    %c0_13 = arith.constant 0 : index
    %c0_14 = arith.constant 0 : index
    %c0_15 = arith.constant 0 : index
    %c0_16 = arith.constant 0 : index
    %8 = vector.load %arg1[%c0_13, %c0_14, %c0_15, %c0_16] : memref<1x16x16x4xbf16, #tpu.memory_space<vmem>>, vector<1x16x16x4xbf16>
    %9 = vector.shape_cast %8 : vector<1x16x16x4xbf16> to vector<16x16x4xbf16>
    %c1 = arith.constant 1 : index
    %c1_17 = arith.constant 1 : index
    %c0_18 = arith.constant 0 : index
    %10 = vector.load %arg8[%c1, %c1_17, %c0_18] : memref<18x18x4xbf16, #tpu.memory_space<vmem>>, vector<16x16x4xbf16>
    tpu.vector_store %arg8[%c1, %c1_17, %c0_18], %9 {strides = array<i32>} : memref<18x18x4xbf16, #tpu.memory_space<vmem>>, vector<16x16x4xbf16>,
    %cst_19 = arith.constant 0.000000e+00 : bf16
    %11 = vector.broadcast %cst_19 : bf16 to vector<1x18x8xbf16>
    %c0_20 = arith.constant 0 : index
    %c0_21 = arith.constant 0 : index
    %c0_22 = arith.constant 0 : index
    %12 = vector.load %arg9[%c0_20, %c0_21, %c0_22] : memref<18x18x8xbf16, #tpu.memory_space<vmem>>, vector<1x18x8xbf16>
    tpu.vector_store %arg9[%c0_20, %c0_21, %c0_22], %11 {strides = array<i32>} : memref<18x18x8xbf16, #tpu.memory_space<vmem>>, vector<1x18x8xbf16>,
    %cst_23 = arith.constant 0.000000e+00 : bf16
    %13 = vector.broadcast %cst_23 : bf16 to vector<1x18x8xbf16>
    %c17_24 = arith.constant 17 : index
    %c0_25 = arith.constant 0 : index
    %c0_26 = arith.constant 0 : index
    %14 = vector.load %arg9[%c17_24, %c0_25, %c0_26] : memref<18x18x8xbf16, #tpu.memory_space<vmem>>, vector<1x18x8xbf16>
    tpu.vector_store %arg9[%c17_24, %c0_25, %c0_26], %13 {strides = array<i32>} : memref<18x18x8xbf16, #tpu.memory_space<vmem>>, vector<1x18x8xbf16>,
    %cst_27 = arith.constant 0.000000e+00 : bf16
    %15 = vector.broadcast %cst_27 : bf16 to vector<18x1x8xbf16>
    %c0_28 = arith.constant 0 : index
    %c0_29 = arith.constant 0 : index
    %c0_30 = arith.constant 0 : index
    %16 = vector.load %arg9[%c0_28, %c0_29, %c0_30] : memref<18x18x8xbf16, #tpu.memory_space<vmem>>, vector<18x1x8xbf16>
    tpu.vector_store %arg9[%c0_28, %c0_29, %c0_30], %15 {strides = array<i32>} : memref<18x18x8xbf16, #tpu.memory_space<vmem>>, vector<18x1x8xbf16>,
    %cst_31 = arith.constant 0.000000e+00 : bf16
    %17 = vector.broadcast %cst_31 : bf16 to vector<18x1x8xbf16>
    %c0_32 = arith.constant 0 : index
    %c17_33 = arith.constant 17 : index
    %c0_34 = arith.constant 0 : index
    %18 = vector.load %arg9[%c0_32, %c17_33, %c0_34] : memref<18x18x8xbf16, #tpu.memory_space<vmem>>, vector<18x1x8xbf16>
    tpu.vector_store %arg9[%c0_32, %c17_33, %c0_34], %17 {strides = array<i32>} : memref<18x18x8xbf16, #tpu.memory_space<vmem>>, vector<18x1x8xbf16>,
    %cst_35 = arith.constant 0.000000e+00 : f32
    %19 = vector.broadcast %cst_35 : f32 to vector<128x8xf32>
    %c0_36 = arith.constant 0 : index
    %c0_37 = arith.constant 0 : index
    %c0_38 = arith.constant 0 : index
    %20 = vector.load %arg8[%c0_36, %c0_37, %c0_38] : memref<18x18x4xbf16, #tpu.memory_space<vmem>>, vector<8x16x4xbf16>
    %21 = vector.shape_cast %20 : vector<8x16x4xbf16> to vector<128x4xbf16>
    %c0_39 = arith.constant 0 : index
    %c0_40 = arith.constant 0 : index
    %c0_41 = arith.constant 0 : index
    %22 = vector.load %arg2[%c0_39, %c0_40, %c0_41] : memref<9x4x8xbf16, #tpu.memory_space<vmem>>, vector<1x4x8xbf16>
    %23 = vector.shape_cast %22 : vector<1x4x8xbf16> to vector<4x8xbf16>
    %cst_42 = arith.constant dense<0.000000e+00> : vector<128x8xf32>
    %24 = tpu.matmul %21, %23, %cst_42 {dimension_numbers = #tpu.dot_dimension_numbers<[1], [0], [0], [1], [0, 0, 1, 1], [], []>} : vector<128x4xbf16>, vector<4x8xbf16>, vector<128x8xf32> -> vector<128x8xf32>
    %25 = arith.addf %19, %24 : vector<128x8xf32>
    %c0_43 = arith.constant 0 : index
    %c1_44 = arith.constant 1 : index
    %c0_45 = arith.constant 0 : index
    %26 = vector.load %arg8[%c0_43, %c1_44, %c0_45] : memref<18x18x4xbf16, #tpu.memory_space<vmem>>, vector<8x16x4xbf16>
    %27 = vector.shape_cast %26 : vector<8x16x4xbf16> to vector<128x4xbf16>
    %c1_46 = arith.constant 1 : index
    %c0_47 = arith.constant 0 : index
    %c0_48 = arith.constant 0 : index
    %28 = vector.load %arg2[%c1_46, %c0_47, %c0_48] : memref<9x4x8xbf16, #tpu.memory_space<vmem>>, vector<1x4x8xbf16>
    %29 = vector.shape_cast %28 : vector<1x4x8xbf16> to vector<4x8xbf16>
    %cst_49 = arith.constant dense<0.000000e+00> : vector<128x8xf32>
    %30 = tpu.matmul %27, %29, %cst_49 {dimension_numbers = #tpu.dot_dimension_numbers<[1], [0], [0], [1], [0, 0, 1, 1], [], []>} : vector<128x4xbf16>, vector<4x8xbf16>, vector<128x8xf32> -> vector<128x8xf32>
    %31 = arith.addf %25, %30 : vector<128x8xf32>
    %c0_50 = arith.constant 0 : index
    %c2 = arith.constant 2 : index
    %c0_51 = arith.constant 0 : index
    %32 = vector.load %arg8[%c0_50, %c2, %c0_51] : memref<18x18x4xbf16, #tpu.memory_space<vmem>>, vector<8x16x4xbf16>
    %33 = vector.shape_cast %32 : vector<8x16x4xbf16> to vector<128x4xbf16>
    %c2_52 = arith.constant 2 : index
    %c0_53 = arith.constant 0 : index
    %c0_54 = arith.constant 0 : index
    %34 = vector.load %arg2[%c2_52, %c0_53, %c0_54] : memref<9x4x8xbf16, #tpu.memory_space<vmem>>, vector<1x4x8xbf16>
    %35 = vector.shape_cast %34 : vector<1x4x8xbf16> to vector<4x8xbf16>
    %cst_55 = arith.constant dense<0.000000e+00> : vector<128x8xf32>
    %36 = tpu.matmul %33, %35, %cst_55 {dimension_numbers = #tpu.dot_dimension_numbers<[1], [0], [0], [1], [0, 0, 1, 1], [], []>} : vector<128x4xbf16>, vector<4x8xbf16>, vector<128x8xf32> -> vector<128x8xf32>
    %37 = arith.addf %31, %36 : vector<128x8xf32>
    %c1_56 = arith.constant 1 : index
    %c0_57 = arith.constant 0 : index
    %c0_58 = arith.constant 0 : index
    %38 = vector.load %arg8[%c1_56, %c0_57, %c0_58] : memref<18x18x4xbf16, #tpu.memory_space<vmem>>, vector<8x16x4xbf16>
    %39 = vector.shape_cast %38 : vector<8x16x4xbf16> to vector<128x4xbf16>
    %c3 = arith.constant 3 : index
    %c0_59 = arith.constant 0 : index
    %c0_60 = arith.constant 0 : index
    %40 = vector.load %arg2[%c3, %c0_59, %c0_60] : memref<9x4x8xbf16, #tpu.memory_space<vmem>>, vector<1x4x8xbf16>
    %41 = vector.shape_cast %40 : vector<1x4x8xbf16> to vector<4x8xbf16>
    %cst_61 = arith.constant dense<0.000000e+00> : vector<128x8xf32>
    %42 = tpu.matmul %39, %41, %cst_61 {dimension_numbers = #tpu.dot_dimension_numbers<[1], [0], [0], [1], [0, 0, 1, 1], [], []>} : vector<128x4xbf16>, vector<4x8xbf16>, vector<128x8xf32> -> vector<128x8xf32>
    %43 = arith.addf %37, %42 : vector<128x8xf32>
    %c1_62 = arith.constant 1 : index
    %c1_63 = arith.constant 1 : index
    %c0_64 = arith.constant 0 : index
    %44 = vector.load %arg8[%c1_62, %c1_63, %c0_64] : memref<18x18x4xbf16, #tpu.memory_space<vmem>>, vector<8x16x4xbf16>
    %45 = vector.shape_cast %44 : vector<8x16x4xbf16> to vector<128x4xbf16>
    %c4 = arith.constant 4 : index
    %c0_65 = arith.constant 0 : index
    %c0_66 = arith.constant 0 : index
    %46 = vector.load %arg2[%c4, %c0_65, %c0_66] : memref<9x4x8xbf16, #tpu.memory_space<vmem>>, vector<1x4x8xbf16>
    %47 = vector.shape_cast %46 : vector<1x4x8xbf16> to vector<4x8xbf16>
    %cst_67 = arith.constant dense<0.000000e+00> : vector<128x8xf32>
    %48 = tpu.matmul %45, %47, %cst_67 {dimension_numbers = #tpu.dot_dimension_numbers<[1], [0], [0], [1], [0, 0, 1, 1], [], []>} : vector<128x4xbf16>, vector<4x8xbf16>, vector<128x8xf32> -> vector<128x8xf32>
    %49 = arith.addf %43, %48 : vector<128x8xf32>
    %c1_68 = arith.constant 1 : index
    %c2_69 = arith.constant 2 : index
    %c0_70 = arith.constant 0 : index
    %50 = vector.load %arg8[%c1_68, %c2_69, %c0_70] : memref<18x18x4xbf16, #tpu.memory_space<vmem>>, vector<8x16x4xbf16>
    %51 = vector.shape_cast %50 : vector<8x16x4xbf16> to vector<128x4xbf16>
    %c5 = arith.constant 5 : index
    %c0_71 = arith.constant 0 : index
    %c0_72 = arith.constant 0 : index
    %52 = vector.load %arg2[%c5, %c0_71, %c0_72] : memref<9x4x8xbf16, #tpu.memory_space<vmem>>, vector<1x4x8xbf16>
    %53 = vector.shape_cast %52 : vector<1x4x8xbf16> to vector<4x8xbf16>
    %cst_73 = arith.constant dense<0.000000e+00> : vector<128x8xf32>
    %54 = tpu.matmul %51, %53, %cst_73 {dimension_numbers = #tpu.dot_dimension_numbers<[1], [0], [0], [1], [0, 0, 1, 1], [], []>} : vector<128x4xbf16>, vector<4x8xbf16>, vector<128x8xf32> -> vector<128x8xf32>
    %55 = arith.addf %49, %54 : vector<128x8xf32>
    %c2_74 = arith.constant 2 : index
    %c0_75 = arith.constant 0 : index
    %c0_76 = arith.constant 0 : index
    %56 = vector.load %arg8[%c2_74, %c0_75, %c0_76] : memref<18x18x4xbf16, #tpu.memory_space<vmem>>, vector<8x16x4xbf16>
    %57 = vector.shape_cast %56 : vector<8x16x4xbf16> to vector<128x4xbf16>
    %c6 = arith.constant 6 : index
    %c0_77 = arith.constant 0 : index
    %c0_78 = arith.constant 0 : index
    %58 = vector.load %arg2[%c6, %c0_77, %c0_78] : memref<9x4x8xbf16, #tpu.memory_space<vmem>>, vector<1x4x8xbf16>
    %59 = vector.shape_cast %58 : vector<1x4x8xbf16> to vector<4x8xbf16>
    %cst_79 = arith.constant dense<0.000000e+00> : vector<128x8xf32>
    %60 = tpu.matmul %57, %59, %cst_79 {dimension_numbers = #tpu.dot_dimension_numbers<[1], [0], [0], [1], [0, 0, 1, 1], [], []>} : vector<128x4xbf16>, vector<4x8xbf16>, vector<128x8xf32> -> vector<128x8xf32>
    %61 = arith.addf %55, %60 : vector<128x8xf32>
    %c2_80 = arith.constant 2 : index
    %c1_81 = arith.constant 1 : index
    %c0_82 = arith.constant 0 : index
    %62 = vector.load %arg8[%c2_80, %c1_81, %c0_82] : memref<18x18x4xbf16, #tpu.memory_space<vmem>>, vector<8x16x4xbf16>
    %63 = vector.shape_cast %62 : vector<8x16x4xbf16> to vector<128x4xbf16>
    %c7 = arith.constant 7 : index
    %c0_83 = arith.constant 0 : index
    %c0_84 = arith.constant 0 : index
    %64 = vector.load %arg2[%c7, %c0_83, %c0_84] : memref<9x4x8xbf16, #tpu.memory_space<vmem>>, vector<1x4x8xbf16>
    %65 = vector.shape_cast %64 : vector<1x4x8xbf16> to vector<4x8xbf16>
    %cst_85 = arith.constant dense<0.000000e+00> : vector<128x8xf32>
    %66 = tpu.matmul %63, %65, %cst_85 {dimension_numbers = #tpu.dot_dimension_numbers<[1], [0], [0], [1], [0, 0, 1, 1], [], []>} : vector<128x4xbf16>, vector<4x8xbf16>, vector<128x8xf32> -> vector<128x8xf32>
    %67 = arith.addf %61, %66 : vector<128x8xf32>
    %c2_86 = arith.constant 2 : index
    %c2_87 = arith.constant 2 : index
    %c0_88 = arith.constant 0 : index
    %68 = vector.load %arg8[%c2_86, %c2_87, %c0_88] : memref<18x18x4xbf16, #tpu.memory_space<vmem>>, vector<8x16x4xbf16>
    %69 = vector.shape_cast %68 : vector<8x16x4xbf16> to vector<128x4xbf16>
    %c8 = arith.constant 8 : index
    %c0_89 = arith.constant 0 : index
    %c0_90 = arith.constant 0 : index
    %70 = vector.load %arg2[%c8, %c0_89, %c0_90] : memref<9x4x8xbf16, #tpu.memory_space<vmem>>, vector<1x4x8xbf16>
    %71 = vector.shape_cast %70 : vector<1x4x8xbf16> to vector<4x8xbf16>
    %cst_91 = arith.constant dense<0.000000e+00> : vector<128x8xf32>
    %72 = tpu.matmul %69, %71, %cst_91 {dimension_numbers = #tpu.dot_dimension_numbers<[1], [0], [0], [1], [0, 0, 1, 1], [], []>} : vector<128x4xbf16>, vector<4x8xbf16>, vector<128x8xf32> -> vector<128x8xf32>
    %73 = arith.addf %67, %72 : vector<128x8xf32>
    %c0_92 = arith.constant 0 : index
    %c0_93 = arith.constant 0 : index
    %74 = vector.load %arg3[%c0_92, %c0_93] : memref<1x8xf32, #tpu.memory_space<vmem>>, vector<1x8xf32>
    %75 = vector.broadcast %74 : vector<1x8xf32> to vector<128x8xf32>
    %76 = arith.addf %73, %75 : vector<128x8xf32>
    %cst_94 = arith.constant 0.000000e+00 : f32
    %77 = vector.broadcast %cst_94 : f32 to vector<128x8xf32>
    %78 = arith.maximumf %76, %77 : vector<128x8xf32>
    %79 = vector.shape_cast %78 : vector<128x8xf32> to vector<8x16x8xf32>
    %80 = arith.truncf %79 : vector<8x16x8xf32> to vector<8x16x8xbf16>
    %c1_95 = arith.constant 1 : index
    %c1_96 = arith.constant 1 : index
    %c0_97 = arith.constant 0 : index
    %81 = vector.load %arg9[%c1_95, %c1_96, %c0_97] : memref<18x18x8xbf16, #tpu.memory_space<vmem>>, vector<8x16x8xbf16>
    tpu.vector_store %arg9[%c1_95, %c1_96, %c0_97], %80 {strides = array<i32>} : memref<18x18x8xbf16, #tpu.memory_space<vmem>>, vector<8x16x8xbf16>,
    %cst_98 = arith.constant 0.000000e+00 : f32
    %82 = vector.broadcast %cst_98 : f32 to vector<128x8xf32>
    %c8_99 = arith.constant 8 : index
    %c0_100 = arith.constant 0 : index
    %c0_101 = arith.constant 0 : index
    %83 = vector.load %arg8[%c8_99, %c0_100, %c0_101] : memref<18x18x4xbf16, #tpu.memory_space<vmem>>, vector<8x16x4xbf16>
    %84 = vector.shape_cast %83 : vector<8x16x4xbf16> to vector<128x4xbf16>
    %c0_102 = arith.constant 0 : index
    %c0_103 = arith.constant 0 : index
    %c0_104 = arith.constant 0 : index
    %85 = vector.load %arg2[%c0_102, %c0_103, %c0_104] : memref<9x4x8xbf16, #tpu.memory_space<vmem>>, vector<1x4x8xbf16>
    %86 = vector.shape_cast %85 : vector<1x4x8xbf16> to vector<4x8xbf16>
    %cst_105 = arith.constant dense<0.000000e+00> : vector<128x8xf32>
    %87 = tpu.matmul %84, %86, %cst_105 {dimension_numbers = #tpu.dot_dimension_numbers<[1], [0], [0], [1], [0, 0, 1, 1], [], []>} : vector<128x4xbf16>, vector<4x8xbf16>, vector<128x8xf32> -> vector<128x8xf32>
    %88 = arith.addf %82, %87 : vector<128x8xf32>
    %c8_106 = arith.constant 8 : index
    %c1_107 = arith.constant 1 : index
    %c0_108 = arith.constant 0 : index
    %89 = vector.load %arg8[%c8_106, %c1_107, %c0_108] : memref<18x18x4xbf16, #tpu.memory_space<vmem>>, vector<8x16x4xbf16>
    %90 = vector.shape_cast %89 : vector<8x16x4xbf16> to vector<128x4xbf16>
    %c1_109 = arith.constant 1 : index
    %c0_110 = arith.constant 0 : index
    %c0_111 = arith.constant 0 : index
    %91 = vector.load %arg2[%c1_109, %c0_110, %c0_111] : memref<9x4x8xbf16, #tpu.memory_space<vmem>>, vector<1x4x8xbf16>
    %92 = vector.shape_cast %91 : vector<1x4x8xbf16> to vector<4x8xbf16>
    %cst_112 = arith.constant dense<0.000000e+00> : vector<128x8xf32>
    %93 = tpu.matmul %90, %92, %cst_112 {dimension_numbers = #tpu.dot_dimension_numbers<[1], [0], [0], [1], [0, 0, 1, 1], [], []>} : vector<128x4xbf16>, vector<4x8xbf16>, vector<128x8xf32> -> vector<128x8xf32>
    %94 = arith.addf %88, %93 : vector<128x8xf32>
    %c8_113 = arith.constant 8 : index
    %c2_114 = arith.constant 2 : index
    %c0_115 = arith.constant 0 : index
    %95 = vector.load %arg8[%c8_113, %c2_114, %c0_115] : memref<18x18x4xbf16, #tpu.memory_space<vmem>>, vector<8x16x4xbf16>
    %96 = vector.shape_cast %95 : vector<8x16x4xbf16> to vector<128x4xbf16>
    %c2_116 = arith.constant 2 : index
    %c0_117 = arith.constant 0 : index
    %c0_118 = arith.constant 0 : index
    %97 = vector.load %arg2[%c2_116, %c0_117, %c0_118] : memref<9x4x8xbf16, #tpu.memory_space<vmem>>, vector<1x4x8xbf16>
    %98 = vector.shape_cast %97 : vector<1x4x8xbf16> to vector<4x8xbf16>
    %cst_119 = arith.constant dense<0.000000e+00> : vector<128x8xf32>
    %99 = tpu.matmul %96, %98, %cst_119 {dimension_numbers = #tpu.dot_dimension_numbers<[1], [0], [0], [1], [0, 0, 1, 1], [], []>} : vector<128x4xbf16>, vector<4x8xbf16>, vector<128x8xf32> -> vector<128x8xf32>
    %100 = arith.addf %94, %99 : vector<128x8xf32>
    %c9 = arith.constant 9 : index
    %c0_120 = arith.constant 0 : index
    %c0_121 = arith.constant 0 : index
    %101 = vector.load %arg8[%c9, %c0_120, %c0_121] : memref<18x18x4xbf16, #tpu.memory_space<vmem>>, vector<8x16x4xbf16>
    %102 = vector.shape_cast %101 : vector<8x16x4xbf16> to vector<128x4xbf16>
    %c3_122 = arith.constant 3 : index
    %c0_123 = arith.constant 0 : index
    %c0_124 = arith.constant 0 : index
    %103 = vector.load %arg2[%c3_122, %c0_123, %c0_124] : memref<9x4x8xbf16, #tpu.memory_space<vmem>>, vector<1x4x8xbf16>
    %104 = vector.shape_cast %103 : vector<1x4x8xbf16> to vector<4x8xbf16>
    %cst_125 = arith.constant dense<0.000000e+00> : vector<128x8xf32>
    %105 = tpu.matmul %102, %104, %cst_125 {dimension_numbers = #tpu.dot_dimension_numbers<[1], [0], [0], [1], [0, 0, 1, 1], [], []>} : vector<128x4xbf16>, vector<4x8xbf16>, vector<128x8xf32> -> vector<128x8xf32>
    %106 = arith.addf %100, %105 : vector<128x8xf32>
    %c9_126 = arith.constant 9 : index
    %c1_127 = arith.constant 1 : index
    %c0_128 = arith.constant 0 : index
    %107 = vector.load %arg8[%c9_126, %c1_127, %c0_128] : memref<18x18x4xbf16, #tpu.memory_space<vmem>>, vector<8x16x4xbf16>
    %108 = vector.shape_cast %107 : vector<8x16x4xbf16> to vector<128x4xbf16>
    %c4_129 = arith.constant 4 : index
    %c0_130 = arith.constant 0 : index
    %c0_131 = arith.constant 0 : index
    %109 = vector.load %arg2[%c4_129, %c0_130, %c0_131] : memref<9x4x8xbf16, #tpu.memory_space<vmem>>, vector<1x4x8xbf16>
    %110 = vector.shape_cast %109 : vector<1x4x8xbf16> to vector<4x8xbf16>
    %cst_132 = arith.constant dense<0.000000e+00> : vector<128x8xf32>
    %111 = tpu.matmul %108, %110, %cst_132 {dimension_numbers = #tpu.dot_dimension_numbers<[1], [0], [0], [1], [0, 0, 1, 1], [], []>} : vector<128x4xbf16>, vector<4x8xbf16>, vector<128x8xf32> -> vector<128x8xf32>
    %112 = arith.addf %106, %111 : vector<128x8xf32>
    %c9_133 = arith.constant 9 : index
    %c2_134 = arith.constant 2 : index
    %c0_135 = arith.constant 0 : index
    %113 = vector.load %arg8[%c9_133, %c2_134, %c0_135] : memref<18x18x4xbf16, #tpu.memory_space<vmem>>, vector<8x16x4xbf16>
    %114 = vector.shape_cast %113 : vector<8x16x4xbf16> to vector<128x4xbf16>
    %c5_136 = arith.constant 5 : index
    %c0_137 = arith.constant 0 : index
    %c0_138 = arith.constant 0 : index
    %115 = vector.load %arg2[%c5_136, %c0_137, %c0_138] : memref<9x4x8xbf16, #tpu.memory_space<vmem>>, vector<1x4x8xbf16>
    %116 = vector.shape_cast %115 : vector<1x4x8xbf16> to vector<4x8xbf16>
    %cst_139 = arith.constant dense<0.000000e+00> : vector<128x8xf32>
    %117 = tpu.matmul %114, %116, %cst_139 {dimension_numbers = #tpu.dot_dimension_numbers<[1], [0], [0], [1], [0, 0, 1, 1], [], []>} : vector<128x4xbf16>, vector<4x8xbf16>, vector<128x8xf32> -> vector<128x8xf32>
    %118 = arith.addf %112, %117 : vector<128x8xf32>
    %c10 = arith.constant 10 : index
    %c0_140 = arith.constant 0 : index
    %c0_141 = arith.constant 0 : index
    %119 = vector.load %arg8[%c10, %c0_140, %c0_141] : memref<18x18x4xbf16, #tpu.memory_space<vmem>>, vector<8x16x4xbf16>
    %120 = vector.shape_cast %119 : vector<8x16x4xbf16> to vector<128x4xbf16>
    %c6_142 = arith.constant 6 : index
    %c0_143 = arith.constant 0 : index
    %c0_144 = arith.constant 0 : index
    %121 = vector.load %arg2[%c6_142, %c0_143, %c0_144] : memref<9x4x8xbf16, #tpu.memory_space<vmem>>, vector<1x4x8xbf16>
    %122 = vector.shape_cast %121 : vector<1x4x8xbf16> to vector<4x8xbf16>
    %cst_145 = arith.constant dense<0.000000e+00> : vector<128x8xf32>
    %123 = tpu.matmul %120, %122, %cst_145 {dimension_numbers = #tpu.dot_dimension_numbers<[1], [0], [0], [1], [0, 0, 1, 1], [], []>} : vector<128x4xbf16>, vector<4x8xbf16>, vector<128x8xf32> -> vector<128x8xf32>
    %124 = arith.addf %118, %123 : vector<128x8xf32>
    %c10_146 = arith.constant 10 : index
    %c1_147 = arith.constant 1 : index
    %c0_148 = arith.constant 0 : index
    %125 = vector.load %arg8[%c10_146, %c1_147, %c0_148] : memref<18x18x4xbf16, #tpu.memory_space<vmem>>, vector<8x16x4xbf16>
    %126 = vector.shape_cast %125 : vector<8x16x4xbf16> to vector<128x4xbf16>
    %c7_149 = arith.constant 7 : index
    %c0_150 = arith.constant 0 : index
    %c0_151 = arith.constant 0 : index
    %127 = vector.load %arg2[%c7_149, %c0_150, %c0_151] : memref<9x4x8xbf16, #tpu.memory_space<vmem>>, vector<1x4x8xbf16>
    %128 = vector.shape_cast %127 : vector<1x4x8xbf16> to vector<4x8xbf16>
    %cst_152 = arith.constant dense<0.000000e+00> : vector<128x8xf32>
    %129 = tpu.matmul %126, %128, %cst_152 {dimension_numbers = #tpu.dot_dimension_numbers<[1], [0], [0], [1], [0, 0, 1, 1], [], []>} : vector<128x4xbf16>, vector<4x8xbf16>, vector<128x8xf32> -> vector<128x8xf32>
    %130 = arith.addf %124, %129 : vector<128x8xf32>
    %c10_153 = arith.constant 10 : index
    %c2_154 = arith.constant 2 : index
    %c0_155 = arith.constant 0 : index
    %131 = vector.load %arg8[%c10_153, %c2_154, %c0_155] : memref<18x18x4xbf16, #tpu.memory_space<vmem>>, vector<8x16x4xbf16>
    %132 = vector.shape_cast %131 : vector<8x16x4xbf16> to vector<128x4xbf16>
    %c8_156 = arith.constant 8 : index
    %c0_157 = arith.constant 0 : index
    %c0_158 = arith.constant 0 : index
    %133 = vector.load %arg2[%c8_156, %c0_157, %c0_158] : memref<9x4x8xbf16, #tpu.memory_space<vmem>>, vector<1x4x8xbf16>
    %134 = vector.shape_cast %133 : vector<1x4x8xbf16> to vector<4x8xbf16>
    %cst_159 = arith.constant dense<0.000000e+00> : vector<128x8xf32>
    %135 = tpu.matmul %132, %134, %cst_159 {dimension_numbers = #tpu.dot_dimension_numbers<[1], [0], [0], [1], [0, 0, 1, 1], [], []>} : vector<128x4xbf16>, vector<4x8xbf16>, vector<128x8xf32> -> vector<128x8xf32>
    %136 = arith.addf %130, %135 : vector<128x8xf32>
    %c0_160 = arith.constant 0 : index
    %c0_161 = arith.constant 0 : index
    %137 = vector.load %arg3[%c0_160, %c0_161] : memref<1x8xf32, #tpu.memory_space<vmem>>, vector<1x8xf32>
    %138 = vector.broadcast %137 : vector<1x8xf32> to vector<128x8xf32>
    %139 = arith.addf %136, %138 : vector<128x8xf32>
    %cst_162 = arith.constant 0.000000e+00 : f32
    %140 = vector.broadcast %cst_162 : f32 to vector<128x8xf32>
    %141 = arith.maximumf %139, %140 : vector<128x8xf32>
    %142 = vector.shape_cast %141 : vector<128x8xf32> to vector<8x16x8xf32>
    %143 = arith.truncf %142 : vector<8x16x8xf32> to vector<8x16x8xbf16>
    %c9_163 = arith.constant 9 : index
    %c1_164 = arith.constant 1 : index
    %c0_165 = arith.constant 0 : index
    %144 = vector.load %arg9[%c9_163, %c1_164, %c0_165] : memref<18x18x8xbf16, #tpu.memory_space<vmem>>, vector<8x16x8xbf16>
    tpu.vector_store %arg9[%c9_163, %c1_164, %c0_165], %143 {strides = array<i32>} : memref<18x18x8xbf16, #tpu.memory_space<vmem>>, vector<8x16x8xbf16>,
    %cst_166 = arith.constant 0.000000e+00 : f32
    %145 = vector.broadcast %cst_166 : f32 to vector<128x8xf32>
    %c0_167 = arith.constant 0 : index
    %c0_168 = arith.constant 0 : index
    %c0_169 = arith.constant 0 : index
    %146 = vector.load %arg9[%c0_167, %c0_168, %c0_169] : memref<18x18x8xbf16, #tpu.memory_space<vmem>>, vector<8x16x8xbf16>
    %147 = vector.shape_cast %146 : vector<8x16x8xbf16> to vector<128x8xbf16>
    %c0_170 = arith.constant 0 : index
    %c0_171 = arith.constant 0 : index
    %c0_172 = arith.constant 0 : index
    %148 = vector.load %arg4[%c0_170, %c0_171, %c0_172] : memref<9x8x8xbf16, #tpu.memory_space<vmem>>, vector<1x8x8xbf16>
    %149 = vector.shape_cast %148 : vector<1x8x8xbf16> to vector<8x8xbf16>
    %cst_173 = arith.constant dense<0.000000e+00> : vector<128x8xf32>
    %150 = tpu.matmul %147, %149, %cst_173 {dimension_numbers = #tpu.dot_dimension_numbers<[1], [0], [0], [1], [0, 0, 1, 1], [], []>} : vector<128x8xbf16>, vector<8x8xbf16>, vector<128x8xf32> -> vector<128x8xf32>
    %151 = arith.addf %145, %150 : vector<128x8xf32>
    %c0_174 = arith.constant 0 : index
    %c1_175 = arith.constant 1 : index
    %c0_176 = arith.constant 0 : index
    %152 = vector.load %arg9[%c0_174, %c1_175, %c0_176] : memref<18x18x8xbf16, #tpu.memory_space<vmem>>, vector<8x16x8xbf16>
    %153 = vector.shape_cast %152 : vector<8x16x8xbf16> to vector<128x8xbf16>
    %c1_177 = arith.constant 1 : index
    %c0_178 = arith.constant 0 : index
    %c0_179 = arith.constant 0 : index
    %154 = vector.load %arg4[%c1_177, %c0_178, %c0_179] : memref<9x8x8xbf16, #tpu.memory_space<vmem>>, vector<1x8x8xbf16>
    %155 = vector.shape_cast %154 : vector<1x8x8xbf16> to vector<8x8xbf16>
    %cst_180 = arith.constant dense<0.000000e+00> : vector<128x8xf32>
    %156 = tpu.matmul %153, %155, %cst_180 {dimension_numbers = #tpu.dot_dimension_numbers<[1], [0], [0], [1], [0, 0, 1, 1], [], []>} : vector<128x8xbf16>, vector<8x8xbf16>, vector<128x8xf32> -> vector<128x8xf32>
    %157 = arith.addf %151, %156 : vector<128x8xf32>
    %c0_181 = arith.constant 0 : index
    %c2_182 = arith.constant 2 : index
    %c0_183 = arith.constant 0 : index
    %158 = vector.load %arg9[%c0_181, %c2_182, %c0_183] : memref<18x18x8xbf16, #tpu.memory_space<vmem>>, vector<8x16x8xbf16>
    %159 = vector.shape_cast %158 : vector<8x16x8xbf16> to vector<128x8xbf16>
    %c2_184 = arith.constant 2 : index
    %c0_185 = arith.constant 0 : index
    %c0_186 = arith.constant 0 : index
    %160 = vector.load %arg4[%c2_184, %c0_185, %c0_186] : memref<9x8x8xbf16, #tpu.memory_space<vmem>>, vector<1x8x8xbf16>
    %161 = vector.shape_cast %160 : vector<1x8x8xbf16> to vector<8x8xbf16>
    %cst_187 = arith.constant dense<0.000000e+00> : vector<128x8xf32>
    %162 = tpu.matmul %159, %161, %cst_187 {dimension_numbers = #tpu.dot_dimension_numbers<[1], [0], [0], [1], [0, 0, 1, 1], [], []>} : vector<128x8xbf16>, vector<8x8xbf16>, vector<128x8xf32> -> vector<128x8xf32>
    %163 = arith.addf %157, %162 : vector<128x8xf32>
    %c1_188 = arith.constant 1 : index
    %c0_189 = arith.constant 0 : index
    %c0_190 = arith.constant 0 : index
    %164 = vector.load %arg9[%c1_188, %c0_189, %c0_190] : memref<18x18x8xbf16, #tpu.memory_space<vmem>>, vector<8x16x8xbf16>
    %165 = vector.shape_cast %164 : vector<8x16x8xbf16> to vector<128x8xbf16>
    %c3_191 = arith.constant 3 : index
    %c0_192 = arith.constant 0 : index
    %c0_193 = arith.constant 0 : index
    %166 = vector.load %arg4[%c3_191, %c0_192, %c0_193] : memref<9x8x8xbf16, #tpu.memory_space<vmem>>, vector<1x8x8xbf16>
    %167 = vector.shape_cast %166 : vector<1x8x8xbf16> to vector<8x8xbf16>
    %cst_194 = arith.constant dense<0.000000e+00> : vector<128x8xf32>
    %168 = tpu.matmul %165, %167, %cst_194 {dimension_numbers = #tpu.dot_dimension_numbers<[1], [0], [0], [1], [0, 0, 1, 1], [], []>} : vector<128x8xbf16>, vector<8x8xbf16>, vector<128x8xf32> -> vector<128x8xf32>
    %169 = arith.addf %163, %168 : vector<128x8xf32>
    %c1_195 = arith.constant 1 : index
    %c1_196 = arith.constant 1 : index
    %c0_197 = arith.constant 0 : index
    %170 = vector.load %arg9[%c1_195, %c1_196, %c0_197] : memref<18x18x8xbf16, #tpu.memory_space<vmem>>, vector<8x16x8xbf16>
    %171 = vector.shape_cast %170 : vector<8x16x8xbf16> to vector<128x8xbf16>
    %c4_198 = arith.constant 4 : index
    %c0_199 = arith.constant 0 : index
    %c0_200 = arith.constant 0 : index
    %172 = vector.load %arg4[%c4_198, %c0_199, %c0_200] : memref<9x8x8xbf16, #tpu.memory_space<vmem>>, vector<1x8x8xbf16>
    %173 = vector.shape_cast %172 : vector<1x8x8xbf16> to vector<8x8xbf16>
    %cst_201 = arith.constant dense<0.000000e+00> : vector<128x8xf32>
    %174 = tpu.matmul %171, %173, %cst_201 {dimension_numbers = #tpu.dot_dimension_numbers<[1], [0], [0], [1], [0, 0, 1, 1], [], []>} : vector<128x8xbf16>, vector<8x8xbf16>, vector<128x8xf32> -> vector<128x8xf32>
    %175 = arith.addf %169, %174 : vector<128x8xf32>
    %c1_202 = arith.constant 1 : index
    %c2_203 = arith.constant 2 : index
    %c0_204 = arith.constant 0 : index
    %176 = vector.load %arg9[%c1_202, %c2_203, %c0_204] : memref<18x18x8xbf16, #tpu.memory_space<vmem>>, vector<8x16x8xbf16>
    %177 = vector.shape_cast %176 : vector<8x16x8xbf16> to vector<128x8xbf16>
    %c5_205 = arith.constant 5 : index
    %c0_206 = arith.constant 0 : index
    %c0_207 = arith.constant 0 : index
    %178 = vector.load %arg4[%c5_205, %c0_206, %c0_207] : memref<9x8x8xbf16, #tpu.memory_space<vmem>>, vector<1x8x8xbf16>
    %179 = vector.shape_cast %178 : vector<1x8x8xbf16> to vector<8x8xbf16>
    %cst_208 = arith.constant dense<0.000000e+00> : vector<128x8xf32>
    %180 = tpu.matmul %177, %179, %cst_208 {dimension_numbers = #tpu.dot_dimension_numbers<[1], [0], [0], [1], [0, 0, 1, 1], [], []>} : vector<128x8xbf16>, vector<8x8xbf16>, vector<128x8xf32> -> vector<128x8xf32>
    %181 = arith.addf %175, %180 : vector<128x8xf32>
    %c2_209 = arith.constant 2 : index
    %c0_210 = arith.constant 0 : index
    %c0_211 = arith.constant 0 : index
    %182 = vector.load %arg9[%c2_209, %c0_210, %c0_211] : memref<18x18x8xbf16, #tpu.memory_space<vmem>>, vector<8x16x8xbf16>
    %183 = vector.shape_cast %182 : vector<8x16x8xbf16> to vector<128x8xbf16>
    %c6_212 = arith.constant 6 : index
    %c0_213 = arith.constant 0 : index
    %c0_214 = arith.constant 0 : index
    %184 = vector.load %arg4[%c6_212, %c0_213, %c0_214] : memref<9x8x8xbf16, #tpu.memory_space<vmem>>, vector<1x8x8xbf16>
    %185 = vector.shape_cast %184 : vector<1x8x8xbf16> to vector<8x8xbf16>
    %cst_215 = arith.constant dense<0.000000e+00> : vector<128x8xf32>
    %186 = tpu.matmul %183, %185, %cst_215 {dimension_numbers = #tpu.dot_dimension_numbers<[1], [0], [0], [1], [0, 0, 1, 1], [], []>} : vector<128x8xbf16>, vector<8x8xbf16>, vector<128x8xf32> -> vector<128x8xf32>
    %187 = arith.addf %181, %186 : vector<128x8xf32>
    %c2_216 = arith.constant 2 : index
    %c1_217 = arith.constant 1 : index
    %c0_218 = arith.constant 0 : index
    %188 = vector.load %arg9[%c2_216, %c1_217, %c0_218] : memref<18x18x8xbf16, #tpu.memory_space<vmem>>, vector<8x16x8xbf16>
    %189 = vector.shape_cast %188 : vector<8x16x8xbf16> to vector<128x8xbf16>
    %c7_219 = arith.constant 7 : index
    %c0_220 = arith.constant 0 : index
    %c0_221 = arith.constant 0 : index
    %190 = vector.load %arg4[%c7_219, %c0_220, %c0_221] : memref<9x8x8xbf16, #tpu.memory_space<vmem>>, vector<1x8x8xbf16>
    %191 = vector.shape_cast %190 : vector<1x8x8xbf16> to vector<8x8xbf16>
    %cst_222 = arith.constant dense<0.000000e+00> : vector<128x8xf32>
    %192 = tpu.matmul %189, %191, %cst_222 {dimension_numbers = #tpu.dot_dimension_numbers<[1], [0], [0], [1], [0, 0, 1, 1], [], []>} : vector<128x8xbf16>, vector<8x8xbf16>, vector<128x8xf32> -> vector<128x8xf32>
    %193 = arith.addf %187, %192 : vector<128x8xf32>
    %c2_223 = arith.constant 2 : index
    %c2_224 = arith.constant 2 : index
    %c0_225 = arith.constant 0 : index
    %194 = vector.load %arg9[%c2_223, %c2_224, %c0_225] : memref<18x18x8xbf16, #tpu.memory_space<vmem>>, vector<8x16x8xbf16>
    %195 = vector.shape_cast %194 : vector<8x16x8xbf16> to vector<128x8xbf16>
    %c8_226 = arith.constant 8 : index
    %c0_227 = arith.constant 0 : index
    %c0_228 = arith.constant 0 : index
    %196 = vector.load %arg4[%c8_226, %c0_227, %c0_228] : memref<9x8x8xbf16, #tpu.memory_space<vmem>>, vector<1x8x8xbf16>
    %197 = vector.shape_cast %196 : vector<1x8x8xbf16> to vector<8x8xbf16>
    %cst_229 = arith.constant dense<0.000000e+00> : vector<128x8xf32>
    %198 = tpu.matmul %195, %197, %cst_229 {dimension_numbers = #tpu.dot_dimension_numbers<[1], [0], [0], [1], [0, 0, 1, 1], [], []>} : vector<128x8xbf16>, vector<8x8xbf16>, vector<128x8xf32> -> vector<128x8xf32>
    %199 = arith.addf %193, %198 : vector<128x8xf32>
    %c0_230 = arith.constant 0 : index
    %c0_231 = arith.constant 0 : index
    %c0_232 = arith.constant 0 : index
    %c0_233 = arith.constant 0 : index
    %200 = vector.load %arg1[%c0_230, %c0_231, %c0_232, %c0_233] : memref<1x16x16x4xbf16, #tpu.memory_space<vmem>>, vector<1x8x16x4xbf16>
    %201 = vector.shape_cast %200 : vector<1x8x16x4xbf16> to vector<8x16x4xbf16>
    %202 = vector.shape_cast %201 : vector<8x16x4xbf16> to vector<128x4xbf16>
    %c0_234 = arith.constant 0 : index
    %c0_235 = arith.constant 0 : index
    %203 = vector.load %arg6[%c0_234, %c0_235] : memref<4x8xbf16, #tpu.memory_space<vmem>>, vector<4x8xbf16>
    %cst_236 = arith.constant dense<0.000000e+00> : vector<128x8xf32>
    %204 = tpu.matmul %202, %203, %cst_236 {dimension_numbers = #tpu.dot_dimension_numbers<[1], [0], [0], [1], [0, 0, 1, 1], [], []>} : vector<128x4xbf16>, vector<4x8xbf16>, vector<128x8xf32> -> vector<128x8xf32>
    %205 = arith.addf %199, %204 : vector<128x8xf32>
    %c0_237 = arith.constant 0 : index
    %c0_238 = arith.constant 0 : index
    %206 = vector.load %arg5[%c0_237, %c0_238] : memref<1x8xf32, #tpu.memory_space<vmem>>, vector<1x8xf32>
    %207 = vector.broadcast %206 : vector<1x8xf32> to vector<128x8xf32>
    %208 = arith.addf %205, %207 : vector<128x8xf32>
    %cst_239 = arith.constant 0.000000e+00 : f32
    %209 = vector.broadcast %cst_239 : f32 to vector<128x8xf32>
    %210 = arith.maximumf %208, %209 : vector<128x8xf32>
    %211 = vector.shape_cast %210 : vector<128x8xf32> to vector<8x16x8xf32>
    %212 = arith.truncf %211 : vector<8x16x8xf32> to vector<8x16x8xbf16>
    %c0_240 = arith.constant 0 : index
    %c0_241 = arith.constant 0 : index
    %c0_242 = arith.constant 0 : index
    %c0_243 = arith.constant 0 : index
    %213 = vector.load %arg7[%c0_240, %c0_241, %c0_242, %c0_243] : memref<1x16x16x8xbf16, #tpu.memory_space<vmem>>, vector<1x8x16x8xbf16>
    %214 = vector.shape_cast %213 : vector<1x8x16x8xbf16> to vector<8x16x8xbf16>
    %215 = vector.shape_cast %212 : vector<8x16x8xbf16> to vector<1x8x16x8xbf16>
    tpu.vector_store %arg7[%c0_240, %c0_241, %c0_242, %c0_243], %215 {strides = array<i32>} : memref<1x16x16x8xbf16, #tpu.memory_space<vmem>>, vector<1x8x16x8xbf16>,
    %cst_244 = arith.constant 0.000000e+00 : f32
    %216 = vector.broadcast %cst_244 : f32 to vector<128x8xf32>
    %c8_245 = arith.constant 8 : index
    %c0_246 = arith.constant 0 : index
    %c0_247 = arith.constant 0 : index
    %217 = vector.load %arg9[%c8_245, %c0_246, %c0_247] : memref<18x18x8xbf16, #tpu.memory_space<vmem>>, vector<8x16x8xbf16>
    %218 = vector.shape_cast %217 : vector<8x16x8xbf16> to vector<128x8xbf16>
    %c0_248 = arith.constant 0 : index
    %c0_249 = arith.constant 0 : index
    %c0_250 = arith.constant 0 : index
    %219 = vector.load %arg4[%c0_248, %c0_249, %c0_250] : memref<9x8x8xbf16, #tpu.memory_space<vmem>>, vector<1x8x8xbf16>
    %220 = vector.shape_cast %219 : vector<1x8x8xbf16> to vector<8x8xbf16>
    %cst_251 = arith.constant dense<0.000000e+00> : vector<128x8xf32>
    %221 = tpu.matmul %218, %220, %cst_251 {dimension_numbers = #tpu.dot_dimension_numbers<[1], [0], [0], [1], [0, 0, 1, 1], [], []>} : vector<128x8xbf16>, vector<8x8xbf16>, vector<128x8xf32> -> vector<128x8xf32>
    %222 = arith.addf %216, %221 : vector<128x8xf32>
    %c8_252 = arith.constant 8 : index
    %c1_253 = arith.constant 1 : index
    %c0_254 = arith.constant 0 : index
    %223 = vector.load %arg9[%c8_252, %c1_253, %c0_254] : memref<18x18x8xbf16, #tpu.memory_space<vmem>>, vector<8x16x8xbf16>
    %224 = vector.shape_cast %223 : vector<8x16x8xbf16> to vector<128x8xbf16>
    %c1_255 = arith.constant 1 : index
    %c0_256 = arith.constant 0 : index
    %c0_257 = arith.constant 0 : index
    %225 = vector.load %arg4[%c1_255, %c0_256, %c0_257] : memref<9x8x8xbf16, #tpu.memory_space<vmem>>, vector<1x8x8xbf16>
    %226 = vector.shape_cast %225 : vector<1x8x8xbf16> to vector<8x8xbf16>
    %cst_258 = arith.constant dense<0.000000e+00> : vector<128x8xf32>
    %227 = tpu.matmul %224, %226, %cst_258 {dimension_numbers = #tpu.dot_dimension_numbers<[1], [0], [0], [1], [0, 0, 1, 1], [], []>} : vector<128x8xbf16>, vector<8x8xbf16>, vector<128x8xf32> -> vector<128x8xf32>
    %228 = arith.addf %222, %227 : vector<128x8xf32>
    %c8_259 = arith.constant 8 : index
    %c2_260 = arith.constant 2 : index
    %c0_261 = arith.constant 0 : index
    %229 = vector.load %arg9[%c8_259, %c2_260, %c0_261] : memref<18x18x8xbf16, #tpu.memory_space<vmem>>, vector<8x16x8xbf16>
    %230 = vector.shape_cast %229 : vector<8x16x8xbf16> to vector<128x8xbf16>
    %c2_262 = arith.constant 2 : index
    %c0_263 = arith.constant 0 : index
    %c0_264 = arith.constant 0 : index
    %231 = vector.load %arg4[%c2_262, %c0_263, %c0_264] : memref<9x8x8xbf16, #tpu.memory_space<vmem>>, vector<1x8x8xbf16>
    %232 = vector.shape_cast %231 : vector<1x8x8xbf16> to vector<8x8xbf16>
    %cst_265 = arith.constant dense<0.000000e+00> : vector<128x8xf32>
    %233 = tpu.matmul %230, %232, %cst_265 {dimension_numbers = #tpu.dot_dimension_numbers<[1], [0], [0], [1], [0, 0, 1, 1], [], []>} : vector<128x8xbf16>, vector<8x8xbf16>, vector<128x8xf32> -> vector<128x8xf32>
    %234 = arith.addf %228, %233 : vector<128x8xf32>
    %c9_266 = arith.constant 9 : index
    %c0_267 = arith.constant 0 : index
    %c0_268 = arith.constant 0 : index
    %235 = vector.load %arg9[%c9_266, %c0_267, %c0_268] : memref<18x18x8xbf16, #tpu.memory_space<vmem>>, vector<8x16x8xbf16>
    %236 = vector.shape_cast %235 : vector<8x16x8xbf16> to vector<128x8xbf16>
    %c3_269 = arith.constant 3 : index
    %c0_270 = arith.constant 0 : index
    %c0_271 = arith.constant 0 : index
    %237 = vector.load %arg4[%c3_269, %c0_270, %c0_271] : memref<9x8x8xbf16, #tpu.memory_space<vmem>>, vector<1x8x8xbf16>
    %238 = vector.shape_cast %237 : vector<1x8x8xbf16> to vector<8x8xbf16>
    %cst_272 = arith.constant dense<0.000000e+00> : vector<128x8xf32>
    %239 = tpu.matmul %236, %238, %cst_272 {dimension_numbers = #tpu.dot_dimension_numbers<[1], [0], [0], [1], [0, 0, 1, 1], [], []>} : vector<128x8xbf16>, vector<8x8xbf16>, vector<128x8xf32> -> vector<128x8xf32>
    %240 = arith.addf %234, %239 : vector<128x8xf32>
    %c9_273 = arith.constant 9 : index
    %c1_274 = arith.constant 1 : index
    %c0_275 = arith.constant 0 : index
    %241 = vector.load %arg9[%c9_273, %c1_274, %c0_275] : memref<18x18x8xbf16, #tpu.memory_space<vmem>>, vector<8x16x8xbf16>
    %242 = vector.shape_cast %241 : vector<8x16x8xbf16> to vector<128x8xbf16>
    %c4_276 = arith.constant 4 : index
    %c0_277 = arith.constant 0 : index
    %c0_278 = arith.constant 0 : index
    %243 = vector.load %arg4[%c4_276, %c0_277, %c0_278] : memref<9x8x8xbf16, #tpu.memory_space<vmem>>, vector<1x8x8xbf16>
    %244 = vector.shape_cast %243 : vector<1x8x8xbf16> to vector<8x8xbf16>
    %cst_279 = arith.constant dense<0.000000e+00> : vector<128x8xf32>
    %245 = tpu.matmul %242, %244, %cst_279 {dimension_numbers = #tpu.dot_dimension_numbers<[1], [0], [0], [1], [0, 0, 1, 1], [], []>} : vector<128x8xbf16>, vector<8x8xbf16>, vector<128x8xf32> -> vector<128x8xf32>
    %246 = arith.addf %240, %245 : vector<128x8xf32>
    %c9_280 = arith.constant 9 : index
    %c2_281 = arith.constant 2 : index
    %c0_282 = arith.constant 0 : index
    %247 = vector.load %arg9[%c9_280, %c2_281, %c0_282] : memref<18x18x8xbf16, #tpu.memory_space<vmem>>, vector<8x16x8xbf16>
    %248 = vector.shape_cast %247 : vector<8x16x8xbf16> to vector<128x8xbf16>
    %c5_283 = arith.constant 5 : index
    %c0_284 = arith.constant 0 : index
    %c0_285 = arith.constant 0 : index
    %249 = vector.load %arg4[%c5_283, %c0_284, %c0_285] : memref<9x8x8xbf16, #tpu.memory_space<vmem>>, vector<1x8x8xbf16>
    %250 = vector.shape_cast %249 : vector<1x8x8xbf16> to vector<8x8xbf16>
    %cst_286 = arith.constant dense<0.000000e+00> : vector<128x8xf32>
    %251 = tpu.matmul %248, %250, %cst_286 {dimension_numbers = #tpu.dot_dimension_numbers<[1], [0], [0], [1], [0, 0, 1, 1], [], []>} : vector<128x8xbf16>, vector<8x8xbf16>, vector<128x8xf32> -> vector<128x8xf32>
    %252 = arith.addf %246, %251 : vector<128x8xf32>
    %c10_287 = arith.constant 10 : index
    %c0_288 = arith.constant 0 : index
    %c0_289 = arith.constant 0 : index
    %253 = vector.load %arg9[%c10_287, %c0_288, %c0_289] : memref<18x18x8xbf16, #tpu.memory_space<vmem>>, vector<8x16x8xbf16>
    %254 = vector.shape_cast %253 : vector<8x16x8xbf16> to vector<128x8xbf16>
    %c6_290 = arith.constant 6 : index
    %c0_291 = arith.constant 0 : index
    %c0_292 = arith.constant 0 : index
    %255 = vector.load %arg4[%c6_290, %c0_291, %c0_292] : memref<9x8x8xbf16, #tpu.memory_space<vmem>>, vector<1x8x8xbf16>
    %256 = vector.shape_cast %255 : vector<1x8x8xbf16> to vector<8x8xbf16>
    %cst_293 = arith.constant dense<0.000000e+00> : vector<128x8xf32>
    %257 = tpu.matmul %254, %256, %cst_293 {dimension_numbers = #tpu.dot_dimension_numbers<[1], [0], [0], [1], [0, 0, 1, 1], [], []>} : vector<128x8xbf16>, vector<8x8xbf16>, vector<128x8xf32> -> vector<128x8xf32>
    %258 = arith.addf %252, %257 : vector<128x8xf32>
    %c10_294 = arith.constant 10 : index
    %c1_295 = arith.constant 1 : index
    %c0_296 = arith.constant 0 : index
    %259 = vector.load %arg9[%c10_294, %c1_295, %c0_296] : memref<18x18x8xbf16, #tpu.memory_space<vmem>>, vector<8x16x8xbf16>
    %260 = vector.shape_cast %259 : vector<8x16x8xbf16> to vector<128x8xbf16>
    %c7_297 = arith.constant 7 : index
    %c0_298 = arith.constant 0 : index
    %c0_299 = arith.constant 0 : index
    %261 = vector.load %arg4[%c7_297, %c0_298, %c0_299] : memref<9x8x8xbf16, #tpu.memory_space<vmem>>, vector<1x8x8xbf16>
    %262 = vector.shape_cast %261 : vector<1x8x8xbf16> to vector<8x8xbf16>
    %cst_300 = arith.constant dense<0.000000e+00> : vector<128x8xf32>
    %263 = tpu.matmul %260, %262, %cst_300 {dimension_numbers = #tpu.dot_dimension_numbers<[1], [0], [0], [1], [0, 0, 1, 1], [], []>} : vector<128x8xbf16>, vector<8x8xbf16>, vector<128x8xf32> -> vector<128x8xf32>
    %264 = arith.addf %258, %263 : vector<128x8xf32>
    %c10_301 = arith.constant 10 : index
    %c2_302 = arith.constant 2 : index
    %c0_303 = arith.constant 0 : index
    %265 = vector.load %arg9[%c10_301, %c2_302, %c0_303] : memref<18x18x8xbf16, #tpu.memory_space<vmem>>, vector<8x16x8xbf16>
    %266 = vector.shape_cast %265 : vector<8x16x8xbf16> to vector<128x8xbf16>
    %c8_304 = arith.constant 8 : index
    %c0_305 = arith.constant 0 : index
    %c0_306 = arith.constant 0 : index
    %267 = vector.load %arg4[%c8_304, %c0_305, %c0_306] : memref<9x8x8xbf16, #tpu.memory_space<vmem>>, vector<1x8x8xbf16>
    %268 = vector.shape_cast %267 : vector<1x8x8xbf16> to vector<8x8xbf16>
    %cst_307 = arith.constant dense<0.000000e+00> : vector<128x8xf32>
    %269 = tpu.matmul %266, %268, %cst_307 {dimension_numbers = #tpu.dot_dimension_numbers<[1], [0], [0], [1], [0, 0, 1, 1], [], []>} : vector<128x8xbf16>, vector<8x8xbf16>, vector<128x8xf32> -> vector<128x8xf32>
    %270 = arith.addf %264, %269 : vector<128x8xf32>
    %c0_308 = arith.constant 0 : index
    %c8_309 = arith.constant 8 : index
    %c0_310 = arith.constant 0 : index
    %c0_311 = arith.constant 0 : index
    %271 = vector.load %arg1[%c0_308, %c8_309, %c0_310, %c0_311] : memref<1x16x16x4xbf16, #tpu.memory_space<vmem>>, vector<1x8x16x4xbf16>
    %272 = vector.shape_cast %271 : vector<1x8x16x4xbf16> to vector<8x16x4xbf16>
    %273 = vector.shape_cast %272 : vector<8x16x4xbf16> to vector<128x4xbf16>
    %c0_312 = arith.constant 0 : index
    %c0_313 = arith.constant 0 : index
    %274 = vector.load %arg6[%c0_312, %c0_313] : memref<4x8xbf16, #tpu.memory_space<vmem>>, vector<4x8xbf16>
    %cst_314 = arith.constant dense<0.000000e+00> : vector<128x8xf32>
    %275 = tpu.matmul %273, %274, %cst_314 {dimension_numbers = #tpu.dot_dimension_numbers<[1], [0], [0], [1], [0, 0, 1, 1], [], []>} : vector<128x4xbf16>, vector<4x8xbf16>, vector<128x8xf32> -> vector<128x8xf32>
    %276 = arith.addf %270, %275 : vector<128x8xf32>
    %c0_315 = arith.constant 0 : index
    %c0_316 = arith.constant 0 : index
    %277 = vector.load %arg5[%c0_315, %c0_316] : memref<1x8xf32, #tpu.memory_space<vmem>>, vector<1x8xf32>
    %278 = vector.broadcast %277 : vector<1x8xf32> to vector<128x8xf32>
    %279 = arith.addf %276, %278 : vector<128x8xf32>
    %cst_317 = arith.constant 0.000000e+00 : f32
    %280 = vector.broadcast %cst_317 : f32 to vector<128x8xf32>
    %281 = arith.maximumf %279, %280 : vector<128x8xf32>
    %282 = vector.shape_cast %281 : vector<128x8xf32> to vector<8x16x8xf32>
    %283 = arith.truncf %282 : vector<8x16x8xf32> to vector<8x16x8xbf16>
    %c0_318 = arith.constant 0 : index
    %c8_319 = arith.constant 8 : index
    %c0_320 = arith.constant 0 : index
    %c0_321 = arith.constant 0 : index
    %284 = vector.load %arg7[%c0_318, %c8_319, %c0_320, %c0_321] : memref<1x16x16x8xbf16, #tpu.memory_space<vmem>>, vector<1x8x16x8xbf16>
    %285 = vector.shape_cast %284 : vector<1x8x16x8xbf16> to vector<8x16x8xbf16>
    %286 = vector.shape_cast %283 : vector<8x16x8xbf16> to vector<1x8x16x8xbf16>
    tpu.vector_store %arg7[%c0_318, %c8_319, %c0_320, %c0_321], %286 {strides = array<i32>} : memref<1x16x16x8xbf16, #tpu.memory_space<vmem>>, vector<1x8x16x8xbf16>,
    return
  }
  func.func @transform_0(%arg0: i32) -> (i32, i32, i32, i32) {
    %c0_i32 = arith.constant 0 : i32
    %c0_i32_0 = arith.constant 0 : i32
    %c0_i32_1 = arith.constant 0 : i32
    %c0_i32_2 = arith.constant 0 : i32
    return %arg0, %c0_i32, %c0_i32_0, %c0_i32_1 : i32, i32, i32, i32
  }
  func.func @transform_1(%arg0: i32) -> (i32, i32, i32) {
    %c0_i32 = arith.constant 0 : i32
    %c0_i32_0 = arith.constant 0 : i32
    %c0_i32_1 = arith.constant 0 : i32
    %c0_i32_2 = arith.constant 0 : i32
    return %c0_i32, %c0_i32_0, %c0_i32_1 : i32, i32, i32
  }
  func.func @transform_2(%arg0: i32) -> (i32, i32) {
    %c0_i32 = arith.constant 0 : i32
    %c0_i32_0 = arith.constant 0 : i32
    %c0_i32_1 = arith.constant 0 : i32
    return %c0_i32, %c0_i32_0 : i32, i32
  }
  func.func @transform_3(%arg0: i32) -> (i32, i32, i32) {
    %c0_i32 = arith.constant 0 : i32
    %c0_i32_0 = arith.constant 0 : i32
    %c0_i32_1 = arith.constant 0 : i32
    %c0_i32_2 = arith.constant 0 : i32
    return %c0_i32, %c0_i32_0, %c0_i32_1 : i32, i32, i32
  }
  func.func @transform_4(%arg0: i32) -> (i32, i32) {
    %c0_i32 = arith.constant 0 : i32
    %c0_i32_0 = arith.constant 0 : i32
    %c0_i32_1 = arith.constant 0 : i32
    return %c0_i32, %c0_i32_0 : i32, i32
  }
  func.func @transform_5(%arg0: i32) -> (i32, i32) {
    %c0_i32 = arith.constant 0 : i32
    %c0_i32_0 = arith.constant 0 : i32
    %c0_i32_1 = arith.constant 0 : i32
    return %c0_i32, %c0_i32_0 : i32, i32
  }
  func.func @transform_6(%arg0: i32) -> (i32, i32, i32, i32) {
    %c0_i32 = arith.constant 0 : i32
    %c0_i32_0 = arith.constant 0 : i32
    %c0_i32_1 = arith.constant 0 : i32
    %c0_i32_2 = arith.constant 0 : i32
    return %arg0, %c0_i32, %c0_i32_0, %c0_i32_1 : i32, i32, i32, i32
  }
}

</mosaic_0001>

<llo_original>
// kernel: tpu_custom_call.1
$region0: #{tpu_custom_call.1}
  #allocation0 [shape = 'u32[]', space=smem, size = 0x4, offset = 0x4, fixed_abs, tag = 'smem constant byte address 0x4 - core index']
  #allocation1 [shape = 'u32[144,128]{1,0:T(1,128)}', space=vmem, size = 0x12000, scoped, tag = 'internal scratch']
  #allocation2 [shape = 'bf16[18,18,4]{2,1,0:T(8,128)(2,1)}', space=vmem, size = 0x1b000, scoped, tag = 'scratch operand']
  #allocation3 [shape = 'bf16[18,18,8]{2,1,0:T(8,128)(2,1)}', space=vmem, size = 0x1b000, scoped, tag = 'scratch operand']
  %s0 = inlined_call_operand.vmem [shape: bf16[2,16,16,4], index: 0, kind: input, shape index: {}]
  %s1 = inlined_call_operand.vmem [shape: bf16[9,4,8], index: 1, kind: input, shape index: {}]
  %s2 = inlined_call_operand.vmem [shape: f32[1,8], index: 2, kind: input, shape index: {}]
  %s3 = inlined_call_operand.vmem [shape: bf16[9,8,8], index: 3, kind: input, shape index: {}]
  %s4 = inlined_call_operand.vmem [shape: f32[1,8], index: 4, kind: input, shape index: {}]
  %s5 = inlined_call_operand.vmem [shape: bf16[4,8], index: 5, kind: input, shape index: {}]
  %s6 = inlined_call_operand.vmem [shape: bf16[2,16,16,8], index: 6, kind: output, shape index: {}]
  %s7 = sld [smem:[#allocation0]]
  $region57: #{tpu_custom_call.1} parent=0
    _
  %s9 = ssub.s32 1, %s7
  %s10 = scalar_select 0, %s9, %s7
  loop: start=0, step=1, limit=4
  $region2: #{tpu_custom_call.1} parent=0 // loop_pre_header
    _
  $region3: #{tpu_custom_call.1} parent=0 // loop_header
    %s12 = sphi 0, %s16
    %p13 = scmp.ge.s32.totalorder %s12, 4
    %s22 = sphi 0, %s24
    %s25 = sphi 0, %s22
    %s26 = sphi 0, %s25
    %s42 = sphi 0, %s26
    %s46 = sphi 0, %s46
    %s48 = sphi 0, %s46
    %s49 = sphi 0, %s48
    %s63 = sphi 0, %s49
    %s67 = sphi 0, %s67
    %s69 = sphi 0, %s67
    %s70 = sphi 0, %s69
    %s84 = sphi 0, %s70
    %s88 = sphi 0, %s88
    %s90 = sphi 0, %s88
    %s91 = sphi 0, %s90
    %s105 = sphi 0, %s91
    %s109 = sphi 0, %s109
    %s111 = sphi 0, %s109
    %s112 = sphi 0, %s111
    %s126 = sphi 0, %s112
    %s130 = sphi 0, %s130
    %s132 = sphi 0, %s130
    %s133 = sphi 0, %s132
    %s147 = sphi 0, %s133
    %s153 = sphi 0, %s155
    %s156 = sphi 0, %s153
    %s157 = sphi 0, %s156
    %s173 = sphi 0, %s157
  $region4: #{tpu_custom_call.1} parent=0 // loop_header_branch
    %15 = sbr.rel (%p13) target = $region8
  $region5: #{tpu_custom_call.1} parent=0 // loop_body
    %s17 = ssub.s32 %s12, 1
    %s18 = ssub.s32 %s12, 2
    %s19 = sadd.s32 %s12, 1
    %s20 = ssub.s32 %s12, %s19
    %p21 = scmp.eq.s32.totalorder %s20, 0
    %s23 = sadd.s32 %s22, 1
    %s24 = scalar_select %p21, %s22, %s23
    %p27 = pneg %p21
    %p28 = scmp.eq.s32.totalorder %s12, 1
    %p29 = por %p27, %p28
    %p30 = scmp.ne.s32.totalorder %s22, %s25
    %p31 = scmp.eq.s32.totalorder %s12, 0
    %p32 = por %p30, %p31
    %p33 = scmp.ne.s32.totalorder %s22, %s25
    %p34 = scmp.eq.s32.totalorder %s17, 1
    %p35 = por %p33, %p34
    %p36 = scmp.ne.s32.totalorder %s25, %s26
    %p37 = scmp.eq.s32.totalorder %s17, 0
    %p38 = por %p36, %p37
    %p39 = scmp.ne.s32.totalorder %s25, %s26
    %p40 = scmp.eq.s32.totalorder %s18, 1
    %p41 = por %p39, %p40
    %p43 = scmp.ne.s32.totalorder %s26, %s42
    %p44 = scmp.eq.s32.totalorder %s18, 0
    %p45 = por %p43, %p44
    %s47 = sadd.s32 %s46, 1
    %p50 = scmp.eq.s32.totalorder %s12, 1
    %p51 = scmp.ne.s32.totalorder %s46, %s48
    %p52 = scmp.eq.s32.totalorder %s12, 0
    %p53 = por %p51, %p52
    %p54 = scmp.ne.s32.totalorder %s46, %s48
    %p55 = scmp.eq.s32.totalorder %s17, 1
    %p56 = por %p54, %p55
    %p57 = scmp.ne.s32.totalorder %s48, %s49
    %p58 = scmp.eq.s32.totalorder %s17, 0
    %p59 = por %p57, %p58
    %p60 = scmp.ne.s32.totalorder %s48, %s49
    %p61 = scmp.eq.s32.totalorder %s18, 1
    %p62 = por %p60, %p61
    %p64 = scmp.ne.s32.totalorder %s49, %s63
    %p65 = scmp.eq.s32.totalorder %s18, 0
    %p66 = por %p64, %p65
    %s68 = sadd.s32 %s67, 1
    %p71 = scmp.eq.s32.totalorder %s12, 1
    %p72 = scmp.ne.s32.totalorder %s67, %s69
    %p73 = scmp.eq.s32.totalorder %s12, 0
    %p74 = por %p72, %p73
    %p75 = scmp.ne.s32.totalorder %s67, %s69
    %p76 = scmp.eq.s32.totalorder %s17, 1
    %p77 = por %p75, %p76
    %p78 = scmp.ne.s32.totalorder %s69, %s70
    %p79 = scmp.eq.s32.totalorder %s17, 0
    %p80 = por %p78, %p79
    %p81 = scmp.ne.s32.totalorder %s69, %s70
    %p82 = scmp.eq.s32.totalorder %s18, 1
    %p83 = por %p81, %p82
    %p85 = scmp.ne.s32.totalorder %s70, %s84
    %p86 = scmp.eq.s32.totalorder %s18, 0
    %p87 = por %p85, %p86
    %s89 = sadd.s32 %s88, 1
    %p92 = scmp.eq.s32.totalorder %s12, 1
    %p93 = scmp.ne.s32.totalorder %s88, %s90
    %p94 = scmp.eq.s32.totalorder %s12, 0
    %p95 = por %p93, %p94
    %p96 = scmp.ne.s32.totalorder %s88, %s90
    %p97 = scmp.eq.s32.totalorder %s17, 1
    %p98 = por %p96, %p97
    %p99 = scmp.ne.s32.totalorder %s90, %s91
    %p100 = scmp.eq.s32.totalorder %s17, 0
    %p101 = por %p99, %p100
    %p102 = scmp.ne.s32.totalorder %s90, %s91
    %p103 = scmp.eq.s32.totalorder %s18, 1
    %p104 = por %p102, %p103
    %p106 = scmp.ne.s32.totalorder %s91, %s105
    %p107 = scmp.eq.s32.totalorder %s18, 0
    %p108 = por %p106, %p107
    %s110 = sadd.s32 %s109, 1
    %p113 = scmp.eq.s32.totalorder %s12, 1
    %p114 = scmp.ne.s32.totalorder %s109, %s111
    %p115 = scmp.eq.s32.totalorder %s12, 0
    %p116 = por %p114, %p115
    %p117 = scmp.ne.s32.totalorder %s109, %s111
    %p118 = scmp.eq.s32.totalorder %s17, 1
    %p119 = por %p117, %p118
    %p120 = scmp.ne.s32.totalorder %s111, %s112
    %p121 = scmp.eq.s32.totalorder %s17, 0
    %p122 = por %p120, %p121
    %p123 = scmp.ne.s32.totalorder %s111, %s112
    %p124 = scmp.eq.s32.totalorder %s18, 1
    %p125 = por %p123, %p124
    %p127 = scmp.ne.s32.totalorder %s112, %s126
    %p128 = scmp.eq.s32.totalorder %s18, 0
    %p129 = por %p127, %p128
    %s131 = sadd.s32 %s130, 1
    %p134 = scmp.eq.s32.totalorder %s12, 1
    %p135 = scmp.ne.s32.totalorder %s130, %s132
    %p136 = scmp.eq.s32.totalorder %s12, 0
    %p137 = por %p135, %p136
    %p138 = scmp.ne.s32.totalorder %s130, %s132
    %p139 = scmp.eq.s32.totalorder %s17, 1
    %p140 = por %p138, %p139
    %p141 = scmp.ne.s32.totalorder %s132, %s133
    %p142 = scmp.eq.s32.totalorder %s17, 0
    %p143 = por %p141, %p142
    %p144 = scmp.ne.s32.totalorder %s132, %s133
    %p145 = scmp.eq.s32.totalorder %s18, 1
    %p146 = por %p144, %p145
    %p148 = scmp.ne.s32.totalorder %s133, %s147
    %p149 = scmp.eq.s32.totalorder %s18, 0
    %p150 = por %p148, %p149
    %s151 = ssub.s32 %s12, %s19
    %p152 = scmp.eq.s32.totalorder %s151, 0
    %s154 = sadd.s32 %s153, 1
    %s155 = scalar_select %p152, %s153, %s154
    %p158 = pneg %p152
    %p159 = scmp.eq.s32.totalorder %s12, 1
    %p160 = por %p158, %p159
    %p161 = scmp.ne.s32.totalorder %s153, %s156
    %p162 = scmp.eq.s32.totalorder %s12, 0
    %p163 = por %p161, %p162
    %p164 = scmp.ne.s32.totalorder %s153, %s156
    %p165 = scmp.eq.s32.totalorder %s17, 1
    %p166 = por %p164, %p165
    %p167 = scmp.ne.s32.totalorder %s156, %s157
    %p168 = scmp.eq.s32.totalorder %s17, 0
    %p169 = por %p167, %p168
    %p170 = scmp.ne.s32.totalorder %s156, %s157
    %p171 = scmp.eq.s32.totalorder %s18, 1
    %p172 = por %p170, %p171
    %p174 = scmp.ne.s32.totalorder %s157, %s173
    %p175 = scmp.eq.s32.totalorder %s18, 0
    %p176 = por %p174, %p175
    %p177 = scmp.le.s32.totalorder 1, %s12
    %p178 = scmp.lt.s32.totalorder %s12, 3
    %p179 = pnand %p177, %p178
    %p180 = pneg %p179
    // Predicated region
    $region9: #{tpu_custom_call.1} parent=5 // pred_check
      _
    $region10: #{tpu_custom_call.1} parent=5 // pred_check_branch
      %182 = sbr.rel (%p179) target = $region12
    $region11: #{tpu_custom_call.1} parent=5 // pred_region
      %s183 = ssub.s32 %s12, 1
      // Predicated region
      $region13: #{tpu_custom_call.1} parent=11 // pred_check
        %p184 = pneg %p59
      $region14: #{tpu_custom_call.1} parent=11 // pred_check_branch
        %186 = sbr.rel (%p184) target = $region16
      $region15: #{tpu_custom_call.1} parent=11 // pred_region
        _
      $region16: #{tpu_custom_call.1} parent=11 // pred_fallthru
        _
      // Predicated region
      $region17: #{tpu_custom_call.1} parent=11 // pred_check
        %p187 = pneg %p80
      $region18: #{tpu_custom_call.1} parent=11 // pred_check_branch
        %189 = sbr.rel (%p187) target = $region20
      $region19: #{tpu_custom_call.1} parent=11 // pred_region
        _
      $region20: #{tpu_custom_call.1} parent=11 // pred_fallthru
        _
      // Predicated region
      $region21: #{tpu_custom_call.1} parent=11 // pred_check
        %p190 = pneg %p101
      $region22: #{tpu_custom_call.1} parent=11 // pred_check_branch
        %192 = sbr.rel (%p190) target = $region24
      $region23: #{tpu_custom_call.1} parent=11 // pred_region
        _
      $region24: #{tpu_custom_call.1} parent=11 // pred_fallthru
        _
      // Predicated region
      $region25: #{tpu_custom_call.1} parent=11 // pred_check
        %p193 = pneg %p122
      $region26: #{tpu_custom_call.1} parent=11 // pred_check_branch
        %195 = sbr.rel (%p193) target = $region28
      $region27: #{tpu_custom_call.1} parent=11 // pred_region
        _
      $region28: #{tpu_custom_call.1} parent=11 // pred_fallthru
        _
      // Predicated region
      $region29: #{tpu_custom_call.1} parent=11 // pred_check
        %p196 = pneg %p143
      $region30: #{tpu_custom_call.1} parent=11 // pred_check_branch
        %198 = sbr.rel (%p196) target = $region32
      $region31: #{tpu_custom_call.1} parent=11 // pred_region
        _
      $region32: #{tpu_custom_call.1} parent=11 // pred_fallthru
        _
    $region12: #{tpu_custom_call.1} parent=5 // pred_fallthru
      _
    %p199 = scmp.lt.s32.totalorder %s12, 2
    // Predicated region
    $region33: #{tpu_custom_call.1} parent=5 // pred_check
      %p200 = pneg %p199
    $region34: #{tpu_custom_call.1} parent=5 // pred_check_branch
      %202 = sbr.rel (%p200) target = $region36
    $region35: #{tpu_custom_call.1} parent=5 // pred_region
      // Predicated region
      $region37: #{tpu_custom_call.1} parent=35 // pred_check
        %p203 = pneg %p32
      $region38: #{tpu_custom_call.1} parent=35 // pred_check_branch
        %205 = sbr.rel (%p203) target = $region40
      $region39: #{tpu_custom_call.1} parent=35 // pred_region
        %p206 = scmp.lt.s32.totalorder %s12, 1
        %s207 = scalar_select %p206, %s12, 1
        %s208 = smul.addr %s207, 32
        %s209 = smul.addr %s208, 4
        %s210 = scalar_lea.vmem %s0, %s209
      $region40: #{tpu_custom_call.1} parent=35 // pred_fallthru
        _
    $region36: #{tpu_custom_call.1} parent=5 // pred_fallthru
      _
    %p211 = scmp.le.s32.totalorder 1, %s12
    %p212 = scmp.lt.s32.totalorder %s12, 3
    %p213 = pnand %p211, %p212
    %p214 = pneg %p213
    // Predicated region
    $region41: #{tpu_custom_call.1} parent=5 // pred_check
      _
    $region42: #{tpu_custom_call.1} parent=5 // pred_check_branch
      %216 = sbr.rel (%p213) target = $region44
    $region43: #{tpu_custom_call.1} parent=5 // pred_region
      %s217 = ssub.s32 %s12, 1
      %p218 = scmp.lt.s32.totalorder %s17, 1
      %s219 = scalar_select %p218, %s17, 1
      %s220 = smul.addr %s219, 32
      %s221 = smul.addr %s220, 4
      %s222 = scalar_lea.vmem %s0, %s221
      %p223 = pneg %p38
      %p224 = pneg %p35
      %p225 = pneg %p59
      %p226 = pneg %p56
      %p227 = pneg %p80
      %p228 = pneg %p77
      %p229 = pneg %p101
      %p230 = pneg %p98
      %p231 = pneg %p122
      %p232 = pneg %p119
      %p233 = pneg %p143
      %p234 = pneg %p140
      %p235 = pneg %p169
      %p236 = pneg %p166
      %p237 = scmp.lt.s32.totalorder %s17, 1
      %s238 = scalar_select %p237, %s17, 1
      %s239 = smul.addr %s238, 32
      %s240 = smul.addr %s239, 4
      %s241 = scalar_lea.vmem %s6, %s240
      %p242 = scmp.lt.s32.totalorder %s17, 1
      %s243 = scalar_select %p242, %s17, 1
      %s244 = smul.addr %s243, 32
      %s245 = smul.addr %s244, 4
      %s246 = scalar_lea.vmem %s0, %s245
      %p247 = scmp.lt.s32.totalorder %s17, 1
      %s248 = scalar_select %p247, %s17, 1
      %s249 = smul.addr %s248, 32
      %s250 = smul.addr %s249, 4
      %s251 = scalar_lea.vmem %s6, %s250
      %vm253 = vcmask 27648
      %254 = vst.msk [vmem:[#allocation2] sm:$0xf] %vm253, 0
      %255 = vst.msk [vmem:[#allocation2 + $0x4] sm:$0xf] %vm253, 0
      %vm256 = vcmask 24576
      %257 = vst.msk [vmem:[#allocation2 + $0x8] sm:$0x1] %vm256, 0
      %s258 = scalar_lea.vmem [#allocation2], 204
      %259 = vst.msk [vmem:[%s258] sm:$0xf] %vm253, 0
      %260 = vst.msk [vmem:[%s258 + $0x4] sm:$0xf] %vm253, 0
      %261 = vst.msk [vmem:[%s258 + $0x8] sm:$0x1] %vm256, 0
      %vm262 = vcmask 24576
      %vm263 = vsmask.f32 256
      %vm264 = vmand %vm262, %vm263
      %v265 = vld [vmem:[#allocation2] sm:$0x1]
      %v266 = vsel %vm264, 0, %v265
      %267 = vst [vmem:[#allocation2] sm:$0x1] %v266
      %v268 = vld [vmem:[#allocation2 + $0xc] sm:$0x1]
      %v269 = vsel %vm264, 0, %v268
      %270 = vst [vmem:[#allocation2 + $0xc] sm:$0x1] %v269
      %v271 = vld [vmem:[#allocation2 + $0x18] sm:$0x1]
      %v272 = vsel %vm264, 0, %v271
      %273 = vst [vmem:[#allocation2 + $0x18] sm:$0x1] %v272
      %v274 = vld [vmem:[#allocation2 + $0x24] sm:$0x1]
      %v275 = vsel %vm264, 0, %v274
      %276 = vst [vmem:[#allocation2 + $0x24] sm:$0x1] %v275
      %v277 = vld [vmem:[#allocation2 + $0x30] sm:$0x1]
      %v278 = vsel %vm264, 0, %v277
      %279 = vst [vmem:[#allocation2 + $0x30] sm:$0x1] %v278
      %v280 = vld [vmem:[#allocation2 + $0x3c] sm:$0x1]
      %v281 = vsel %vm264, 0, %v280
      %282 = vst [vmem:[#allocation2 + $0x3c] sm:$0x1] %v281
      %v283 = vld [vmem:[#allocation2 + $0x48] sm:$0x1]
      %v284 = vsel %vm264, 0, %v283
      %285 = vst [vmem:[#allocation2 + $0x48] sm:$0x1] %v284
      %v286 = vld [vmem:[#allocation2 + $0x54] sm:$0x1]
      %v287 = vsel %vm264, 0, %v286
      %288 = vst [vmem:[#allocation2 + $0x54] sm:$0x1] %v287
      %v289 = vld [vmem:[#allocation2 + $0x60] sm:$0x1]
      %v290 = vsel %vm264, 0, %v289
      %291 = vst [vmem:[#allocation2 + $0x60] sm:$0x1] %v290
      %v292 = vld [vmem:[#allocation2 + $0x6c] sm:$0x1]
      %v293 = vsel %vm264, 0, %v292
      %294 = vst [vmem:[#allocation2 + $0x6c] sm:$0x1] %v293
      %v295 = vld [vmem:[#allocation2 + $0x78] sm:$0x1]
      %v296 = vsel %vm264, 0, %v295
      %297 = vst [vmem:[#allocation2 + $0x78] sm:$0x1] %v296
      %v298 = vld [vmem:[#allocation2 + $0x84] sm:$0x1]
      %v299 = vsel %vm264, 0, %v298
      %300 = vst [vmem:[#allocation2 + $0x84] sm:$0x1] %v299
      %v301 = vld [vmem:[#allocation2 + $0x90] sm:$0x1]
      %v302 = vsel %vm264, 0, %v301
      %303 = vst [vmem:[#allocation2 + $0x90] sm:$0x1] %v302
      %v304 = vld [vmem:[#allocation2 + $0x9c] sm:$0x1]
      %v305 = vsel %vm264, 0, %v304
      %306 = vst [vmem:[#allocation2 + $0x9c] sm:$0x1] %v305
      %v307 = vld [vmem:[#allocation2 + $0xa8] sm:$0x1]
      %v308 = vsel %vm264, 0, %v307
      %309 = vst [vmem:[#allocation2 + $0xa8] sm:$0x1] %v308
      %v310 = vld [vmem:[#allocation2 + $0xb4] sm:$0x1]
      %v311 = vsel %vm264, 0, %v310
      %312 = vst [vmem:[#allocation2 + $0xb4] sm:$0x1] %v311
      %v313 = vld [vmem:[#allocation2 + $0xc0] sm:$0x1]
      %v314 = vsel %vm264, 0, %v313
      %315 = vst [vmem:[#allocation2 + $0xc0] sm:$0x1] %v314
      %v316 = vld [vmem:[#allocation2 + $0xcc] sm:$0x1]
      %v317 = vsel %vm264, 0, %v316
      %318 = vst [vmem:[#allocation2 + $0xcc] sm:$0x1] %v317
      %vm319 = vsmask.f32 7938
      %vm320 = vmand %vm262, %vm319
      %v321 = vld [vmem:[#allocation2 + $0x8] sm:$0x1]
      %v322 = vsel %vm320, 0, %v321
      %323 = vst [vmem:[#allocation2 + $0x8] sm:$0x1] %v322
      %v324 = vld [vmem:[#allocation2 + $0x14] sm:$0x1]
      %v325 = vsel %vm320, 0, %v324
      %326 = vst [vmem:[#allocation2 + $0x14] sm:$0x1] %v325
      %v327 = vld [vmem:[#allocation2 + $0x20] sm:$0x1]
      %v328 = vsel %vm320, 0, %v327
      %329 = vst [vmem:[#allocation2 + $0x20] sm:$0x1] %v328
      %v330 = vld [vmem:[#allocation2 + $0x2c] sm:$0x1]
      %v331 = vsel %vm320, 0, %v330
      %332 = vst [vmem:[#allocation2 + $0x2c] sm:$0x1] %v331
      %v333 = vld [vmem:[#allocation2 + $0x38] sm:$0x1]
      %v334 = vsel %vm320, 0, %v333
      %335 = vst [vmem:[#allocation2 + $0x38] sm:$0x1] %v334
      %v336 = vld [vmem:[#allocation2 + $0x44] sm:$0x1]
      %v337 = vsel %vm320, 0, %v336
      %338 = vst [vmem:[#allocation2 + $0x44] sm:$0x1] %v337
      %v339 = vld [vmem:[#allocation2 + $0x50] sm:$0x1]
      %v340 = vsel %vm320, 0, %v339
      %341 = vst [vmem:[#allocation2 + $0x50] sm:$0x1] %v340
      %v342 = vld [vmem:[#allocation2 + $0x5c] sm:$0x1]
      %v343 = vsel %vm320, 0, %v342
      %344 = vst [vmem:[#allocation2 + $0x5c] sm:$0x1] %v343
      %v345 = vld [vmem:[#allocation2 + $0x68] sm:$0x1]
      %v346 = vsel %vm320, 0, %v345
      %347 = vst [vmem:[#allocation2 + $0x68] sm:$0x1] %v346
      %v348 = vld [vmem:[#allocation2 + $0x74] sm:$0x1]
      %v349 = vsel %vm320, 0, %v348
      %350 = vst [vmem:[#allocation2 + $0x74] sm:$0x1] %v349
      %v351 = vld [vmem:[#allocation2 + $0x80] sm:$0x1]
      %v352 = vsel %vm320, 0, %v351
      %353 = vst [vmem:[#allocation2 + $0x80] sm:$0x1] %v352
      %v354 = vld [vmem:[#allocation2 + $0x8c] sm:$0x1]
      %v355 = vsel %vm320, 0, %v354
      %356 = vst [vmem:[#allocation2 + $0x8c] sm:$0x1] %v355
      %v357 = vld [vmem:[#allocation2 + $0x98] sm:$0x1]
      %v358 = vsel %vm320, 0, %v357
      %359 = vst [vmem:[#allocation2 + $0x98] sm:$0x1] %v358
      %v360 = vld [vmem:[#allocation2 + $0xa4] sm:$0x1]
      %v361 = vsel %vm320, 0, %v360
      %362 = vst [vmem:[#allocation2 + $0xa4] sm:$0x1] %v361
      %v363 = vld [vmem:[#allocation2 + $0xb0] sm:$0x1]
      %v364 = vsel %vm320, 0, %v363
      %365 = vst [vmem:[#allocation2 + $0xb0] sm:$0x1] %v364
      %v366 = vld [vmem:[#allocation2 + $0xbc] sm:$0x1]
      %v367 = vsel %vm320, 0, %v366
      %368 = vst [vmem:[#allocation2 + $0xbc] sm:$0x1] %v367
      %v369 = vld [vmem:[#allocation2 + $0xc8] sm:$0x1]
      %v370 = vsel %vm320, 0, %v369
      %371 = vst [vmem:[#allocation2 + $0xc8] sm:$0x1] %v370
      %v372 = vld [vmem:[#allocation2 + $0xd4] sm:$0x1]
      %v373 = vsel %vm320, 0, %v372
      %374 = vst [vmem:[#allocation2 + $0xd4] sm:$0x1] %v373
      %v375 = vld [vmem:[%s246] sm:$0xf]
      %v376 = vld [vmem:[%s246 + $0x4] sm:$0xf]
      %v377 = vld [vmem:[%s246 + $0x8] sm:$0xf]
      %v378 = vld [vmem:[%s246 + $0xc] sm:$0xf]
      %v379 = vld [vmem:[%s246 + $0x10] sm:$0xf]
      %v380 = vld [vmem:[%s246 + $0x14] sm:$0xf]
      %v381 = vld [vmem:[%s246 + $0x18] sm:$0xf]
      %v382 = vld [vmem:[%s246 + $0x1c] sm:$0xf]
      %v383 = vld [vmem:[%s246 + $0x20] sm:$0xf]
      %v384 = vld [vmem:[%s246 + $0x24] sm:$0xf]
      %v385 = vld [vmem:[%s246 + $0x28] sm:$0xf]
      %v386 = vld [vmem:[%s246 + $0x2c] sm:$0xf]
      %v387 = vld [vmem:[%s246 + $0x30] sm:$0xf]
      %v388 = vld [vmem:[%s246 + $0x34] sm:$0xf]
      %v389 = vld [vmem:[%s246 + $0x38] sm:$0xf]
      %v390 = vld [vmem:[%s246 + $0x3c] sm:$0xf]
      %v391 = vld [vmem:[%s246 + $0x40] sm:$0xf]
      %v392 = vld [vmem:[%s246 + $0x44] sm:$0xf]
      %v393 = vld [vmem:[%s246 + $0x48] sm:$0xf]
      %v394 = vld [vmem:[%s246 + $0x4c] sm:$0xf]
      %v395 = vld [vmem:[%s246 + $0x50] sm:$0xf]
      %v396 = vld [vmem:[%s246 + $0x54] sm:$0xf]
      %v397 = vld [vmem:[%s246 + $0x58] sm:$0xf]
      %v398 = vld [vmem:[%s246 + $0x5c] sm:$0xf]
      %v399 = vld [vmem:[%s246 + $0x60] sm:$0xf]
      %v400 = vld [vmem:[%s246 + $0x64] sm:$0xf]
      %v401 = vld [vmem:[%s246 + $0x68] sm:$0xf]
      %v402 = vld [vmem:[%s246 + $0x6c] sm:$0xf]
      %v403 = vld [vmem:[%s246 + $0x70] sm:$0xf]
      %v404 = vld [vmem:[%s246 + $0x74] sm:$0xf]
      %v405 = vld [vmem:[%s246 + $0x78] sm:$0xf]
      %v406 = vld [vmem:[%s246 + $0x7c] sm:$0xf]
      %vm407 = vsmask.f32 4368
      %vm408 = vmor %vm263, %vm407
      %v410 = vshrl.u32 %v375, 16
      %v412 = vrot.slane %v410, 7
      %v413 = vshll.u32 %v375, 16
      %v415 = vor.u32 %v412, %v413
      %v416 = vrot.slane %v412, 4
      %v418 = vshrl.u32 %v376, 16
      %v420 = vrot.slane %v418, 7
      %v421 = vshll.u32 %v376, 16
      %v423 = vor.u32 %v420, %v421
      %v424 = vsel %vm408, %v416, %v423
      %v425 = vrot.slane %v420, 4
      %v427 = vshrl.u32 %v377, 16
      %v429 = vrot.slane %v427, 7
      %v430 = vshll.u32 %v377, 16
      %v432 = vor.u32 %v429, %v430
      %v433 = vrot.slane %v429, 4
      %v435 = vshrl.u32 %v378, 16
      %v437 = vrot.slane %v435, 7
      %v438 = vshll.u32 %v378, 16
      %v440 = vor.u32 %v437, %v438
      %v441 = vsel %vm408, %v433, %v440
      %v442 = vrot.slane %v437, 4
      %v444 = vshrl.u32 %v379, 16
      %v446 = vrot.slane %v444, 7
      %v447 = vshll.u32 %v379, 16
      %v449 = vor.u32 %v446, %v447
      %v450 = vrot.slane %v446, 4
      %v452 = vshrl.u32 %v380, 16
      %v454 = vrot.slane %v452, 7
      %v455 = vshll.u32 %v380, 16
      %v457 = vor.u32 %v454, %v455
      %v458 = vsel %vm408, %v450, %v457
      %v459 = vrot.slane %v454, 4
      %v461 = vshrl.u32 %v381, 16
      %v463 = vrot.slane %v461, 7
      %v464 = vshll.u32 %v381, 16
      %v466 = vor.u32 %v463, %v464
      %v467 = vrot.slane %v463, 4
      %v469 = vshrl.u32 %v382, 16
      %v471 = vrot.slane %v469, 7
      %v472 = vshll.u32 %v382, 16
      %v474 = vor.u32 %v471, %v472
      %v475 = vsel %vm408, %v467, %v474
      %v476 = vrot.slane %v471, 4
      %v478 = vshrl.u32 %v383, 16
      %v480 = vrot.slane %v478, 7
      %v481 = vshll.u32 %v383, 16
      %v483 = vor.u32 %v480, %v481
      %v484 = vrot.slane %v480, 4
      %v486 = vshrl.u32 %v384, 16
      %v488 = vrot.slane %v486, 7
      %v489 = vshll.u32 %v384, 16
      %v491 = vor.u32 %v488, %v489
      %v492 = vsel %vm408, %v484, %v491
      %v493 = vrot.slane %v488, 4
      %v495 = vshrl.u32 %v385, 16
      %v497 = vrot.slane %v495, 7
      %v498 = vshll.u32 %v385, 16
      %v500 = vor.u32 %v497, %v498
      %v501 = vrot.slane %v497, 4
      %v503 = vshrl.u32 %v386, 16
      %v505 = vrot.slane %v503, 7
      %v506 = vshll.u32 %v386, 16
      %v508 = vor.u32 %v505, %v506
      %v509 = vsel %vm408, %v501, %v508
      %v510 = vrot.slane %v505, 4
      %v512 = vshrl.u32 %v387, 16
      %v514 = vrot.slane %v512, 7
      %v515 = vshll.u32 %v387, 16
      %v517 = vor.u32 %v514, %v515
      %v518 = vrot.slane %v514, 4
      %v520 = vshrl.u32 %v388, 16
      %v522 = vrot.slane %v520, 7
      %v523 = vshll.u32 %v388, 16
      %v525 = vor.u32 %v522, %v523
      %v526 = vsel %vm408, %v518, %v525
      %v527 = vrot.slane %v522, 4
      %v529 = vshrl.u32 %v389, 16
      %v531 = vrot.slane %v529, 7
      %v532 = vshll.u32 %v389, 16
      %v534 = vor.u32 %v531, %v532
      %v535 = vrot.slane %v531, 4
      %v537 = vshrl.u32 %v390, 16
      %v539 = vrot.slane %v537, 7
      %v540 = vshll.u32 %v390, 16
      %v542 = vor.u32 %v539, %v540
      %v543 = vsel %vm408, %v535, %v542
      %v544 = vrot.slane %v539, 4
      %v546 = vshrl.u32 %v391, 16
      %v548 = vrot.slane %v546, 7
      %v549 = vshll.u32 %v391, 16
      %v551 = vor.u32 %v548, %v549
      %v552 = vrot.slane %v548, 4
      %v554 = vshrl.u32 %v392, 16
      %v556 = vrot.slane %v554, 7
      %v557 = vshll.u32 %v392, 16
      %v559 = vor.u32 %v556, %v557
      %v560 = vsel %vm408, %v552, %v559
      %v561 = vrot.slane %v556, 4
      %v563 = vshrl.u32 %v393, 16
      %v565 = vrot.slane %v563, 7
      %v566 = vshll.u32 %v393, 16
      %v568 = vor.u32 %v565, %v566
      %v569 = vrot.slane %v565, 4
      %v571 = vshrl.u32 %v394, 16
      %v573 = vrot.slane %v571, 7
      %v574 = vshll.u32 %v394, 16
      %v576 = vor.u32 %v573, %v574
      %v577 = vsel %vm408, %v569, %v576
      %v578 = vrot.slane %v573, 4
      %v580 = vshrl.u32 %v395, 16
      %v582 = vrot.slane %v580, 7
      %v583 = vshll.u32 %v395, 16
      %v585 = vor.u32 %v582, %v583
      %v586 = vrot.slane %v582, 4
      %v588 = vshrl.u32 %v396, 16
      %v590 = vrot.slane %v588, 7
      %v591 = vshll.u32 %v396, 16
      %v593 = vor.u32 %v590, %v591
      %v594 = vsel %vm408, %v586, %v593
      %v595 = vrot.slane %v590, 4
      %v597 = vshrl.u32 %v397, 16
      %v599 = vrot.slane %v597, 7
      %v600 = vshll.u32 %v397, 16
      %v602 = vor.u32 %v599, %v600
      %v603 = vrot.slane %v599, 4
      %v605 = vshrl.u32 %v398, 16
      %v607 = vrot.slane %v605, 7
      %v608 = vshll.u32 %v398, 16
      %v610 = vor.u32 %v607, %v608
      %v611 = vsel %vm408, %v603, %v610
      %v612 = vrot.slane %v607, 4
      %v614 = vshrl.u32 %v399, 16
      %v616 = vrot.slane %v614, 7
      %v617 = vshll.u32 %v399, 16
      %v619 = vor.u32 %v616, %v617
      %v620 = vrot.slane %v616, 4
      %v622 = vshrl.u32 %v400, 16
      %v624 = vrot.slane %v622, 7
      %v625 = vshll.u32 %v400, 16
      %v627 = vor.u32 %v624, %v625
      %v628 = vsel %vm408, %v620, %v627
      %v629 = vrot.slane %v624, 4
      %v631 = vshrl.u32 %v401, 16
      %v633 = vrot.slane %v631, 7
      %v634 = vshll.u32 %v401, 16
      %v636 = vor.u32 %v633, %v634
      %v637 = vrot.slane %v633, 4
      %v639 = vshrl.u32 %v402, 16
      %v641 = vrot.slane %v639, 7
      %v642 = vshll.u32 %v402, 16
      %v644 = vor.u32 %v641, %v642
      %v645 = vsel %vm408, %v637, %v644
      %v646 = vrot.slane %v641, 4
      %v648 = vshrl.u32 %v403, 16
      %v650 = vrot.slane %v648, 7
      %v651 = vshll.u32 %v403, 16
      %v653 = vor.u32 %v650, %v651
      %v654 = vrot.slane %v650, 4
      %v656 = vshrl.u32 %v404, 16
      %v658 = vrot.slane %v656, 7
      %v659 = vshll.u32 %v404, 16
      %v661 = vor.u32 %v658, %v659
      %v662 = vsel %vm408, %v654, %v661
      %v663 = vrot.slane %v658, 4
      %v665 = vshrl.u32 %v405, 16
      %v667 = vrot.slane %v665, 7
      %v668 = vshll.u32 %v405, 16
      %v670 = vor.u32 %v667, %v668
      %v671 = vrot.slane %v667, 4
      %v673 = vshrl.u32 %v406, 16
      %v675 = vrot.slane %v673, 7
      %v676 = vshll.u32 %v406, 16
      %v678 = vor.u32 %v675, %v676
      %v679 = vsel %vm408, %v671, %v678
      %v680 = vrot.slane %v675, 4
      %s729 = scalar_lea.vmem [#allocation2], 12
      %vm730 = vcmask 27648
      %vm731 = vmand %vm730, %vm319
      %v732 = vld [vmem:[%s729] sm:$0xf]
      %v733 = vsel %vm731, %v415, %v732
      %734 = vst [vmem:[%s729] sm:$0xf] %v733
      %735 = vst.msk [vmem:[%s729 + $0x4] sm:$0xf] %vm253, %v424
      %v736 = vld [vmem:[%s729 + $0x8] sm:$0x1]
      %v737 = vsel %vm264, %v425, %v736
      %738 = vst [vmem:[%s729 + $0x8] sm:$0x1] %v737
      %v739 = vld [vmem:[%s729 + $0xc] sm:$0xf]
      %v740 = vsel %vm731, %v432, %v739
      %741 = vst [vmem:[%s729 + $0xc] sm:$0xf] %v740
      %742 = vst.msk [vmem:[%s729 + $0x10] sm:$0xf] %vm253, %v441
      %v743 = vld [vmem:[%s729 + $0x14] sm:$0x1]
      %v744 = vsel %vm264, %v442, %v743
      %745 = vst [vmem:[%s729 + $0x14] sm:$0x1] %v744
      %v746 = vld [vmem:[%s729 + $0x18] sm:$0xf]
      %v747 = vsel %vm731, %v449, %v746
      %748 = vst [vmem:[%s729 + $0x18] sm:$0xf] %v747
      %749 = vst.msk [vmem:[%s729 + $0x1c] sm:$0xf] %vm253, %v458
      %v750 = vld [vmem:[%s729 + $0x20] sm:$0x1]
      %v751 = vsel %vm264, %v459, %v750
      %752 = vst [vmem:[%s729 + $0x20] sm:$0x1] %v751
      %v753 = vld [vmem:[%s729 + $0x24] sm:$0xf]
      %v754 = vsel %vm731, %v466, %v753
      %755 = vst [vmem:[%s729 + $0x24] sm:$0xf] %v754
      %756 = vst.msk [vmem:[%s729 + $0x28] sm:$0xf] %vm253, %v475
      %v757 = vld [vmem:[%s729 + $0x2c] sm:$0x1]
      %v758 = vsel %vm264, %v476, %v757
      %759 = vst [vmem:[%s729 + $0x2c] sm:$0x1] %v758
      %v760 = vld [vmem:[%s729 + $0x30] sm:$0xf]
      %v761 = vsel %vm731, %v483, %v760
      %762 = vst [vmem:[%s729 + $0x30] sm:$0xf] %v761
      %763 = vst.msk [vmem:[%s729 + $0x34] sm:$0xf] %vm253, %v492
      %v764 = vld [vmem:[%s729 + $0x38] sm:$0x1]
      %v765 = vsel %vm264, %v493, %v764
      %766 = vst [vmem:[%s729 + $0x38] sm:$0x1] %v765
      %v767 = vld [vmem:[%s729 + $0x3c] sm:$0xf]
      %v768 = vsel %vm731, %v500, %v767
      %769 = vst [vmem:[%s729 + $0x3c] sm:$0xf] %v768
      %770 = vst.msk [vmem:[%s729 + $0x40] sm:$0xf] %vm253, %v509
      %v771 = vld [vmem:[%s729 + $0x44] sm:$0x1]
      %v772 = vsel %vm264, %v510, %v771
      %773 = vst [vmem:[%s729 + $0x44] sm:$0x1] %v772
      %v774 = vld [vmem:[%s729 + $0x48] sm:$0xf]
      %v775 = vsel %vm731, %v517, %v774
      %776 = vst [vmem:[%s729 + $0x48] sm:$0xf] %v775
      %777 = vst.msk [vmem:[%s729 + $0x4c] sm:$0xf] %vm253, %v526
      %v778 = vld [vmem:[%s729 + $0x50] sm:$0x1]
      %v779 = vsel %vm264, %v527, %v778
      %780 = vst [vmem:[%s729 + $0x50] sm:$0x1] %v779
      %v781 = vld [vmem:[%s729 + $0x54] sm:$0xf]
      %v782 = vsel %vm731, %v534, %v781
      %783 = vst [vmem:[%s729 + $0x54] sm:$0xf] %v782
      %784 = vst.msk [vmem:[%s729 + $0x58] sm:$0xf] %vm253, %v543
      %v785 = vld [vmem:[%s729 + $0x5c] sm:$0x1]
      %v786 = vsel %vm264, %v544, %v785
      %787 = vst [vmem:[%s729 + $0x5c] sm:$0x1] %v786
      %v788 = vld [vmem:[%s729 + $0x60] sm:$0xf]
      %v789 = vsel %vm731, %v551, %v788
      %790 = vst [vmem:[%s729 + $0x60] sm:$0xf] %v789
      %791 = vst.msk [vmem:[%s729 + $0x64] sm:$0xf] %vm253, %v560
      %v792 = vld [vmem:[%s729 + $0x68] sm:$0x1]
      %v793 = vsel %vm264, %v561, %v792
      %794 = vst [vmem:[%s729 + $0x68] sm:$0x1] %v793
      %v795 = vld [vmem:[%s729 + $0x6c] sm:$0xf]
      %v796 = vsel %vm731, %v568, %v795
      %797 = vst [vmem:[%s729 + $0x6c] sm:$0xf] %v796
      %798 = vst.msk [vmem:[%s729 + $0x70] sm:$0xf] %vm253, %v577
      %v799 = vld [vmem:[%s729 + $0x74] sm:$0x1]
      %v800 = vsel %vm264, %v578, %v799
      %801 = vst [vmem:[%s729 + $0x74] sm:$0x1] %v800
      %v802 = vld [vmem:[%s729 + $0x78] sm:$0xf]
      %v803 = vsel %vm731, %v585, %v802
      %804 = vst [vmem:[%s729 + $0x78] sm:$0xf] %v803
      %805 = vst.msk [vmem:[%s729 + $0x7c] sm:$0xf] %vm253, %v594
      %v806 = vld [vmem:[%s729 + $0x80] sm:$0x1]
      %v807 = vsel %vm264, %v595, %v806
      %808 = vst [vmem:[%s729 + $0x80] sm:$0x1] %v807
      %v809 = vld [vmem:[%s729 + $0x84] sm:$0xf]
      %v810 = vsel %vm731, %v602, %v809
      %811 = vst [vmem:[%s729 + $0x84] sm:$0xf] %v810
      %812 = vst.msk [vmem:[%s729 + $0x88] sm:$0xf] %vm253, %v611
      %v813 = vld [vmem:[%s729 + $0x8c] sm:$0x1]
      %v814 = vsel %vm264, %v612, %v813
      %815 = vst [vmem:[%s729 + $0x8c] sm:$0x1] %v814
      %v816 = vld [vmem:[%s729 + $0x90] sm:$0xf]
      %v817 = vsel %vm731, %v619, %v816
      %818 = vst [vmem:[%s729 + $0x90] sm:$0xf] %v817
      %819 = vst.msk [vmem:[%s729 + $0x94] sm:$0xf] %vm253, %v628
      %v820 = vld [vmem:[%s729 + $0x98] sm:$0x1]
      %v821 = vsel %vm264, %v629, %v820
      %822 = vst [vmem:[%s729 + $0x98] sm:$0x1] %v821
      %v823 = vld [vmem:[%s729 + $0x9c] sm:$0xf]
      %v824 = vsel %vm731, %v636, %v823
      %825 = vst [vmem:[%s729 + $0x9c] sm:$0xf] %v824
      %826 = vst.msk [vmem:[%s729 + $0xa0] sm:$0xf] %vm253, %v645
      %v827 = vld [vmem:[%s729 + $0xa4] sm:$0x1]
      %v828 = vsel %vm264, %v646, %v827
      %829 = vst [vmem:[%s729 + $0xa4] sm:$0x1] %v828
      %v830 = vld [vmem:[%s729 + $0xa8] sm:$0xf]
      %v831 = vsel %vm731, %v653, %v830
      %832 = vst [vmem:[%s729 + $0xa8] sm:$0xf] %v831
      %833 = vst.msk [vmem:[%s729 + $0xac] sm:$0xf] %vm253, %v662
      %v834 = vld [vmem:[%s729 + $0xb0] sm:$0x1]
      %v835 = vsel %vm264, %v663, %v834
      %836 = vst [vmem:[%s729 + $0xb0] sm:$0x1] %v835
      %v837 = vld [vmem:[%s729 + $0xb4] sm:$0xf]
      %v838 = vsel %vm731, %v670, %v837
      %839 = vst [vmem:[%s729 + $0xb4] sm:$0xf] %v838
      %840 = vst.msk [vmem:[%s729 + $0xb8] sm:$0xf] %vm253, %v679
      %v841 = vld [vmem:[%s729 + $0xbc] sm:$0x1]
      %v842 = vsel %vm264, %v680, %v841
      %843 = vst [vmem:[%s729 + $0xbc] sm:$0x1] %v842
      %vm844 = vcmask 60416
      %845 = vst.msk [vmem:[#allocation3] sm:$0xf] %vm844, 0
      %846 = vst.msk [vmem:[#allocation3 + $0x4] sm:$0xf] %vm844, 0
      %vm847 = vcmask 57344
      %848 = vst.msk [vmem:[#allocation3 + $0x8] sm:$0x1] %vm847, 0
      %s849 = scalar_lea.vmem [#allocation3], 204
      %850 = vst.msk [vmem:[%s849] sm:$0xf] %vm844, 0
      %851 = vst.msk [vmem:[%s849 + $0x4] sm:$0xf] %vm844, 0
      %852 = vst.msk [vmem:[%s849 + $0x8] sm:$0x1] %vm847, 0
      %vm853 = vcmask 57344
      %vm854 = vmand %vm853, %vm263
      %v855 = vld [vmem:[#allocation3] sm:$0x1]
      %v856 = vsel %vm854, 0, %v855
      %857 = vst [vmem:[#allocation3] sm:$0x1] %v856
      %v858 = vld [vmem:[#allocation3 + $0xc] sm:$0x1]
      %v859 = vsel %vm854, 0, %v858
      %860 = vst [vmem:[#allocation3 + $0xc] sm:$0x1] %v859
      %v861 = vld [vmem:[#allocation3 + $0x18] sm:$0x1]
      %v862 = vsel %vm854, 0, %v861
      %863 = vst [vmem:[#allocation3 + $0x18] sm:$0x1] %v862
      %v864 = vld [vmem:[#allocation3 + $0x24] sm:$0x1]
      %v865 = vsel %vm854, 0, %v864
      %866 = vst [vmem:[#allocation3 + $0x24] sm:$0x1] %v865
      %v867 = vld [vmem:[#allocation3 + $0x30] sm:$0x1]
      %v868 = vsel %vm854, 0, %v867
      %869 = vst [vmem:[#allocation3 + $0x30] sm:$0x1] %v868
      %v870 = vld [vmem:[#allocation3 + $0x3c] sm:$0x1]
      %v871 = vsel %vm854, 0, %v870
      %872 = vst [vmem:[#allocation3 + $0x3c] sm:$0x1] %v871
      %v873 = vld [vmem:[#allocation3 + $0x48] sm:$0x1]
      %v874 = vsel %vm854, 0, %v873
      %875 = vst [vmem:[#allocation3 + $0x48] sm:$0x1] %v874
      %v876 = vld [vmem:[#allocation3 + $0x54] sm:$0x1]
      %v877 = vsel %vm854, 0, %v876
      %878 = vst [vmem:[#allocation3 + $0x54] sm:$0x1] %v877
      %v879 = vld [vmem:[#allocation3 + $0x60] sm:$0x1]
      %v880 = vsel %vm854, 0, %v879
      %881 = vst [vmem:[#allocation3 + $0x60] sm:$0x1] %v880
      %v882 = vld [vmem:[#allocation3 + $0x6c] sm:$0x1]
      %v883 = vsel %vm854, 0, %v882
      %884 = vst [vmem:[#allocation3 + $0x6c] sm:$0x1] %v883
      %v885 = vld [vmem:[#allocation3 + $0x78] sm:$0x1]
      %v886 = vsel %vm854, 0, %v885
      %887 = vst [vmem:[#allocation3 + $0x78] sm:$0x1] %v886
      %v888 = vld [vmem:[#allocation3 + $0x84] sm:$0x1]
      %v889 = vsel %vm854, 0, %v888
      %890 = vst [vmem:[#allocation3 + $0x84] sm:$0x1] %v889
      %v891 = vld [vmem:[#allocation3 + $0x90] sm:$0x1]
      %v892 = vsel %vm854, 0, %v891
      %893 = vst [vmem:[#allocation3 + $0x90] sm:$0x1] %v892
      %v894 = vld [vmem:[#allocation3 + $0x9c] sm:$0x1]
      %v895 = vsel %vm854, 0, %v894
      %896 = vst [vmem:[#allocation3 + $0x9c] sm:$0x1] %v895
      %v897 = vld [vmem:[#allocation3 + $0xa8] sm:$0x1]
      %v898 = vsel %vm854, 0, %v897
      %899 = vst [vmem:[#allocation3 + $0xa8] sm:$0x1] %v898
      %v900 = vld [vmem:[#allocation3 + $0xb4] sm:$0x1]
      %v901 = vsel %vm854, 0, %v900
      %902 = vst [vmem:[#allocation3 + $0xb4] sm:$0x1] %v901
      %v903 = vld [vmem:[#allocation3 + $0xc0] sm:$0x1]
      %v904 = vsel %vm854, 0, %v903
      %905 = vst [vmem:[#allocation3 + $0xc0] sm:$0x1] %v904
      %v906 = vld [vmem:[#allocation3 + $0xcc] sm:$0x1]
      %v907 = vsel %vm854, 0, %v906
      %908 = vst [vmem:[#allocation3 + $0xcc] sm:$0x1] %v907
      %vm909 = vmand %vm853, %vm319
      %v910 = vld [vmem:[#allocation3 + $0x8] sm:$0x1]
      %v911 = vsel %vm909, 0, %v910
      %912 = vst [vmem:[#allocation3 + $0x8] sm:$0x1] %v911
      %v913 = vld [vmem:[#allocation3 + $0x14] sm:$0x1]
      %v914 = vsel %vm909, 0, %v913
      %915 = vst [vmem:[#allocation3 + $0x14] sm:$0x1] %v914
      %v916 = vld [vmem:[#allocation3 + $0x20] sm:$0x1]
      %v917 = vsel %vm909, 0, %v916
      %918 = vst [vmem:[#allocation3 + $0x20] sm:$0x1] %v917
      %v919 = vld [vmem:[#allocation3 + $0x2c] sm:$0x1]
      %v920 = vsel %vm909, 0, %v919
      %921 = vst [vmem:[#allocation3 + $0x2c] sm:$0x1] %v920
      %v922 = vld [vmem:[#allocation3 + $0x38] sm:$0x1]
      %v923 = vsel %vm909, 0, %v922
      %924 = vst [vmem:[#allocation3 + $0x38] sm:$0x1] %v923
      %v925 = vld [vmem:[#allocation3 + $0x44] sm:$0x1]
      %v926 = vsel %vm909, 0, %v925
      %927 = vst [vmem:[#allocation3 + $0x44] sm:$0x1] %v926
      %v928 = vld [vmem:[#allocation3 + $0x50] sm:$0x1]
      %v929 = vsel %vm909, 0, %v928
      %930 = vst [vmem:[#allocation3 + $0x50] sm:$0x1] %v929
      %v931 = vld [vmem:[#allocation3 + $0x5c] sm:$0x1]
      %v932 = vsel %vm909, 0, %v931
      %933 = vst [vmem:[#allocation3 + $0x5c] sm:$0x1] %v932
      %v934 = vld [vmem:[#allocation3 + $0x68] sm:$0x1]
      %v935 = vsel %vm909, 0, %v934
      %936 = vst [vmem:[#allocation3 + $0x68] sm:$0x1] %v935
      %v937 = vld [vmem:[#allocation3 + $0x74] sm:$0x1]
      %v938 = vsel %vm909, 0, %v937
      %939 = vst [vmem:[#allocation3 + $0x74] sm:$0x1] %v938
      %v940 = vld [vmem:[#allocation3 + $0x80] sm:$0x1]
      %v941 = vsel %vm909, 0, %v940
      %942 = vst [vmem:[#allocation3 + $0x80] sm:$0x1] %v941
      %v943 = vld [vmem:[#allocation3 + $0x8c] sm:$0x1]
      %v944 = vsel %vm909, 0, %v943
      %945 = vst [vmem:[#allocation3 + $0x8c] sm:$0x1] %v944
      %v946 = vld [vmem:[#allocation3 + $0x98] sm:$0x1]
      %v947 = vsel %vm909, 0, %v946
      %948 = vst [vmem:[#allocation3 + $0x98] sm:$0x1] %v947
      %v949 = vld [vmem:[#allocation3 + $0xa4] sm:$0x1]
      %v950 = vsel %vm909, 0, %v949
      %951 = vst [vmem:[#allocation3 + $0xa4] sm:$0x1] %v950
      %v952 = vld [vmem:[#allocation3 + $0xb0] sm:$0x1]
      %v953 = vsel %vm909, 0, %v952
      %954 = vst [vmem:[#allocation3 + $0xb0] sm:$0x1] %v953
      %v955 = vld [vmem:[#allocation3 + $0xbc] sm:$0x1]
      %v956 = vsel %vm909, 0, %v955
      %957 = vst [vmem:[#allocation3 + $0xbc] sm:$0x1] %v956
      %v958 = vld [vmem:[#allocation3 + $0xc8] sm:$0x1]
      %v959 = vsel %vm909, 0, %v958
      %960 = vst [vmem:[#allocation3 + $0xc8] sm:$0x1] %v959
      %v961 = vld [vmem:[#allocation3 + $0xd4] sm:$0x1]
      %v962 = vsel %vm909, 0, %v961
      %963 = vst [vmem:[#allocation3 + $0xd4] sm:$0x1] %v962
      %v964 = vld [vmem:[#allocation2] sm:$0xf]
      %v965 = vld [vmem:[#allocation2 + $0x4] sm:$0xf]
      %v966 = vld [vmem:[#allocation2 + $0xc] sm:$0xf]
      %v967 = vld [vmem:[#allocation2 + $0x10] sm:$0xf]
      %v968 = vld [vmem:[#allocation2 + $0x18] sm:$0xf]
      %v969 = vld [vmem:[#allocation2 + $0x1c] sm:$0xf]
      %v970 = vld [vmem:[#allocation2 + $0x24] sm:$0xf]
      %v971 = vld [vmem:[#allocation2 + $0x28] sm:$0xf]
      %v972 = vld [vmem:[#allocation2 + $0x30] sm:$0xf]
      %v973 = vld [vmem:[#allocation2 + $0x34] sm:$0xf]
      %v974 = vld [vmem:[#allocation2 + $0x3c] sm:$0xf]
      %v975 = vld [vmem:[#allocation2 + $0x40] sm:$0xf]
      %v976 = vld [vmem:[#allocation2 + $0x48] sm:$0xf]
      %v977 = vld [vmem:[#allocation2 + $0x4c] sm:$0xf]
      %v978 = vld [vmem:[#allocation2 + $0x54] sm:$0xf]
      %v979 = vld [vmem:[#allocation2 + $0x58] sm:$0xf]
      %v980 = vld [vmem:[%s1] sm:$0x3]
      %v981 = vld [vmem:[#allocation2 + $0x8] sm:$0x1]
      %v982 = vld [vmem:[#allocation2 + $0x14] sm:$0x1]
      %v983 = vld [vmem:[#allocation2 + $0x20] sm:$0x1]
      %v984 = vld [vmem:[#allocation2 + $0x2c] sm:$0x1]
      %v985 = vld [vmem:[#allocation2 + $0x38] sm:$0x1]
      %v986 = vld [vmem:[#allocation2 + $0x44] sm:$0x1]
      %v987 = vld [vmem:[#allocation2 + $0x50] sm:$0x1]
      %v988 = vld [vmem:[#allocation2 + $0x5c] sm:$0x1]
      %vm989 = vsmask.f32 3328
      %vm990 = vsmask.f32 7440
      %vm991 = vmor %vm989, %vm990
      %v993 = vshrl.u32 %v964, 16
      %v995 = vrot.slane %v993, 4
      %v996 = vshll.u32 %v964, 16
      %v998 = vrot.slane %v996, 5
      %v999 = vor.u32 %v995, %v998
      %v1000 = vrot.slane %v999, 4
      %v1002 = vshll.u32 %v965, 16
      %v1004 = vrot.slane %v1002, 5
      %v1005 = vsel %vm991, %v1000, %v1004
      %v1006 = vshrl.u32 %v965, 16
      %v1008 = vrot.slane %v1006, 4
      %v1009 = vor.u32 %v1008, %v1004
      %v1010 = vrot.slane %v1009, 4
      %v1012 = vshll.u32 %v981, 16
      %v1014 = vrot.slane %v1012, 5
      %v1015 = vsel %vm991, %v1010, %v1014
      %v1017 = vshrl.u32 %v966, 16
      %v1019 = vrot.slane %v1017, 4
      %v1020 = vshll.u32 %v966, 16
      %v1022 = vrot.slane %v1020, 5
      %v1023 = vor.u32 %v1019, %v1022
      %v1024 = vrot.slane %v1023, 4
      %v1026 = vshll.u32 %v967, 16
      %v1028 = vrot.slane %v1026, 5
      %v1029 = vsel %vm991, %v1024, %v1028
      %v1030 = vshrl.u32 %v967, 16
      %v1032 = vrot.slane %v1030, 4
      %v1033 = vor.u32 %v1032, %v1028
      %v1034 = vrot.slane %v1033, 4
      %v1036 = vshll.u32 %v982, 16
      %v1038 = vrot.slane %v1036, 5
      %v1039 = vsel %vm991, %v1034, %v1038
      %v1041 = vshrl.u32 %v968, 16
      %v1043 = vrot.slane %v1041, 4
      %v1044 = vshll.u32 %v968, 16
      %v1046 = vrot.slane %v1044, 5
      %v1047 = vor.u32 %v1043, %v1046
      %v1048 = vrot.slane %v1047, 4
      %v1050 = vshll.u32 %v969, 16
      %v1052 = vrot.slane %v1050, 5
      %v1053 = vsel %vm991, %v1048, %v1052
      %v1054 = vshrl.u32 %v969, 16
      %v1056 = vrot.slane %v1054, 4
      %v1057 = vor.u32 %v1056, %v1052
      %v1058 = vrot.slane %v1057, 4
      %v1060 = vshll.u32 %v983, 16
      %v1062 = vrot.slane %v1060, 5
      %v1063 = vsel %vm991, %v1058, %v1062
      %v1065 = vshrl.u32 %v970, 16
      %v1067 = vrot.slane %v1065, 4
      %v1068 = vshll.u32 %v970, 16
      %v1070 = vrot.slane %v1068, 5
      %v1071 = vor.u32 %v1067, %v1070
      %v1072 = vrot.slane %v1071, 4
      %v1074 = vshll.u32 %v971, 16
      %v1076 = vrot.slane %v1074, 5
      %v1077 = vsel %vm991, %v1072, %v1076
      %v1078 = vshrl.u32 %v971, 16
      %v1080 = vrot.slane %v1078, 4
      %v1081 = vor.u32 %v1080, %v1076
      %v1082 = vrot.slane %v1081, 4
      %v1084 = vshll.u32 %v984, 16
      %v1086 = vrot.slane %v1084, 5
      %v1087 = vsel %vm991, %v1082, %v1086
      %v1089 = vshrl.u32 %v972, 16
      %v1091 = vrot.slane %v1089, 4
      %v1092 = vshll.u32 %v972, 16
      %v1094 = vrot.slane %v1092, 5
      %v1095 = vor.u32 %v1091, %v1094
      %v1096 = vrot.slane %v1095, 4
      %v1098 = vshll.u32 %v973, 16
      %v1100 = vrot.slane %v1098, 5
      %v1101 = vsel %vm991, %v1096, %v1100
      %v1102 = vshrl.u32 %v973, 16
      %v1104 = vrot.slane %v1102, 4
      %v1105 = vor.u32 %v1104, %v1100
      %v1106 = vrot.slane %v1105, 4
      %v1108 = vshll.u32 %v985, 16
      %v1110 = vrot.slane %v1108, 5
      %v1111 = vsel %vm991, %v1106, %v1110
      %v1113 = vshrl.u32 %v974, 16
      %v1115 = vrot.slane %v1113, 4
      %v1116 = vshll.u32 %v974, 16
      %v1118 = vrot.slane %v1116, 5
      %v1119 = vor.u32 %v1115, %v1118
      %v1120 = vrot.slane %v1119, 4
      %v1122 = vshll.u32 %v975, 16
      %v1124 = vrot.slane %v1122, 5
      %v1125 = vsel %vm991, %v1120, %v1124
      %v1126 = vshrl.u32 %v975, 16
      %v1128 = vrot.slane %v1126, 4
      %v1129 = vor.u32 %v1128, %v1124
      %v1130 = vrot.slane %v1129, 4
      %v1132 = vshll.u32 %v986, 16
      %v1134 = vrot.slane %v1132, 5
      %v1135 = vsel %vm991, %v1130, %v1134
      %v1137 = vshrl.u32 %v976, 16
      %v1139 = vrot.slane %v1137, 4
      %v1140 = vshll.u32 %v976, 16
      %v1142 = vrot.slane %v1140, 5
      %v1143 = vor.u32 %v1139, %v1142
      %v1144 = vrot.slane %v1143, 4
      %v1146 = vshll.u32 %v977, 16
      %v1148 = vrot.slane %v1146, 5
      %v1149 = vsel %vm991, %v1144, %v1148
      %v1150 = vshrl.u32 %v977, 16
      %v1152 = vrot.slane %v1150, 4
      %v1153 = vor.u32 %v1152, %v1148
      %v1154 = vrot.slane %v1153, 4
      %v1156 = vshll.u32 %v987, 16
      %v1158 = vrot.slane %v1156, 5
      %v1159 = vsel %vm991, %v1154, %v1158
      %v1161 = vshrl.u32 %v978, 16
      %v1163 = vrot.slane %v1161, 4
      %v1164 = vshll.u32 %v978, 16
      %v1166 = vrot.slane %v1164, 5
      %v1167 = vor.u32 %v1163, %v1166
      %v1168 = vrot.slane %v1167, 4
      %v1170 = vshll.u32 %v979, 16
      %v1172 = vrot.slane %v1170, 5
      %v1173 = vsel %vm991, %v1168, %v1172
      %v1174 = vshrl.u32 %v979, 16
      %v1176 = vrot.slane %v1174, 4
      %v1177 = vor.u32 %v1176, %v1172
      %v1178 = vrot.slane %v1177, 4
      %v1180 = vshll.u32 %v988, 16
      %v1182 = vrot.slane %v1180, 5
      %v1183 = vsel %vm991, %v1178, %v1182
      %s1184 = scalar_lea.vmem %s1, 2
      %v1185 = vld [vmem:[%s1184] sm:$0x3]
      %v1186 = vunpack.c.l.b16 %v1005
      %v1187 = vunpack.c.l.b16 %v1015
      %v1188 = vunpack.c.l.b16 %v1029
      %v1189 = vunpack.c.l.b16 %v1039
      %v1190 = vunpack.c.l.b16 %v1053
      %v1191 = vunpack.c.l.b16 %v1063
      %v1192 = vunpack.c.l.b16 %v1077
      %v1193 = vunpack.c.l.b16 %v1087
      %v1194 = vunpack.c.l.b16 %v1101
      %v1195 = vunpack.c.l.b16 %v1111
      %v1196 = vunpack.c.l.b16 %v1125
      %v1197 = vunpack.c.l.b16 %v1135
      %v1198 = vunpack.c.l.b16 %v1149
      %v1199 = vunpack.c.l.b16 %v1159
      %v1200 = vunpack.c.l.b16 %v1173
      %v1201 = vunpack.c.l.b16 %v1183
      %v1202 = vpack.c.b16 %v1187, %v1186
      %v1203 = vpack.c.b16 %v1189, %v1188
      %v1204 = vpack.c.b16 %v1191, %v1190
      %v1205 = vpack.c.b16 %v1193, %v1192
      %v1206 = vpack.c.b16 %v1195, %v1194
      %v1207 = vpack.c.b16 %v1197, %v1196
      %v1208 = vpack.c.b16 %v1199, %v1198
      %v1209 = vpack.c.b16 %v1201, %v1200
      %vm1210 = vcmask 31744
      %v1212 = vsel %vm1210, %v1202, 0
      %v1215 = vsel %vm1210, %v1203, 0
      %v1218 = vsel %vm1210, %v1204, 0
      %v1221 = vsel %vm1210, %v1205, 0
      %v1224 = vsel %vm1210, %v1206, 0
      %v1227 = vsel %vm1210, %v1207, 0
      %v1230 = vsel %vm1210, %v1208, 0
      %v1233 = vsel %vm1210, %v1209, 0
      %vm1235 = vcmask 1041408
      %v1237 = vsel %vm1235, %v1185, 0
      %1239 = vmatprep.subr.bf16.mxu0 0
      %1240 = vmatpush1.bf16.msra.mxu0 %v1237
      %1241 = vmatprep.subr.bf16.mxu0 0
      %1242 = vmatpush1.bf16.msra.mxu0 0
      %1243 = vmatprep.subr.bf16.mxu0 0
      %1244 = vmatpush1.bf16.msra.mxu0 0
      %1245 = vmatprep.subr.bf16.mxu0 0
      %1246 = vmatpush1.bf16.msra.mxu0 0
      %1247 = vmatprep.subr.bf16.mxu0 0
      %1248 = vmatpush1.bf16.msra.mxu0 0
      %1249 = vmatprep.subr.bf16.mxu0 0
      %1250 = vmatpush1.bf16.msra.mxu0 0
      %1251 = vmatprep.subr.bf16.mxu0 0
      %1252 = vmatpush1.bf16.msra.mxu0 0
      %1253 = vmatprep.subr.bf16.mxu0 0
      %1254 = vmatpush1.bf16.msra.mxu0 0
      %1255 = vmatprep.subr.bf16.mxu0 0
      %1256 = vmatpush1.bf16.msra.mxu0 0
      %1257 = vmatprep.subr.bf16.mxu0 0
      %1258 = vmatpush1.bf16.msra.mxu0 0
      %1259 = vmatprep.subr.bf16.mxu0 0
      %1260 = vmatpush1.bf16.msra.mxu0 0
      %1261 = vmatprep.subr.bf16.mxu0 0
      %1262 = vmatpush1.bf16.msra.mxu0 0
      %1263 = vmatprep.subr.bf16.mxu0 0
      %1264 = vmatpush1.bf16.msra.mxu0 0
      %1265 = vmatprep.subr.bf16.mxu0 0
      %1266 = vmatpush1.bf16.msra.mxu0 0
      %1267 = vmatprep.subr.bf16.mxu0 0
      %1268 = vmatpush1.bf16.msra.mxu0 0
      %1269 = vmatprep.subr.bf16.mxu0 0
      %1270 = vmatpush1.bf16.msra.mxu0 0
      %1271 = vmatprep.mubr.bf16.mxu0 0
      %1272 = vmatmul.mubr.bf16.gmra.mrb[0].mxu0 %v1212
      %v1273 = vpop.f32.mrb[0].mxu0
      %v1274 = vadd.f32 0.0, %v1273
      %v1275 = vpop.f32.mrb[0].mxu0
      %v1276 = vpop.f32.mrb[0].mxu0
      %v1277 = vadd.f32 0.0, %v1276
      %v1278 = vpop.f32.mrb[0].mxu0
      %1279 = vmatprep.mubr.bf16.mxu0 0
      %1280 = vmatmul.mubr.bf16.gmra.mrb[0].mxu0 %v1215
      %v1281 = vpop.f32.mrb[0].mxu0
      %v1282 = vadd.f32 0.0, %v1281
      %v1283 = vpop.f32.mrb[0].mxu0
      %v1284 = vpop.f32.mrb[0].mxu0
      %v1285 = vadd.f32 0.0, %v1284
      %v1286 = vpop.f32.mrb[0].mxu0
      %1287 = vmatprep.mubr.bf16.mxu0 0
      %1288 = vmatmul.mubr.bf16.gmra.mrb[0].mxu0 %v1218
      %v1289 = vpop.f32.mrb[0].mxu0
      %v1290 = vadd.f32 0.0, %v1289
      %v1291 = vpop.f32.mrb[0].mxu0
      %v1292 = vpop.f32.mrb[0].mxu0
      %v1293 = vadd.f32 0.0, %v1292
      %v1294 = vpop.f32.mrb[0].mxu0
      %1295 = vmatprep.mubr.bf16.mxu0 0
      %1296 = vmatmul.mubr.bf16.gmra.mrb[0].mxu0 %v1221
      %v1297 = vpop.f32.mrb[0].mxu0
      %v1298 = vadd.f32 0.0, %v1297
      %v1299 = vpop.f32.mrb[0].mxu0
      %v1300 = vpop.f32.mrb[0].mxu0
      %v1301 = vadd.f32 0.0, %v1300
      %v1302 = vpop.f32.mrb[0].mxu0
      %1303 = vmatprep.mubr.bf16.mxu0 0
      %1304 = vmatmul.mubr.bf16.gmra.mrb[0].mxu0 %v1224
      %v1305 = vpop.f32.mrb[0].mxu0
      %v1306 = vadd.f32 0.0, %v1305
      %v1307 = vpop.f32.mrb[0].mxu0
      %v1308 = vpop.f32.mrb[0].mxu0
      %v1309 = vadd.f32 0.0, %v1308
      %v1310 = vpop.f32.mrb[0].mxu0
      %1311 = vmatprep.mubr.bf16.mxu0 0
      %1312 = vmatmul.mubr.bf16.gmra.mrb[0].mxu0 %v1227
      %v1313 = vpop.f32.mrb[0].mxu0
      %v1314 = vadd.f32 0.0, %v1313
      %v1315 = vpop.f32.mrb[0].mxu0
      %v1316 = vpop.f32.mrb[0].mxu0
      %v1317 = vadd.f32 0.0, %v1316
      %v1318 = vpop.f32.mrb[0].mxu0
      %1319 = vmatprep.mubr.bf16.mxu0 0
      %1320 = vmatmul.mubr.bf16.gmra.mrb[0].mxu0 %v1230
      %v1321 = vpop.f32.mrb[0].mxu0
      %v1322 = vadd.f32 0.0, %v1321
      %v1323 = vpop.f32.mrb[0].mxu0
      %v1324 = vpop.f32.mrb[0].mxu0
      %v1325 = vadd.f32 0.0, %v1324
      %v1326 = vpop.f32.mrb[0].mxu0
      %1327 = vmatprep.mubr.bf16.mxu0 0
      %1328 = vmatmul.mubr.bf16.gmra.mrb[0].mxu0 %v1233
      %v1329 = vpop.f32.mrb[0].mxu0
      %v1330 = vadd.f32 0.0, %v1329
      %v1331 = vpop.f32.mrb[0].mxu0
      %v1332 = vpop.f32.mrb[0].mxu0
      %v1333 = vadd.f32 0.0, %v1332
      %v1334 = vpop.f32.mrb[0].mxu0
      %1335 = vdwg.mxu0
      %v1352 = vunpack.c.l.b16 %v964
      %v1353 = vunpack.c.l.b16 %v965
      %v1354 = vunpack.c.l.b16 %v966
      %v1355 = vunpack.c.l.b16 %v967
      %v1356 = vunpack.c.l.b16 %v968
      %v1357 = vunpack.c.l.b16 %v969
      %v1358 = vunpack.c.l.b16 %v970
      %v1359 = vunpack.c.l.b16 %v971
      %v1360 = vunpack.c.l.b16 %v972
      %v1361 = vunpack.c.l.b16 %v973
      %v1362 = vunpack.c.l.b16 %v974
      %v1363 = vunpack.c.l.b16 %v975
      %v1364 = vunpack.c.l.b16 %v976
      %v1365 = vunpack.c.l.b16 %v977
      %v1366 = vunpack.c.l.b16 %v978
      %v1367 = vunpack.c.l.b16 %v979
      %v1368 = vpack.c.b16 %v1353, %v1352
      %v1369 = vpack.c.b16 %v1355, %v1354
      %v1370 = vpack.c.b16 %v1357, %v1356
      %v1371 = vpack.c.b16 %v1359, %v1358
      %v1372 = vpack.c.b16 %v1361, %v1360
      %v1373 = vpack.c.b16 %v1363, %v1362
      %v1374 = vpack.c.b16 %v1365, %v1364
      %v1375 = vpack.c.b16 %v1367, %v1366
      %v1377 = vsel %vm1210, %v1368, 0
      %v1380 = vsel %vm1210, %v1369, 0
      %v1383 = vsel %vm1210, %v1370, 0
      %v1386 = vsel %vm1210, %v1371, 0
      %v1389 = vsel %vm1210, %v1372, 0
      %v1392 = vsel %vm1210, %v1373, 0
      %v1395 = vsel %vm1210, %v1374, 0
      %v1398 = vsel %vm1210, %v1375, 0
      %v1401 = vsel %vm1235, %v980, 0
      %1403 = vmatprep.subr.bf16.mxu0 0
      %1404 = vmatpush1.bf16.msra.mxu0 %v1401
      %1405 = vmatprep.subr.bf16.mxu0 0
      %1406 = vmatpush1.bf16.msra.mxu0 0
      %1407 = vmatprep.subr.bf16.mxu0 0
      %1408 = vmatpush1.bf16.msra.mxu0 0
      %1409 = vmatprep.subr.bf16.mxu0 0
      %1410 = vmatpush1.bf16.msra.mxu0 0
      %1411 = vmatprep.subr.bf16.mxu0 0
      %1412 = vmatpush1.bf16.msra.mxu0 0
      %1413 = vmatprep.subr.bf16.mxu0 0
      %1414 = vmatpush1.bf16.msra.mxu0 0
      %1415 = vmatprep.subr.bf16.mxu0 0
      %1416 = vmatpush1.bf16.msra.mxu0 0
      %1417 = vmatprep.subr.bf16.mxu0 0
      %1418 = vmatpush1.bf16.msra.mxu0 0
      %1419 = vmatprep.subr.bf16.mxu0 0
      %1420 = vmatpush1.bf16.msra.mxu0 0
      %1421 = vmatprep.subr.bf16.mxu0 0
      %1422 = vmatpush1.bf16.msra.mxu0 0
      %1423 = vmatprep.subr.bf16.mxu0 0
      %1424 = vmatpush1.bf16.msra.mxu0 0
      %1425 = vmatprep.subr.bf16.mxu0 0
      %1426 = vmatpush1.bf16.msra.mxu0 0
      %1427 = vmatprep.subr.bf16.mxu0 0
      %1428 = vmatpush1.bf16.msra.mxu0 0
      %1429 = vmatprep.subr.bf16.mxu0 0
      %1430 = vmatpush1.bf16.msra.mxu0 0
      %1431 = vmatprep.subr.bf16.mxu0 0
      %1432 = vmatpush1.bf16.msra.mxu0 0
      %1433 = vmatprep.subr.bf16.mxu0 0
      %1434 = vmatpush1.bf16.msra.mxu0 0
      %1435 = vmatprep.mubr.bf16.mxu0 0
      %1436 = vmatmul.mubr.bf16.gmra.mrb[0].mxu0 %v1377
      %v1437 = vpop.f32.mrb[0].mxu0
      %v1438 = vadd.f32 %v1274, %v1437
      %v1439 = vpop.f32.mrb[0].mxu0
      %v1440 = vpop.f32.mrb[0].mxu0
      %v1441 = vadd.f32 %v1277, %v1440
      %v1442 = vpop.f32.mrb[0].mxu0
      %1443 = vmatprep.mubr.bf16.mxu0 0
      %1444 = vmatmul.mubr.bf16.gmra.mrb[0].mxu0 %v1380
      %v1445 = vpop.f32.mrb[0].mxu0
      %v1446 = vadd.f32 %v1282, %v1445
      %v1447 = vpop.f32.mrb[0].mxu0
      %v1448 = vpop.f32.mrb[0].mxu0
      %v1449 = vadd.f32 %v1285, %v1448
      %v1450 = vpop.f32.mrb[0].mxu0
      %1451 = vmatprep.mubr.bf16.mxu0 0
      %1452 = vmatmul.mubr.bf16.gmra.mrb[0].mxu0 %v1383
      %v1453 = vpop.f32.mrb[0].mxu0
      %v1454 = vadd.f32 %v1290, %v1453
      %v1455 = vpop.f32.mrb[0].mxu0
      %v1456 = vpop.f32.mrb[0].mxu0
      %v1457 = vadd.f32 %v1293, %v1456
      %v1458 = vpop.f32.mrb[0].mxu0
      %1459 = vmatprep.mubr.bf16.mxu0 0
      %1460 = vmatmul.mubr.bf16.gmra.mrb[0].mxu0 %v1386
      %v1461 = vpop.f32.mrb[0].mxu0
      %v1462 = vadd.f32 %v1298, %v1461
      %v1463 = vpop.f32.mrb[0].mxu0
      %v1464 = vpop.f32.mrb[0].mxu0
      %v1465 = vadd.f32 %v1301, %v1464
      %v1466 = vpop.f32.mrb[0].mxu0
      %1467 = vmatprep.mubr.bf16.mxu0 0
      %1468 = vmatmul.mubr.bf16.gmra.mrb[0].mxu0 %v1389
      %v1469 = vpop.f32.mrb[0].mxu0
      %v1470 = vadd.f32 %v1306, %v1469
      %v1471 = vpop.f32.mrb[0].mxu0
      %v1472 = vpop.f32.mrb[0].mxu0
      %v1473 = vadd.f32 %v1309, %v1472
      %v1474 = vpop.f32.mrb[0].mxu0
      %1475 = vmatprep.mubr.bf16.mxu0 0
      %1476 = vmatmul.mubr.bf16.gmra.mrb[0].mxu0 %v1392
      %v1477 = vpop.f32.mrb[0].mxu0
      %v1478 = vadd.f32 %v1314, %v1477
      %v1479 = vpop.f32.mrb[0].mxu0
      %v1480 = vpop.f32.mrb[0].mxu0
      %v1481 = vadd.f32 %v1317, %v1480
      %v1482 = vpop.f32.mrb[0].mxu0
      %1483 = vmatprep.mubr.bf16.mxu0 0
      %1484 = vmatmul.mubr.bf16.gmra.mrb[0].mxu0 %v1395
      %v1485 = vpop.f32.mrb[0].mxu0
      %v1486 = vadd.f32 %v1322, %v1485
      %v1487 = vpop.f32.mrb[0].mxu0
      %v1488 = vpop.f32.mrb[0].mxu0
      %v1489 = vadd.f32 %v1325, %v1488
      %v1490 = vpop.f32.mrb[0].mxu0
      %1491 = vmatprep.mubr.bf16.mxu0 0
      %1492 = vmatmul.mubr.bf16.gmra.mrb[0].mxu0 %v1398
      %v1493 = vpop.f32.mrb[0].mxu0
      %v1494 = vadd.f32 %v1330, %v1493
      %v1495 = vpop.f32.mrb[0].mxu0
      %v1496 = vpop.f32.mrb[0].mxu0
      %v1497 = vadd.f32 %v1333, %v1496
      %v1498 = vpop.f32.mrb[0].mxu0
      %1499 = vdwg.mxu0
      %v1500 = vld [vmem:[#allocation2] sm:$0xe]
      %v1501 = vld [vmem:[#allocation2 + $0xc] sm:$0xe]
      %v1502 = vld [vmem:[#allocation2 + $0x18] sm:$0xe]
      %v1503 = vld [vmem:[#allocation2 + $0x24] sm:$0xe]
      %v1504 = vld [vmem:[#allocation2 + $0x30] sm:$0xe]
      %v1505 = vld [vmem:[#allocation2 + $0x3c] sm:$0xe]
      %v1506 = vld [vmem:[#allocation2 + $0x48] sm:$0xe]
      %v1507 = vld [vmem:[#allocation2 + $0x54] sm:$0xe]
      %vm1524 = vcmask 1042432
      %vm1525 = vcmask 1046532
      %vm1526 = vmor %vm1524, %vm1525
      %v1527 = vrot.slane %v1500, 5
      %v1528 = vrot.slane %v1527, 4
      %v1529 = vrot.slane %v965, 5
      %v1530 = vsel %vm1526, %v1528, %v1529
      %v1531 = vrot.slane %v1529, 4
      %v1532 = vrot.slane %v981, 5
      %v1533 = vsel %vm1526, %v1531, %v1532
      %v1534 = vrot.slane %v1501, 5
      %v1535 = vrot.slane %v1534, 4
      %v1536 = vrot.slane %v967, 5
      %v1537 = vsel %vm1526, %v1535, %v1536
      %v1538 = vrot.slane %v1536, 4
      %v1539 = vrot.slane %v982, 5
      %v1540 = vsel %vm1526, %v1538, %v1539
      %v1541 = vrot.slane %v1502, 5
      %v1542 = vrot.slane %v1541, 4
      %v1543 = vrot.slane %v969, 5
      %v1544 = vsel %vm1526, %v1542, %v1543
      %v1545 = vrot.slane %v1543, 4
      %v1546 = vrot.slane %v983, 5
      %v1547 = vsel %vm1526, %v1545, %v1546
      %v1548 = vrot.slane %v1503, 5
      %v1549 = vrot.slane %v1548, 4
      %v1550 = vrot.slane %v971, 5
      %v1551 = vsel %vm1526, %v1549, %v1550
      %v1552 = vrot.slane %v1550, 4
      %v1553 = vrot.slane %v984, 5
      %v1554 = vsel %vm1526, %v1552, %v1553
      %v1555 = vrot.slane %v1504, 5
      %v1556 = vrot.slane %v1555, 4
      %v1557 = vrot.slane %v973, 5
      %v1558 = vsel %vm1526, %v1556, %v1557
      %v1559 = vrot.slane %v1557, 4
      %v1560 = vrot.slane %v985, 5
      %v1561 = vsel %vm1526, %v1559, %v1560
      %v1562 = vrot.slane %v1505, 5
      %v1563 = vrot.slane %v1562, 4
      %v1564 = vrot.slane %v975, 5
      %v1565 = vsel %vm1526, %v1563, %v1564
      %v1566 = vrot.slane %v1564, 4
      %v1567 = vrot.slane %v986, 5
      %v1568 = vsel %vm1526, %v1566, %v1567
      %v1569 = vrot.slane %v1506, 5
      %v1570 = vrot.slane %v1569, 4
      %v1571 = vrot.slane %v977, 5
      %v1572 = vsel %vm1526, %v1570, %v1571
      %v1573 = vrot.slane %v1571, 4
      %v1574 = vrot.slane %v987, 5
      %v1575 = vsel %vm1526, %v1573, %v1574
      %v1576 = vrot.slane %v1507, 5
      %v1577 = vrot.slane %v1576, 4
      %v1578 = vrot.slane %v979, 5
      %v1579 = vsel %vm1526, %v1577, %v1578
      %v1580 = vrot.slane %v1578, 4
      %v1581 = vrot.slane %v988, 5
      %v1582 = vsel %vm1526, %v1580, %v1581
      %s1583 = scalar_lea.vmem %s1, 4
      %v1584 = vld [vmem:[%s1583] sm:$0x3]
      %v1585 = vunpack.c.l.b16 %v1530
      %v1586 = vunpack.c.l.b16 %v1533
      %v1587 = vunpack.c.l.b16 %v1537
      %v1588 = vunpack.c.l.b16 %v1540
      %v1589 = vunpack.c.l.b16 %v1544
      %v1590 = vunpack.c.l.b16 %v1547
      %v1591 = vunpack.c.l.b16 %v1551
      %v1592 = vunpack.c.l.b16 %v1554
      %v1593 = vunpack.c.l.b16 %v1558
      %v1594 = vunpack.c.l.b16 %v1561
      %v1595 = vunpack.c.l.b16 %v1565
      %v1596 = vunpack.c.l.b16 %v1568
      %v1597 = vunpack.c.l.b16 %v1572
      %v1598 = vunpack.c.l.b16 %v1575
      %v1599 = vunpack.c.l.b16 %v1579
      %v1600 = vunpack.c.l.b16 %v1582
      %v1601 = vpack.c.b16 %v1586, %v1585
      %v1602 = vpack.c.b16 %v1588, %v1587
      %v1603 = vpack.c.b16 %v1590, %v1589
      %v1604 = vpack.c.b16 %v1592, %v1591
      %v1605 = vpack.c.b16 %v1594, %v1593
      %v1606 = vpack.c.b16 %v1596, %v1595
      %v1607 = vpack.c.b16 %v1598, %v1597
      %v1608 = vpack.c.b16 %v1600, %v1599
      %v1610 = vsel %vm1210, %v1601, 0
      %v1613 = vsel %vm1210, %v1602, 0
      %v1616 = vsel %vm1210, %v1603, 0
      %v1619 = vsel %vm1210, %v1604, 0
      %v1622 = vsel %vm1210, %v1605, 0
      %v1625 = vsel %vm1210, %v1606, 0
      %v1628 = vsel %vm1210, %v1607, 0
      %v1631 = vsel %vm1210, %v1608, 0
      %v1634 = vsel %vm1235, %v1584, 0
      %1636 = vmatprep.subr.bf16.mxu0 0
      %1637 = vmatpush1.bf16.msra.mxu0 %v1634
      %1638 = vmatprep.subr.bf16.mxu0 0
      %1639 = vmatpush1.bf16.msra.mxu0 0
      %1640 = vmatprep.subr.bf16.mxu0 0
      %1641 = vmatpush1.bf16.msra.mxu0 0
      %1642 = vmatprep.subr.bf16.mxu0 0
      %1643 = vmatpush1.bf16.msra.mxu0 0
      %1644 = vmatprep.subr.bf16.mxu0 0
      %1645 = vmatpush1.bf16.msra.mxu0 0
      %1646 = vmatprep.subr.bf16.mxu0 0
      %1647 = vmatpush1.bf16.msra.mxu0 0
      %1648 = vmatprep.subr.bf16.mxu0 0
      %1649 = vmatpush1.bf16.msra.mxu0 0
      %1650 = vmatprep.subr.bf16.mxu0 0
      %1651 = vmatpush1.bf16.msra.mxu0 0
      %1652 = vmatprep.subr.bf16.mxu0 0
      %1653 = vmatpush1.bf16.msra.mxu0 0
      %1654 = vmatprep.subr.bf16.mxu0 0
      %1655 = vmatpush1.bf16.msra.mxu0 0
      %1656 = vmatprep.subr.bf16.mxu0 0
      %1657 = vmatpush1.bf16.msra.mxu0 0
      %1658 = vmatprep.subr.bf16.mxu0 0
      %1659 = vmatpush1.bf16.msra.mxu0 0
      %1660 = vmatprep.subr.bf16.mxu0 0
      %1661 = vmatpush1.bf16.msra.mxu0 0
      %1662 = vmatprep.subr.bf16.mxu0 0
      %1663 = vmatpush1.bf16.msra.mxu0 0
      %1664 = vmatprep.subr.bf16.mxu0 0
      %1665 = vmatpush1.bf16.msra.mxu0 0
      %1666 = vmatprep.subr.bf16.mxu0 0
      %1667 = vmatpush1.bf16.msra.mxu0 0
      %1668 = vmatprep.mubr.bf16.mxu0 0
      %1669 = vmatmul.mubr.bf16.gmra.mrb[0].mxu0 %v1610
      %v1670 = vpop.f32.mrb[0].mxu0
      %v1671 = vadd.f32 0.0, %v1670
      %v1672 = vpop.f32.mrb[0].mxu0
      %v1673 = vpop.f32.mrb[0].mxu0
      %v1674 = vadd.f32 0.0, %v1673
      %v1675 = vpop.f32.mrb[0].mxu0
      %1676 = vmatprep.mubr.bf16.mxu0 0
      %1677 = vmatmul.mubr.bf16.gmra.mrb[0].mxu0 %v1613
      %v1678 = vpop.f32.mrb[0].mxu0
      %v1679 = vadd.f32 0.0, %v1678
      %v1680 = vpop.f32.mrb[0].mxu0
      %v1681 = vpop.f32.mrb[0].mxu0
      %v1682 = vadd.f32 0.0, %v1681
      %v1683 = vpop.f32.mrb[0].mxu0
      %1684 = vmatprep.mubr.bf16.mxu0 0
      %1685 = vmatmul.mubr.bf16.gmra.mrb[0].mxu0 %v1616
      %v1686 = vpop.f32.mrb[0].mxu0
      %v1687 = vadd.f32 0.0, %v1686
      %v1688 = vpop.f32.mrb[0].mxu0
      %v1689 = vpop.f32.mrb[0].mxu0
      %v1690 = vadd.f32 0.0, %v1689
      %v1691 = vpop.f32.mrb[0].mxu0
      %1692 = vmatprep.mubr.bf16.mxu0 0
      %1693 = vmatmul.mubr.bf16.gmra.mrb[0].mxu0 %v1619
      %v1694 = vpop.f32.mrb[0].mxu0
      %v1695 = vadd.f32 0.0, %v1694
      %v1696 = vpop.f32.mrb[0].mxu0
      %v1697 = vpop.f32.mrb[0].mxu0
      %v1698 = vadd.f32 0.0, %v1697
      %v1699 = vpop.f32.mrb[0].mxu0
      %1700 = vmatprep.mubr.bf16.mxu0 0
      %1701 = vmatmul.mubr.bf16.gmra.mrb[0].mxu0 %v1622
      %v1702 = vpop.f32.mrb[0].mxu0
      %v1703 = vadd.f32 0.0, %v1702
      %v1704 = vpop.f32.mrb[0].mxu0
      %v1705 = vpop.f32.mrb[0].mxu0
      %v1706 = vadd.f32 0.0, %v1705
      %v1707 = vpop.f32.mrb[0].mxu0
      %1708 = vmatprep.mubr.bf16.mxu0 0
      %1709 = vmatmul.mubr.bf16.gmra.mrb[0].mxu0 %v1625
      %v1710 = vpop.f32.mrb[0].mxu0
      %v1711 = vadd.f32 0.0, %v1710
      %v1712 = vpop.f32.mrb[0].mxu0
      %v1713 = vpop.f32.mrb[0].mxu0
      %v1714 = vadd.f32 0.0, %v1713
      %v1715 = vpop.f32.mrb[0].mxu0
      %1716 = vmatprep.mubr.bf16.mxu0 0
      %1717 = vmatmul.mubr.bf16.gmra.mrb[0].mxu0 %v1628
      %v1718 = vpop.f32.mrb[0].mxu0
      %v1719 = vadd.f32 0.0, %v1718
      %v1720 = vpop.f32.mrb[0].mxu0
      %v1721 = vpop.f32.mrb[0].mxu0
      %v1722 = vadd.f32 0.0, %v1721
      %v1723 = vpop.f32.mrb[0].mxu0
      %1724 = vmatprep.mubr.bf16.mxu0 0
      %1725 = vmatmul.mubr.bf16.gmra.mrb[0].mxu0 %v1631
      %v1726 = vpop.f32.mrb[0].mxu0
      %v1727 = vadd.f32 0.0, %v1726
      %v1728 = vpop.f32.mrb[0].mxu0
      %v1729 = vpop.f32.mrb[0].mxu0
      %v1730 = vadd.f32 0.0, %v1729
      %v1731 = vpop.f32.mrb[0].mxu0
      %1732 = vdwg.mxu0
      %v1733 = vadd.f32 %v1438, %v1671
      %v1734 = vadd.f32 %v1441, %v1674
      %v1735 = vadd.f32 %v1446, %v1679
      %v1736 = vadd.f32 %v1449, %v1682
      %v1737 = vadd.f32 %v1454, %v1687
      %v1738 = vadd.f32 %v1457, %v1690
      %v1739 = vadd.f32 %v1462, %v1695
      %v1740 = vadd.f32 %v1465, %v1698
      %v1741 = vadd.f32 %v1470, %v1703
      %v1742 = vadd.f32 %v1473, %v1706
      %v1743 = vadd.f32 %v1478, %v1711
      %v1744 = vadd.f32 %v1481, %v1714
      %v1745 = vadd.f32 %v1486, %v1719
      %v1746 = vadd.f32 %v1489, %v1722
      %v1747 = vadd.f32 %v1494, %v1727
      %v1748 = vadd.f32 %v1497, %v1730
      %v1749 = vld [vmem:[%s729] sm:$0xf]
      %v1750 = vld [vmem:[%s729 + $0x4] sm:$0xf]
      %v1751 = vld [vmem:[%s729 + $0xc] sm:$0xf]
      %v1752 = vld [vmem:[%s729 + $0x10] sm:$0xf]
      %v1753 = vld [vmem:[%s729 + $0x18] sm:$0xf]
      %v1754 = vld [vmem:[%s729 + $0x1c] sm:$0xf]
      %v1755 = vld [vmem:[%s729 + $0x24] sm:$0xf]
      %v1756 = vld [vmem:[%s729 + $0x28] sm:$0xf]
      %v1757 = vld [vmem:[%s729 + $0x30] sm:$0xf]
      %v1758 = vld [vmem:[%s729 + $0x34] sm:$0xf]
      %v1759 = vld [vmem:[%s729 + $0x3c] sm:$0xf]
      %v1760 = vld [vmem:[%s729 + $0x40] sm:$0xf]
      %v1761 = vld [vmem:[%s729 + $0x48] sm:$0xf]
      %v1762 = vld [vmem:[%s729 + $0x4c] sm:$0xf]
      %v1763 = vld [vmem:[%s729 + $0x54] sm:$0xf]
      %v1764 = vld [vmem:[%s729 + $0x58] sm:$0xf]
      %s1765 = scalar_lea.vmem %s1, 6
      %v1766 = vld [vmem:[%s1765] sm:$0x3]
      %v1783 = vunpack.c.l.b16 %v1749
      %v1784 = vunpack.c.l.b16 %v1750
      %v1785 = vunpack.c.l.b16 %v1751
      %v1786 = vunpack.c.l.b16 %v1752
      %v1787 = vunpack.c.l.b16 %v1753
      %v1788 = vunpack.c.l.b16 %v1754
      %v1789 = vunpack.c.l.b16 %v1755
      %v1790 = vunpack.c.l.b16 %v1756
      %v1791 = vunpack.c.l.b16 %v1757
      %v1792 = vunpack.c.l.b16 %v1758
      %v1793 = vunpack.c.l.b16 %v1759
      %v1794 = vunpack.c.l.b16 %v1760
      %v1795 = vunpack.c.l.b16 %v1761
      %v1796 = vunpack.c.l.b16 %v1762
      %v1797 = vunpack.c.l.b16 %v1763
      %v1798 = vunpack.c.l.b16 %v1764
      %v1799 = vpack.c.b16 %v1784, %v1783
      %v1800 = vpack.c.b16 %v1786, %v1785
      %v1801 = vpack.c.b16 %v1788, %v1787
      %v1802 = vpack.c.b16 %v1790, %v1789
      %v1803 = vpack.c.b16 %v1792, %v1791
      %v1804 = vpack.c.b16 %v1794, %v1793
      %v1805 = vpack.c.b16 %v1796, %v1795
      %v1806 = vpack.c.b16 %v1798, %v1797
      %v1808 = vsel %vm1210, %v1799, 0
      %v1811 = vsel %vm1210, %v1800, 0
      %v1814 = vsel %vm1210, %v1801, 0
      %v1817 = vsel %vm1210, %v1802, 0
      %v1820 = vsel %vm1210, %v1803, 0
      %v1823 = vsel %vm1210, %v1804, 0
      %v1826 = vsel %vm1210, %v1805, 0
      %v1829 = vsel %vm1210, %v1806, 0
      %v1832 = vsel %vm1235, %v1766, 0
      %1834 = vmatprep.subr.bf16.mxu0 0
      %1835 = vmatpush1.bf16.msra.mxu0 %v1832
      %1836 = vmatprep.subr.bf16.mxu0 0
      %1837 = vmatpush1.bf16.msra.mxu0 0
      %1838 = vmatprep.subr.bf16.mxu0 0
      %1839 = vmatpush1.bf16.msra.mxu0 0
      %1840 = vmatprep.subr.bf16.mxu0 0
      %1841 = vmatpush1.bf16.msra.mxu0 0
      %1842 = vmatprep.subr.bf16.mxu0 0
      %1843 = vmatpush1.bf16.msra.mxu0 0
      %1844 = vmatprep.subr.bf16.mxu0 0
      %1845 = vmatpush1.bf16.msra.mxu0 0
      %1846 = vmatprep.subr.bf16.mxu0 0
      %1847 = vmatpush1.bf16.msra.mxu0 0
      %1848 = vmatprep.subr.bf16.mxu0 0
      %1849 = vmatpush1.bf16.msra.mxu0 0
      %1850 = vmatprep.subr.bf16.mxu0 0
      %1851 = vmatpush1.bf16.msra.mxu0 0
      %1852 = vmatprep.subr.bf16.mxu0 0
      %1853 = vmatpush1.bf16.msra.mxu0 0
      %1854 = vmatprep.subr.bf16.mxu0 0
      %1855 = vmatpush1.bf16.msra.mxu0 0
      %1856 = vmatprep.subr.bf16.mxu0 0
      %1857 = vmatpush1.bf16.msra.mxu0 0
      %1858 = vmatprep.subr.bf16.mxu0 0
      %1859 = vmatpush1.bf16.msra.mxu0 0
      %1860 = vmatprep.subr.bf16.mxu0 0
      %1861 = vmatpush1.bf16.msra.mxu0 0
      %1862 = vmatprep.subr.bf16.mxu0 0
      %1863 = vmatpush1.bf16.msra.mxu0 0
      %1864 = vmatprep.subr.bf16.mxu0 0
      %1865 = vmatpush1.bf16.msra.mxu0 0
      %1866 = vmatprep.mubr.bf16.mxu0 0
      %1867 = vmatmul.mubr.bf16.gmra.mrb[0].mxu0 %v1808
      %v1868 = vpop.f32.mrb[0].mxu0
      %v1869 = vadd.f32 0.0, %v1868
      %v1870 = vpop.f32.mrb[0].mxu0
      %v1871 = vpop.f32.mrb[0].mxu0
      %v1872 = vadd.f32 0.0, %v1871
      %v1873 = vpop.f32.mrb[0].mxu0
      %1874 = vmatprep.mubr.bf16.mxu0 0
      %1875 = vmatmul.mubr.bf16.gmra.mrb[0].mxu0 %v1811
      %v1876 = vpop.f32.mrb[0].mxu0
      %v1877 = vadd.f32 0.0, %v1876
      %v1878 = vpop.f32.mrb[0].mxu0
      %v1879 = vpop.f32.mrb[0].mxu0
      %v1880 = vadd.f32 0.0, %v1879
      %v1881 = vpop.f32.mrb[0].mxu0
      %1882 = vmatprep.mubr.bf16.mxu0 0
      %1883 = vmatmul.mubr.bf16.gmra.mrb[0].mxu0 %v1814
      %v1884 = vpop.f32.mrb[0].mxu0
      %v1885 = vadd.f32 0.0, %v1884
      %v1886 = vpop.f32.mrb[0].mxu0
      %v1887 = vpop.f32.mrb[0].mxu0
      %v1888 = vadd.f32 0.0, %v1887
      %v1889 = vpop.f32.mrb[0].mxu0
      %1890 = vmatprep.mubr.bf16.mxu0 0
      %1891 = vmatmul.mubr.bf16.gmra.mrb[0].mxu0 %v1817
      %v1892 = vpop.f32.mrb[0].mxu0
      %v1893 = vadd.f32 0.0, %v1892
      %v1894 = vpop.f32.mrb[0].mxu0
      %v1895 = vpop.f32.mrb[0].mxu0
      %v1896 = vadd.f32 0.0, %v1895
      %v1897 = vpop.f32.mrb[0].mxu0
      %1898 = vmatprep.mubr.bf16.mxu0 0
      %1899 = vmatmul.mubr.bf16.gmra.mrb[0].mxu0 %v1820
      %v1900 = vpop.f32.mrb[0].mxu0
      %v1901 = vadd.f32 0.0, %v1900
      %v1902 = vpop.f32.mrb[0].mxu0
      %v1903 = vpop.f32.mrb[0].mxu0
      %v1904 = vadd.f32 0.0, %v1903
      %v1905 = vpop.f32.mrb[0].mxu0
      %1906 = vmatprep.mubr.bf16.mxu0 0
      %1907 = vmatmul.mubr.bf16.gmra.mrb[0].mxu0 %v1823
      %v1908 = vpop.f32.mrb[0].mxu0
      %v1909 = vadd.f32 0.0, %v1908
      %v1910 = vpop.f32.mrb[0].mxu0
      %v1911 = vpop.f32.mrb[0].mxu0
      %v1912 = vadd.f32 0.0, %v1911
      %v1913 = vpop.f32.mrb[0].mxu0
      %1914 = vmatprep.mubr.bf16.mxu0 0
      %1915 = vmatmul.mubr.bf16.gmra.mrb[0].mxu0 %v1826
      %v1916 = vpop.f32.mrb[0].mxu0
      %v1917 = vadd.f32 0.0, %v1916
      %v1918 = vpop.f32.mrb[0].mxu0
      %v1919 = vpop.f32.mrb[0].mxu0
      %v1920 = vadd.f32 0.0, %v1919
      %v1921 = vpop.f32.mrb[0].mxu0
      %1922 = vmatprep.mubr.bf16.mxu0 0
      %1923 = vmatmul.mubr.bf16.gmra.mrb[0].mxu0 %v1829
      %v1924 = vpop.f32.mrb[0].mxu0
      %v1925 = vadd.f32 0.0, %v1924
      %v1926 = vpop.f32.mrb[0].mxu0
      %v1927 = vpop.f32.mrb[0].mxu0
      %v1928 = vadd.f32 0.0, %v1927
      %v1929 = vpop.f32.mrb[0].mxu0
      %1930 = vdwg.mxu0
      %v1931 = vadd.f32 %v1733, %v1869
      %v1932 = vadd.f32 %v1734, %v1872
      %v1933 = vadd.f32 %v1735, %v1877
      %v1934 = vadd.f32 %v1736, %v1880
      %v1935 = vadd.f32 %v1737, %v1885
      %v1936 = vadd.f32 %v1738, %v1888
      %v1937 = vadd.f32 %v1739, %v1893
      %v1938 = vadd.f32 %v1740, %v1896
      %v1939 = vadd.f32 %v1741, %v1901
      %v1940 = vadd.f32 %v1742, %v1904
      %v1941 = vadd.f32 %v1743, %v1909
      %v1942 = vadd.f32 %v1744, %v1912
      %v1943 = vadd.f32 %v1745, %v1917
      %v1944 = vadd.f32 %v1746, %v1920
      %v1945 = vadd.f32 %v1747, %v1925
      %v1946 = vadd.f32 %v1748, %v1928
      %v1947 = vld [vmem:[%s729] sm:$0xf]
      %v1948 = vld [vmem:[%s729 + $0x4] sm:$0xf]
      %v1949 = vld [vmem:[%s729 + $0x8] sm:$0x1]
      %v1950 = vld [vmem:[%s729 + $0xc] sm:$0xf]
      %v1951 = vld [vmem:[%s729 + $0x10] sm:$0xf]
      %v1952 = vld [vmem:[%s729 + $0x14] sm:$0x1]
      %v1953 = vld [vmem:[%s729 + $0x18] sm:$0xf]
      %v1954 = vld [vmem:[%s729 + $0x1c] sm:$0xf]
      %v1955 = vld [vmem:[%s729 + $0x20] sm:$0x1]
      %v1956 = vld [vmem:[%s729 + $0x24] sm:$0xf]
      %v1957 = vld [vmem:[%s729 + $0x28] sm:$0xf]
      %v1958 = vld [vmem:[%s729 + $0x2c] sm:$0x1]
      %v1959 = vld [vmem:[%s729 + $0x30] sm:$0xf]
      %v1960 = vld [vmem:[%s729 + $0x34] sm:$0xf]
      %v1961 = vld [vmem:[%s729 + $0x38] sm:$0x1]
      %v1962 = vld [vmem:[%s729 + $0x3c] sm:$0xf]
      %v1963 = vld [vmem:[%s729 + $0x40] sm:$0xf]
      %v1964 = vld [vmem:[%s729 + $0x44] sm:$0x1]
      %v1965 = vld [vmem:[%s729 + $0x48] sm:$0xf]
      %v1966 = vld [vmem:[%s729 + $0x4c] sm:$0xf]
      %v1967 = vld [vmem:[%s729 + $0x50] sm:$0x1]
      %v1968 = vld [vmem:[%s729 + $0x54] sm:$0xf]
      %v1969 = vld [vmem:[%s729 + $0x58] sm:$0xf]
      %v1970 = vld [vmem:[%s729 + $0x5c] sm:$0x1]
      %v1972 = vshrl.u32 %v1947, 16
      %v1974 = vrot.slane %v1972, 4
      %v1975 = vshll.u32 %v1947, 16
      %v1977 = vrot.slane %v1975, 5
      %v1978 = vor.u32 %v1974, %v1977
      %v1979 = vrot.slane %v1978, 4
      %v1981 = vshll.u32 %v1948, 16
      %v1983 = vrot.slane %v1981, 5
      %v1984 = vsel %vm991, %v1979, %v1983
      %v1985 = vshrl.u32 %v1948, 16
      %v1987 = vrot.slane %v1985, 4
      %v1988 = vor.u32 %v1987, %v1983
      %v1989 = vrot.slane %v1988, 4
      %v1991 = vshll.u32 %v1949, 16
      %v1993 = vrot.slane %v1991, 5
      %v1994 = vsel %vm991, %v1989, %v1993
      %v1996 = vshrl.u32 %v1950, 16
      %v1998 = vrot.slane %v1996, 4
      %v1999 = vshll.u32 %v1950, 16
      %v2001 = vrot.slane %v1999, 5
      %v2002 = vor.u32 %v1998, %v2001
      %v2003 = vrot.slane %v2002, 4
      %v2005 = vshll.u32 %v1951, 16
      %v2007 = vrot.slane %v2005, 5
      %v2008 = vsel %vm991, %v2003, %v2007
      %v2009 = vshrl.u32 %v1951, 16
      %v2011 = vrot.slane %v2009, 4
      %v2012 = vor.u32 %v2011, %v2007
      %v2013 = vrot.slane %v2012, 4
      %v2015 = vshll.u32 %v1952, 16
      %v2017 = vrot.slane %v2015, 5
      %v2018 = vsel %vm991, %v2013, %v2017
      %v2020 = vshrl.u32 %v1953, 16
      %v2022 = vrot.slane %v2020, 4
      %v2023 = vshll.u32 %v1953, 16
      %v2025 = vrot.slane %v2023, 5
      %v2026 = vor.u32 %v2022, %v2025
      %v2027 = vrot.slane %v2026, 4
      %v2029 = vshll.u32 %v1954, 16
      %v2031 = vrot.slane %v2029, 5
      %v2032 = vsel %vm991, %v2027, %v2031
      %v2033 = vshrl.u32 %v1954, 16
      %v2035 = vrot.slane %v2033, 4
      %v2036 = vor.u32 %v2035, %v2031
      %v2037 = vrot.slane %v2036, 4
      %v2039 = vshll.u32 %v1955, 16
      %v2041 = vrot.slane %v2039, 5
      %v2042 = vsel %vm991, %v2037, %v2041
      %v2044 = vshrl.u32 %v1956, 16
      %v2046 = vrot.slane %v2044, 4
      %v2047 = vshll.u32 %v1956, 16
      %v2049 = vrot.slane %v2047, 5
      %v2050 = vor.u32 %v2046, %v2049
      %v2051 = vrot.slane %v2050, 4
      %v2053 = vshll.u32 %v1957, 16
      %v2055 = vrot.slane %v2053, 5
      %v2056 = vsel %vm991, %v2051, %v2055
      %v2057 = vshrl.u32 %v1957, 16
      %v2059 = vrot.slane %v2057, 4
      %v2060 = vor.u32 %v2059, %v2055
      %v2061 = vrot.slane %v2060, 4
      %v2063 = vshll.u32 %v1958, 16
      %v2065 = vrot.slane %v2063, 5
      %v2066 = vsel %vm991, %v2061, %v2065
      %v2068 = vshrl.u32 %v1959, 16
      %v2070 = vrot.slane %v2068, 4
      %v2071 = vshll.u32 %v1959, 16
      %v2073 = vrot.slane %v2071, 5
      %v2074 = vor.u32 %v2070, %v2073
      %v2075 = vrot.slane %v2074, 4
      %v2077 = vshll.u32 %v1960, 16
      %v2079 = vrot.slane %v2077, 5
      %v2080 = vsel %vm991, %v2075, %v2079
      %v2081 = vshrl.u32 %v1960, 16
      %v2083 = vrot.slane %v2081, 4
      %v2084 = vor.u32 %v2083, %v2079
      %v2085 = vrot.slane %v2084, 4
      %v2087 = vshll.u32 %v1961, 16
      %v2089 = vrot.slane %v2087, 5
      %v2090 = vsel %vm991, %v2085, %v2089
      %v2092 = vshrl.u32 %v1962, 16
      %v2094 = vrot.slane %v2092, 4
      %v2095 = vshll.u32 %v1962, 16
      %v2097 = vrot.slane %v2095, 5
      %v2098 = vor.u32 %v2094, %v2097
      %v2099 = vrot.slane %v2098, 4
      %v2101 = vshll.u32 %v1963, 16
      %v2103 = vrot.slane %v2101, 5
      %v2104 = vsel %vm991, %v2099, %v2103
      %v2105 = vshrl.u32 %v1963, 16
      %v2107 = vrot.slane %v2105, 4
      %v2108 = vor.u32 %v2107, %v2103
      %v2109 = vrot.slane %v2108, 4
      %v2111 = vshll.u32 %v1964, 16
      %v2113 = vrot.slane %v2111, 5
      %v2114 = vsel %vm991, %v2109, %v2113
      %v2116 = vshrl.u32 %v1965, 16
      %v2118 = vrot.slane %v2116, 4
      %v2119 = vshll.u32 %v1965, 16
      %v2121 = vrot.slane %v2119, 5
      %v2122 = vor.u32 %v2118, %v2121
      %v2123 = vrot.slane %v2122, 4
      %v2125 = vshll.u32 %v1966, 16
      %v2127 = vrot.slane %v2125, 5
      %v2128 = vsel %vm991, %v2123, %v2127
      %v2129 = vshrl.u32 %v1966, 16
      %v2131 = vrot.slane %v2129, 4
      %v2132 = vor.u32 %v2131, %v2127
      %v2133 = vrot.slane %v2132, 4
      %v2135 = vshll.u32 %v1967, 16
      %v2137 = vrot.slane %v2135, 5
      %v2138 = vsel %vm991, %v2133, %v2137
      %v2140 = vshrl.u32 %v1968, 16
      %v2142 = vrot.slane %v2140, 4
      %v2143 = vshll.u32 %v1968, 16
      %v2145 = vrot.slane %v2143, 5
      %v2146 = vor.u32 %v2142, %v2145
      %v2147 = vrot.slane %v2146, 4
      %v2149 = vshll.u32 %v1969, 16
      %v2151 = vrot.slane %v2149, 5
      %v2152 = vsel %vm991, %v2147, %v2151
      %v2153 = vshrl.u32 %v1969, 16
      %v2155 = vrot.slane %v2153, 4
      %v2156 = vor.u32 %v2155, %v2151
      %v2157 = vrot.slane %v2156, 4
      %v2159 = vshll.u32 %v1970, 16
      %v2161 = vrot.slane %v2159, 5
      %v2162 = vsel %vm991, %v2157, %v2161
      %s2163 = scalar_lea.vmem %s1, 8
      %v2164 = vld [vmem:[%s2163] sm:$0x3]
      %v2165 = vunpack.c.l.b16 %v1984
      %v2166 = vunpack.c.l.b16 %v1994
      %v2167 = vunpack.c.l.b16 %v2008
      %v2168 = vunpack.c.l.b16 %v2018
      %v2169 = vunpack.c.l.b16 %v2032
      %v2170 = vunpack.c.l.b16 %v2042
      %v2171 = vunpack.c.l.b16 %v2056
      %v2172 = vunpack.c.l.b16 %v2066
      %v2173 = vunpack.c.l.b16 %v2080
      %v2174 = vunpack.c.l.b16 %v2090
      %v2175 = vunpack.c.l.b16 %v2104
      %v2176 = vunpack.c.l.b16 %v2114
      %v2177 = vunpack.c.l.b16 %v2128
      %v2178 = vunpack.c.l.b16 %v2138
      %v2179 = vunpack.c.l.b16 %v2152
      %v2180 = vunpack.c.l.b16 %v2162
      %v2181 = vpack.c.b16 %v2166, %v2165
      %v2182 = vpack.c.b16 %v2168, %v2167
      %v2183 = vpack.c.b16 %v2170, %v2169
      %v2184 = vpack.c.b16 %v2172, %v2171
      %v2185 = vpack.c.b16 %v2174, %v2173
      %v2186 = vpack.c.b16 %v2176, %v2175
      %v2187 = vpack.c.b16 %v2178, %v2177
      %v2188 = vpack.c.b16 %v2180, %v2179
      %v2190 = vsel %vm1210, %v2181, 0
      %v2193 = vsel %vm1210, %v2182, 0
      %v2196 = vsel %vm1210, %v2183, 0
      %v2199 = vsel %vm1210, %v2184, 0
      %v2202 = vsel %vm1210, %v2185, 0
      %v2205 = vsel %vm1210, %v2186, 0
      %v2208 = vsel %vm1210, %v2187, 0
      %v2211 = vsel %vm1210, %v2188, 0
      %v2214 = vsel %vm1235, %v2164, 0
      %2216 = vmatprep.subr.bf16.mxu0 0
      %2217 = vmatpush1.bf16.msra.mxu0 %v2214
      %2218 = vmatprep.subr.bf16.mxu0 0
      %2219 = vmatpush1.bf16.msra.mxu0 0
      %2220 = vmatprep.subr.bf16.mxu0 0
      %2221 = vmatpush1.bf16.msra.mxu0 0
      %2222 = vmatprep.subr.bf16.mxu0 0
      %2223 = vmatpush1.bf16.msra.mxu0 0
      %2224 = vmatprep.subr.bf16.mxu0 0
      %2225 = vmatpush1.bf16.msra.mxu0 0
      %2226 = vmatprep.subr.bf16.mxu0 0
      %2227 = vmatpush1.bf16.msra.mxu0 0
      %2228 = vmatprep.subr.bf16.mxu0 0
      %2229 = vmatpush1.bf16.msra.mxu0 0
      %2230 = vmatprep.subr.bf16.mxu0 0
      %2231 = vmatpush1.bf16.msra.mxu0 0
      %2232 = vmatprep.subr.bf16.mxu0 0
      %2233 = vmatpush1.bf16.msra.mxu0 0
      %2234 = vmatprep.subr.bf16.mxu0 0
      %2235 = vmatpush1.bf16.msra.mxu0 0
      %2236 = vmatprep.subr.bf16.mxu0 0
      %2237 = vmatpush1.bf16.msra.mxu0 0
      %2238 = vmatprep.subr.bf16.mxu0 0
      %2239 = vmatpush1.bf16.msra.mxu0 0
      %2240 = vmatprep.subr.bf16.mxu0 0
      %2241 = vmatpush1.bf16.msra.mxu0 0
      %2242 = vmatprep.subr.bf16.mxu0 0
      %2243 = vmatpush1.bf16.msra.mxu0 0
      %2244 = vmatprep.subr.bf16.mxu0 0
      %2245 = vmatpush1.bf16.msra.mxu0 0
      %2246 = vmatprep.subr.bf16.mxu0 0
      %2247 = vmatpush1.bf16.msra.mxu0 0
      %2248 = vmatprep.mubr.bf16.mxu0 0
      %2249 = vmatmul.mubr.bf16.gmra.mrb[0].mxu0 %v2190
      %v2250 = vpop.f32.mrb[0].mxu0
      %v2251 = vadd.f32 0.0, %v2250
      %v2252 = vpop.f32.mrb[0].mxu0
      %v2253 = vpop.f32.mrb[0].mxu0
      %v2254 = vadd.f32 0.0, %v2253
      %v2255 = vpop.f32.mrb[0].mxu0
      %2256 = vmatprep.mubr.bf16.mxu0 0
      %2257 = vmatmul.mubr.bf16.gmra.mrb[0].mxu0 %v2193
      %v2258 = vpop.f32.mrb[0].mxu0
      %v2259 = vadd.f32 0.0, %v2258
      %v2260 = vpop.f32.mrb[0].mxu0
      %v2261 = vpop.f32.mrb[0].mxu0
      %v2262 = vadd.f32 0.0, %v2261
      %v2263 = vpop.f32.mrb[0].mxu0
      %2264 = vmatprep.mubr.bf16.mxu0 0
      %2265 = vmatmul.mubr.bf16.gmra.mrb[0].mxu0 %v2196
      %v2266 = vpop.f32.mrb[0].mxu0
      %v2267 = vadd.f32 0.0, %v2266
      %v2268 = vpop.f32.mrb[0].mxu0
      %v2269 = vpop.f32.mrb[0].mxu0
      %v2270 = vadd.f32 0.0, %v2269
      %v2271 = vpop.f32.mrb[0].mxu0
      %2272 = vmatprep.mubr.bf16.mxu0 0
      %2273 = vmatmul.mubr.bf16.gmra.mrb[0].mxu0 %v2199
      %v2274 = vpop.f32.mrb[0].mxu0
      %v2275 = vadd.f32 0.0, %v2274
      %v2276 = vpop.f32.mrb[0].mxu0
      %v2277 = vpop.f32.mrb[0].mxu0
      %v2278 = vadd.f32 0.0, %v2277
      %v2279 = vpop.f32.mrb[0].mxu0
      %2280 = vmatprep.mubr.bf16.mxu0 0
      %2281 = vmatmul.mubr.bf16.gmra.mrb[0].mxu0 %v2202
      %v2282 = vpop.f32.mrb[0].mxu0
      %v2283 = vadd.f32 0.0, %v2282
      %v2284 = vpop.f32.mrb[0].mxu0
      %v2285 = vpop.f32.mrb[0].mxu0
      %v2286 = vadd.f32 0.0, %v2285
      %v2287 = vpop.f32.mrb[0].mxu0
      %2288 = vmatprep.mubr.bf16.mxu0 0
      %2289 = vmatmul.mubr.bf16.gmra.mrb[0].mxu0 %v2205
      %v2290 = vpop.f32.mrb[0].mxu0
      %v2291 = vadd.f32 0.0, %v2290
      %v2292 = vpop.f32.mrb[0].mxu0
      %v2293 = vpop.f32.mrb[0].mxu0
      %v2294 = vadd.f32 0.0, %v2293
      %v2295 = vpop.f32.mrb[0].mxu0
      %2296 = vmatprep.mubr.bf16.mxu0 0
      %2297 = vmatmul.mubr.bf16.gmra.mrb[0].mxu0 %v2208
      %v2298 = vpop.f32.mrb[0].mxu0
      %v2299 = vadd.f32 0.0, %v2298
      %v2300 = vpop.f32.mrb[0].mxu0
      %v2301 = vpop.f32.mrb[0].mxu0
      %v2302 = vadd.f32 0.0, %v2301
      %v2303 = vpop.f32.mrb[0].mxu0
      %2304 = vmatprep.mubr.bf16.mxu0 0
      %2305 = vmatmul.mubr.bf16.gmra.mrb[0].mxu0 %v2211
      %v2306 = vpop.f32.mrb[0].mxu0
      %v2307 = vadd.f32 0.0, %v2306
      %v2308 = vpop.f32.mrb[0].mxu0
      %v2309 = vpop.f32.mrb[0].mxu0
      %v2310 = vadd.f32 0.0, %v2309
      %v2311 = vpop.f32.mrb[0].mxu0
      %2312 = vdwg.mxu0
      %v2313 = vadd.f32 %v1931, %v2251
      %v2314 = vadd.f32 %v1932, %v2254
      %v2315 = vadd.f32 %v1933, %v2259
      %v2316 = vadd.f32 %v1934, %v2262
      %v2317 = vadd.f32 %v1935, %v2267
      %v2318 = vadd.f32 %v1936, %v2270
      %v2319 = vadd.f32 %v1937, %v2275
      %v2320 = vadd.f32 %v1938, %v2278
      %v2321 = vadd.f32 %v1939, %v2283
      %v2322 = vadd.f32 %v1940, %v2286
      %v2323 = vadd.f32 %v1941, %v2291
      %v2324 = vadd.f32 %v1942, %v2294
      %v2325 = vadd.f32 %v1943, %v2299
      %v2326 = vadd.f32 %v1944, %v2302
      %v2327 = vadd.f32 %v1945, %v2307
      %v2328 = vadd.f32 %v1946, %v2310
      %v2329 = vld [vmem:[%s729] sm:$0xe]
      %v2330 = vld [vmem:[%s729 + $0xc] sm:$0xe]
      %v2331 = vld [vmem:[%s729 + $0x18] sm:$0xe]
      %v2332 = vld [vmem:[%s729 + $0x24] sm:$0xe]
      %v2333 = vld [vmem:[%s729 + $0x30] sm:$0xe]
      %v2334 = vld [vmem:[%s729 + $0x3c] sm:$0xe]
      %v2335 = vld [vmem:[%s729 + $0x48] sm:$0xe]
      %v2336 = vld [vmem:[%s729 + $0x54] sm:$0xe]
      %v2361 = vrot.slane %v2329, 5
      %v2362 = vrot.slane %v2361, 4
      %v2363 = vrot.slane %v1948, 5
      %v2364 = vsel %vm1526, %v2362, %v2363
      %v2365 = vrot.slane %v2363, 4
      %v2366 = vrot.slane %v1949, 5
      %v2367 = vsel %vm1526, %v2365, %v2366
      %v2368 = vrot.slane %v2330, 5
      %v2369 = vrot.slane %v2368, 4
      %v2370 = vrot.slane %v1951, 5
      %v2371 = vsel %vm1526, %v2369, %v2370
      %v2372 = vrot.slane %v2370, 4
      %v2373 = vrot.slane %v1952, 5
      %v2374 = vsel %vm1526, %v2372, %v2373
      %v2375 = vrot.slane %v2331, 5
      %v2376 = vrot.slane %v2375, 4
      %v2377 = vrot.slane %v1954, 5
      %v2378 = vsel %vm1526, %v2376, %v2377
      %v2379 = vrot.slane %v2377, 4
      %v2380 = vrot.slane %v1955, 5
      %v2381 = vsel %vm1526, %v2379, %v2380
      %v2382 = vrot.slane %v2332, 5
      %v2383 = vrot.slane %v2382, 4
      %v2384 = vrot.slane %v1957, 5
      %v2385 = vsel %vm1526, %v2383, %v2384
      %v2386 = vrot.slane %v2384, 4
      %v2387 = vrot.slane %v1958, 5
      %v2388 = vsel %vm1526, %v2386, %v2387
      %v2389 = vrot.slane %v2333, 5
      %v2390 = vrot.slane %v2389, 4
      %v2391 = vrot.slane %v1960, 5
      %v2392 = vsel %vm1526, %v2390, %v2391
      %v2393 = vrot.slane %v2391, 4
      %v2394 = vrot.slane %v1961, 5
      %v2395 = vsel %vm1526, %v2393, %v2394
      %v2396 = vrot.slane %v2334, 5
      %v2397 = vrot.slane %v2396, 4
      %v2398 = vrot.slane %v1963, 5
      %v2399 = vsel %vm1526, %v2397, %v2398
      %v2400 = vrot.slane %v2398, 4
      %v2401 = vrot.slane %v1964, 5
      %v2402 = vsel %vm1526, %v2400, %v2401
      %v2403 = vrot.slane %v2335, 5
      %v2404 = vrot.slane %v2403, 4
      %v2405 = vrot.slane %v1966, 5
      %v2406 = vsel %vm1526, %v2404, %v2405
      %v2407 = vrot.slane %v2405, 4
      %v2408 = vrot.slane %v1967, 5
      %v2409 = vsel %vm1526, %v2407, %v2408
      %v2410 = vrot.slane %v2336, 5
      %v2411 = vrot.slane %v2410, 4
      %v2412 = vrot.slane %v1969, 5
      %v2413 = vsel %vm1526, %v2411, %v2412
      %v2414 = vrot.slane %v2412, 4
      %v2415 = vrot.slane %v1970, 5
      %v2416 = vsel %vm1526, %v2414, %v2415
      %s2417 = scalar_lea.vmem %s1, 10
      %v2418 = vld [vmem:[%s2417] sm:$0x3]
      %v2419 = vunpack.c.l.b16 %v2364
      %v2420 = vunpack.c.l.b16 %v2367
      %v2421 = vunpack.c.l.b16 %v2371
      %v2422 = vunpack.c.l.b16 %v2374
      %v2423 = vunpack.c.l.b16 %v2378
      %v2424 = vunpack.c.l.b16 %v2381
      %v2425 = vunpack.c.l.b16 %v2385
      %v2426 = vunpack.c.l.b16 %v2388
      %v2427 = vunpack.c.l.b16 %v2392
      %v2428 = vunpack.c.l.b16 %v2395
      %v2429 = vunpack.c.l.b16 %v2399
      %v2430 = vunpack.c.l.b16 %v2402
      %v2431 = vunpack.c.l.b16 %v2406
      %v2432 = vunpack.c.l.b16 %v2409
      %v2433 = vunpack.c.l.b16 %v2413
      %v2434 = vunpack.c.l.b16 %v2416
      %v2435 = vpack.c.b16 %v2420, %v2419
      %v2436 = vpack.c.b16 %v2422, %v2421
      %v2437 = vpack.c.b16 %v2424, %v2423
      %v2438 = vpack.c.b16 %v2426, %v2425
      %v2439 = vpack.c.b16 %v2428, %v2427
      %v2440 = vpack.c.b16 %v2430, %v2429
      %v2441 = vpack.c.b16 %v2432, %v2431
      %v2442 = vpack.c.b16 %v2434, %v2433
      %v2444 = vsel %vm1210, %v2435, 0
      %v2447 = vsel %vm1210, %v2436, 0
      %v2450 = vsel %vm1210, %v2437, 0
      %v2453 = vsel %vm1210, %v2438, 0
      %v2456 = vsel %vm1210, %v2439, 0
      %v2459 = vsel %vm1210, %v2440, 0
      %v2462 = vsel %vm1210, %v2441, 0
      %v2465 = vsel %vm1210, %v2442, 0
      %v2468 = vsel %vm1235, %v2418, 0
      %2470 = vmatprep.subr.bf16.mxu0 0
      %2471 = vmatpush1.bf16.msra.mxu0 %v2468
      %2472 = vmatprep.subr.bf16.mxu0 0
      %2473 = vmatpush1.bf16.msra.mxu0 0
      %2474 = vmatprep.subr.bf16.mxu0 0
      %2475 = vmatpush1.bf16.msra.mxu0 0
      %2476 = vmatprep.subr.bf16.mxu0 0
      %2477 = vmatpush1.bf16.msra.mxu0 0
      %2478 = vmatprep.subr.bf16.mxu0 0
      %2479 = vmatpush1.bf16.msra.mxu0 0
      %2480 = vmatprep.subr.bf16.mxu0 0
      %2481 = vmatpush1.bf16.msra.mxu0 0
      %2482 = vmatprep.subr.bf16.mxu0 0
      %2483 = vmatpush1.bf16.msra.mxu0 0
      %2484 = vmatprep.subr.bf16.mxu0 0
      %2485 = vmatpush1.bf16.msra.mxu0 0
      %2486 = vmatprep.subr.bf16.mxu0 0
      %2487 = vmatpush1.bf16.msra.mxu0 0
      %2488 = vmatprep.subr.bf16.mxu0 0
      %2489 = vmatpush1.bf16.msra.mxu0 0
      %2490 = vmatprep.subr.bf16.mxu0 0
      %2491 = vmatpush1.bf16.msra.mxu0 0
      %2492 = vmatprep.subr.bf16.mxu0 0
      %2493 = vmatpush1.bf16.msra.mxu0 0
      %2494 = vmatprep.subr.bf16.mxu0 0
      %2495 = vmatpush1.bf16.msra.mxu0 0
      %2496 = vmatprep.subr.bf16.mxu0 0
      %2497 = vmatpush1.bf16.msra.mxu0 0
      %2498 = vmatprep.subr.bf16.mxu0 0
      %2499 = vmatpush1.bf16.msra.mxu0 0
      %2500 = vmatprep.subr.bf16.mxu0 0
      %2501 = vmatpush1.bf16.msra.mxu0 0
      %2502 = vmatprep.mubr.bf16.mxu0 0
      %2503 = vmatmul.mubr.bf16.gmra.mrb[0].mxu0 %v2444
      %v2504 = vpop.f32.mrb[0].mxu0
      %v2505 = vadd.f32 0.0, %v2504
      %v2506 = vpop.f32.mrb[0].mxu0
      %v2507 = vpop.f32.mrb[0].mxu0
      %v2508 = vadd.f32 0.0, %v2507
      %v2509 = vpop.f32.mrb[0].mxu0
      %2510 = vmatprep.mubr.bf16.mxu0 0
      %2511 = vmatmul.mubr.bf16.gmra.mrb[0].mxu0 %v2447
      %v2512 = vpop.f32.mrb[0].mxu0
      %v2513 = vadd.f32 0.0, %v2512
      %v2514 = vpop.f32.mrb[0].mxu0
      %v2515 = vpop.f32.mrb[0].mxu0
      %v2516 = vadd.f32 0.0, %v2515
      %v2517 = vpop.f32.mrb[0].mxu0
      %2518 = vmatprep.mubr.bf16.mxu0 0
      %2519 = vmatmul.mubr.bf16.gmra.mrb[0].mxu0 %v2450
      %v2520 = vpop.f32.mrb[0].mxu0
      %v2521 = vadd.f32 0.0, %v2520
      %v2522 = vpop.f32.mrb[0].mxu0
      %v2523 = vpop.f32.mrb[0].mxu0
      %v2524 = vadd.f32 0.0, %v2523
      %v2525 = vpop.f32.mrb[0].mxu0
      %2526 = vmatprep.mubr.bf16.mxu0 0
      %2527 = vmatmul.mubr.bf16.gmra.mrb[0].mxu0 %v2453
      %v2528 = vpop.f32.mrb[0].mxu0
      %v2529 = vadd.f32 0.0, %v2528
      %v2530 = vpop.f32.mrb[0].mxu0
      %v2531 = vpop.f32.mrb[0].mxu0
      %v2532 = vadd.f32 0.0, %v2531
      %v2533 = vpop.f32.mrb[0].mxu0
      %2534 = vmatprep.mubr.bf16.mxu0 0
      %2535 = vmatmul.mubr.bf16.gmra.mrb[0].mxu0 %v2456
      %v2536 = vpop.f32.mrb[0].mxu0
      %v2537 = vadd.f32 0.0, %v2536
      %v2538 = vpop.f32.mrb[0].mxu0
      %v2539 = vpop.f32.mrb[0].mxu0
      %v2540 = vadd.f32 0.0, %v2539
      %v2541 = vpop.f32.mrb[0].mxu0
      %2542 = vmatprep.mubr.bf16.mxu0 0
      %2543 = vmatmul.mubr.bf16.gmra.mrb[0].mxu0 %v2459
      %v2544 = vpop.f32.mrb[0].mxu0
      %v2545 = vadd.f32 0.0, %v2544
      %v2546 = vpop.f32.mrb[0].mxu0
      %v2547 = vpop.f32.mrb[0].mxu0
      %v2548 = vadd.f32 0.0, %v2547
      %v2549 = vpop.f32.mrb[0].mxu0
      %2550 = vmatprep.mubr.bf16.mxu0 0
      %2551 = vmatmul.mubr.bf16.gmra.mrb[0].mxu0 %v2462
      %v2552 = vpop.f32.mrb[0].mxu0
      %v2553 = vadd.f32 0.0, %v2552
      %v2554 = vpop.f32.mrb[0].mxu0
      %v2555 = vpop.f32.mrb[0].mxu0
      %v2556 = vadd.f32 0.0, %v2555
      %v2557 = vpop.f32.mrb[0].mxu0
      %2558 = vmatprep.mubr.bf16.mxu0 0
      %2559 = vmatmul.mubr.bf16.gmra.mrb[0].mxu0 %v2465
      %v2560 = vpop.f32.mrb[0].mxu0
      %v2561 = vadd.f32 0.0, %v2560
      %v2562 = vpop.f32.mrb[0].mxu0
      %v2563 = vpop.f32.mrb[0].mxu0
      %v2564 = vadd.f32 0.0, %v2563
      %v2565 = vpop.f32.mrb[0].mxu0
      %2566 = vdwg.mxu0
      %v2567 = vadd.f32 %v2313, %v2505
      %v2568 = vadd.f32 %v2314, %v2508
      %v2569 = vadd.f32 %v2315, %v2513
      %v2570 = vadd.f32 %v2316, %v2516
      %v2571 = vadd.f32 %v2317, %v2521
      %v2572 = vadd.f32 %v2318, %v2524
      %v2573 = vadd.f32 %v2319, %v2529
      %v2574 = vadd.f32 %v2320, %v2532
      %v2575 = vadd.f32 %v2321, %v2537
      %v2576 = vadd.f32 %v2322, %v2540
      %v2577 = vadd.f32 %v2323, %v2545
      %v2578 = vadd.f32 %v2324, %v2548
      %v2579 = vadd.f32 %v2325, %v2553
      %v2580 = vadd.f32 %v2326, %v2556
      %v2581 = vadd.f32 %v2327, %v2561
      %v2582 = vadd.f32 %v2328, %v2564
      %s2583 = scalar_lea.vmem [#allocation2], 24
      %v2584 = vld [vmem:[%s2583] sm:$0xf]
      %v2585 = vld [vmem:[%s2583 + $0x4] sm:$0xf]
      %v2586 = vld [vmem:[%s2583 + $0xc] sm:$0xf]
      %v2587 = vld [vmem:[%s2583 + $0x10] sm:$0xf]
      %v2588 = vld [vmem:[%s2583 + $0x18] sm:$0xf]
      %v2589 = vld [vmem:[%s2583 + $0x1c] sm:$0xf]
      %v2590 = vld [vmem:[%s2583 + $0x24] sm:$0xf]
      %v2591 = vld [vmem:[%s2583 + $0x28] sm:$0xf]
      %v2592 = vld [vmem:[%s2583 + $0x30] sm:$0xf]
      %v2593 = vld [vmem:[%s2583 + $0x34] sm:$0xf]
      %v2594 = vld [vmem:[%s2583 + $0x3c] sm:$0xf]
      %v2595 = vld [vmem:[%s2583 + $0x40] sm:$0xf]
      %v2596 = vld [vmem:[%s2583 + $0x48] sm:$0xf]
      %v2597 = vld [vmem:[%s2583 + $0x4c] sm:$0xf]
      %v2598 = vld [vmem:[%s2583 + $0x54] sm:$0xf]
      %v2599 = vld [vmem:[%s2583 + $0x58] sm:$0xf]
      %s2600 = scalar_lea.vmem %s1, 12
      %v2601 = vld [vmem:[%s2600] sm:$0x3]
      %v2618 = vunpack.c.l.b16 %v2584
      %v2619 = vunpack.c.l.b16 %v2585
      %v2620 = vunpack.c.l.b16 %v2586
      %v2621 = vunpack.c.l.b16 %v2587
      %v2622 = vunpack.c.l.b16 %v2588
      %v2623 = vunpack.c.l.b16 %v2589
      %v2624 = vunpack.c.l.b16 %v2590
      %v2625 = vunpack.c.l.b16 %v2591
      %v2626 = vunpack.c.l.b16 %v2592
      %v2627 = vunpack.c.l.b16 %v2593
      %v2628 = vunpack.c.l.b16 %v2594
      %v2629 = vunpack.c.l.b16 %v2595
      %v2630 = vunpack.c.l.b16 %v2596
      %v2631 = vunpack.c.l.b16 %v2597
      %v2632 = vunpack.c.l.b16 %v2598
      %v2633 = vunpack.c.l.b16 %v2599
      %v2634 = vpack.c.b16 %v2619, %v2618
      %v2635 = vpack.c.b16 %v2621, %v2620
      %v2636 = vpack.c.b16 %v2623, %v2622
      %v2637 = vpack.c.b16 %v2625, %v2624
      %v2638 = vpack.c.b16 %v2627, %v2626
      %v2639 = vpack.c.b16 %v2629, %v2628
      %v2640 = vpack.c.b16 %v2631, %v2630
      %v2641 = vpack.c.b16 %v2633, %v2632
      %v2643 = vsel %vm1210, %v2634, 0
      %v2646 = vsel %vm1210, %v2635, 0
      %v2649 = vsel %vm1210, %v2636, 0
      %v2652 = vsel %vm1210, %v2637, 0
      %v2655 = vsel %vm1210, %v2638, 0
      %v2658 = vsel %vm1210, %v2639, 0
      %v2661 = vsel %vm1210, %v2640, 0
      %v2664 = vsel %vm1210, %v2641, 0
      %v2667 = vsel %vm1235, %v2601, 0
      %2669 = vmatprep.subr.bf16.mxu0 0
      %2670 = vmatpush1.bf16.msra.mxu0 %v2667
      %2671 = vmatprep.subr.bf16.mxu0 0
      %2672 = vmatpush1.bf16.msra.mxu0 0
      %2673 = vmatprep.subr.bf16.mxu0 0
      %2674 = vmatpush1.bf16.msra.mxu0 0
      %2675 = vmatprep.subr.bf16.mxu0 0
      %2676 = vmatpush1.bf16.msra.mxu0 0
      %2677 = vmatprep.subr.bf16.mxu0 0
      %2678 = vmatpush1.bf16.msra.mxu0 0
      %2679 = vmatprep.subr.bf16.mxu0 0
      %2680 = vmatpush1.bf16.msra.mxu0 0
      %2681 = vmatprep.subr.bf16.mxu0 0
      %2682 = vmatpush1.bf16.msra.mxu0 0
      %2683 = vmatprep.subr.bf16.mxu0 0
      %2684 = vmatpush1.bf16.msra.mxu0 0
      %2685 = vmatprep.subr.bf16.mxu0 0
      %2686 = vmatpush1.bf16.msra.mxu0 0
      %2687 = vmatprep.subr.bf16.mxu0 0
      %2688 = vmatpush1.bf16.msra.mxu0 0
      %2689 = vmatprep.subr.bf16.mxu0 0
      %2690 = vmatpush1.bf16.msra.mxu0 0
      %2691 = vmatprep.subr.bf16.mxu0 0
      %2692 = vmatpush1.bf16.msra.mxu0 0
      %2693 = vmatprep.subr.bf16.mxu0 0
      %2694 = vmatpush1.bf16.msra.mxu0 0
      %2695 = vmatprep.subr.bf16.mxu0 0
      %2696 = vmatpush1.bf16.msra.mxu0 0
      %2697 = vmatprep.subr.bf16.mxu0 0
      %2698 = vmatpush1.bf16.msra.mxu0 0
      %2699 = vmatprep.subr.bf16.mxu0 0
      %2700 = vmatpush1.bf16.msra.mxu0 0
      %2701 = vmatprep.mubr.bf16.mxu0 0
      %2702 = vmatmul.mubr.bf16.gmra.mrb[0].mxu0 %v2643
      %v2703 = vpop.f32.mrb[0].mxu0
      %v2704 = vadd.f32 0.0, %v2703
      %v2705 = vpop.f32.mrb[0].mxu0
      %v2706 = vpop.f32.mrb[0].mxu0
      %v2707 = vadd.f32 0.0, %v2706
      %v2708 = vpop.f32.mrb[0].mxu0
      %2709 = vmatprep.mubr.bf16.mxu0 0
      %2710 = vmatmul.mubr.bf16.gmra.mrb[0].mxu0 %v2646
      %v2711 = vpop.f32.mrb[0].mxu0
      %v2712 = vadd.f32 0.0, %v2711
      %v2713 = vpop.f32.mrb[0].mxu0
      %v2714 = vpop.f32.mrb[0].mxu0
      %v2715 = vadd.f32 0.0, %v2714
      %v2716 = vpop.f32.mrb[0].mxu0
      %2717 = vmatprep.mubr.bf16.mxu0 0
      %2718 = vmatmul.mubr.bf16.gmra.mrb[0].mxu0 %v2649
      %v2719 = vpop.f32.mrb[0].mxu0
      %v2720 = vadd.f32 0.0, %v2719
      %v2721 = vpop.f32.mrb[0].mxu0
      %v2722 = vpop.f32.mrb[0].mxu0
      %v2723 = vadd.f32 0.0, %v2722
      %v2724 = vpop.f32.mrb[0].mxu0
      %2725 = vmatprep.mubr.bf16.mxu0 0
      %2726 = vmatmul.mubr.bf16.gmra.mrb[0].mxu0 %v2652
      %v2727 = vpop.f32.mrb[0].mxu0
      %v2728 = vadd.f32 0.0, %v2727
      %v2729 = vpop.f32.mrb[0].mxu0
      %v2730 = vpop.f32.mrb[0].mxu0
      %v2731 = vadd.f32 0.0, %v2730
      %v2732 = vpop.f32.mrb[0].mxu0
      %2733 = vmatprep.mubr.bf16.mxu0 0
      %2734 = vmatmul.mubr.bf16.gmra.mrb[0].mxu0 %v2655
      %v2735 = vpop.f32.mrb[0].mxu0
      %v2736 = vadd.f32 0.0, %v2735
      %v2737 = vpop.f32.mrb[0].mxu0
      %v2738 = vpop.f32.mrb[0].mxu0
      %v2739 = vadd.f32 0.0, %v2738
      %v2740 = vpop.f32.mrb[0].mxu0
      %2741 = vmatprep.mubr.bf16.mxu0 0
      %2742 = vmatmul.mubr.bf16.gmra.mrb[0].mxu0 %v2658
      %v2743 = vpop.f32.mrb[0].mxu0
      %v2744 = vadd.f32 0.0, %v2743
      %v2745 = vpop.f32.mrb[0].mxu0
      %v2746 = vpop.f32.mrb[0].mxu0
      %v2747 = vadd.f32 0.0, %v2746
      %v2748 = vpop.f32.mrb[0].mxu0
      %2749 = vmatprep.mubr.bf16.mxu0 0
      %2750 = vmatmul.mubr.bf16.gmra.mrb[0].mxu0 %v2661
      %v2751 = vpop.f32.mrb[0].mxu0
      %v2752 = vadd.f32 0.0, %v2751
      %v2753 = vpop.f32.mrb[0].mxu0
      %v2754 = vpop.f32.mrb[0].mxu0
      %v2755 = vadd.f32 0.0, %v2754
      %v2756 = vpop.f32.mrb[0].mxu0
      %2757 = vmatprep.mubr.bf16.mxu0 0
      %2758 = vmatmul.mubr.bf16.gmra.mrb[0].mxu0 %v2664
      %v2759 = vpop.f32.mrb[0].mxu0
      %v2760 = vadd.f32 0.0, %v2759
      %v2761 = vpop.f32.mrb[0].mxu0
      %v2762 = vpop.f32.mrb[0].mxu0
      %v2763 = vadd.f32 0.0, %v2762
      %v2764 = vpop.f32.mrb[0].mxu0
      %2765 = vdwg.mxu0
      %v2766 = vadd.f32 %v2567, %v2704
      %v2767 = vadd.f32 %v2568, %v2707
      %v2768 = vadd.f32 %v2569, %v2712
      %v2769 = vadd.f32 %v2570, %v2715
      %v2770 = vadd.f32 %v2571, %v2720
      %v2771 = vadd.f32 %v2572, %v2723
      %v2772 = vadd.f32 %v2573, %v2728
      %v2773 = vadd.f32 %v2574, %v2731
      %v2774 = vadd.f32 %v2575, %v2736
      %v2775 = vadd.f32 %v2576, %v2739
      %v2776 = vadd.f32 %v2577, %v2744
      %v2777 = vadd.f32 %v2578, %v2747
      %v2778 = vadd.f32 %v2579, %v2752
      %v2779 = vadd.f32 %v2580, %v2755
      %v2780 = vadd.f32 %v2581, %v2760
      %v2781 = vadd.f32 %v2582, %v2763
      %v2782 = vld [vmem:[%s2583] sm:$0xf]
      %v2783 = vld [vmem:[%s2583 + $0x4] sm:$0xf]
      %v2784 = vld [vmem:[%s2583 + $0x8] sm:$0x1]
      %v2785 = vld [vmem:[%s2583 + $0xc] sm:$0xf]
      %v2786 = vld [vmem:[%s2583 + $0x10] sm:$0xf]
      %v2787 = vld [vmem:[%s2583 + $0x14] sm:$0x1]
      %v2788 = vld [vmem:[%s2583 + $0x18] sm:$0xf]
      %v2789 = vld [vmem:[%s2583 + $0x1c] sm:$0xf]
      %v2790 = vld [vmem:[%s2583 + $0x20] sm:$0x1]
      %v2791 = vld [vmem:[%s2583 + $0x24] sm:$0xf]
      %v2792 = vld [vmem:[%s2583 + $0x28] sm:$0xf]
      %v2793 = vld [vmem:[%s2583 + $0x2c] sm:$0x1]
      %v2794 = vld [vmem:[%s2583 + $0x30] sm:$0xf]
      %v2795 = vld [vmem:[%s2583 + $0x34] sm:$0xf]
      %v2796 = vld [vmem:[%s2583 + $0x38] sm:$0x1]
      %v2797 = vld [vmem:[%s2583 + $0x3c] sm:$0xf]
      %v2798 = vld [vmem:[%s2583 + $0x40] sm:$0xf]
      %v2799 = vld [vmem:[%s2583 + $0x44] sm:$0x1]
      %v2800 = vld [vmem:[%s2583 + $0x48] sm:$0xf]
      %v2801 = vld [vmem:[%s2583 + $0x4c] sm:$0xf]
      %v2802 = vld [vmem:[%s2583 + $0x50] sm:$0x1]
      %v2803 = vld [vmem:[%s2583 + $0x54] sm:$0xf]
      %v2804 = vld [vmem:[%s2583 + $0x58] sm:$0xf]
      %v2805 = vld [vmem:[%s2583 + $0x5c] sm:$0x1]
      %v2807 = vshrl.u32 %v2782, 16
      %v2809 = vrot.slane %v2807, 4
      %v2810 = vshll.u32 %v2782, 16
      %v2812 = vrot.slane %v2810, 5
      %v2813 = vor.u32 %v2809, %v2812
      %v2814 = vrot.slane %v2813, 4
      %v2816 = vshll.u32 %v2783, 16
      %v2818 = vrot.slane %v2816, 5
      %v2819 = vsel %vm991, %v2814, %v2818
      %v2820 = vshrl.u32 %v2783, 16
      %v2822 = vrot.slane %v2820, 4
      %v2823 = vor.u32 %v2822, %v2818
      %v2824 = vrot.slane %v2823, 4
      %v2826 = vshll.u32 %v2784, 16
      %v2828 = vrot.slane %v2826, 5
      %v2829 = vsel %vm991, %v2824, %v2828
      %v2831 = vshrl.u32 %v2785, 16
      %v2833 = vrot.slane %v2831, 4
      %v2834 = vshll.u32 %v2785, 16
      %v2836 = vrot.slane %v2834, 5
      %v2837 = vor.u32 %v2833, %v2836
      %v2838 = vrot.slane %v2837, 4
      %v2840 = vshll.u32 %v2786, 16
      %v2842 = vrot.slane %v2840, 5
      %v2843 = vsel %vm991, %v2838, %v2842
      %v2844 = vshrl.u32 %v2786, 16
      %v2846 = vrot.slane %v2844, 4
      %v2847 = vor.u32 %v2846, %v2842
      %v2848 = vrot.slane %v2847, 4
      %v2850 = vshll.u32 %v2787, 16
      %v2852 = vrot.slane %v2850, 5
      %v2853 = vsel %vm991, %v2848, %v2852
      %v2855 = vshrl.u32 %v2788, 16
      %v2857 = vrot.slane %v2855, 4
      %v2858 = vshll.u32 %v2788, 16
      %v2860 = vrot.slane %v2858, 5
      %v2861 = vor.u32 %v2857, %v2860
      %v2862 = vrot.slane %v2861, 4
      %v2864 = vshll.u32 %v2789, 16
      %v2866 = vrot.slane %v2864, 5
      %v2867 = vsel %vm991, %v2862, %v2866
      %v2868 = vshrl.u32 %v2789, 16
      %v2870 = vrot.slane %v2868, 4
      %v2871 = vor.u32 %v2870, %v2866
      %v2872 = vrot.slane %v2871, 4
      %v2874 = vshll.u32 %v2790, 16
      %v2876 = vrot.slane %v2874, 5
      %v2877 = vsel %vm991, %v2872, %v2876
      %v2879 = vshrl.u32 %v2791, 16
      %v2881 = vrot.slane %v2879, 4
      %v2882 = vshll.u32 %v2791, 16
      %v2884 = vrot.slane %v2882, 5
      %v2885 = vor.u32 %v2881, %v2884
      %v2886 = vrot.slane %v2885, 4
      %v2888 = vshll.u32 %v2792, 16
      %v2890 = vrot.slane %v2888, 5
      %v2891 = vsel %vm991, %v2886, %v2890
      %v2892 = vshrl.u32 %v2792, 16
      %v2894 = vrot.slane %v2892, 4
      %v2895 = vor.u32 %v2894, %v2890
      %v2896 = vrot.slane %v2895, 4
      %v2898 = vshll.u32 %v2793, 16
      %v2900 = vrot.slane %v2898, 5
      %v2901 = vsel %vm991, %v2896, %v2900
      %v2903 = vshrl.u32 %v2794, 16
      %v2905 = vrot.slane %v2903, 4
      %v2906 = vshll.u32 %v2794, 16
      %v2908 = vrot.slane %v2906, 5
      %v2909 = vor.u32 %v2905, %v2908
      %v2910 = vrot.slane %v2909, 4
      %v2912 = vshll.u32 %v2795, 16
      %v2914 = vrot.slane %v2912, 5
      %v2915 = vsel %vm991, %v2910, %v2914
      %v2916 = vshrl.u32 %v2795, 16
      %v2918 = vrot.slane %v2916, 4
      %v2919 = vor.u32 %v2918, %v2914
      %v2920 = vrot.slane %v2919, 4
      %v2922 = vshll.u32 %v2796, 16
      %v2924 = vrot.slane %v2922, 5
      %v2925 = vsel %vm991, %v2920, %v2924
      %v2927 = vshrl.u32 %v2797, 16
      %v2929 = vrot.slane %v2927, 4
      %v2930 = vshll.u32 %v2797, 16
      %v2932 = vrot.slane %v2930, 5
      %v2933 = vor.u32 %v2929, %v2932
      %v2934 = vrot.slane %v2933, 4
      %v2936 = vshll.u32 %v2798, 16
      %v2938 = vrot.slane %v2936, 5
      %v2939 = vsel %vm991, %v2934, %v2938
      %v2940 = vshrl.u32 %v2798, 16
      %v2942 = vrot.slane %v2940, 4
      %v2943 = vor.u32 %v2942, %v2938
      %v2944 = vrot.slane %v2943, 4
      %v2946 = vshll.u32 %v2799, 16
      %v2948 = vrot.slane %v2946, 5
      %v2949 = vsel %vm991, %v2944, %v2948
      %v2951 = vshrl.u32 %v2800, 16
      %v2953 = vrot.slane %v2951, 4
      %v2954 = vshll.u32 %v2800, 16
      %v2956 = vrot.slane %v2954, 5
      %v2957 = vor.u32 %v2953, %v2956
      %v2958 = vrot.slane %v2957, 4
      %v2960 = vshll.u32 %v2801, 16
      %v2962 = vrot.slane %v2960, 5
      %v2963 = vsel %vm991, %v2958, %v2962
      %v2964 = vshrl.u32 %v2801, 16
      %v2966 = vrot.slane %v2964, 4
      %v2967 = vor.u32 %v2966, %v2962
      %v2968 = vrot.slane %v2967, 4
      %v2970 = vshll.u32 %v2802, 16
      %v2972 = vrot.slane %v2970, 5
      %v2973 = vsel %vm991, %v2968, %v2972
      %v2975 = vshrl.u32 %v2803, 16
      %v2977 = vrot.slane %v2975, 4
      %v2978 = vshll.u32 %v2803, 16
      %v2980 = vrot.slane %v2978, 5
      %v2981 = vor.u32 %v2977, %v2980
      %v2982 = vrot.slane %v2981, 4
      %v2984 = vshll.u32 %v2804, 16
      %v2986 = vrot.slane %v2984, 5
      %v2987 = vsel %vm991, %v2982, %v2986
      %v2988 = vshrl.u32 %v2804, 16
      %v2990 = vrot.slane %v2988, 4
      %v2991 = vor.u32 %v2990, %v2986
      %v2992 = vrot.slane %v2991, 4
      %v2994 = vshll.u32 %v2805, 16
      %v2996 = vrot.slane %v2994, 5
      %v2997 = vsel %vm991, %v2992, %v2996
      %s2998 = scalar_lea.vmem %s1, 14
      %v2999 = vld [vmem:[%s2998] sm:$0x3]
      %v3000 = vunpack.c.l.b16 %v2819
      %v3001 = vunpack.c.l.b16 %v2829
      %v3002 = vunpack.c.l.b16 %v2843
      %v3003 = vunpack.c.l.b16 %v2853
      %v3004 = vunpack.c.l.b16 %v2867
      %v3005 = vunpack.c.l.b16 %v2877
      %v3006 = vunpack.c.l.b16 %v2891
      %v3007 = vunpack.c.l.b16 %v2901
      %v3008 = vunpack.c.l.b16 %v2915
      %v3009 = vunpack.c.l.b16 %v2925
      %v3010 = vunpack.c.l.b16 %v2939
      %v3011 = vunpack.c.l.b16 %v2949
      %v3012 = vunpack.c.l.b16 %v2963
      %v3013 = vunpack.c.l.b16 %v2973
      %v3014 = vunpack.c.l.b16 %v2987
      %v3015 = vunpack.c.l.b16 %v2997
      %v3016 = vpack.c.b16 %v3001, %v3000
      %v3017 = vpack.c.b16 %v3003, %v3002
      %v3018 = vpack.c.b16 %v3005, %v3004
      %v3019 = vpack.c.b16 %v3007, %v3006
      %v3020 = vpack.c.b16 %v3009, %v3008
      %v3021 = vpack.c.b16 %v3011, %v3010
      %v3022 = vpack.c.b16 %v3013, %v3012
      %v3023 = vpack.c.b16 %v3015, %v3014
      %v3025 = vsel %vm1210, %v3016, 0
      %v3028 = vsel %vm1210, %v3017, 0
      %v3031 = vsel %vm1210, %v3018, 0
      %v3034 = vsel %vm1210, %v3019, 0
      %v3037 = vsel %vm1210, %v3020, 0
      %v3040 = vsel %vm1210, %v3021, 0
      %v3043 = vsel %vm1210, %v3022, 0
      %v3046 = vsel %vm1210, %v3023, 0
      %v3049 = vsel %vm1235, %v2999, 0
      %3051 = vmatprep.subr.bf16.mxu0 0
      %3052 = vmatpush1.bf16.msra.mxu0 %v3049
      %3053 = vmatprep.subr.bf16.mxu0 0
      %3054 = vmatpush1.bf16.msra.mxu0 0
      %3055 = vmatprep.subr.bf16.mxu0 0
      %3056 = vmatpush1.bf16.msra.mxu0 0
      %3057 = vmatprep.subr.bf16.mxu0 0
      %3058 = vmatpush1.bf16.msra.mxu0 0
      %3059 = vmatprep.subr.bf16.mxu0 0
      %3060 = vmatpush1.bf16.msra.mxu0 0
      %3061 = vmatprep.subr.bf16.mxu0 0
      %3062 = vmatpush1.bf16.msra.mxu0 0
      %3063 = vmatprep.subr.bf16.mxu0 0
      %3064 = vmatpush1.bf16.msra.mxu0 0
      %3065 = vmatprep.subr.bf16.mxu0 0
      %3066 = vmatpush1.bf16.msra.mxu0 0
      %3067 = vmatprep.subr.bf16.mxu0 0
      %3068 = vmatpush1.bf16.msra.mxu0 0
      %3069 = vmatprep.subr.bf16.mxu0 0
      %3070 = vmatpush1.bf16.msra.mxu0 0
      %3071 = vmatprep.subr.bf16.mxu0 0
      %3072 = vmatpush1.bf16.msra.mxu0 0
      %3073 = vmatprep.subr.bf16.mxu0 0
      %3074 = vmatpush1.bf16.msra.mxu0 0
      %3075 = vmatprep.subr.bf16.mxu0 0
      %3076 = vmatpush1.bf16.msra.mxu0 0
      %3077 = vmatprep.subr.bf16.mxu0 0
      %3078 = vmatpush1.bf16.msra.mxu0 0
      %3079 = vmatprep.subr.bf16.mxu0 0
      %3080 = vmatpush1.bf16.msra.mxu0 0
      %3081 = vmatprep.subr.bf16.mxu0 0
      %3082 = vmatpush1.bf16.msra.mxu0 0
      %3083 = vmatprep.mubr.bf16.mxu0 0
      %3084 = vmatmul.mubr.bf16.gmra.mrb[0].mxu0 %v3025
      %v3085 = vpop.f32.mrb[0].mxu0
      %v3086 = vadd.f32 0.0, %v3085
      %v3087 = vpop.f32.mrb[0].mxu0
      %v3088 = vpop.f32.mrb[0].mxu0
      %v3089 = vadd.f32 0.0, %v3088
      %v3090 = vpop.f32.mrb[0].mxu0
      %3091 = vmatprep.mubr.bf16.mxu0 0
      %3092 = vmatmul.mubr.bf16.gmra.mrb[0].mxu0 %v3028
      %v3093 = vpop.f32.mrb[0].mxu0
      %v3094 = vadd.f32 0.0, %v3093
      %v3095 = vpop.f32.mrb[0].mxu0
      %v3096 = vpop.f32.mrb[0].mxu0
      %v3097 = vadd.f32 0.0, %v3096
      %v3098 = vpop.f32.mrb[0].mxu0
      %3099 = vmatprep.mubr.bf16.mxu0 0
      %3100 = vmatmul.mubr.bf16.gmra.mrb[0].mxu0 %v3031
      %v3101 = vpop.f32.mrb[0].mxu0
      %v3102 = vadd.f32 0.0, %v3101
      %v3103 = vpop.f32.mrb[0].mxu0
      %v3104 = vpop.f32.mrb[0].mxu0
      %v3105 = vadd.f32 0.0, %v3104
      %v3106 = vpop.f32.mrb[0].mxu0
      %3107 = vmatprep.mubr.bf16.mxu0 0
      %3108 = vmatmul.mubr.bf16.gmra.mrb[0].mxu0 %v3034
      %v3109 = vpop.f32.mrb[0].mxu0
      %v3110 = vadd.f32 0.0, %v3109
      %v3111 = vpop.f32.mrb[0].mxu0
      %v3112 = vpop.f32.mrb[0].mxu0
      %v3113 = vadd.f32 0.0, %v3112
      %v3114 = vpop.f32.mrb[0].mxu0
      %3115 = vmatprep.mubr.bf16.mxu0 0
      %3116 = vmatmul.mubr.bf16.gmra.mrb[0].mxu0 %v3037
      %v3117 = vpop.f32.mrb[0].mxu0
      %v3118 = vadd.f32 0.0, %v3117
      %v3119 = vpop.f32.mrb[0].mxu0
      %v3120 = vpop.f32.mrb[0].mxu0
      %v3121 = vadd.f32 0.0, %v3120
      %v3122 = vpop.f32.mrb[0].mxu0
      %3123 = vmatprep.mubr.bf16.mxu0 0
      %3124 = vmatmul.mubr.bf16.gmra.mrb[0].mxu0 %v3040
      %v3125 = vpop.f32.mrb[0].mxu0
      %v3126 = vadd.f32 0.0, %v3125
      %v3127 = vpop.f32.mrb[0].mxu0
      %v3128 = vpop.f32.mrb[0].mxu0
      %v3129 = vadd.f32 0.0, %v3128
      %v3130 = vpop.f32.mrb[0].mxu0
      %3131 = vmatprep.mubr.bf16.mxu0 0
      %3132 = vmatmul.mubr.bf16.gmra.mrb[0].mxu0 %v3043
      %v3133 = vpop.f32.mrb[0].mxu0
      %v3134 = vadd.f32 0.0, %v3133
      %v3135 = vpop.f32.mrb[0].mxu0
      %v3136 = vpop.f32.mrb[0].mxu0
      %v3137 = vadd.f32 0.0, %v3136
      %v3138 = vpop.f32.mrb[0].mxu0
      %3139 = vmatprep.mubr.bf16.mxu0 0
      %3140 = vmatmul.mubr.bf16.gmra.mrb[0].mxu0 %v3046
      %v3141 = vpop.f32.mrb[0].mxu0
      %v3142 = vadd.f32 0.0, %v3141
      %v3143 = vpop.f32.mrb[0].mxu0
      %v3144 = vpop.f32.mrb[0].mxu0
      %v3145 = vadd.f32 0.0, %v3144
      %v3146 = vpop.f32.mrb[0].mxu0
      %3147 = vdwg.mxu0
      %v3148 = vadd.f32 %v2766, %v3086
      %v3149 = vadd.f32 %v2767, %v3089
      %v3150 = vadd.f32 %v2768, %v3094
      %v3151 = vadd.f32 %v2769, %v3097
      %v3152 = vadd.f32 %v2770, %v3102
      %v3153 = vadd.f32 %v2771, %v3105
      %v3154 = vadd.f32 %v2772, %v3110
      %v3155 = vadd.f32 %v2773, %v3113
      %v3156 = vadd.f32 %v2774, %v3118
      %v3157 = vadd.f32 %v2775, %v3121
      %v3158 = vadd.f32 %v2776, %v3126
      %v3159 = vadd.f32 %v2777, %v3129
      %v3160 = vadd.f32 %v2778, %v3134
      %v3161 = vadd.f32 %v2779, %v3137
      %v3162 = vadd.f32 %v2780, %v3142
      %v3163 = vadd.f32 %v2781, %v3145
      %v3164 = vld [vmem:[%s2583] sm:$0xe]
      %v3165 = vld [vmem:[%s2583 + $0xc] sm:$0xe]
      %v3166 = vld [vmem:[%s2583 + $0x18] sm:$0xe]
      %v3167 = vld [vmem:[%s2583 + $0x24] sm:$0xe]
      %v3168 = vld [vmem:[%s2583 + $0x30] sm:$0xe]
      %v3169 = vld [vmem:[%s2583 + $0x3c] sm:$0xe]
      %v3170 = vld [vmem:[%s2583 + $0x48] sm:$0xe]
      %v3171 = vld [vmem:[%s2583 + $0x54] sm:$0xe]
      %v3196 = vrot.slane %v3164, 5
      %v3197 = vrot.slane %v3196, 4
      %v3198 = vrot.slane %v2783, 5
      %v3199 = vsel %vm1526, %v3197, %v3198
      %v3200 = vrot.slane %v3198, 4
      %v3201 = vrot.slane %v2784, 5
      %v3202 = vsel %vm1526, %v3200, %v3201
      %v3203 = vrot.slane %v3165, 5
      %v3204 = vrot.slane %v3203, 4
      %v3205 = vrot.slane %v2786, 5
      %v3206 = vsel %vm1526, %v3204, %v3205
      %v3207 = vrot.slane %v3205, 4
      %v3208 = vrot.slane %v2787, 5
      %v3209 = vsel %vm1526, %v3207, %v3208
      %v3210 = vrot.slane %v3166, 5
      %v3211 = vrot.slane %v3210, 4
      %v3212 = vrot.slane %v2789, 5
      %v3213 = vsel %vm1526, %v3211, %v3212
      %v3214 = vrot.slane %v3212, 4
      %v3215 = vrot.slane %v2790, 5
      %v3216 = vsel %vm1526, %v3214, %v3215
      %v3217 = vrot.slane %v3167, 5
      %v3218 = vrot.slane %v3217, 4
      %v3219 = vrot.slane %v2792, 5
      %v3220 = vsel %vm1526, %v3218, %v3219
      %v3221 = vrot.slane %v3219, 4
      %v3222 = vrot.slane %v2793, 5
      %v3223 = vsel %vm1526, %v3221, %v3222
      %v3224 = vrot.slane %v3168, 5
      %v3225 = vrot.slane %v3224, 4
      %v3226 = vrot.slane %v2795, 5
      %v3227 = vsel %vm1526, %v3225, %v3226
      %v3228 = vrot.slane %v3226, 4
      %v3229 = vrot.slane %v2796, 5
      %v3230 = vsel %vm1526, %v3228, %v3229
      %v3231 = vrot.slane %v3169, 5
      %v3232 = vrot.slane %v3231, 4
      %v3233 = vrot.slane %v2798, 5
      %v3234 = vsel %vm1526, %v3232, %v3233
      %v3235 = vrot.slane %v3233, 4
      %v3236 = vrot.slane %v2799, 5
      %v3237 = vsel %vm1526, %v3235, %v3236
      %v3238 = vrot.slane %v3170, 5
      %v3239 = vrot.slane %v3238, 4
      %v3240 = vrot.slane %v2801, 5
      %v3241 = vsel %vm1526, %v3239, %v3240
      %v3242 = vrot.slane %v3240, 4
      %v3243 = vrot.slane %v2802, 5
      %v3244 = vsel %vm1526, %v3242, %v3243
      %v3245 = vrot.slane %v3171, 5
      %v3246 = vrot.slane %v3245, 4
      %v3247 = vrot.slane %v2804, 5
      %v3248 = vsel %vm1526, %v3246, %v3247
      %v3249 = vrot.slane %v3247, 4
      %v3250 = vrot.slane %v2805, 5
      %v3251 = vsel %vm1526, %v3249, %v3250
      %s3252 = scalar_lea.vmem %s1, 16
      %v3253 = vld [vmem:[%s3252] sm:$0x3]
      %v3254 = vunpack.c.l.b16 %v3199
      %v3255 = vunpack.c.l.b16 %v3202
      %v3256 = vunpack.c.l.b16 %v3206
      %v3257 = vunpack.c.l.b16 %v3209
      %v3258 = vunpack.c.l.b16 %v3213
      %v3259 = vunpack.c.l.b16 %v3216
      %v3260 = vunpack.c.l.b16 %v3220
      %v3261 = vunpack.c.l.b16 %v3223
      %v3262 = vunpack.c.l.b16 %v3227
      %v3263 = vunpack.c.l.b16 %v3230
      %v3264 = vunpack.c.l.b16 %v3234
      %v3265 = vunpack.c.l.b16 %v3237
      %v3266 = vunpack.c.l.b16 %v3241
      %v3267 = vunpack.c.l.b16 %v3244
      %v3268 = vunpack.c.l.b16 %v3248
      %v3269 = vunpack.c.l.b16 %v3251
      %v3270 = vpack.c.b16 %v3255, %v3254
      %v3271 = vpack.c.b16 %v3257, %v3256
      %v3272 = vpack.c.b16 %v3259, %v3258
      %v3273 = vpack.c.b16 %v3261, %v3260
      %v3274 = vpack.c.b16 %v3263, %v3262
      %v3275 = vpack.c.b16 %v3265, %v3264
      %v3276 = vpack.c.b16 %v3267, %v3266
      %v3277 = vpack.c.b16 %v3269, %v3268
      %v3279 = vsel %vm1210, %v3270, 0
      %v3282 = vsel %vm1210, %v3271, 0
      %v3285 = vsel %vm1210, %v3272, 0
      %v3288 = vsel %vm1210, %v3273, 0
      %v3291 = vsel %vm1210, %v3274, 0
      %v3294 = vsel %vm1210, %v3275, 0
      %v3297 = vsel %vm1210, %v3276, 0
      %v3300 = vsel %vm1210, %v3277, 0
      %v3303 = vsel %vm1235, %v3253, 0
      %3305 = vmatprep.subr.bf16.mxu0 0
      %3306 = vmatpush1.bf16.msra.mxu0 %v3303
      %3307 = vmatprep.subr.bf16.mxu0 0
      %3308 = vmatpush1.bf16.msra.mxu0 0
      %3309 = vmatprep.subr.bf16.mxu0 0
      %3310 = vmatpush1.bf16.msra.mxu0 0
      %3311 = vmatprep.subr.bf16.mxu0 0
      %3312 = vmatpush1.bf16.msra.mxu0 0
      %3313 = vmatprep.subr.bf16.mxu0 0
      %3314 = vmatpush1.bf16.msra.mxu0 0
      %3315 = vmatprep.subr.bf16.mxu0 0
      %3316 = vmatpush1.bf16.msra.mxu0 0
      %3317 = vmatprep.subr.bf16.mxu0 0
      %3318 = vmatpush1.bf16.msra.mxu0 0
      %3319 = vmatprep.subr.bf16.mxu0 0
      %3320 = vmatpush1.bf16.msra.mxu0 0
      %3321 = vmatprep.subr.bf16.mxu0 0
      %3322 = vmatpush1.bf16.msra.mxu0 0
      %3323 = vmatprep.subr.bf16.mxu0 0
      %3324 = vmatpush1.bf16.msra.mxu0 0
      %3325 = vmatprep.subr.bf16.mxu0 0
      %3326 = vmatpush1.bf16.msra.mxu0 0
      %3327 = vmatprep.subr.bf16.mxu0 0
      %3328 = vmatpush1.bf16.msra.mxu0 0
      %3329 = vmatprep.subr.bf16.mxu0 0
      %3330 = vmatpush1.bf16.msra.mxu0 0
      %3331 = vmatprep.subr.bf16.mxu0 0
      %3332 = vmatpush1.bf16.msra.mxu0 0
      %3333 = vmatprep.subr.bf16.mxu0 0
      %3334 = vmatpush1.bf16.msra.mxu0 0
      %3335 = vmatprep.subr.bf16.mxu0 0
      %3336 = vmatpush1.bf16.msra.mxu0 0
      %3337 = vmatprep.mubr.bf16.mxu0 0
      %3338 = vmatmul.mubr.bf16.gmra.mrb[0].mxu0 %v3279
      %v3339 = vpop.f32.mrb[0].mxu0
      %v3340 = vadd.f32 0.0, %v3339
      %v3341 = vpop.f32.mrb[0].mxu0
      %v3342 = vpop.f32.mrb[0].mxu0
      %v3343 = vadd.f32 0.0, %v3342
      %v3344 = vpop.f32.mrb[0].mxu0
      %3345 = vmatprep.mubr.bf16.mxu0 0
      %3346 = vmatmul.mubr.bf16.gmra.mrb[0].mxu0 %v3282
      %v3347 = vpop.f32.mrb[0].mxu0
      %v3348 = vadd.f32 0.0, %v3347
      %v3349 = vpop.f32.mrb[0].mxu0
      %v3350 = vpop.f32.mrb[0].mxu0
      %v3351 = vadd.f32 0.0, %v3350
      %v3352 = vpop.f32.mrb[0].mxu0
      %3353 = vmatprep.mubr.bf16.mxu0 0
      %3354 = vmatmul.mubr.bf16.gmra.mrb[0].mxu0 %v3285
      %v3355 = vpop.f32.mrb[0].mxu0
      %v3356 = vadd.f32 0.0, %v3355
      %v3357 = vpop.f32.mrb[0].mxu0
      %v3358 = vpop.f32.mrb[0].mxu0
      %v3359 = vadd.f32 0.0, %v3358
      %v3360 = vpop.f32.mrb[0].mxu0
      %3361 = vmatprep.mubr.bf16.mxu0 0
      %3362 = vmatmul.mubr.bf16.gmra.mrb[0].mxu0 %v3288
      %v3363 = vpop.f32.mrb[0].mxu0
      %v3364 = vadd.f32 0.0, %v3363
      %v3365 = vpop.f32.mrb[0].mxu0
      %v3366 = vpop.f32.mrb[0].mxu0
      %v3367 = vadd.f32 0.0, %v3366
      %v3368 = vpop.f32.mrb[0].mxu0
      %3369 = vmatprep.mubr.bf16.mxu0 0
      %3370 = vmatmul.mubr.bf16.gmra.mrb[0].mxu0 %v3291
      %v3371 = vpop.f32.mrb[0].mxu0
      %v3372 = vadd.f32 0.0, %v3371
      %v3373 = vpop.f32.mrb[0].mxu0
      %v3374 = vpop.f32.mrb[0].mxu0
      %v3375 = vadd.f32 0.0, %v3374
      %v3376 = vpop.f32.mrb[0].mxu0
      %3377 = vmatprep.mubr.bf16.mxu0 0
      %3378 = vmatmul.mubr.bf16.gmra.mrb[0].mxu0 %v3294
      %v3379 = vpop.f32.mrb[0].mxu0
      %v3380 = vadd.f32 0.0, %v3379
      %v3381 = vpop.f32.mrb[0].mxu0
      %v3382 = vpop.f32.mrb[0].mxu0
      %v3383 = vadd.f32 0.0, %v3382
      %v3384 = vpop.f32.mrb[0].mxu0
      %3385 = vmatprep.mubr.bf16.mxu0 0
      %3386 = vmatmul.mubr.bf16.gmra.mrb[0].mxu0 %v3297
      %v3387 = vpop.f32.mrb[0].mxu0
      %v3388 = vadd.f32 0.0, %v3387
      %v3389 = vpop.f32.mrb[0].mxu0
      %v3390 = vpop.f32.mrb[0].mxu0
      %v3391 = vadd.f32 0.0, %v3390
      %v3392 = vpop.f32.mrb[0].mxu0
      %3393 = vmatprep.mubr.bf16.mxu0 0
      %3394 = vmatmul.mubr.bf16.gmra.mrb[0].mxu0 %v3300
      %v3395 = vpop.f32.mrb[0].mxu0
      %v3396 = vadd.f32 0.0, %v3395
      %v3397 = vpop.f32.mrb[0].mxu0
      %v3398 = vpop.f32.mrb[0].mxu0
      %v3399 = vadd.f32 0.0, %v3398
      %v3400 = vpop.f32.mrb[0].mxu0
      %3401 = vdwg.mxu0
      %v3402 = vadd.f32 %v3148, %v3340
      %v3403 = vadd.f32 %v3149, %v3343
      %v3404 = vadd.f32 %v3150, %v3348
      %v3405 = vadd.f32 %v3151, %v3351
      %v3406 = vadd.f32 %v3152, %v3356
      %v3407 = vadd.f32 %v3153, %v3359
      %v3408 = vadd.f32 %v3154, %v3364
      %v3409 = vadd.f32 %v3155, %v3367
      %v3410 = vadd.f32 %v3156, %v3372
      %v3411 = vadd.f32 %v3157, %v3375
      %v3412 = vadd.f32 %v3158, %v3380
      %v3413 = vadd.f32 %v3159, %v3383
      %v3414 = vadd.f32 %v3160, %v3388
      %v3415 = vadd.f32 %v3161, %v3391
      %v3416 = vadd.f32 %v3162, %v3396
      %v3417 = vadd.f32 %v3163, %v3399
      %v3418 = vld [vmem:[%s2] sm:$0x1]
      %v3420 = vlaneseq
      %v3421 = vshrl.u32 %v3420, 7
      %v3422 = vsub.s32 0, %v3421
      %v3423 = vrot.slane %v3418, %v3422
      %v3425 = vadd.f32 %v3402, %v3423
      %v3426 = vadd.f32 %v3403, %v3423
      %v3427 = vadd.f32 %v3404, %v3423
      %v3428 = vadd.f32 %v3405, %v3423
      %v3429 = vadd.f32 %v3406, %v3423
      %v3430 = vadd.f32 %v3407, %v3423
      %v3431 = vadd.f32 %v3408, %v3423
      %v3432 = vadd.f32 %v3409, %v3423
      %v3433 = vadd.f32 %v3410, %v3423
      %v3434 = vadd.f32 %v3411, %v3423
      %v3435 = vadd.f32 %v3412, %v3423
      %v3436 = vadd.f32 %v3413, %v3423
      %v3437 = vadd.f32 %v3414, %v3423
      %v3438 = vadd.f32 %v3415, %v3423
      %v3439 = vadd.f32 %v3416, %v3423
      %v3440 = vadd.f32 %v3417, %v3423
      %v3441 = vmax.f32 %v3425, 0.0
      %v3442 = vmax.f32 %v3426, 0.0
      %v3443 = vmax.f32 %v3427, 0.0
      %v3444 = vmax.f32 %v3428, 0.0
      %v3445 = vmax.f32 %v3429, 0.0
      %v3446 = vmax.f32 %v3430, 0.0
      %v3447 = vmax.f32 %v3431, 0.0
      %v3448 = vmax.f32 %v3432, 0.0
      %v3449 = vmax.f32 %v3433, 0.0
      %v3450 = vmax.f32 %v3434, 0.0
      %v3451 = vmax.f32 %v3435, 0.0
      %v3452 = vmax.f32 %v3436, 0.0
      %v3453 = vmax.f32 %v3437, 0.0
      %v3454 = vmax.f32 %v3438, 0.0
      %v3455 = vmax.f32 %v3439, 0.0
      %v3456 = vmax.f32 %v3440, 0.0
      %v3457 = vpack.c.bf16 %v3442, %v3441
      %v3458 = vpack.c.bf16 %v3444, %v3443
      %v3459 = vpack.c.bf16 %v3446, %v3445
      %v3460 = vpack.c.bf16 %v3448, %v3447
      %v3461 = vpack.c.bf16 %v3450, %v3449
      %v3462 = vpack.c.bf16 %v3452, %v3451
      %v3463 = vpack.c.bf16 %v3454, %v3453
      %v3464 = vpack.c.bf16 %v3456, %v3455
      %v3473 = vunpack.c.l.b16 %v3457
      %v3474 = vunpack.c.h.b16 %v3457
      %v3475 = vunpack.c.l.b16 %v3458
      %v3476 = vunpack.c.h.b16 %v3458
      %v3477 = vunpack.c.l.b16 %v3459
      %v3478 = vunpack.c.h.b16 %v3459
      %v3479 = vunpack.c.l.b16 %v3460
      %v3480 = vunpack.c.h.b16 %v3460
      %v3481 = vunpack.c.l.b16 %v3461
      %v3482 = vunpack.c.h.b16 %v3461
      %v3483 = vunpack.c.l.b16 %v3462
      %v3484 = vunpack.c.h.b16 %v3462
      %v3485 = vunpack.c.l.b16 %v3463
      %v3486 = vunpack.c.h.b16 %v3463
      %v3487 = vunpack.c.l.b16 %v3464
      %v3488 = vunpack.c.h.b16 %v3464
      %v3489 = vpack.c.b16 %v3473, %v3473
      %v3490 = vpack.c.b16 %v3474, %v3474
      %v3491 = vpack.c.b16 %v3475, %v3475
      %v3492 = vpack.c.b16 %v3476, %v3476
      %v3493 = vpack.c.b16 %v3477, %v3477
      %v3494 = vpack.c.b16 %v3478, %v3478
      %v3495 = vpack.c.b16 %v3479, %v3479
      %v3496 = vpack.c.b16 %v3480, %v3480
      %v3497 = vpack.c.b16 %v3481, %v3481
      %v3498 = vpack.c.b16 %v3482, %v3482
      %v3499 = vpack.c.b16 %v3483, %v3483
      %v3500 = vpack.c.b16 %v3484, %v3484
      %v3501 = vpack.c.b16 %v3485, %v3485
      %v3502 = vpack.c.b16 %v3486, %v3486
      %v3503 = vpack.c.b16 %v3487, %v3487
      %v3504 = vpack.c.b16 %v3488, %v3488
      %v3506 = vshrl.u32 %v3489, 16
      %v3508 = vrot.slane %v3506, 7
      %v3509 = vshll.u32 %v3489, 16
      %v3511 = vor.u32 %v3508, %v3509
      %v3512 = vrot.slane %v3508, 4
      %v3514 = vshrl.u32 %v3490, 16
      %v3516 = vrot.slane %v3514, 7
      %v3517 = vshll.u32 %v3490, 16
      %v3519 = vor.u32 %v3516, %v3517
      %v3520 = vsel %vm408, %v3512, %v3519
      %v3521 = vrot.slane %v3516, 4
      %v3523 = vshrl.u32 %v3491, 16
      %v3525 = vrot.slane %v3523, 7
      %v3526 = vshll.u32 %v3491, 16
      %v3528 = vor.u32 %v3525, %v3526
      %v3529 = vrot.slane %v3525, 4
      %v3531 = vshrl.u32 %v3492, 16
      %v3533 = vrot.slane %v3531, 7
      %v3534 = vshll.u32 %v3492, 16
      %v3536 = vor.u32 %v3533, %v3534
      %v3537 = vsel %vm408, %v3529, %v3536
      %v3538 = vrot.slane %v3533, 4
      %v3540 = vshrl.u32 %v3493, 16
      %v3542 = vrot.slane %v3540, 7
      %v3543 = vshll.u32 %v3493, 16
      %v3545 = vor.u32 %v3542, %v3543
      %v3546 = vrot.slane %v3542, 4
      %v3548 = vshrl.u32 %v3494, 16
      %v3550 = vrot.slane %v3548, 7
      %v3551 = vshll.u32 %v3494, 16
      %v3553 = vor.u32 %v3550, %v3551
      %v3554 = vsel %vm408, %v3546, %v3553
      %v3555 = vrot.slane %v3550, 4
      %v3557 = vshrl.u32 %v3495, 16
      %v3559 = vrot.slane %v3557, 7
      %v3560 = vshll.u32 %v3495, 16
      %v3562 = vor.u32 %v3559, %v3560
      %v3563 = vrot.slane %v3559, 4
      %v3565 = vshrl.u32 %v3496, 16
      %v3567 = vrot.slane %v3565, 7
      %v3568 = vshll.u32 %v3496, 16
      %v3570 = vor.u32 %v3567, %v3568
      %v3571 = vsel %vm408, %v3563, %v3570
      %v3572 = vrot.slane %v3567, 4
      %v3574 = vshrl.u32 %v3497, 16
      %v3576 = vrot.slane %v3574, 7
      %v3577 = vshll.u32 %v3497, 16
      %v3579 = vor.u32 %v3576, %v3577
      %v3580 = vrot.slane %v3576, 4
      %v3582 = vshrl.u32 %v3498, 16
      %v3584 = vrot.slane %v3582, 7
      %v3585 = vshll.u32 %v3498, 16
      %v3587 = vor.u32 %v3584, %v3585
      %v3588 = vsel %vm408, %v3580, %v3587
      %v3589 = vrot.slane %v3584, 4
      %v3591 = vshrl.u32 %v3499, 16
      %v3593 = vrot.slane %v3591, 7
      %v3594 = vshll.u32 %v3499, 16
      %v3596 = vor.u32 %v3593, %v3594
      %v3597 = vrot.slane %v3593, 4
      %v3599 = vshrl.u32 %v3500, 16
      %v3601 = vrot.slane %v3599, 7
      %v3602 = vshll.u32 %v3500, 16
      %v3604 = vor.u32 %v3601, %v3602
      %v3605 = vsel %vm408, %v3597, %v3604
      %v3606 = vrot.slane %v3601, 4
      %v3608 = vshrl.u32 %v3501, 16
      %v3610 = vrot.slane %v3608, 7
      %v3611 = vshll.u32 %v3501, 16
      %v3613 = vor.u32 %v3610, %v3611
      %v3614 = vrot.slane %v3610, 4
      %v3616 = vshrl.u32 %v3502, 16
      %v3618 = vrot.slane %v3616, 7
      %v3619 = vshll.u32 %v3502, 16
      %v3621 = vor.u32 %v3618, %v3619
      %v3622 = vsel %vm408, %v3614, %v3621
      %v3623 = vrot.slane %v3618, 4
      %v3625 = vshrl.u32 %v3503, 16
      %v3627 = vrot.slane %v3625, 7
      %v3628 = vshll.u32 %v3503, 16
      %v3630 = vor.u32 %v3627, %v3628
      %v3631 = vrot.slane %v3627, 4
      %v3633 = vshrl.u32 %v3504, 16
      %v3635 = vrot.slane %v3633, 7
      %v3636 = vshll.u32 %v3504, 16
      %v3638 = vor.u32 %v3635, %v3636
      %v3639 = vsel %vm408, %v3631, %v3638
      %v3640 = vrot.slane %v3635, 4
      %s3665 = scalar_lea.vmem [#allocation3], 12
      %vm3666 = vcmask 60416
      %vm3667 = vmand %vm3666, %vm319
      %v3668 = vld [vmem:[%s3665] sm:$0xf]
      %v3669 = vsel %vm3667, %v3511, %v3668
      %3670 = vst [vmem:[%s3665] sm:$0xf] %v3669
      %3671 = vst.msk [vmem:[%s3665 + $0x4] sm:$0xf] %vm844, %v3520
      %v3672 = vld [vmem:[%s3665 + $0x8] sm:$0x1]
      %v3673 = vsel %vm854, %v3521, %v3672
      %3674 = vst [vmem:[%s3665 + $0x8] sm:$0x1] %v3673
      %v3675 = vld [vmem:[%s3665 + $0xc] sm:$0xf]
      %v3676 = vsel %vm3667, %v3528, %v3675
      %3677 = vst [vmem:[%s3665 + $0xc] sm:$0xf] %v3676
      %3678 = vst.msk [vmem:[%s3665 + $0x10] sm:$0xf] %vm844, %v3537
      %v3679 = vld [vmem:[%s3665 + $0x14] sm:$0x1]
      %v3680 = vsel %vm854, %v3538, %v3679
      %3681 = vst [vmem:[%s3665 + $0x14] sm:$0x1] %v3680
      %v3682 = vld [vmem:[%s3665 + $0x18] sm:$0xf]
      %v3683 = vsel %vm3667, %v3545, %v3682
      %3684 = vst [vmem:[%s3665 + $0x18] sm:$0xf] %v3683
      %3685 = vst.msk [vmem:[%s3665 + $0x1c] sm:$0xf] %vm844, %v3554
      %v3686 = vld [vmem:[%s3665 + $0x20] sm:$0x1]
      %v3687 = vsel %vm854, %v3555, %v3686
      %3688 = vst [vmem:[%s3665 + $0x20] sm:$0x1] %v3687
      %v3689 = vld [vmem:[%s3665 + $0x24] sm:$0xf]
      %v3690 = vsel %vm3667, %v3562, %v3689
      %3691 = vst [vmem:[%s3665 + $0x24] sm:$0xf] %v3690
      %3692 = vst.msk [vmem:[%s3665 + $0x28] sm:$0xf] %vm844, %v3571
      %v3693 = vld [vmem:[%s3665 + $0x2c] sm:$0x1]
      %v3694 = vsel %vm854, %v3572, %v3693
      %3695 = vst [vmem:[%s3665 + $0x2c] sm:$0x1] %v3694
      %v3696 = vld [vmem:[%s3665 + $0x30] sm:$0xf]
      %v3697 = vsel %vm3667, %v3579, %v3696
      %3698 = vst [vmem:[%s3665 + $0x30] sm:$0xf] %v3697
      %3699 = vst.msk [vmem:[%s3665 + $0x34] sm:$0xf] %vm844, %v3588
      %v3700 = vld [vmem:[%s3665 + $0x38] sm:$0x1]
      %v3701 = vsel %vm854, %v3589, %v3700
      %3702 = vst [vmem:[%s3665 + $0x38] sm:$0x1] %v3701
      %v3703 = vld [vmem:[%s3665 + $0x3c] sm:$0xf]
      %v3704 = vsel %vm3667, %v3596, %v3703
      %3705 = vst [vmem:[%s3665 + $0x3c] sm:$0xf] %v3704
      %3706 = vst.msk [vmem:[%s3665 + $0x40] sm:$0xf] %vm844, %v3605
      %v3707 = vld [vmem:[%s3665 + $0x44] sm:$0x1]
      %v3708 = vsel %vm854, %v3606, %v3707
      %3709 = vst [vmem:[%s3665 + $0x44] sm:$0x1] %v3708
      %v3710 = vld [vmem:[%s3665 + $0x48] sm:$0xf]
      %v3711 = vsel %vm3667, %v3613, %v3710
      %3712 = vst [vmem:[%s3665 + $0x48] sm:$0xf] %v3711
      %3713 = vst.msk [vmem:[%s3665 + $0x4c] sm:$0xf] %vm844, %v3622
      %v3714 = vld [vmem:[%s3665 + $0x50] sm:$0x1]
      %v3715 = vsel %vm854, %v3623, %v3714
      %3716 = vst [vmem:[%s3665 + $0x50] sm:$0x1] %v3715
      %v3717 = vld [vmem:[%s3665 + $0x54] sm:$0xf]
      %v3718 = vsel %vm3667, %v3630, %v3717
      %3719 = vst [vmem:[%s3665 + $0x54] sm:$0xf] %v3718
      %3720 = vst.msk [vmem:[%s3665 + $0x58] sm:$0xf] %vm844, %v3639
      %v3721 = vld [vmem:[%s3665 + $0x5c] sm:$0x1]
      %v3722 = vsel %vm854, %v3640, %v3721
      %3723 = vst [vmem:[%s3665 + $0x5c] sm:$0x1] %v3722
      %s3724 = scalar_lea.vmem [#allocation2], 96
      %v3725 = vld [vmem:[%s3724] sm:$0xf]
      %v3726 = vld [vmem:[%s3724 + $0x4] sm:$0xf]
      %v3727 = vld [vmem:[%s3724 + $0xc] sm:$0xf]
      %v3728 = vld [vmem:[%s3724 + $0x10] sm:$0xf]
      %v3729 = vld [vmem:[%s3724 + $0x18] sm:$0xf]
      %v3730 = vld [vmem:[%s3724 + $0x1c] sm:$0xf]
      %v3731 = vld [vmem:[%s3724 + $0x24] sm:$0xf]
      %v3732 = vld [vmem:[%s3724 + $0x28] sm:$0xf]
      %v3733 = vld [vmem:[%s3724 + $0x30] sm:$0xf]
      %v3734 = vld [vmem:[%s3724 + $0x34] sm:$0xf]
      %v3735 = vld [vmem:[%s3724 + $0x3c] sm:$0xf]
      %v3736 = vld [vmem:[%s3724 + $0x40] sm:$0xf]
      %v3737 = vld [vmem:[%s3724 + $0x48] sm:$0xf]
      %v3738 = vld [vmem:[%s3724 + $0x4c] sm:$0xf]
      %v3739 = vld [vmem:[%s3724 + $0x54] sm:$0xf]
      %v3740 = vld [vmem:[%s3724 + $0x58] sm:$0xf]
      %v3741 = vld [vmem:[%s1] sm:$0x3]
      %v3742 = vld [vmem:[%s3724 + $0x8] sm:$0x1]
      %v3743 = vld [vmem:[%s3724 + $0x14] sm:$0x1]
      %v3744 = vld [vmem:[%s3724 + $0x20] sm:$0x1]
      %v3745 = vld [vmem:[%s3724 + $0x2c] sm:$0x1]
      %v3746 = vld [vmem:[%s3724 + $0x38] sm:$0x1]
      %v3747 = vld [vmem:[%s3724 + $0x44] sm:$0x1]
      %v3748 = vld [vmem:[%s3724 + $0x50] sm:$0x1]
      %v3749 = vld [vmem:[%s3724 + $0x5c] sm:$0x1]
      %v3751 = vshrl.u32 %v3725, 16
      %v3753 = vrot.slane %v3751, 4
      %v3754 = vshll.u32 %v3725, 16
      %v3756 = vrot.slane %v3754, 5
      %v3757 = vor.u32 %v3753, %v3756
      %v3758 = vrot.slane %v3757, 4
      %v3760 = vshll.u32 %v3726, 16
      %v3762 = vrot.slane %v3760, 5
      %v3763 = vsel %vm991, %v3758, %v3762
      %v3764 = vshrl.u32 %v3726, 16
      %v3766 = vrot.slane %v3764, 4
      %v3767 = vor.u32 %v3766, %v3762
      %v3768 = vrot.slane %v3767, 4
      %v3770 = vshll.u32 %v3742, 16
      %v3772 = vrot.slane %v3770, 5
      %v3773 = vsel %vm991, %v3768, %v3772
      %v3775 = vshrl.u32 %v3727, 16
      %v3777 = vrot.slane %v3775, 4
      %v3778 = vshll.u32 %v3727, 16
      %v3780 = vrot.slane %v3778, 5
      %v3781 = vor.u32 %v3777, %v3780
      %v3782 = vrot.slane %v3781, 4
      %v3784 = vshll.u32 %v3728, 16
      %v3786 = vrot.slane %v3784, 5
      %v3787 = vsel %vm991, %v3782, %v3786
      %v3788 = vshrl.u32 %v3728, 16
      %v3790 = vrot.slane %v3788, 4
      %v3791 = vor.u32 %v3790, %v3786
      %v3792 = vrot.slane %v3791, 4
      %v3794 = vshll.u32 %v3743, 16
      %v3796 = vrot.slane %v3794, 5
      %v3797 = vsel %vm991, %v3792, %v3796
      %v3799 = vshrl.u32 %v3729, 16
      %v3801 = vrot.slane %v3799, 4
      %v3802 = vshll.u32 %v3729, 16
      %v3804 = vrot.slane %v3802, 5
      %v3805 = vor.u32 %v3801, %v3804
      %v3806 = vrot.slane %v3805, 4
      %v3808 = vshll.u32 %v3730, 16
      %v3810 = vrot.slane %v3808, 5
      %v3811 = vsel %vm991, %v3806, %v3810
      %v3812 = vshrl.u32 %v3730, 16
      %v3814 = vrot.slane %v3812, 4
      %v3815 = vor.u32 %v3814, %v3810
      %v3816 = vrot.slane %v3815, 4
      %v3818 = vshll.u32 %v3744, 16
      %v3820 = vrot.slane %v3818, 5
      %v3821 = vsel %vm991, %v3816, %v3820
      %v3823 = vshrl.u32 %v3731, 16
      %v3825 = vrot.slane %v3823, 4
      %v3826 = vshll.u32 %v3731, 16
      %v3828 = vrot.slane %v3826, 5
      %v3829 = vor.u32 %v3825, %v3828
      %v3830 = vrot.slane %v3829, 4
      %v3832 = vshll.u32 %v3732, 16
      %v3834 = vrot.slane %v3832, 5
      %v3835 = vsel %vm991, %v3830, %v3834
      %v3836 = vshrl.u32 %v3732, 16
      %v3838 = vrot.slane %v3836, 4
      %v3839 = vor.u32 %v3838, %v3834
      %v3840 = vrot.slane %v3839, 4
      %v3842 = vshll.u32 %v3745, 16
      %v3844 = vrot.slane %v3842, 5
      %v3845 = vsel %vm991, %v3840, %v3844
      %v3847 = vshrl.u32 %v3733, 16
      %v3849 = vrot.slane %v3847, 4
      %v3850 = vshll.u32 %v3733, 16
      %v3852 = vrot.slane %v3850, 5
      %v3853 = vor.u32 %v3849, %v3852
      %v3854 = vrot.slane %v3853, 4
      %v3856 = vshll.u32 %v3734, 16
      %v3858 = vrot.slane %v3856, 5
      %v3859 = vsel %vm991, %v3854, %v3858
      %v3860 = vshrl.u32 %v3734, 16
      %v3862 = vrot.slane %v3860, 4
      %v3863 = vor.u32 %v3862, %v3858
      %v3864 = vrot.slane %v3863, 4
      %v3866 = vshll.u32 %v3746, 16
      %v3868 = vrot.slane %v3866, 5
      %v3869 = vsel %vm991, %v3864, %v3868
      %v3871 = vshrl.u32 %v3735, 16
      %v3873 = vrot.slane %v3871, 4
      %v3874 = vshll.u32 %v3735, 16
      %v3876 = vrot.slane %v3874, 5
      %v3877 = vor.u32 %v3873, %v3876
      %v3878 = vrot.slane %v3877, 4
      %v3880 = vshll.u32 %v3736, 16
      %v3882 = vrot.slane %v3880, 5
      %v3883 = vsel %vm991, %v3878, %v3882
      %v3884 = vshrl.u32 %v3736, 16
      %v3886 = vrot.slane %v3884, 4
      %v3887 = vor.u32 %v3886, %v3882
      %v3888 = vrot.slane %v3887, 4
      %v3890 = vshll.u32 %v3747, 16
      %v3892 = vrot.slane %v3890, 5
      %v3893 = vsel %vm991, %v3888, %v3892
      %v3895 = vshrl.u32 %v3737, 16
      %v3897 = vrot.slane %v3895, 4
      %v3898 = vshll.u32 %v3737, 16
      %v3900 = vrot.slane %v3898, 5
      %v3901 = vor.u32 %v3897, %v3900
      %v3902 = vrot.slane %v3901, 4
      %v3904 = vshll.u32 %v3738, 16
      %v3906 = vrot.slane %v3904, 5
      %v3907 = vsel %vm991, %v3902, %v3906
      %v3908 = vshrl.u32 %v3738, 16
      %v3910 = vrot.slane %v3908, 4
      %v3911 = vor.u32 %v3910, %v3906
      %v3912 = vrot.slane %v3911, 4
      %v3914 = vshll.u32 %v3748, 16
      %v3916 = vrot.slane %v3914, 5
      %v3917 = vsel %vm991, %v3912, %v3916
      %v3919 = vshrl.u32 %v3739, 16
      %v3921 = vrot.slane %v3919, 4
      %v3922 = vshll.u32 %v3739, 16
      %v3924 = vrot.slane %v3922, 5
      %v3925 = vor.u32 %v3921, %v3924
      %v3926 = vrot.slane %v3925, 4
      %v3928 = vshll.u32 %v3740, 16
      %v3930 = vrot.slane %v3928, 5
      %v3931 = vsel %vm991, %v3926, %v3930
      %v3932 = vshrl.u32 %v3740, 16
      %v3934 = vrot.slane %v3932, 4
      %v3935 = vor.u32 %v3934, %v3930
      %v3936 = vrot.slane %v3935, 4
      %v3938 = vshll.u32 %v3749, 16
      %v3940 = vrot.slane %v3938, 5
      %v3941 = vsel %vm991, %v3936, %v3940
      %v3942 = vld [vmem:[%s1184] sm:$0x3]
      %v3943 = vunpack.c.l.b16 %v3763
      %v3944 = vunpack.c.l.b16 %v3773
      %v3945 = vunpack.c.l.b16 %v3787
      %v3946 = vunpack.c.l.b16 %v3797
      %v3947 = vunpack.c.l.b16 %v3811
      %v3948 = vunpack.c.l.b16 %v3821
      %v3949 = vunpack.c.l.b16 %v3835
      %v3950 = vunpack.c.l.b16 %v3845
      %v3951 = vunpack.c.l.b16 %v3859
      %v3952 = vunpack.c.l.b16 %v3869
      %v3953 = vunpack.c.l.b16 %v3883
      %v3954 = vunpack.c.l.b16 %v3893
      %v3955 = vunpack.c.l.b16 %v3907
      %v3956 = vunpack.c.l.b16 %v3917
      %v3957 = vunpack.c.l.b16 %v3931
      %v3958 = vunpack.c.l.b16 %v3941
      %v3959 = vpack.c.b16 %v3944, %v3943
      %v3960 = vpack.c.b16 %v3946, %v3945
      %v3961 = vpack.c.b16 %v3948, %v3947
      %v3962 = vpack.c.b16 %v3950, %v3949
      %v3963 = vpack.c.b16 %v3952, %v3951
      %v3964 = vpack.c.b16 %v3954, %v3953
      %v3965 = vpack.c.b16 %v3956, %v3955
      %v3966 = vpack.c.b16 %v3958, %v3957
      %v3968 = vsel %vm1210, %v3959, 0
      %v3971 = vsel %vm1210, %v3960, 0
      %v3974 = vsel %vm1210, %v3961, 0
      %v3977 = vsel %vm1210, %v3962, 0
      %v3980 = vsel %vm1210, %v3963, 0
      %v3983 = vsel %vm1210, %v3964, 0
      %v3986 = vsel %vm1210, %v3965, 0
      %v3989 = vsel %vm1210, %v3966, 0
      %v3992 = vsel %vm1235, %v3942, 0
      %3994 = vmatprep.subr.bf16.mxu0 0
      %3995 = vmatpush1.bf16.msra.mxu0 %v3992
      %3996 = vmatprep.subr.bf16.mxu0 0
      %3997 = vmatpush1.bf16.msra.mxu0 0
      %3998 = vmatprep.subr.bf16.mxu0 0
      %3999 = vmatpush1.bf16.msra.mxu0 0
      %4000 = vmatprep.subr.bf16.mxu0 0
      %4001 = vmatpush1.bf16.msra.mxu0 0
      %4002 = vmatprep.subr.bf16.mxu0 0
      %4003 = vmatpush1.bf16.msra.mxu0 0
      %4004 = vmatprep.subr.bf16.mxu0 0
      %4005 = vmatpush1.bf16.msra.mxu0 0
      %4006 = vmatprep.subr.bf16.mxu0 0
      %4007 = vmatpush1.bf16.msra.mxu0 0
      %4008 = vmatprep.subr.bf16.mxu0 0
      %4009 = vmatpush1.bf16.msra.mxu0 0
      %4010 = vmatprep.subr.bf16.mxu0 0
      %4011 = vmatpush1.bf16.msra.mxu0 0
      %4012 = vmatprep.subr.bf16.mxu0 0
      %4013 = vmatpush1.bf16.msra.mxu0 0
      %4014 = vmatprep.subr.bf16.mxu0 0
      %4015 = vmatpush1.bf16.msra.mxu0 0
      %4016 = vmatprep.subr.bf16.mxu0 0
      %4017 = vmatpush1.bf16.msra.mxu0 0
      %4018 = vmatprep.subr.bf16.mxu0 0
      %4019 = vmatpush1.bf16.msra.mxu0 0
      %4020 = vmatprep.subr.bf16.mxu0 0
      %4021 = vmatpush1.bf16.msra.mxu0 0
      %4022 = vmatprep.subr.bf16.mxu0 0
      %4023 = vmatpush1.bf16.msra.mxu0 0
      %4024 = vmatprep.subr.bf16.mxu0 0
      %4025 = vmatpush1.bf16.msra.mxu0 0
      %4026 = vmatprep.mubr.bf16.mxu0 0
      %4027 = vmatmul.mubr.bf16.gmra.mrb[0].mxu0 %v3968
      %v4028 = vpop.f32.mrb[0].mxu0
      %v4029 = vadd.f32 0.0, %v4028
      %v4030 = vpop.f32.mrb[0].mxu0
      %v4031 = vpop.f32.mrb[0].mxu0
      %v4032 = vadd.f32 0.0, %v4031
      %v4033 = vpop.f32.mrb[0].mxu0
      %4034 = vmatprep.mubr.bf16.mxu0 0
      %4035 = vmatmul.mubr.bf16.gmra.mrb[0].mxu0 %v3971
      %v4036 = vpop.f32.mrb[0].mxu0
      %v4037 = vadd.f32 0.0, %v4036
      %v4038 = vpop.f32.mrb[0].mxu0
      %v4039 = vpop.f32.mrb[0].mxu0
      %v4040 = vadd.f32 0.0, %v4039
      %v4041 = vpop.f32.mrb[0].mxu0
      %4042 = vmatprep.mubr.bf16.mxu0 0
      %4043 = vmatmul.mubr.bf16.gmra.mrb[0].mxu0 %v3974
      %v4044 = vpop.f32.mrb[0].mxu0
      %v4045 = vadd.f32 0.0, %v4044
      %v4046 = vpop.f32.mrb[0].mxu0
      %v4047 = vpop.f32.mrb[0].mxu0
      %v4048 = vadd.f32 0.0, %v4047
      %v4049 = vpop.f32.mrb[0].mxu0
      %4050 = vmatprep.mubr.bf16.mxu0 0
      %4051 = vmatmul.mubr.bf16.gmra.mrb[0].mxu0 %v3977
      %v4052 = vpop.f32.mrb[0].mxu0
      %v4053 = vadd.f32 0.0, %v4052
      %v4054 = vpop.f32.mrb[0].mxu0
      %v4055 = vpop.f32.mrb[0].mxu0
      %v4056 = vadd.f32 0.0, %v4055
      %v4057 = vpop.f32.mrb[0].mxu0
      %4058 = vmatprep.mubr.bf16.mxu0 0
      %4059 = vmatmul.mubr.bf16.gmra.mrb[0].mxu0 %v3980
      %v4060 = vpop.f32.mrb[0].mxu0
      %v4061 = vadd.f32 0.0, %v4060
      %v4062 = vpop.f32.mrb[0].mxu0
      %v4063 = vpop.f32.mrb[0].mxu0
      %v4064 = vadd.f32 0.0, %v4063
      %v4065 = vpop.f32.mrb[0].mxu0
      %4066 = vmatprep.mubr.bf16.mxu0 0
      %4067 = vmatmul.mubr.bf16.gmra.mrb[0].mxu0 %v3983
      %v4068 = vpop.f32.mrb[0].mxu0
      %v4069 = vadd.f32 0.0, %v4068
      %v4070 = vpop.f32.mrb[0].mxu0
      %v4071 = vpop.f32.mrb[0].mxu0
      %v4072 = vadd.f32 0.0, %v4071
      %v4073 = vpop.f32.mrb[0].mxu0
      %4074 = vmatprep.mubr.bf16.mxu0 0
      %4075 = vmatmul.mubr.bf16.gmra.mrb[0].mxu0 %v3986
      %v4076 = vpop.f32.mrb[0].mxu0
      %v4077 = vadd.f32 0.0, %v4076
      %v4078 = vpop.f32.mrb[0].mxu0
      %v4079 = vpop.f32.mrb[0].mxu0
      %v4080 = vadd.f32 0.0, %v4079
      %v4081 = vpop.f32.mrb[0].mxu0
      %4082 = vmatprep.mubr.bf16.mxu0 0
      %4083 = vmatmul.mubr.bf16.gmra.mrb[0].mxu0 %v3989
      %v4084 = vpop.f32.mrb[0].mxu0
      %v4085 = vadd.f32 0.0, %v4084
      %v4086 = vpop.f32.mrb[0].mxu0
      %v4087 = vpop.f32.mrb[0].mxu0
      %v4088 = vadd.f32 0.0, %v4087
      %v4089 = vpop.f32.mrb[0].mxu0
      %4090 = vdwg.mxu0
      %v4107 = vunpack.c.l.b16 %v3725
      %v4108 = vunpack.c.l.b16 %v3726
      %v4109 = vunpack.c.l.b16 %v3727
      %v4110 = vunpack.c.l.b16 %v3728
      %v4111 = vunpack.c.l.b16 %v3729
      %v4112 = vunpack.c.l.b16 %v3730
      %v4113 = vunpack.c.l.b16 %v3731
      %v4114 = vunpack.c.l.b16 %v3732
      %v4115 = vunpack.c.l.b16 %v3733
      %v4116 = vunpack.c.l.b16 %v3734
      %v4117 = vunpack.c.l.b16 %v3735
      %v4118 = vunpack.c.l.b16 %v3736
      %v4119 = vunpack.c.l.b16 %v3737
      %v4120 = vunpack.c.l.b16 %v3738
      %v4121 = vunpack.c.l.b16 %v3739
      %v4122 = vunpack.c.l.b16 %v3740
      %v4123 = vpack.c.b16 %v4108, %v4107
      %v4124 = vpack.c.b16 %v4110, %v4109
      %v4125 = vpack.c.b16 %v4112, %v4111
      %v4126 = vpack.c.b16 %v4114, %v4113
      %v4127 = vpack.c.b16 %v4116, %v4115
      %v4128 = vpack.c.b16 %v4118, %v4117
      %v4129 = vpack.c.b16 %v4120, %v4119
      %v4130 = vpack.c.b16 %v4122, %v4121
      %v4132 = vsel %vm1210, %v4123, 0
      %v4135 = vsel %vm1210, %v4124, 0
      %v4138 = vsel %vm1210, %v4125, 0
      %v4141 = vsel %vm1210, %v4126, 0
      %v4144 = vsel %vm1210, %v4127, 0
      %v4147 = vsel %vm1210, %v4128, 0
      %v4150 = vsel %vm1210, %v4129, 0
      %v4153 = vsel %vm1210, %v4130, 0
      %v4156 = vsel %vm1235, %v3741, 0
      %4158 = vmatprep.subr.bf16.mxu0 0
      %4159 = vmatpush1.bf16.msra.mxu0 %v4156
      %4160 = vmatprep.subr.bf16.mxu0 0
      %4161 = vmatpush1.bf16.msra.mxu0 0
      %4162 = vmatprep.subr.bf16.mxu0 0
      %4163 = vmatpush1.bf16.msra.mxu0 0
      %4164 = vmatprep.subr.bf16.mxu0 0
      %4165 = vmatpush1.bf16.msra.mxu0 0
      %4166 = vmatprep.subr.bf16.mxu0 0
      %4167 = vmatpush1.bf16.msra.mxu0 0
      %4168 = vmatprep.subr.bf16.mxu0 0
      %4169 = vmatpush1.bf16.msra.mxu0 0
      %4170 = vmatprep.subr.bf16.mxu0 0
      %4171 = vmatpush1.bf16.msra.mxu0 0
      %4172 = vmatprep.subr.bf16.mxu0 0
      %4173 = vmatpush1.bf16.msra.mxu0 0
      %4174 = vmatprep.subr.bf16.mxu0 0
      %4175 = vmatpush1.bf16.msra.mxu0 0
      %4176 = vmatprep.subr.bf16.mxu0 0
      %4177 = vmatpush1.bf16.msra.mxu0 0
      %4178 = vmatprep.subr.bf16.mxu0 0
      %4179 = vmatpush1.bf16.msra.mxu0 0
      %4180 = vmatprep.subr.bf16.mxu0 0
      %4181 = vmatpush1.bf16.msra.mxu0 0
      %4182 = vmatprep.subr.bf16.mxu0 0
      %4183 = vmatpush1.bf16.msra.mxu0 0
      %4184 = vmatprep.subr.bf16.mxu0 0
      %4185 = vmatpush1.bf16.msra.mxu0 0
      %4186 = vmatprep.subr.bf16.mxu0 0
      %4187 = vmatpush1.bf16.msra.mxu0 0
      %4188 = vmatprep.subr.bf16.mxu0 0
      %4189 = vmatpush1.bf16.msra.mxu0 0
      %4190 = vmatprep.mubr.bf16.mxu0 0
      %4191 = vmatmul.mubr.bf16.gmra.mrb[0].mxu0 %v4132
      %v4192 = vpop.f32.mrb[0].mxu0
      %v4193 = vadd.f32 %v4029, %v4192
      %v4194 = vpop.f32.mrb[0].mxu0
      %v4195 = vpop.f32.mrb[0].mxu0
      %v4196 = vadd.f32 %v4032, %v4195
      %v4197 = vpop.f32.mrb[0].mxu0
      %4198 = vmatprep.mubr.bf16.mxu0 0
      %4199 = vmatmul.mubr.bf16.gmra.mrb[0].mxu0 %v4135
      %v4200 = vpop.f32.mrb[0].mxu0
      %v4201 = vadd.f32 %v4037, %v4200
      %v4202 = vpop.f32.mrb[0].mxu0
      %v4203 = vpop.f32.mrb[0].mxu0
      %v4204 = vadd.f32 %v4040, %v4203
      %v4205 = vpop.f32.mrb[0].mxu0
      %4206 = vmatprep.mubr.bf16.mxu0 0
      %4207 = vmatmul.mubr.bf16.gmra.mrb[0].mxu0 %v4138
      %v4208 = vpop.f32.mrb[0].mxu0
      %v4209 = vadd.f32 %v4045, %v4208
      %v4210 = vpop.f32.mrb[0].mxu0
      %v4211 = vpop.f32.mrb[0].mxu0
      %v4212 = vadd.f32 %v4048, %v4211
      %v4213 = vpop.f32.mrb[0].mxu0
      %4214 = vmatprep.mubr.bf16.mxu0 0
      %4215 = vmatmul.mubr.bf16.gmra.mrb[0].mxu0 %v4141
      %v4216 = vpop.f32.mrb[0].mxu0
      %v4217 = vadd.f32 %v4053, %v4216
      %v4218 = vpop.f32.mrb[0].mxu0
      %v4219 = vpop.f32.mrb[0].mxu0
      %v4220 = vadd.f32 %v4056, %v4219
      %v4221 = vpop.f32.mrb[0].mxu0
      %4222 = vmatprep.mubr.bf16.mxu0 0
      %4223 = vmatmul.mubr.bf16.gmra.mrb[0].mxu0 %v4144
      %v4224 = vpop.f32.mrb[0].mxu0
      %v4225 = vadd.f32 %v4061, %v4224
      %v4226 = vpop.f32.mrb[0].mxu0
      %v4227 = vpop.f32.mrb[0].mxu0
      %v4228 = vadd.f32 %v4064, %v4227
      %v4229 = vpop.f32.mrb[0].mxu0
      %4230 = vmatprep.mubr.bf16.mxu0 0
      %4231 = vmatmul.mubr.bf16.gmra.mrb[0].mxu0 %v4147
      %v4232 = vpop.f32.mrb[0].mxu0
      %v4233 = vadd.f32 %v4069, %v4232
      %v4234 = vpop.f32.mrb[0].mxu0
      %v4235 = vpop.f32.mrb[0].mxu0
      %v4236 = vadd.f32 %v4072, %v4235
      %v4237 = vpop.f32.mrb[0].mxu0
      %4238 = vmatprep.mubr.bf16.mxu0 0
      %4239 = vmatmul.mubr.bf16.gmra.mrb[0].mxu0 %v4150
      %v4240 = vpop.f32.mrb[0].mxu0
      %v4241 = vadd.f32 %v4077, %v4240
      %v4242 = vpop.f32.mrb[0].mxu0
      %v4243 = vpop.f32.mrb[0].mxu0
      %v4244 = vadd.f32 %v4080, %v4243
      %v4245 = vpop.f32.mrb[0].mxu0
      %4246 = vmatprep.mubr.bf16.mxu0 0
      %4247 = vmatmul.mubr.bf16.gmra.mrb[0].mxu0 %v4153
      %v4248 = vpop.f32.mrb[0].mxu0
      %v4249 = vadd.f32 %v4085, %v4248
      %v4250 = vpop.f32.mrb[0].mxu0
      %v4251 = vpop.f32.mrb[0].mxu0
      %v4252 = vadd.f32 %v4088, %v4251
      %v4253 = vpop.f32.mrb[0].mxu0
      %4254 = vdwg.mxu0
      %v4255 = vld [vmem:[%s3724] sm:$0xe]
      %v4256 = vld [vmem:[%s3724 + $0xc] sm:$0xe]
      %v4257 = vld [vmem:[%s3724 + $0x18] sm:$0xe]
      %v4258 = vld [vmem:[%s3724 + $0x24] sm:$0xe]
      %v4259 = vld [vmem:[%s3724 + $0x30] sm:$0xe]
      %v4260 = vld [vmem:[%s3724 + $0x3c] sm:$0xe]
      %v4261 = vld [vmem:[%s3724 + $0x48] sm:$0xe]
      %v4262 = vld [vmem:[%s3724 + $0x54] sm:$0xe]
      %v4279 = vrot.slane %v4255, 5
      %v4280 = vrot.slane %v4279, 4
      %v4281 = vrot.slane %v3726, 5
      %v4282 = vsel %vm1526, %v4280, %v4281
      %v4283 = vrot.slane %v4281, 4
      %v4284 = vrot.slane %v3742, 5
      %v4285 = vsel %vm1526, %v4283, %v4284
      %v4286 = vrot.slane %v4256, 5
      %v4287 = vrot.slane %v4286, 4
      %v4288 = vrot.slane %v3728, 5
      %v4289 = vsel %vm1526, %v4287, %v4288
      %v4290 = vrot.slane %v4288, 4
      %v4291 = vrot.slane %v3743, 5
      %v4292 = vsel %vm1526, %v4290, %v4291
      %v4293 = vrot.slane %v4257, 5
      %v4294 = vrot.slane %v4293, 4
      %v4295 = vrot.slane %v3730, 5
      %v4296 = vsel %vm1526, %v4294, %v4295
      %v4297 = vrot.slane %v4295, 4
      %v4298 = vrot.slane %v3744, 5
      %v4299 = vsel %vm1526, %v4297, %v4298
      %v4300 = vrot.slane %v4258, 5
      %v4301 = vrot.slane %v4300, 4
      %v4302 = vrot.slane %v3732, 5
      %v4303 = vsel %vm1526, %v4301, %v4302
      %v4304 = vrot.slane %v4302, 4
      %v4305 = vrot.slane %v3745, 5
      %v4306 = vsel %vm1526, %v4304, %v4305
      %v4307 = vrot.slane %v4259, 5
      %v4308 = vrot.slane %v4307, 4
      %v4309 = vrot.slane %v3734, 5
      %v4310 = vsel %vm1526, %v4308, %v4309
      %v4311 = vrot.slane %v4309, 4
      %v4312 = vrot.slane %v3746, 5
      %v4313 = vsel %vm1526, %v4311, %v4312
      %v4314 = vrot.slane %v4260, 5
      %v4315 = vrot.slane %v4314, 4
      %v4316 = vrot.slane %v3736, 5
      %v4317 = vsel %vm1526, %v4315, %v4316
      %v4318 = vrot.slane %v4316, 4
      %v4319 = vrot.slane %v3747, 5
      %v4320 = vsel %vm1526, %v4318, %v4319
      %v4321 = vrot.slane %v4261, 5
      %v4322 = vrot.slane %v4321, 4
      %v4323 = vrot.slane %v3738, 5
      %v4324 = vsel %vm1526, %v4322, %v4323
      %v4325 = vrot.slane %v4323, 4
      %v4326 = vrot.slane %v3748, 5
      %v4327 = vsel %vm1526, %v4325, %v4326
      %v4328 = vrot.slane %v4262, 5
      %v4329 = vrot.slane %v4328, 4
      %v4330 = vrot.slane %v3740, 5
      %v4331 = vsel %vm1526, %v4329, %v4330
      %v4332 = vrot.slane %v4330, 4
      %v4333 = vrot.slane %v3749, 5
      %v4334 = vsel %vm1526, %v4332, %v4333
      %v4335 = vld [vmem:[%s1583] sm:$0x3]
      %v4336 = vunpack.c.l.b16 %v4282
      %v4337 = vunpack.c.l.b16 %v4285
      %v4338 = vunpack.c.l.b16 %v4289
      %v4339 = vunpack.c.l.b16 %v4292
      %v4340 = vunpack.c.l.b16 %v4296
      %v4341 = vunpack.c.l.b16 %v4299
      %v4342 = vunpack.c.l.b16 %v4303
      %v4343 = vunpack.c.l.b16 %v4306
      %v4344 = vunpack.c.l.b16 %v4310
      %v4345 = vunpack.c.l.b16 %v4313
      %v4346 = vunpack.c.l.b16 %v4317
      %v4347 = vunpack.c.l.b16 %v4320
      %v4348 = vunpack.c.l.b16 %v4324
      %v4349 = vunpack.c.l.b16 %v4327
      %v4350 = vunpack.c.l.b16 %v4331
      %v4351 = vunpack.c.l.b16 %v4334
      %v4352 = vpack.c.b16 %v4337, %v4336
      %v4353 = vpack.c.b16 %v4339, %v4338
      %v4354 = vpack.c.b16 %v4341, %v4340
      %v4355 = vpack.c.b16 %v4343, %v4342
      %v4356 = vpack.c.b16 %v4345, %v4344
      %v4357 = vpack.c.b16 %v4347, %v4346
      %v4358 = vpack.c.b16 %v4349, %v4348
      %v4359 = vpack.c.b16 %v4351, %v4350
      %v4361 = vsel %vm1210, %v4352, 0
      %v4364 = vsel %vm1210, %v4353, 0
      %v4367 = vsel %vm1210, %v4354, 0
      %v4370 = vsel %vm1210, %v4355, 0
      %v4373 = vsel %vm1210, %v4356, 0
      %v4376 = vsel %vm1210, %v4357, 0
      %v4379 = vsel %vm1210, %v4358, 0
      %v4382 = vsel %vm1210, %v4359, 0
      %v4385 = vsel %vm1235, %v4335, 0
      %4387 = vmatprep.subr.bf16.mxu0 0
      %4388 = vmatpush1.bf16.msra.mxu0 %v4385
      %4389 = vmatprep.subr.bf16.mxu0 0
      %4390 = vmatpush1.bf16.msra.mxu0 0
      %4391 = vmatprep.subr.bf16.mxu0 0
      %4392 = vmatpush1.bf16.msra.mxu0 0
      %4393 = vmatprep.subr.bf16.mxu0 0
      %4394 = vmatpush1.bf16.msra.mxu0 0
      %4395 = vmatprep.subr.bf16.mxu0 0
      %4396 = vmatpush1.bf16.msra.mxu0 0
      %4397 = vmatprep.subr.bf16.mxu0 0
      %4398 = vmatpush1.bf16.msra.mxu0 0
      %4399 = vmatprep.subr.bf16.mxu0 0
      %4400 = vmatpush1.bf16.msra.mxu0 0
      %4401 = vmatprep.subr.bf16.mxu0 0
      %4402 = vmatpush1.bf16.msra.mxu0 0
      %4403 = vmatprep.subr.bf16.mxu0 0
      %4404 = vmatpush1.bf16.msra.mxu0 0
      %4405 = vmatprep.subr.bf16.mxu0 0
      %4406 = vmatpush1.bf16.msra.mxu0 0
      %4407 = vmatprep.subr.bf16.mxu0 0
      %4408 = vmatpush1.bf16.msra.mxu0 0
      %4409 = vmatprep.subr.bf16.mxu0 0
      %4410 = vmatpush1.bf16.msra.mxu0 0
      %4411 = vmatprep.subr.bf16.mxu0 0
      %4412 = vmatpush1.bf16.msra.mxu0 0
      %4413 = vmatprep.subr.bf16.mxu0 0
      %4414 = vmatpush1.bf16.msra.mxu0 0
      %4415 = vmatprep.subr.bf16.mxu0 0
      %4416 = vmatpush1.bf16.msra.mxu0 0
      %4417 = vmatprep.subr.bf16.mxu0 0
      %4418 = vmatpush1.bf16.msra.mxu0 0
      %4419 = vmatprep.mubr.bf16.mxu0 0
      %4420 = vmatmul.mubr.bf16.gmra.mrb[0].mxu0 %v4361
      %v4421 = vpop.f32.mrb[0].mxu0
      %v4422 = vadd.f32 0.0, %v4421
      %v4423 = vpop.f32.mrb[0].mxu0
      %v4424 = vpop.f32.mrb[0].mxu0
      %v4425 = vadd.f32 0.0, %v4424
      %v4426 = vpop.f32.mrb[0].mxu0
      %4427 = vmatprep.mubr.bf16.mxu0 0
      %4428 = vmatmul.mubr.bf16.gmra.mrb[0].mxu0 %v4364
      %v4429 = vpop.f32.mrb[0].mxu0
      %v4430 = vadd.f32 0.0, %v4429
      %v4431 = vpop.f32.mrb[0].mxu0
      %v4432 = vpop.f32.mrb[0].mxu0
      %v4433 = vadd.f32 0.0, %v4432
      %v4434 = vpop.f32.mrb[0].mxu0
      %4435 = vmatprep.mubr.bf16.mxu0 0
      %4436 = vmatmul.mubr.bf16.gmra.mrb[0].mxu0 %v4367
      %v4437 = vpop.f32.mrb[0].mxu0
      %v4438 = vadd.f32 0.0, %v4437
      %v4439 = vpop.f32.mrb[0].mxu0
      %v4440 = vpop.f32.mrb[0].mxu0
      %v4441 = vadd.f32 0.0, %v4440
      %v4442 = vpop.f32.mrb[0].mxu0
      %4443 = vmatprep.mubr.bf16.mxu0 0
      %4444 = vmatmul.mubr.bf16.gmra.mrb[0].mxu0 %v4370
      %v4445 = vpop.f32.mrb[0].mxu0
      %v4446 = vadd.f32 0.0, %v4445
      %v4447 = vpop.f32.mrb[0].mxu0
      %v4448 = vpop.f32.mrb[0].mxu0
      %v4449 = vadd.f32 0.0, %v4448
      %v4450 = vpop.f32.mrb[0].mxu0
      %4451 = vmatprep.mubr.bf16.mxu0 0
      %4452 = vmatmul.mubr.bf16.gmra.mrb[0].mxu0 %v4373
      %v4453 = vpop.f32.mrb[0].mxu0
      %v4454 = vadd.f32 0.0, %v4453
      %v4455 = vpop.f32.mrb[0].mxu0
      %v4456 = vpop.f32.mrb[0].mxu0
      %v4457 = vadd.f32 0.0, %v4456
      %v4458 = vpop.f32.mrb[0].mxu0
      %4459 = vmatprep.mubr.bf16.mxu0 0
      %4460 = vmatmul.mubr.bf16.gmra.mrb[0].mxu0 %v4376
      %v4461 = vpop.f32.mrb[0].mxu0
      %v4462 = vadd.f32 0.0, %v4461
      %v4463 = vpop.f32.mrb[0].mxu0
      %v4464 = vpop.f32.mrb[0].mxu0
      %v4465 = vadd.f32 0.0, %v4464
      %v4466 = vpop.f32.mrb[0].mxu0
      %4467 = vmatprep.mubr.bf16.mxu0 0
      %4468 = vmatmul.mubr.bf16.gmra.mrb[0].mxu0 %v4379
      %v4469 = vpop.f32.mrb[0].mxu0
      %v4470 = vadd.f32 0.0, %v4469
      %v4471 = vpop.f32.mrb[0].mxu0
      %v4472 = vpop.f32.mrb[0].mxu0
      %v4473 = vadd.f32 0.0, %v4472
      %v4474 = vpop.f32.mrb[0].mxu0
      %4475 = vmatprep.mubr.bf16.mxu0 0
      %4476 = vmatmul.mubr.bf16.gmra.mrb[0].mxu0 %v4382
      %v4477 = vpop.f32.mrb[0].mxu0
      %v4478 = vadd.f32 0.0, %v4477
      %v4479 = vpop.f32.mrb[0].mxu0
      %v4480 = vpop.f32.mrb[0].mxu0
      %v4481 = vadd.f32 0.0, %v4480
      %v4482 = vpop.f32.mrb[0].mxu0
      %4483 = vdwg.mxu0
      %v4484 = vadd.f32 %v4193, %v4422
      %v4485 = vadd.f32 %v4196, %v4425
      %v4486 = vadd.f32 %v4201, %v4430
      %v4487 = vadd.f32 %v4204, %v4433
      %v4488 = vadd.f32 %v4209, %v4438
      %v4489 = vadd.f32 %v4212, %v4441
      %v4490 = vadd.f32 %v4217, %v4446
      %v4491 = vadd.f32 %v4220, %v4449
      %v4492 = vadd.f32 %v4225, %v4454
      %v4493 = vadd.f32 %v4228, %v4457
      %v4494 = vadd.f32 %v4233, %v4462
      %v4495 = vadd.f32 %v4236, %v4465
      %v4496 = vadd.f32 %v4241, %v4470
      %v4497 = vadd.f32 %v4244, %v4473
      %v4498 = vadd.f32 %v4249, %v4478
      %v4499 = vadd.f32 %v4252, %v4481
      %s4500 = scalar_lea.vmem [#allocation2], 108
      %v4501 = vld [vmem:[%s4500] sm:$0xf]
      %v4502 = vld [vmem:[%s4500 + $0x4] sm:$0xf]
      %v4503 = vld [vmem:[%s4500 + $0xc] sm:$0xf]
      %v4504 = vld [vmem:[%s4500 + $0x10] sm:$0xf]
      %v4505 = vld [vmem:[%s4500 + $0x18] sm:$0xf]
      %v4506 = vld [vmem:[%s4500 + $0x1c] sm:$0xf]
      %v4507 = vld [vmem:[%s4500 + $0x24] sm:$0xf]
      %v4508 = vld [vmem:[%s4500 + $0x28] sm:$0xf]
      %v4509 = vld [vmem:[%s4500 + $0x30] sm:$0xf]
      %v4510 = vld [vmem:[%s4500 + $0x34] sm:$0xf]
      %v4511 = vld [vmem:[%s4500 + $0x3c] sm:$0xf]
      %v4512 = vld [vmem:[%s4500 + $0x40] sm:$0xf]
      %v4513 = vld [vmem:[%s4500 + $0x48] sm:$0xf]
      %v4514 = vld [vmem:[%s4500 + $0x4c] sm:$0xf]
      %v4515 = vld [vmem:[%s4500 + $0x54] sm:$0xf]
      %v4516 = vld [vmem:[%s4500 + $0x58] sm:$0xf]
      %v4517 = vld [vmem:[%s1765] sm:$0x3]
      %v4534 = vunpack.c.l.b16 %v4501
      %v4535 = vunpack.c.l.b16 %v4502
      %v4536 = vunpack.c.l.b16 %v4503
      %v4537 = vunpack.c.l.b16 %v4504
      %v4538 = vunpack.c.l.b16 %v4505
      %v4539 = vunpack.c.l.b16 %v4506
      %v4540 = vunpack.c.l.b16 %v4507
      %v4541 = vunpack.c.l.b16 %v4508
      %v4542 = vunpack.c.l.b16 %v4509
      %v4543 = vunpack.c.l.b16 %v4510
      %v4544 = vunpack.c.l.b16 %v4511
      %v4545 = vunpack.c.l.b16 %v4512
      %v4546 = vunpack.c.l.b16 %v4513
      %v4547 = vunpack.c.l.b16 %v4514
      %v4548 = vunpack.c.l.b16 %v4515
      %v4549 = vunpack.c.l.b16 %v4516
      %v4550 = vpack.c.b16 %v4535, %v4534
      %v4551 = vpack.c.b16 %v4537, %v4536
      %v4552 = vpack.c.b16 %v4539, %v4538
      %v4553 = vpack.c.b16 %v4541, %v4540
      %v4554 = vpack.c.b16 %v4543, %v4542
      %v4555 = vpack.c.b16 %v4545, %v4544
      %v4556 = vpack.c.b16 %v4547, %v4546
      %v4557 = vpack.c.b16 %v4549, %v4548
      %v4559 = vsel %vm1210, %v4550, 0
      %v4562 = vsel %vm1210, %v4551, 0
      %v4565 = vsel %vm1210, %v4552, 0
      %v4568 = vsel %vm1210, %v4553, 0
      %v4571 = vsel %vm1210, %v4554, 0
      %v4574 = vsel %vm1210, %v4555, 0
      %v4577 = vsel %vm1210, %v4556, 0
      %v4580 = vsel %vm1210, %v4557, 0
      %v4583 = vsel %vm1235, %v4517, 0
      %4585 = vmatprep.subr.bf16.mxu0 0
      %4586 = vmatpush1.bf16.msra.mxu0 %v4583
      %4587 = vmatprep.subr.bf16.mxu0 0
      %4588 = vmatpush1.bf16.msra.mxu0 0
      %4589 = vmatprep.subr.bf16.mxu0 0
      %4590 = vmatpush1.bf16.msra.mxu0 0
      %4591 = vmatprep.subr.bf16.mxu0 0
      %4592 = vmatpush1.bf16.msra.mxu0 0
      %4593 = vmatprep.subr.bf16.mxu0 0
      %4594 = vmatpush1.bf16.msra.mxu0 0
      %4595 = vmatprep.subr.bf16.mxu0 0
      %4596 = vmatpush1.bf16.msra.mxu0 0
      %4597 = vmatprep.subr.bf16.mxu0 0
      %4598 = vmatpush1.bf16.msra.mxu0 0
      %4599 = vmatprep.subr.bf16.mxu0 0
      %4600 = vmatpush1.bf16.msra.mxu0 0
      %4601 = vmatprep.subr.bf16.mxu0 0
      %4602 = vmatpush1.bf16.msra.mxu0 0
      %4603 = vmatprep.subr.bf16.mxu0 0
      %4604 = vmatpush1.bf16.msra.mxu0 0
      %4605 = vmatprep.subr.bf16.mxu0 0
      %4606 = vmatpush1.bf16.msra.mxu0 0
      %4607 = vmatprep.subr.bf16.mxu0 0
      %4608 = vmatpush1.bf16.msra.mxu0 0
      %4609 = vmatprep.subr.bf16.mxu0 0
      %4610 = vmatpush1.bf16.msra.mxu0 0
      %4611 = vmatprep.subr.bf16.mxu0 0
      %4612 = vmatpush1.bf16.msra.mxu0 0
      %4613 = vmatprep.subr.bf16.mxu0 0
      %4614 = vmatpush1.bf16.msra.mxu0 0
      %4615 = vmatprep.subr.bf16.mxu0 0
      %4616 = vmatpush1.bf16.msra.mxu0 0
      %4617 = vmatprep.mubr.bf16.mxu0 0
      %4618 = vmatmul.mubr.bf16.gmra.mrb[0].mxu0 %v4559
      %v4619 = vpop.f32.mrb[0].mxu0
      %v4620 = vadd.f32 0.0, %v4619
      %v4621 = vpop.f32.mrb[0].mxu0
      %v4622 = vpop.f32.mrb[0].mxu0
      %v4623 = vadd.f32 0.0, %v4622
      %v4624 = vpop.f32.mrb[0].mxu0
      %4625 = vmatprep.mubr.bf16.mxu0 0
      %4626 = vmatmul.mubr.bf16.gmra.mrb[0].mxu0 %v4562
      %v4627 = vpop.f32.mrb[0].mxu0
      %v4628 = vadd.f32 0.0, %v4627
      %v4629 = vpop.f32.mrb[0].mxu0
      %v4630 = vpop.f32.mrb[0].mxu0
      %v4631 = vadd.f32 0.0, %v4630
      %v4632 = vpop.f32.mrb[0].mxu0
      %4633 = vmatprep.mubr.bf16.mxu0 0
      %4634 = vmatmul.mubr.bf16.gmra.mrb[0].mxu0 %v4565
      %v4635 = vpop.f32.mrb[0].mxu0
      %v4636 = vadd.f32 0.0, %v4635
      %v4637 = vpop.f32.mrb[0].mxu0
      %v4638 = vpop.f32.mrb[0].mxu0
      %v4639 = vadd.f32 0.0, %v4638
      %v4640 = vpop.f32.mrb[0].mxu0
      %4641 = vmatprep.mubr.bf16.mxu0 0
      %4642 = vmatmul.mubr.bf16.gmra.mrb[0].mxu0 %v4568
      %v4643 = vpop.f32.mrb[0].mxu0
      %v4644 = vadd.f32 0.0, %v4643
      %v4645 = vpop.f32.mrb[0].mxu0
      %v4646 = vpop.f32.mrb[0].mxu0
      %v4647 = vadd.f32 0.0, %v4646
      %v4648 = vpop.f32.mrb[0].mxu0
      %4649 = vmatprep.mubr.bf16.mxu0 0
      %4650 = vmatmul.mubr.bf16.gmra.mrb[0].mxu0 %v4571
      %v4651 = vpop.f32.mrb[0].mxu0
      %v4652 = vadd.f32 0.0, %v4651
      %v4653 = vpop.f32.mrb[0].mxu0
      %v4654 = vpop.f32.mrb[0].mxu0
      %v4655 = vadd.f32 0.0, %v4654
      %v4656 = vpop.f32.mrb[0].mxu0
      %4657 = vmatprep.mubr.bf16.mxu0 0
      %4658 = vmatmul.mubr.bf16.gmra.mrb[0].mxu0 %v4574
      %v4659 = vpop.f32.mrb[0].mxu0
      %v4660 = vadd.f32 0.0, %v4659
      %v4661 = vpop.f32.mrb[0].mxu0
      %v4662 = vpop.f32.mrb[0].mxu0
      %v4663 = vadd.f32 0.0, %v4662
      %v4664 = vpop.f32.mrb[0].mxu0
      %4665 = vmatprep.mubr.bf16.mxu0 0
      %4666 = vmatmul.mubr.bf16.gmra.mrb[0].mxu0 %v4577
      %v4667 = vpop.f32.mrb[0].mxu0
      %v4668 = vadd.f32 0.0, %v4667
      %v4669 = vpop.f32.mrb[0].mxu0
      %v4670 = vpop.f32.mrb[0].mxu0
      %v4671 = vadd.f32 0.0, %v4670
      %v4672 = vpop.f32.mrb[0].mxu0
      %4673 = vmatprep.mubr.bf16.mxu0 0
      %4674 = vmatmul.mubr.bf16.gmra.mrb[0].mxu0 %v4580
      %v4675 = vpop.f32.mrb[0].mxu0
      %v4676 = vadd.f32 0.0, %v4675
      %v4677 = vpop.f32.mrb[0].mxu0
      %v4678 = vpop.f32.mrb[0].mxu0
      %v4679 = vadd.f32 0.0, %v4678
      %v4680 = vpop.f32.mrb[0].mxu0
      %4681 = vdwg.mxu0
      %v4682 = vadd.f32 %v4484, %v4620
      %v4683 = vadd.f32 %v4485, %v4623
      %v4684 = vadd.f32 %v4486, %v4628
      %v4685 = vadd.f32 %v4487, %v4631
      %v4686 = vadd.f32 %v4488, %v4636
      %v4687 = vadd.f32 %v4489, %v4639
      %v4688 = vadd.f32 %v4490, %v4644
      %v4689 = vadd.f32 %v4491, %v4647
      %v4690 = vadd.f32 %v4492, %v4652
      %v4691 = vadd.f32 %v4493, %v4655
      %v4692 = vadd.f32 %v4494, %v4660
      %v4693 = vadd.f32 %v4495, %v4663
      %v4694 = vadd.f32 %v4496, %v4668
      %v4695 = vadd.f32 %v4497, %v4671
      %v4696 = vadd.f32 %v4498, %v4676
      %v4697 = vadd.f32 %v4499, %v4679
      %v4698 = vld [vmem:[%s4500] sm:$0xf]
      %v4699 = vld [vmem:[%s4500 + $0x4] sm:$0xf]
      %v4700 = vld [vmem:[%s4500 + $0x8] sm:$0x1]
      %v4701 = vld [vmem:[%s4500 + $0xc] sm:$0xf]
      %v4702 = vld [vmem:[%s4500 + $0x10] sm:$0xf]
      %v4703 = vld [vmem:[%s4500 + $0x14] sm:$0x1]
      %v4704 = vld [vmem:[%s4500 + $0x18] sm:$0xf]
      %v4705 = vld [vmem:[%s4500 + $0x1c] sm:$0xf]
      %v4706 = vld [vmem:[%s4500 + $0x20] sm:$0x1]
      %v4707 = vld [vmem:[%s4500 + $0x24] sm:$0xf]
      %v4708 = vld [vmem:[%s4500 + $0x28] sm:$0xf]
      %v4709 = vld [vmem:[%s4500 + $0x2c] sm:$0x1]
      %v4710 = vld [vmem:[%s4500 + $0x30] sm:$0xf]
      %v4711 = vld [vmem:[%s4500 + $0x34] sm:$0xf]
      %v4712 = vld [vmem:[%s4500 + $0x38] sm:$0x1]
      %v4713 = vld [vmem:[%s4500 + $0x3c] sm:$0xf]
      %v4714 = vld [vmem:[%s4500 + $0x40] sm:$0xf]
      %v4715 = vld [vmem:[%s4500 + $0x44] sm:$0x1]
      %v4716 = vld [vmem:[%s4500 + $0x48] sm:$0xf]
      %v4717 = vld [vmem:[%s4500 + $0x4c] sm:$0xf]
      %v4718 = vld [vmem:[%s4500 + $0x50] sm:$0x1]
      %v4719 = vld [vmem:[%s4500 + $0x54] sm:$0xf]
      %v4720 = vld [vmem:[%s4500 + $0x58] sm:$0xf]
      %v4721 = vld [vmem:[%s4500 + $0x5c] sm:$0x1]
      %v4723 = vshrl.u32 %v4698, 16
      %v4725 = vrot.slane %v4723, 4
      %v4726 = vshll.u32 %v4698, 16
      %v4728 = vrot.slane %v4726, 5
      %v4729 = vor.u32 %v4725, %v4728
      %v4730 = vrot.slane %v4729, 4
      %v4732 = vshll.u32 %v4699, 16
      %v4734 = vrot.slane %v4732, 5
      %v4735 = vsel %vm991, %v4730, %v4734
      %v4736 = vshrl.u32 %v4699, 16
      %v4738 = vrot.slane %v4736, 4
      %v4739 = vor.u32 %v4738, %v4734
      %v4740 = vrot.slane %v4739, 4
      %v4742 = vshll.u32 %v4700, 16
      %v4744 = vrot.slane %v4742, 5
      %v4745 = vsel %vm991, %v4740, %v4744
      %v4747 = vshrl.u32 %v4701, 16
      %v4749 = vrot.slane %v4747, 4
      %v4750 = vshll.u32 %v4701, 16
      %v4752 = vrot.slane %v4750, 5
      %v4753 = vor.u32 %v4749, %v4752
      %v4754 = vrot.slane %v4753, 4
      %v4756 = vshll.u32 %v4702, 16
      %v4758 = vrot.slane %v4756, 5
      %v4759 = vsel %vm991, %v4754, %v4758
      %v4760 = vshrl.u32 %v4702, 16
      %v4762 = vrot.slane %v4760, 4
      %v4763 = vor.u32 %v4762, %v4758
      %v4764 = vrot.slane %v4763, 4
      %v4766 = vshll.u32 %v4703, 16
      %v4768 = vrot.slane %v4766, 5
      %v4769 = vsel %vm991, %v4764, %v4768
      %v4771 = vshrl.u32 %v4704, 16
      %v4773 = vrot.slane %v4771, 4
      %v4774 = vshll.u32 %v4704, 16
      %v4776 = vrot.slane %v4774, 5
      %v4777 = vor.u32 %v4773, %v4776
      %v4778 = vrot.slane %v4777, 4
      %v4780 = vshll.u32 %v4705, 16
      %v4782 = vrot.slane %v4780, 5
      %v4783 = vsel %vm991, %v4778, %v4782
      %v4784 = vshrl.u32 %v4705, 16
      %v4786 = vrot.slane %v4784, 4
      %v4787 = vor.u32 %v4786, %v4782
      %v4788 = vrot.slane %v4787, 4
      %v4790 = vshll.u32 %v4706, 16
      %v4792 = vrot.slane %v4790, 5
      %v4793 = vsel %vm991, %v4788, %v4792
      %v4795 = vshrl.u32 %v4707, 16
      %v4797 = vrot.slane %v4795, 4
      %v4798 = vshll.u32 %v4707, 16
      %v4800 = vrot.slane %v4798, 5
      %v4801 = vor.u32 %v4797, %v4800
      %v4802 = vrot.slane %v4801, 4
      %v4804 = vshll.u32 %v4708, 16
      %v4806 = vrot.slane %v4804, 5
      %v4807 = vsel %vm991, %v4802, %v4806
      %v4808 = vshrl.u32 %v4708, 16
      %v4810 = vrot.slane %v4808, 4
      %v4811 = vor.u32 %v4810, %v4806
      %v4812 = vrot.slane %v4811, 4
      %v4814 = vshll.u32 %v4709, 16
      %v4816 = vrot.slane %v4814, 5
      %v4817 = vsel %vm991, %v4812, %v4816
      %v4819 = vshrl.u32 %v4710, 16
      %v4821 = vrot.slane %v4819, 4
      %v4822 = vshll.u32 %v4710, 16
      %v4824 = vrot.slane %v4822, 5
      %v4825 = vor.u32 %v4821, %v4824
      %v4826 = vrot.slane %v4825, 4
      %v4828 = vshll.u32 %v4711, 16
      %v4830 = vrot.slane %v4828, 5
      %v4831 = vsel %vm991, %v4826, %v4830
      %v4832 = vshrl.u32 %v4711, 16
      %v4834 = vrot.slane %v4832, 4
      %v4835 = vor.u32 %v4834, %v4830
      %v4836 = vrot.slane %v4835, 4
      %v4838 = vshll.u32 %v4712, 16
      %v4840 = vrot.slane %v4838, 5
      %v4841 = vsel %vm991, %v4836, %v4840
      %v4843 = vshrl.u32 %v4713, 16
      %v4845 = vrot.slane %v4843, 4
      %v4846 = vshll.u32 %v4713, 16
      %v4848 = vrot.slane %v4846, 5
      %v4849 = vor.u32 %v4845, %v4848
      %v4850 = vrot.slane %v4849, 4
      %v4852 = vshll.u32 %v4714, 16
      %v4854 = vrot.slane %v4852, 5
      %v4855 = vsel %vm991, %v4850, %v4854
      %v4856 = vshrl.u32 %v4714, 16
      %v4858 = vrot.slane %v4856, 4
      %v4859 = vor.u32 %v4858, %v4854
      %v4860 = vrot.slane %v4859, 4
      %v4862 = vshll.u32 %v4715, 16
      %v4864 = vrot.slane %v4862, 5
      %v4865 = vsel %vm991, %v4860, %v4864
      %v4867 = vshrl.u32 %v4716, 16
      %v4869 = vrot.slane %v4867, 4
      %v4870 = vshll.u32 %v4716, 16
      %v4872 = vrot.slane %v4870, 5
      %v4873 = vor.u32 %v4869, %v4872
      %v4874 = vrot.slane %v4873, 4
      %v4876 = vshll.u32 %v4717, 16
      %v4878 = vrot.slane %v4876, 5
      %v4879 = vsel %vm991, %v4874, %v4878
      %v4880 = vshrl.u32 %v4717, 16
      %v4882 = vrot.slane %v4880, 4
      %v4883 = vor.u32 %v4882, %v4878
      %v4884 = vrot.slane %v4883, 4
      %v4886 = vshll.u32 %v4718, 16
      %v4888 = vrot.slane %v4886, 5
      %v4889 = vsel %vm991, %v4884, %v4888
      %v4891 = vshrl.u32 %v4719, 16
      %v4893 = vrot.slane %v4891, 4
      %v4894 = vshll.u32 %v4719, 16
      %v4896 = vrot.slane %v4894, 5
      %v4897 = vor.u32 %v4893, %v4896
      %v4898 = vrot.slane %v4897, 4
      %v4900 = vshll.u32 %v4720, 16
      %v4902 = vrot.slane %v4900, 5
      %v4903 = vsel %vm991, %v4898, %v4902
      %v4904 = vshrl.u32 %v4720, 16
      %v4906 = vrot.slane %v4904, 4
      %v4907 = vor.u32 %v4906, %v4902
      %v4908 = vrot.slane %v4907, 4
      %v4910 = vshll.u32 %v4721, 16
      %v4912 = vrot.slane %v4910, 5
      %v4913 = vsel %vm991, %v4908, %v4912
      %v4914 = vld [vmem:[%s2163] sm:$0x3]
      %v4915 = vunpack.c.l.b16 %v4735
      %v4916 = vunpack.c.l.b16 %v4745
      %v4917 = vunpack.c.l.b16 %v4759
      %v4918 = vunpack.c.l.b16 %v4769
      %v4919 = vunpack.c.l.b16 %v4783
      %v4920 = vunpack.c.l.b16 %v4793
      %v4921 = vunpack.c.l.b16 %v4807
      %v4922 = vunpack.c.l.b16 %v4817
      %v4923 = vunpack.c.l.b16 %v4831
      %v4924 = vunpack.c.l.b16 %v4841
      %v4925 = vunpack.c.l.b16 %v4855
      %v4926 = vunpack.c.l.b16 %v4865
      %v4927 = vunpack.c.l.b16 %v4879
      %v4928 = vunpack.c.l.b16 %v4889
      %v4929 = vunpack.c.l.b16 %v4903
      %v4930 = vunpack.c.l.b16 %v4913
      %v4931 = vpack.c.b16 %v4916, %v4915
      %v4932 = vpack.c.b16 %v4918, %v4917
      %v4933 = vpack.c.b16 %v4920, %v4919
      %v4934 = vpack.c.b16 %v4922, %v4921
      %v4935 = vpack.c.b16 %v4924, %v4923
      %v4936 = vpack.c.b16 %v4926, %v4925
      %v4937 = vpack.c.b16 %v4928, %v4927
      %v4938 = vpack.c.b16 %v4930, %v4929
      %v4940 = vsel %vm1210, %v4931, 0
      %v4943 = vsel %vm1210, %v4932, 0
      %v4946 = vsel %vm1210, %v4933, 0
      %v4949 = vsel %vm1210, %v4934, 0
      %v4952 = vsel %vm1210, %v4935, 0
      %v4955 = vsel %vm1210, %v4936, 0
      %v4958 = vsel %vm1210, %v4937, 0
      %v4961 = vsel %vm1210, %v4938, 0
      %v4964 = vsel %vm1235, %v4914, 0
      %4966 = vmatprep.subr.bf16.mxu0 0
      %4967 = vmatpush1.bf16.msra.mxu0 %v4964
      %4968 = vmatprep.subr.bf16.mxu0 0
      %4969 = vmatpush1.bf16.msra.mxu0 0
      %4970 = vmatprep.subr.bf16.mxu0 0
      %4971 = vmatpush1.bf16.msra.mxu0 0
      %4972 = vmatprep.subr.bf16.mxu0 0
      %4973 = vmatpush1.bf16.msra.mxu0 0
      %4974 = vmatprep.subr.bf16.mxu0 0
      %4975 = vmatpush1.bf16.msra.mxu0 0
      %4976 = vmatprep.subr.bf16.mxu0 0
      %4977 = vmatpush1.bf16.msra.mxu0 0
      %4978 = vmatprep.subr.bf16.mxu0 0
      %4979 = vmatpush1.bf16.msra.mxu0 0
      %4980 = vmatprep.subr.bf16.mxu0 0
      %4981 = vmatpush1.bf16.msra.mxu0 0
      %4982 = vmatprep.subr.bf16.mxu0 0
      %4983 = vmatpush1.bf16.msra.mxu0 0
      %4984 = vmatprep.subr.bf16.mxu0 0
      %4985 = vmatpush1.bf16.msra.mxu0 0
      %4986 = vmatprep.subr.bf16.mxu0 0
      %4987 = vmatpush1.bf16.msra.mxu0 0
      %4988 = vmatprep.subr.bf16.mxu0 0
      %4989 = vmatpush1.bf16.msra.mxu0 0
      %4990 = vmatprep.subr.bf16.mxu0 0
      %4991 = vmatpush1.bf16.msra.mxu0 0
      %4992 = vmatprep.subr.bf16.mxu0 0
      %4993 = vmatpush1.bf16.msra.mxu0 0
      %4994 = vmatprep.subr.bf16.mxu0 0
      %4995 = vmatpush1.bf16.msra.mxu0 0
      %4996 = vmatprep.subr.bf16.mxu0 0
      %4997 = vmatpush1.bf16.msra.mxu0 0
      %4998 = vmatprep.mubr.bf16.mxu0 0
      %4999 = vmatmul.mubr.bf16.gmra.mrb[0].mxu0 %v4940
      %v5000 = vpop.f32.mrb[0].mxu0
      %v5001 = vadd.f32 0.0, %v5000
      %v5002 = vpop.f32.mrb[0].mxu0
      %v5003 = vpop.f32.mrb[0].mxu0
      %v5004 = vadd.f32 0.0, %v5003
      %v5005 = vpop.f32.mrb[0].mxu0
      %5006 = vmatprep.mubr.bf16.mxu0 0
      %5007 = vmatmul.mubr.bf16.gmra.mrb[0].mxu0 %v4943
      %v5008 = vpop.f32.mrb[0].mxu0
      %v5009 = vadd.f32 0.0, %v5008
      %v5010 = vpop.f32.mrb[0].mxu0
      %v5011 = vpop.f32.mrb[0].mxu0
      %v5012 = vadd.f32 0.0, %v5011
      %v5013 = vpop.f32.mrb[0].mxu0
      %5014 = vmatprep.mubr.bf16.mxu0 0
      %5015 = vmatmul.mubr.bf16.gmra.mrb[0].mxu0 %v4946
      %v5016 = vpop.f32.mrb[0].mxu0
      %v5017 = vadd.f32 0.0, %v5016
      %v5018 = vpop.f32.mrb[0].mxu0
      %v5019 = vpop.f32.mrb[0].mxu0
      %v5020 = vadd.f32 0.0, %v5019
      %v5021 = vpop.f32.mrb[0].mxu0
      %5022 = vmatprep.mubr.bf16.mxu0 0
      %5023 = vmatmul.mubr.bf16.gmra.mrb[0].mxu0 %v4949
      %v5024 = vpop.f32.mrb[0].mxu0
      %v5025 = vadd.f32 0.0, %v5024
      %v5026 = vpop.f32.mrb[0].mxu0
      %v5027 = vpop.f32.mrb[0].mxu0
      %v5028 = vadd.f32 0.0, %v5027
      %v5029 = vpop.f32.mrb[0].mxu0
      %5030 = vmatprep.mubr.bf16.mxu0 0
      %5031 = vmatmul.mubr.bf16.gmra.mrb[0].mxu0 %v4952
      %v5032 = vpop.f32.mrb[0].mxu0
      %v5033 = vadd.f32 0.0, %v5032
      %v5034 = vpop.f32.mrb[0].mxu0
      %v5035 = vpop.f32.mrb[0].mxu0
      %v5036 = vadd.f32 0.0, %v5035
      %v5037 = vpop.f32.mrb[0].mxu0
      %5038 = vmatprep.mubr.bf16.mxu0 0
      %5039 = vmatmul.mubr.bf16.gmra.mrb[0].mxu0 %v4955
      %v5040 = vpop.f32.mrb[0].mxu0
      %v5041 = vadd.f32 0.0, %v5040
      %v5042 = vpop.f32.mrb[0].mxu0
      %v5043 = vpop.f32.mrb[0].mxu0
      %v5044 = vadd.f32 0.0, %v5043
      %v5045 = vpop.f32.mrb[0].mxu0
      %5046 = vmatprep.mubr.bf16.mxu0 0
      %5047 = vmatmul.mubr.bf16.gmra.mrb[0].mxu0 %v4958
      %v5048 = vpop.f32.mrb[0].mxu0
      %v5049 = vadd.f32 0.0, %v5048
      %v5050 = vpop.f32.mrb[0].mxu0
      %v5051 = vpop.f32.mrb[0].mxu0
      %v5052 = vadd.f32 0.0, %v5051
      %v5053 = vpop.f32.mrb[0].mxu0
      %5054 = vmatprep.mubr.bf16.mxu0 0
      %5055 = vmatmul.mubr.bf16.gmra.mrb[0].mxu0 %v4961
      %v5056 = vpop.f32.mrb[0].mxu0
      %v5057 = vadd.f32 0.0, %v5056
      %v5058 = vpop.f32.mrb[0].mxu0
      %v5059 = vpop.f32.mrb[0].mxu0
      %v5060 = vadd.f32 0.0, %v5059
      %v5061 = vpop.f32.mrb[0].mxu0
      %5062 = vdwg.mxu0
      %v5063 = vadd.f32 %v4682, %v5001
      %v5064 = vadd.f32 %v4683, %v5004
      %v5065 = vadd.f32 %v4684, %v5009
      %v5066 = vadd.f32 %v4685, %v5012
      %v5067 = vadd.f32 %v4686, %v5017
      %v5068 = vadd.f32 %v4687, %v5020
      %v5069 = vadd.f32 %v4688, %v5025
      %v5070 = vadd.f32 %v4689, %v5028
      %v5071 = vadd.f32 %v4690, %v5033
      %v5072 = vadd.f32 %v4691, %v5036
      %v5073 = vadd.f32 %v4692, %v5041
      %v5074 = vadd.f32 %v4693, %v5044
      %v5075 = vadd.f32 %v4694, %v5049
      %v5076 = vadd.f32 %v4695, %v5052
      %v5077 = vadd.f32 %v4696, %v5057
      %v5078 = vadd.f32 %v4697, %v5060
      %v5079 = vld [vmem:[%s4500] sm:$0xe]
      %v5080 = vld [vmem:[%s4500 + $0xc] sm:$0xe]
      %v5081 = vld [vmem:[%s4500 + $0x18] sm:$0xe]
      %v5082 = vld [vmem:[%s4500 + $0x24] sm:$0xe]
      %v5083 = vld [vmem:[%s4500 + $0x30] sm:$0xe]
      %v5084 = vld [vmem:[%s4500 + $0x3c] sm:$0xe]
      %v5085 = vld [vmem:[%s4500 + $0x48] sm:$0xe]
      %v5086 = vld [vmem:[%s4500 + $0x54] sm:$0xe]
      %v5111 = vrot.slane %v5079, 5
      %v5112 = vrot.slane %v5111, 4
      %v5113 = vrot.slane %v4699, 5
      %v5114 = vsel %vm1526, %v5112, %v5113
      %v5115 = vrot.slane %v5113, 4
      %v5116 = vrot.slane %v4700, 5
      %v5117 = vsel %vm1526, %v5115, %v5116
      %v5118 = vrot.slane %v5080, 5
      %v5119 = vrot.slane %v5118, 4
      %v5120 = vrot.slane %v4702, 5
      %v5121 = vsel %vm1526, %v5119, %v5120
      %v5122 = vrot.slane %v5120, 4
      %v5123 = vrot.slane %v4703, 5
      %v5124 = vsel %vm1526, %v5122, %v5123
      %v5125 = vrot.slane %v5081, 5
      %v5126 = vrot.slane %v5125, 4
      %v5127 = vrot.slane %v4705, 5
      %v5128 = vsel %vm1526, %v5126, %v5127
      %v5129 = vrot.slane %v5127, 4
      %v5130 = vrot.slane %v4706, 5
      %v5131 = vsel %vm1526, %v5129, %v5130
      %v5132 = vrot.slane %v5082, 5
      %v5133 = vrot.slane %v5132, 4
      %v5134 = vrot.slane %v4708, 5
      %v5135 = vsel %vm1526, %v5133, %v5134
      %v5136 = vrot.slane %v5134, 4
      %v5137 = vrot.slane %v4709, 5
      %v5138 = vsel %vm1526, %v5136, %v5137
      %v5139 = vrot.slane %v5083, 5
      %v5140 = vrot.slane %v5139, 4
      %v5141 = vrot.slane %v4711, 5
      %v5142 = vsel %vm1526, %v5140, %v5141
      %v5143 = vrot.slane %v5141, 4
      %v5144 = vrot.slane %v4712, 5
      %v5145 = vsel %vm1526, %v5143, %v5144
      %v5146 = vrot.slane %v5084, 5
      %v5147 = vrot.slane %v5146, 4
      %v5148 = vrot.slane %v4714, 5
      %v5149 = vsel %vm1526, %v5147, %v5148
      %v5150 = vrot.slane %v5148, 4
      %v5151 = vrot.slane %v4715, 5
      %v5152 = vsel %vm1526, %v5150, %v5151
      %v5153 = vrot.slane %v5085, 5
      %v5154 = vrot.slane %v5153, 4
      %v5155 = vrot.slane %v4717, 5
      %v5156 = vsel %vm1526, %v5154, %v5155
      %v5157 = vrot.slane %v5155, 4
      %v5158 = vrot.slane %v4718, 5
      %v5159 = vsel %vm1526, %v5157, %v5158
      %v5160 = vrot.slane %v5086, 5
      %v5161 = vrot.slane %v5160, 4
      %v5162 = vrot.slane %v4720, 5
      %v5163 = vsel %vm1526, %v5161, %v5162
      %v5164 = vrot.slane %v5162, 4
      %v5165 = vrot.slane %v4721, 5
      %v5166 = vsel %vm1526, %v5164, %v5165
      %v5167 = vld [vmem:[%s2417] sm:$0x3]
      %v5168 = vunpack.c.l.b16 %v5114
      %v5169 = vunpack.c.l.b16 %v5117
      %v5170 = vunpack.c.l.b16 %v5121
      %v5171 = vunpack.c.l.b16 %v5124
      %v5172 = vunpack.c.l.b16 %v5128
      %v5173 = vunpack.c.l.b16 %v5131
      %v5174 = vunpack.c.l.b16 %v5135
      %v5175 = vunpack.c.l.b16 %v5138
      %v5176 = vunpack.c.l.b16 %v5142
      %v5177 = vunpack.c.l.b16 %v5145
      %v5178 = vunpack.c.l.b16 %v5149
      %v5179 = vunpack.c.l.b16 %v5152
      %v5180 = vunpack.c.l.b16 %v5156
      %v5181 = vunpack.c.l.b16 %v5159
      %v5182 = vunpack.c.l.b16 %v5163
      %v5183 = vunpack.c.l.b16 %v5166
      %v5184 = vpack.c.b16 %v5169, %v5168
      %v5185 = vpack.c.b16 %v5171, %v5170
      %v5186 = vpack.c.b16 %v5173, %v5172
      %v5187 = vpack.c.b16 %v5175, %v5174
      %v5188 = vpack.c.b16 %v5177, %v5176
      %v5189 = vpack.c.b16 %v5179, %v5178
      %v5190 = vpack.c.b16 %v5181, %v5180
      %v5191 = vpack.c.b16 %v5183, %v5182
      %v5193 = vsel %vm1210, %v5184, 0
      %v5196 = vsel %vm1210, %v5185, 0
      %v5199 = vsel %vm1210, %v5186, 0
      %v5202 = vsel %vm1210, %v5187, 0
      %v5205 = vsel %vm1210, %v5188, 0
      %v5208 = vsel %vm1210, %v5189, 0
      %v5211 = vsel %vm1210, %v5190, 0
      %v5214 = vsel %vm1210, %v5191, 0
      %v5217 = vsel %vm1235, %v5167, 0
      %5219 = vmatprep.subr.bf16.mxu0 0
      %5220 = vmatpush1.bf16.msra.mxu0 %v5217
      %5221 = vmatprep.subr.bf16.mxu0 0
      %5222 = vmatpush1.bf16.msra.mxu0 0
      %5223 = vmatprep.subr.bf16.mxu0 0
      %5224 = vmatpush1.bf16.msra.mxu0 0
      %5225 = vmatprep.subr.bf16.mxu0 0
      %5226 = vmatpush1.bf16.msra.mxu0 0
      %5227 = vmatprep.subr.bf16.mxu0 0
      %5228 = vmatpush1.bf16.msra.mxu0 0
      %5229 = vmatprep.subr.bf16.mxu0 0
      %5230 = vmatpush1.bf16.msra.mxu0 0
      %5231 = vmatprep.subr.bf16.mxu0 0
      %5232 = vmatpush1.bf16.msra.mxu0 0
      %5233 = vmatprep.subr.bf16.mxu0 0
      %5234 = vmatpush1.bf16.msra.mxu0 0
      %5235 = vmatprep.subr.bf16.mxu0 0
      %5236 = vmatpush1.bf16.msra.mxu0 0
      %5237 = vmatprep.subr.bf16.mxu0 0
      %5238 = vmatpush1.bf16.msra.mxu0 0
      %5239 = vmatprep.subr.bf16.mxu0 0
      %5240 = vmatpush1.bf16.msra.mxu0 0
      %5241 = vmatprep.subr.bf16.mxu0 0
      %5242 = vmatpush1.bf16.msra.mxu0 0
      %5243 = vmatprep.subr.bf16.mxu0 0
      %5244 = vmatpush1.bf16.msra.mxu0 0
      %5245 = vmatprep.subr.bf16.mxu0 0
      %5246 = vmatpush1.bf16.msra.mxu0 0
      %5247 = vmatprep.subr.bf16.mxu0 0
      %5248 = vmatpush1.bf16.msra.mxu0 0
      %5249 = vmatprep.subr.bf16.mxu0 0
      %5250 = vmatpush1.bf16.msra.mxu0 0
      %5251 = vmatprep.mubr.bf16.mxu0 0
      %5252 = vmatmul.mubr.bf16.gmra.mrb[0].mxu0 %v5193
      %v5253 = vpop.f32.mrb[0].mxu0
      %v5254 = vadd.f32 0.0, %v5253
      %v5255 = vpop.f32.mrb[0].mxu0
      %v5256 = vpop.f32.mrb[0].mxu0
      %v5257 = vadd.f32 0.0, %v5256
      %v5258 = vpop.f32.mrb[0].mxu0
      %5259 = vmatprep.mubr.bf16.mxu0 0
      %5260 = vmatmul.mubr.bf16.gmra.mrb[0].mxu0 %v5196
      %v5261 = vpop.f32.mrb[0].mxu0
      %v5262 = vadd.f32 0.0, %v5261
      %v5263 = vpop.f32.mrb[0].mxu0
      %v5264 = vpop.f32.mrb[0].mxu0
      %v5265 = vadd.f32 0.0, %v5264
      %v5266 = vpop.f32.mrb[0].mxu0
      %5267 = vmatprep.mubr.bf16.mxu0 0
      %5268 = vmatmul.mubr.bf16.gmra.mrb[0].mxu0 %v5199
      %v5269 = vpop.f32.mrb[0].mxu0
      %v5270 = vadd.f32 0.0, %v5269
      %v5271 = vpop.f32.mrb[0].mxu0
      %v5272 = vpop.f32.mrb[0].mxu0
      %v5273 = vadd.f32 0.0, %v5272
      %v5274 = vpop.f32.mrb[0].mxu0
      %5275 = vmatprep.mubr.bf16.mxu0 0
      %5276 = vmatmul.mubr.bf16.gmra.mrb[0].mxu0 %v5202
      %v5277 = vpop.f32.mrb[0].mxu0
      %v5278 = vadd.f32 0.0, %v5277
      %v5279 = vpop.f32.mrb[0].mxu0
      %v5280 = vpop.f32.mrb[0].mxu0
      %v5281 = vadd.f32 0.0, %v5280
      %v5282 = vpop.f32.mrb[0].mxu0
      %5283 = vmatprep.mubr.bf16.mxu0 0
      %5284 = vmatmul.mubr.bf16.gmra.mrb[0].mxu0 %v5205
      %v5285 = vpop.f32.mrb[0].mxu0
      %v5286 = vadd.f32 0.0, %v5285
      %v5287 = vpop.f32.mrb[0].mxu0
      %v5288 = vpop.f32.mrb[0].mxu0
      %v5289 = vadd.f32 0.0, %v5288
      %v5290 = vpop.f32.mrb[0].mxu0
      %5291 = vmatprep.mubr.bf16.mxu0 0
      %5292 = vmatmul.mubr.bf16.gmra.mrb[0].mxu0 %v5208
      %v5293 = vpop.f32.mrb[0].mxu0
      %v5294 = vadd.f32 0.0, %v5293
      %v5295 = vpop.f32.mrb[0].mxu0
      %v5296 = vpop.f32.mrb[0].mxu0
      %v5297 = vadd.f32 0.0, %v5296
      %v5298 = vpop.f32.mrb[0].mxu0
      %5299 = vmatprep.mubr.bf16.mxu0 0
      %5300 = vmatmul.mubr.bf16.gmra.mrb[0].mxu0 %v5211
      %v5301 = vpop.f32.mrb[0].mxu0
      %v5302 = vadd.f32 0.0, %v5301
      %v5303 = vpop.f32.mrb[0].mxu0
      %v5304 = vpop.f32.mrb[0].mxu0
      %v5305 = vadd.f32 0.0, %v5304
      %v5306 = vpop.f32.mrb[0].mxu0
      %5307 = vmatprep.mubr.bf16.mxu0 0
      %5308 = vmatmul.mubr.bf16.gmra.mrb[0].mxu0 %v5214
      %v5309 = vpop.f32.mrb[0].mxu0
      %v5310 = vadd.f32 0.0, %v5309
      %v5311 = vpop.f32.mrb[0].mxu0
      %v5312 = vpop.f32.mrb[0].mxu0
      %v5313 = vadd.f32 0.0, %v5312
      %v5314 = vpop.f32.mrb[0].mxu0
      %5315 = vdwg.mxu0
      %v5316 = vadd.f32 %v5063, %v5254
      %v5317 = vadd.f32 %v5064, %v5257
      %v5318 = vadd.f32 %v5065, %v5262
      %v5319 = vadd.f32 %v5066, %v5265
      %v5320 = vadd.f32 %v5067, %v5270
      %v5321 = vadd.f32 %v5068, %v5273
      %v5322 = vadd.f32 %v5069, %v5278
      %v5323 = vadd.f32 %v5070, %v5281
      %v5324 = vadd.f32 %v5071, %v5286
      %v5325 = vadd.f32 %v5072, %v5289
      %v5326 = vadd.f32 %v5073, %v5294
      %v5327 = vadd.f32 %v5074, %v5297
      %v5328 = vadd.f32 %v5075, %v5302
      %v5329 = vadd.f32 %v5076, %v5305
      %v5330 = vadd.f32 %v5077, %v5310
      %v5331 = vadd.f32 %v5078, %v5313
      %s5332 = scalar_lea.vmem [#allocation2], 120
      %v5333 = vld [vmem:[%s5332] sm:$0xf]
      %v5334 = vld [vmem:[%s5332 + $0x4] sm:$0xf]
      %v5335 = vld [vmem:[%s5332 + $0xc] sm:$0xf]
      %v5336 = vld [vmem:[%s5332 + $0x10] sm:$0xf]
      %v5337 = vld [vmem:[%s5332 + $0x18] sm:$0xf]
      %v5338 = vld [vmem:[%s5332 + $0x1c] sm:$0xf]
      %v5339 = vld [vmem:[%s5332 + $0x24] sm:$0xf]
      %v5340 = vld [vmem:[%s5332 + $0x28] sm:$0xf]
      %v5341 = vld [vmem:[%s5332 + $0x30] sm:$0xf]
      %v5342 = vld [vmem:[%s5332 + $0x34] sm:$0xf]
      %v5343 = vld [vmem:[%s5332 + $0x3c] sm:$0xf]
      %v5344 = vld [vmem:[%s5332 + $0x40] sm:$0xf]
      %v5345 = vld [vmem:[%s5332 + $0x48] sm:$0xf]
      %v5346 = vld [vmem:[%s5332 + $0x4c] sm:$0xf]
      %v5347 = vld [vmem:[%s5332 + $0x54] sm:$0xf]
      %v5348 = vld [vmem:[%s5332 + $0x58] sm:$0xf]
      %v5349 = vld [vmem:[%s2600] sm:$0x3]
      %v5366 = vunpack.c.l.b16 %v5333
      %v5367 = vunpack.c.l.b16 %v5334
      %v5368 = vunpack.c.l.b16 %v5335
      %v5369 = vunpack.c.l.b16 %v5336
      %v5370 = vunpack.c.l.b16 %v5337
      %v5371 = vunpack.c.l.b16 %v5338
      %v5372 = vunpack.c.l.b16 %v5339
      %v5373 = vunpack.c.l.b16 %v5340
      %v5374 = vunpack.c.l.b16 %v5341
      %v5375 = vunpack.c.l.b16 %v5342
      %v5376 = vunpack.c.l.b16 %v5343
      %v5377 = vunpack.c.l.b16 %v5344
      %v5378 = vunpack.c.l.b16 %v5345
      %v5379 = vunpack.c.l.b16 %v5346
      %v5380 = vunpack.c.l.b16 %v5347
      %v5381 = vunpack.c.l.b16 %v5348
      %v5382 = vpack.c.b16 %v5367, %v5366
      %v5383 = vpack.c.b16 %v5369, %v5368
      %v5384 = vpack.c.b16 %v5371, %v5370
      %v5385 = vpack.c.b16 %v5373, %v5372
      %v5386 = vpack.c.b16 %v5375, %v5374
      %v5387 = vpack.c.b16 %v5377, %v5376
      %v5388 = vpack.c.b16 %v5379, %v5378
      %v5389 = vpack.c.b16 %v5381, %v5380
      %v5391 = vsel %vm1210, %v5382, 0
      %v5394 = vsel %vm1210, %v5383, 0
      %v5397 = vsel %vm1210, %v5384, 0
      %v5400 = vsel %vm1210, %v5385, 0
      %v5403 = vsel %vm1210, %v5386, 0
      %v5406 = vsel %vm1210, %v5387, 0
      %v5409 = vsel %vm1210, %v5388, 0
      %v5412 = vsel %vm1210, %v5389, 0
      %v5415 = vsel %vm1235, %v5349, 0
      %5417 = vmatprep.subr.bf16.mxu0 0
      %5418 = vmatpush1.bf16.msra.mxu0 %v5415
      %5419 = vmatprep.subr.bf16.mxu0 0
      %5420 = vmatpush1.bf16.msra.mxu0 0
      %5421 = vmatprep.subr.bf16.mxu0 0
      %5422 = vmatpush1.bf16.msra.mxu0 0
      %5423 = vmatprep.subr.bf16.mxu0 0
      %5424 = vmatpush1.bf16.msra.mxu0 0
      %5425 = vmatprep.subr.bf16.mxu0 0
      %5426 = vmatpush1.bf16.msra.mxu0 0
      %5427 = vmatprep.subr.bf16.mxu0 0
      %5428 = vmatpush1.bf16.msra.mxu0 0
      %5429 = vmatprep.subr.bf16.mxu0 0
      %5430 = vmatpush1.bf16.msra.mxu0 0
      %5431 = vmatprep.subr.bf16.mxu0 0
      %5432 = vmatpush1.bf16.msra.mxu0 0
      %5433 = vmatprep.subr.bf16.mxu0 0
      %5434 = vmatpush1.bf16.msra.mxu0 0
      %5435 = vmatprep.subr.bf16.mxu0 0
      %5436 = vmatpush1.bf16.msra.mxu0 0
      %5437 = vmatprep.subr.bf16.mxu0 0
      %5438 = vmatpush1.bf16.msra.mxu0 0
      %5439 = vmatprep.subr.bf16.mxu0 0
      %5440 = vmatpush1.bf16.msra.mxu0 0
      %5441 = vmatprep.subr.bf16.mxu0 0
      %5442 = vmatpush1.bf16.msra.mxu0 0
      %5443 = vmatprep.subr.bf16.mxu0 0
      %5444 = vmatpush1.bf16.msra.mxu0 0
      %5445 = vmatprep.subr.bf16.mxu0 0
      %5446 = vmatpush1.bf16.msra.mxu0 0
      %5447 = vmatprep.subr.bf16.mxu0 0
      %5448 = vmatpush1.bf16.msra.mxu0 0
      %5449 = vmatprep.mubr.bf16.mxu0 0
      %5450 = vmatmul.mubr.bf16.gmra.mrb[0].mxu0 %v5391
      %v5451 = vpop.f32.mrb[0].mxu0
      %v5452 = vadd.f32 0.0, %v5451
      %v5453 = vpop.f32.mrb[0].mxu0
      %v5454 = vpop.f32.mrb[0].mxu0
      %v5455 = vadd.f32 0.0, %v5454
      %v5456 = vpop.f32.mrb[0].mxu0
      %5457 = vmatprep.mubr.bf16.mxu0 0
      %5458 = vmatmul.mubr.bf16.gmra.mrb[0].mxu0 %v5394
      %v5459 = vpop.f32.mrb[0].mxu0
      %v5460 = vadd.f32 0.0, %v5459
      %v5461 = vpop.f32.mrb[0].mxu0
      %v5462 = vpop.f32.mrb[0].mxu0
      %v5463 = vadd.f32 0.0, %v5462
      %v5464 = vpop.f32.mrb[0].mxu0
      %5465 = vmatprep.mubr.bf16.mxu0 0
      %5466 = vmatmul.mubr.bf16.gmra.mrb[0].mxu0 %v5397
      %v5467 = vpop.f32.mrb[0].mxu0
      %v5468 = vadd.f32 0.0, %v5467
      %v5469 = vpop.f32.mrb[0].mxu0
      %v5470 = vpop.f32.mrb[0].mxu0
      %v5471 = vadd.f32 0.0, %v5470
      %v5472 = vpop.f32.mrb[0].mxu0
      %5473 = vmatprep.mubr.bf16.mxu0 0
      %5474 = vmatmul.mubr.bf16.gmra.mrb[0].mxu0 %v5400
      %v5475 = vpop.f32.mrb[0].mxu0
      %v5476 = vadd.f32 0.0, %v5475
      %v5477 = vpop.f32.mrb[0].mxu0
      %v5478 = vpop.f32.mrb[0].mxu0
      %v5479 = vadd.f32 0.0, %v5478
      %v5480 = vpop.f32.mrb[0].mxu0
      %5481 = vmatprep.mubr.bf16.mxu0 0
      %5482 = vmatmul.mubr.bf16.gmra.mrb[0].mxu0 %v5403
      %v5483 = vpop.f32.mrb[0].mxu0
      %v5484 = vadd.f32 0.0, %v5483
      %v5485 = vpop.f32.mrb[0].mxu0
      %v5486 = vpop.f32.mrb[0].mxu0
      %v5487 = vadd.f32 0.0, %v5486
      %v5488 = vpop.f32.mrb[0].mxu0
      %5489 = vmatprep.mubr.bf16.mxu0 0
      %5490 = vmatmul.mubr.bf16.gmra.mrb[0].mxu0 %v5406
      %v5491 = vpop.f32.mrb[0].mxu0
      %v5492 = vadd.f32 0.0, %v5491
      %v5493 = vpop.f32.mrb[0].mxu0
      %v5494 = vpop.f32.mrb[0].mxu0
      %v5495 = vadd.f32 0.0, %v5494
      %v5496 = vpop.f32.mrb[0].mxu0
      %5497 = vmatprep.mubr.bf16.mxu0 0
      %5498 = vmatmul.mubr.bf16.gmra.mrb[0].mxu0 %v5409
      %v5499 = vpop.f32.mrb[0].mxu0
      %v5500 = vadd.f32 0.0, %v5499
      %v5501 = vpop.f32.mrb[0].mxu0
      %v5502 = vpop.f32.mrb[0].mxu0
      %v5503 = vadd.f32 0.0, %v5502
      %v5504 = vpop.f32.mrb[0].mxu0
      %5505 = vmatprep.mubr.bf16.mxu0 0
      %5506 = vmatmul.mubr.bf16.gmra.mrb[0].mxu0 %v5412
      %v5507 = vpop.f32.mrb[0].mxu0
      %v5508 = vadd.f32 0.0, %v5507
      %v5509 = vpop.f32.mrb[0].mxu0
      %v5510 = vpop.f32.mrb[0].mxu0
      %v5511 = vadd.f32 0.0, %v5510
      %v5512 = vpop.f32.mrb[0].mxu0
      %5513 = vdwg.mxu0
      %v5514 = vadd.f32 %v5316, %v5452
      %v5515 = vadd.f32 %v5317, %v5455
      %v5516 = vadd.f32 %v5318, %v5460
      %v5517 = vadd.f32 %v5319, %v5463
      %v5518 = vadd.f32 %v5320, %v5468
      %v5519 = vadd.f32 %v5321, %v5471
      %v5520 = vadd.f32 %v5322, %v5476
      %v5521 = vadd.f32 %v5323, %v5479
      %v5522 = vadd.f32 %v5324, %v5484
      %v5523 = vadd.f32 %v5325, %v5487
      %v5524 = vadd.f32 %v5326, %v5492
      %v5525 = vadd.f32 %v5327, %v5495
      %v5526 = vadd.f32 %v5328, %v5500
      %v5527 = vadd.f32 %v5329, %v5503
      %v5528 = vadd.f32 %v5330, %v5508
      %v5529 = vadd.f32 %v5331, %v5511
      %v5530 = vld [vmem:[%s5332] sm:$0xf]
      %v5531 = vld [vmem:[%s5332 + $0x4] sm:$0xf]
      %v5532 = vld [vmem:[%s5332 + $0x8] sm:$0x1]
      %v5533 = vld [vmem:[%s5332 + $0xc] sm:$0xf]
      %v5534 = vld [vmem:[%s5332 + $0x10] sm:$0xf]
      %v5535 = vld [vmem:[%s5332 + $0x14] sm:$0x1]
      %v5536 = vld [vmem:[%s5332 + $0x18] sm:$0xf]
      %v5537 = vld [vmem:[%s5332 + $0x1c] sm:$0xf]
      %v5538 = vld [vmem:[%s5332 + $0x20] sm:$0x1]
      %v5539 = vld [vmem:[%s5332 + $0x24] sm:$0xf]
      %v5540 = vld [vmem:[%s5332 + $0x28] sm:$0xf]
      %v5541 = vld [vmem:[%s5332 + $0x2c] sm:$0x1]
      %v5542 = vld [vmem:[%s5332 + $0x30] sm:$0xf]
      %v5543 = vld [vmem:[%s5332 + $0x34] sm:$0xf]
      %v5544 = vld [vmem:[%s5332 + $0x38] sm:$0x1]
      %v5545 = vld [vmem:[%s5332 + $0x3c] sm:$0xf]
      %v5546 = vld [vmem:[%s5332 + $0x40] sm:$0xf]
      %v5547 = vld [vmem:[%s5332 + $0x44] sm:$0x1]
      %v5548 = vld [vmem:[%s5332 + $0x48] sm:$0xf]
      %v5549 = vld [vmem:[%s5332 + $0x4c] sm:$0xf]
      %v5550 = vld [vmem:[%s5332 + $0x50] sm:$0x1]
      %v5551 = vld [vmem:[%s5332 + $0x54] sm:$0xf]
      %v5552 = vld [vmem:[%s5332 + $0x58] sm:$0xf]
      %v5553 = vld [vmem:[%s5332 + $0x5c] sm:$0x1]
      %v5555 = vshrl.u32 %v5530, 16
      %v5557 = vrot.slane %v5555, 4
      %v5558 = vshll.u32 %v5530, 16
      %v5560 = vrot.slane %v5558, 5
      %v5561 = vor.u32 %v5557, %v5560
      %v5562 = vrot.slane %v5561, 4
      %v5564 = vshll.u32 %v5531, 16
      %v5566 = vrot.slane %v5564, 5
      %v5567 = vsel %vm991, %v5562, %v5566
      %v5568 = vshrl.u32 %v5531, 16
      %v5570 = vrot.slane %v5568, 4
      %v5571 = vor.u32 %v5570, %v5566
      %v5572 = vrot.slane %v5571, 4
      %v5574 = vshll.u32 %v5532, 16
      %v5576 = vrot.slane %v5574, 5
      %v5577 = vsel %vm991, %v5572, %v5576
      %v5579 = vshrl.u32 %v5533, 16
      %v5581 = vrot.slane %v5579, 4
      %v5582 = vshll.u32 %v5533, 16
      %v5584 = vrot.slane %v5582, 5
      %v5585 = vor.u32 %v5581, %v5584
      %v5586 = vrot.slane %v5585, 4
      %v5588 = vshll.u32 %v5534, 16
      %v5590 = vrot.slane %v5588, 5
      %v5591 = vsel %vm991, %v5586, %v5590
      %v5592 = vshrl.u32 %v5534, 16
      %v5594 = vrot.slane %v5592, 4
      %v5595 = vor.u32 %v5594, %v5590
      %v5596 = vrot.slane %v5595, 4
      %v5598 = vshll.u32 %v5535, 16
      %v5600 = vrot.slane %v5598, 5
      %v5601 = vsel %vm991, %v5596, %v5600
      %v5603 = vshrl.u32 %v5536, 16
      %v5605 = vrot.slane %v5603, 4
      %v5606 = vshll.u32 %v5536, 16
      %v5608 = vrot.slane %v5606, 5
      %v5609 = vor.u32 %v5605, %v5608
      %v5610 = vrot.slane %v5609, 4
      %v5612 = vshll.u32 %v5537, 16
      %v5614 = vrot.slane %v5612, 5
      %v5615 = vsel %vm991, %v5610, %v5614
      %v5616 = vshrl.u32 %v5537, 16
      %v5618 = vrot.slane %v5616, 4
      %v5619 = vor.u32 %v5618, %v5614
      %v5620 = vrot.slane %v5619, 4
      %v5622 = vshll.u32 %v5538, 16
      %v5624 = vrot.slane %v5622, 5
      %v5625 = vsel %vm991, %v5620, %v5624
      %v5627 = vshrl.u32 %v5539, 16
      %v5629 = vrot.slane %v5627, 4
      %v5630 = vshll.u32 %v5539, 16
      %v5632 = vrot.slane %v5630, 5
      %v5633 = vor.u32 %v5629, %v5632
      %v5634 = vrot.slane %v5633, 4
      %v5636 = vshll.u32 %v5540, 16
      %v5638 = vrot.slane %v5636, 5
      %v5639 = vsel %vm991, %v5634, %v5638
      %v5640 = vshrl.u32 %v5540, 16
      %v5642 = vrot.slane %v5640, 4
      %v5643 = vor.u32 %v5642, %v5638
      %v5644 = vrot.slane %v5643, 4
      %v5646 = vshll.u32 %v5541, 16
      %v5648 = vrot.slane %v5646, 5
      %v5649 = vsel %vm991, %v5644, %v5648
      %v5651 = vshrl.u32 %v5542, 16
      %v5653 = vrot.slane %v5651, 4
      %v5654 = vshll.u32 %v5542, 16
      %v5656 = vrot.slane %v5654, 5
      %v5657 = vor.u32 %v5653, %v5656
      %v5658 = vrot.slane %v5657, 4
      %v5660 = vshll.u32 %v5543, 16
      %v5662 = vrot.slane %v5660, 5
      %v5663 = vsel %vm991, %v5658, %v5662
      %v5664 = vshrl.u32 %v5543, 16
      %v5666 = vrot.slane %v5664, 4
      %v5667 = vor.u32 %v5666, %v5662
      %v5668 = vrot.slane %v5667, 4
      %v5670 = vshll.u32 %v5544, 16
      %v5672 = vrot.slane %v5670, 5
      %v5673 = vsel %vm991, %v5668, %v5672
      %v5675 = vshrl.u32 %v5545, 16
      %v5677 = vrot.slane %v5675, 4
      %v5678 = vshll.u32 %v5545, 16
      %v5680 = vrot.slane %v5678, 5
      %v5681 = vor.u32 %v5677, %v5680
      %v5682 = vrot.slane %v5681, 4
      %v5684 = vshll.u32 %v5546, 16
      %v5686 = vrot.slane %v5684, 5
      %v5687 = vsel %vm991, %v5682, %v5686
      %v5688 = vshrl.u32 %v5546, 16
      %v5690 = vrot.slane %v5688, 4
      %v5691 = vor.u32 %v5690, %v5686
      %v5692 = vrot.slane %v5691, 4
      %v5694 = vshll.u32 %v5547, 16
      %v5696 = vrot.slane %v5694, 5
      %v5697 = vsel %vm991, %v5692, %v5696
      %v5699 = vshrl.u32 %v5548, 16
      %v5701 = vrot.slane %v5699, 4
      %v5702 = vshll.u32 %v5548, 16
      %v5704 = vrot.slane %v5702, 5
      %v5705 = vor.u32 %v5701, %v5704
      %v5706 = vrot.slane %v5705, 4
      %v5708 = vshll.u32 %v5549, 16
      %v5710 = vrot.slane %v5708, 5
      %v5711 = vsel %vm991, %v5706, %v5710
      %v5712 = vshrl.u32 %v5549, 16
      %v5714 = vrot.slane %v5712, 4
      %v5715 = vor.u32 %v5714, %v5710
      %v5716 = vrot.slane %v5715, 4
      %v5718 = vshll.u32 %v5550, 16
      %v5720 = vrot.slane %v5718, 5
      %v5721 = vsel %vm991, %v5716, %v5720
      %v5723 = vshrl.u32 %v5551, 16
      %v5725 = vrot.slane %v5723, 4
      %v5726 = vshll.u32 %v5551, 16
      %v5728 = vrot.slane %v5726, 5
      %v5729 = vor.u32 %v5725, %v5728
      %v5730 = vrot.slane %v5729, 4
      %v5732 = vshll.u32 %v5552, 16
      %v5734 = vrot.slane %v5732, 5
      %v5735 = vsel %vm991, %v5730, %v5734
      %v5736 = vshrl.u32 %v5552, 16
      %v5738 = vrot.slane %v5736, 4
      %v5739 = vor.u32 %v5738, %v5734
      %v5740 = vrot.slane %v5739, 4
      %v5742 = vshll.u32 %v5553, 16
      %v5744 = vrot.slane %v5742, 5
      %v5745 = vsel %vm991, %v5740, %v5744
      %v5746 = vld [vmem:[%s2998] sm:$0x3]
      %v5747 = vunpack.c.l.b16 %v5567
      %v5748 = vunpack.c.l.b16 %v5577
      %v5749 = vunpack.c.l.b16 %v5591
      %v5750 = vunpack.c.l.b16 %v5601
      %v5751 = vunpack.c.l.b16 %v5615
      %v5752 = vunpack.c.l.b16 %v5625
      %v5753 = vunpack.c.l.b16 %v5639
      %v5754 = vunpack.c.l.b16 %v5649
      %v5755 = vunpack.c.l.b16 %v5663
      %v5756 = vunpack.c.l.b16 %v5673
      %v5757 = vunpack.c.l.b16 %v5687
      %v5758 = vunpack.c.l.b16 %v5697
      %v5759 = vunpack.c.l.b16 %v5711
      %v5760 = vunpack.c.l.b16 %v5721
      %v5761 = vunpack.c.l.b16 %v5735
      %v5762 = vunpack.c.l.b16 %v5745
      %v5763 = vpack.c.b16 %v5748, %v5747
      %v5764 = vpack.c.b16 %v5750, %v5749
      %v5765 = vpack.c.b16 %v5752, %v5751
      %v5766 = vpack.c.b16 %v5754, %v5753
      %v5767 = vpack.c.b16 %v5756, %v5755
      %v5768 = vpack.c.b16 %v5758, %v5757
      %v5769 = vpack.c.b16 %v5760, %v5759
      %v5770 = vpack.c.b16 %v5762, %v5761
      %v5772 = vsel %vm1210, %v5763, 0
      %v5775 = vsel %vm1210, %v5764, 0
      %v5778 = vsel %vm1210, %v5765, 0
      %v5781 = vsel %vm1210, %v5766, 0
      %v5784 = vsel %vm1210, %v5767, 0
      %v5787 = vsel %vm1210, %v5768, 0
      %v5790 = vsel %vm1210, %v5769, 0
      %v5793 = vsel %vm1210, %v5770, 0
      %v5796 = vsel %vm1235, %v5746, 0
      %5798 = vmatprep.subr.bf16.mxu0 0
      %5799 = vmatpush1.bf16.msra.mxu0 %v5796
      %5800 = vmatprep.subr.bf16.mxu0 0
      %5801 = vmatpush1.bf16.msra.mxu0 0
      %5802 = vmatprep.subr.bf16.mxu0 0
      %5803 = vmatpush1.bf16.msra.mxu0 0
      %5804 = vmatprep.subr.bf16.mxu0 0
      %5805 = vmatpush1.bf16.msra.mxu0 0
      %5806 = vmatprep.subr.bf16.mxu0 0
      %5807 = vmatpush1.bf16.msra.mxu0 0
      %5808 = vmatprep.subr.bf16.mxu0 0
      %5809 = vmatpush1.bf16.msra.mxu0 0
      %5810 = vmatprep.subr.bf16.mxu0 0
      %5811 = vmatpush1.bf16.msra.mxu0 0
      %5812 = vmatprep.subr.bf16.mxu0 0
      %5813 = vmatpush1.bf16.msra.mxu0 0
      %5814 = vmatprep.subr.bf16.mxu0 0
      %5815 = vmatpush1.bf16.msra.mxu0 0
      %5816 = vmatprep.subr.bf16.mxu0 0
      %5817 = vmatpush1.bf16.msra.mxu0 0
      %5818 = vmatprep.subr.bf16.mxu0 0
      %5819 = vmatpush1.bf16.msra.mxu0 0
      %5820 = vmatprep.subr.bf16.mxu0 0
      %5821 = vmatpush1.bf16.msra.mxu0 0
      %5822 = vmatprep.subr.bf16.mxu0 0
      %5823 = vmatpush1.bf16.msra.mxu0 0
      %5824 = vmatprep.subr.bf16.mxu0 0
      %5825 = vmatpush1.bf16.msra.mxu0 0
      %5826 = vmatprep.subr.bf16.mxu0 0
      %5827 = vmatpush1.bf16.msra.mxu0 0
      %5828 = vmatprep.subr.bf16.mxu0 0
      %5829 = vmatpush1.bf16.msra.mxu0 0
      %5830 = vmatprep.mubr.bf16.mxu0 0
      %5831 = vmatmul.mubr.bf16.gmra.mrb[0].mxu0 %v5772
      %v5832 = vpop.f32.mrb[0].mxu0
      %v5833 = vadd.f32 0.0, %v5832
      %v5834 = vpop.f32.mrb[0].mxu0
      %v5835 = vpop.f32.mrb[0].mxu0
      %v5836 = vadd.f32 0.0, %v5835
      %v5837 = vpop.f32.mrb[0].mxu0
      %5838 = vmatprep.mubr.bf16.mxu0 0
      %5839 = vmatmul.mubr.bf16.gmra.mrb[0].mxu0 %v5775
      %v5840 = vpop.f32.mrb[0].mxu0
      %v5841 = vadd.f32 0.0, %v5840
      %v5842 = vpop.f32.mrb[0].mxu0
      %v5843 = vpop.f32.mrb[0].mxu0
      %v5844 = vadd.f32 0.0, %v5843
      %v5845 = vpop.f32.mrb[0].mxu0
      %5846 = vmatprep.mubr.bf16.mxu0 0
      %5847 = vmatmul.mubr.bf16.gmra.mrb[0].mxu0 %v5778
      %v5848 = vpop.f32.mrb[0].mxu0
      %v5849 = vadd.f32 0.0, %v5848
      %v5850 = vpop.f32.mrb[0].mxu0
      %v5851 = vpop.f32.mrb[0].mxu0
      %v5852 = vadd.f32 0.0, %v5851
      %v5853 = vpop.f32.mrb[0].mxu0
      %5854 = vmatprep.mubr.bf16.mxu0 0
      %5855 = vmatmul.mubr.bf16.gmra.mrb[0].mxu0 %v5781
      %v5856 = vpop.f32.mrb[0].mxu0
      %v5857 = vadd.f32 0.0, %v5856
      %v5858 = vpop.f32.mrb[0].mxu0
      %v5859 = vpop.f32.mrb[0].mxu0
      %v5860 = vadd.f32 0.0, %v5859
      %v5861 = vpop.f32.mrb[0].mxu0
      %5862 = vmatprep.mubr.bf16.mxu0 0
      %5863 = vmatmul.mubr.bf16.gmra.mrb[0].mxu0 %v5784
      %v5864 = vpop.f32.mrb[0].mxu0
      %v5865 = vadd.f32 0.0, %v5864
      %v5866 = vpop.f32.mrb[0].mxu0
      %v5867 = vpop.f32.mrb[0].mxu0
      %v5868 = vadd.f32 0.0, %v5867
      %v5869 = vpop.f32.mrb[0].mxu0
      %5870 = vmatprep.mubr.bf16.mxu0 0
      %5871 = vmatmul.mubr.bf16.gmra.mrb[0].mxu0 %v5787
      %v5872 = vpop.f32.mrb[0].mxu0
      %v5873 = vadd.f32 0.0, %v5872
      %v5874 = vpop.f32.mrb[0].mxu0
      %v5875 = vpop.f32.mrb[0].mxu0
      %v5876 = vadd.f32 0.0, %v5875
      %v5877 = vpop.f32.mrb[0].mxu0
      %5878 = vmatprep.mubr.bf16.mxu0 0
      %5879 = vmatmul.mubr.bf16.gmra.mrb[0].mxu0 %v5790
      %v5880 = vpop.f32.mrb[0].mxu0
      %v5881 = vadd.f32 0.0, %v5880
      %v5882 = vpop.f32.mrb[0].mxu0
      %v5883 = vpop.f32.mrb[0].mxu0
      %v5884 = vadd.f32 0.0, %v5883
      %v5885 = vpop.f32.mrb[0].mxu0
      %5886 = vmatprep.mubr.bf16.mxu0 0
      %5887 = vmatmul.mubr.bf16.gmra.mrb[0].mxu0 %v5793
      %v5888 = vpop.f32.mrb[0].mxu0
      %v5889 = vadd.f32 0.0, %v5888
      %v5890 = vpop.f32.mrb[0].mxu0
      %v5891 = vpop.f32.mrb[0].mxu0
      %v5892 = vadd.f32 0.0, %v5891
      %v5893 = vpop.f32.mrb[0].mxu0
      %5894 = vdwg.mxu0
      %v5895 = vadd.f32 %v5514, %v5833
      %v5896 = vadd.f32 %v5515, %v5836
      %v5897 = vadd.f32 %v5516, %v5841
      %v5898 = vadd.f32 %v5517, %v5844
      %v5899 = vadd.f32 %v5518, %v5849
      %v5900 = vadd.f32 %v5519, %v5852
      %v5901 = vadd.f32 %v5520, %v5857
      %v5902 = vadd.f32 %v5521, %v5860
      %v5903 = vadd.f32 %v5522, %v5865
      %v5904 = vadd.f32 %v5523, %v5868
      %v5905 = vadd.f32 %v5524, %v5873
      %v5906 = vadd.f32 %v5525, %v5876
      %v5907 = vadd.f32 %v5526, %v5881
      %v5908 = vadd.f32 %v5527, %v5884
      %v5909 = vadd.f32 %v5528, %v5889
      %v5910 = vadd.f32 %v5529, %v5892
      %v5911 = vld [vmem:[%s5332] sm:$0xe]
      %v5912 = vld [vmem:[%s5332 + $0xc] sm:$0xe]
      %v5913 = vld [vmem:[%s5332 + $0x18] sm:$0xe]
      %v5914 = vld [vmem:[%s5332 + $0x24] sm:$0xe]
      %v5915 = vld [vmem:[%s5332 + $0x30] sm:$0xe]
      %v5916 = vld [vmem:[%s5332 + $0x3c] sm:$0xe]
      %v5917 = vld [vmem:[%s5332 + $0x48] sm:$0xe]
      %v5918 = vld [vmem:[%s5332 + $0x54] sm:$0xe]
      %v5943 = vrot.slane %v5911, 5
      %v5944 = vrot.slane %v5943, 4
      %v5945 = vrot.slane %v5531, 5
      %v5946 = vsel %vm1526, %v5944, %v5945
      %v5947 = vrot.slane %v5945, 4
      %v5948 = vrot.slane %v5532, 5
      %v5949 = vsel %vm1526, %v5947, %v5948
      %v5950 = vrot.slane %v5912, 5
      %v5951 = vrot.slane %v5950, 4
      %v5952 = vrot.slane %v5534, 5
      %v5953 = vsel %vm1526, %v5951, %v5952
      %v5954 = vrot.slane %v5952, 4
      %v5955 = vrot.slane %v5535, 5
      %v5956 = vsel %vm1526, %v5954, %v5955
      %v5957 = vrot.slane %v5913, 5
      %v5958 = vrot.slane %v5957, 4
      %v5959 = vrot.slane %v5537, 5
      %v5960 = vsel %vm1526, %v5958, %v5959
      %v5961 = vrot.slane %v5959, 4
      %v5962 = vrot.slane %v5538, 5
      %v5963 = vsel %vm1526, %v5961, %v5962
      %v5964 = vrot.slane %v5914, 5
      %v5965 = vrot.slane %v5964, 4
      %v5966 = vrot.slane %v5540, 5
      %v5967 = vsel %vm1526, %v5965, %v5966
      %v5968 = vrot.slane %v5966, 4
      %v5969 = vrot.slane %v5541, 5
      %v5970 = vsel %vm1526, %v5968, %v5969
      %v5971 = vrot.slane %v5915, 5
      %v5972 = vrot.slane %v5971, 4
      %v5973 = vrot.slane %v5543, 5
      %v5974 = vsel %vm1526, %v5972, %v5973
      %v5975 = vrot.slane %v5973, 4
      %v5976 = vrot.slane %v5544, 5
      %v5977 = vsel %vm1526, %v5975, %v5976
      %v5978 = vrot.slane %v5916, 5
      %v5979 = vrot.slane %v5978, 4
      %v5980 = vrot.slane %v5546, 5
      %v5981 = vsel %vm1526, %v5979, %v5980
      %v5982 = vrot.slane %v5980, 4
      %v5983 = vrot.slane %v5547, 5
      %v5984 = vsel %vm1526, %v5982, %v5983
      %v5985 = vrot.slane %v5917, 5
      %v5986 = vrot.slane %v5985, 4
      %v5987 = vrot.slane %v5549, 5
      %v5988 = vsel %vm1526, %v5986, %v5987
      %v5989 = vrot.slane %v5987, 4
      %v5990 = vrot.slane %v5550, 5
      %v5991 = vsel %vm1526, %v5989, %v5990
      %v5992 = vrot.slane %v5918, 5
      %v5993 = vrot.slane %v5992, 4
      %v5994 = vrot.slane %v5552, 5
      %v5995 = vsel %vm1526, %v5993, %v5994
      %v5996 = vrot.slane %v5994, 4
      %v5997 = vrot.slane %v5553, 5
      %v5998 = vsel %vm1526, %v5996, %v5997
      %v5999 = vld [vmem:[%s3252] sm:$0x3]
      %v6000 = vunpack.c.l.b16 %v5946
      %v6001 = vunpack.c.l.b16 %v5949
      %v6002 = vunpack.c.l.b16 %v5953
      %v6003 = vunpack.c.l.b16 %v5956
      %v6004 = vunpack.c.l.b16 %v5960
      %v6005 = vunpack.c.l.b16 %v5963
      %v6006 = vunpack.c.l.b16 %v5967
      %v6007 = vunpack.c.l.b16 %v5970
      %v6008 = vunpack.c.l.b16 %v5974
      %v6009 = vunpack.c.l.b16 %v5977
      %v6010 = vunpack.c.l.b16 %v5981
      %v6011 = vunpack.c.l.b16 %v5984
      %v6012 = vunpack.c.l.b16 %v5988
      %v6013 = vunpack.c.l.b16 %v5991
      %v6014 = vunpack.c.l.b16 %v5995
      %v6015 = vunpack.c.l.b16 %v5998
      %v6016 = vpack.c.b16 %v6001, %v6000
      %v6017 = vpack.c.b16 %v6003, %v6002
      %v6018 = vpack.c.b16 %v6005, %v6004
      %v6019 = vpack.c.b16 %v6007, %v6006
      %v6020 = vpack.c.b16 %v6009, %v6008
      %v6021 = vpack.c.b16 %v6011, %v6010
      %v6022 = vpack.c.b16 %v6013, %v6012
      %v6023 = vpack.c.b16 %v6015, %v6014
      %v6025 = vsel %vm1210, %v6016, 0
      %v6028 = vsel %vm1210, %v6017, 0
      %v6031 = vsel %vm1210, %v6018, 0
      %v6034 = vsel %vm1210, %v6019, 0
      %v6037 = vsel %vm1210, %v6020, 0
      %v6040 = vsel %vm1210, %v6021, 0
      %v6043 = vsel %vm1210, %v6022, 0
      %v6046 = vsel %vm1210, %v6023, 0
      %v6049 = vsel %vm1235, %v5999, 0
      %6051 = vmatprep.subr.bf16.mxu0 0
      %6052 = vmatpush1.bf16.msra.mxu0 %v6049
      %6053 = vmatprep.subr.bf16.mxu0 0
      %6054 = vmatpush1.bf16.msra.mxu0 0
      %6055 = vmatprep.subr.bf16.mxu0 0
      %6056 = vmatpush1.bf16.msra.mxu0 0
      %6057 = vmatprep.subr.bf16.mxu0 0
      %6058 = vmatpush1.bf16.msra.mxu0 0
      %6059 = vmatprep.subr.bf16.mxu0 0
      %6060 = vmatpush1.bf16.msra.mxu0 0
      %6061 = vmatprep.subr.bf16.mxu0 0
      %6062 = vmatpush1.bf16.msra.mxu0 0
      %6063 = vmatprep.subr.bf16.mxu0 0
      %6064 = vmatpush1.bf16.msra.mxu0 0
      %6065 = vmatprep.subr.bf16.mxu0 0
      %6066 = vmatpush1.bf16.msra.mxu0 0
      %6067 = vmatprep.subr.bf16.mxu0 0
      %6068 = vmatpush1.bf16.msra.mxu0 0
      %6069 = vmatprep.subr.bf16.mxu0 0
      %6070 = vmatpush1.bf16.msra.mxu0 0
      %6071 = vmatprep.subr.bf16.mxu0 0
      %6072 = vmatpush1.bf16.msra.mxu0 0
      %6073 = vmatprep.subr.bf16.mxu0 0
      %6074 = vmatpush1.bf16.msra.mxu0 0
      %6075 = vmatprep.subr.bf16.mxu0 0
      %6076 = vmatpush1.bf16.msra.mxu0 0
      %6077 = vmatprep.subr.bf16.mxu0 0
      %6078 = vmatpush1.bf16.msra.mxu0 0
      %6079 = vmatprep.subr.bf16.mxu0 0
      %6080 = vmatpush1.bf16.msra.mxu0 0
      %6081 = vmatprep.subr.bf16.mxu0 0
      %6082 = vmatpush1.bf16.msra.mxu0 0
      %6083 = vmatprep.mubr.bf16.mxu0 0
      %6084 = vmatmul.mubr.bf16.gmra.mrb[0].mxu0 %v6025
      %v6085 = vpop.f32.mrb[0].mxu0
      %v6086 = vadd.f32 0.0, %v6085
      %v6087 = vpop.f32.mrb[0].mxu0
      %v6088 = vpop.f32.mrb[0].mxu0
      %v6089 = vadd.f32 0.0, %v6088
      %v6090 = vpop.f32.mrb[0].mxu0
      %6091 = vmatprep.mubr.bf16.mxu0 0
      %6092 = vmatmul.mubr.bf16.gmra.mrb[0].mxu0 %v6028
      %v6093 = vpop.f32.mrb[0].mxu0
      %v6094 = vadd.f32 0.0, %v6093
      %v6095 = vpop.f32.mrb[0].mxu0
      %v6096 = vpop.f32.mrb[0].mxu0
      %v6097 = vadd.f32 0.0, %v6096
      %v6098 = vpop.f32.mrb[0].mxu0
      %6099 = vmatprep.mubr.bf16.mxu0 0
      %6100 = vmatmul.mubr.bf16.gmra.mrb[0].mxu0 %v6031
      %v6101 = vpop.f32.mrb[0].mxu0
      %v6102 = vadd.f32 0.0, %v6101
      %v6103 = vpop.f32.mrb[0].mxu0
      %v6104 = vpop.f32.mrb[0].mxu0
      %v6105 = vadd.f32 0.0, %v6104
      %v6106 = vpop.f32.mrb[0].mxu0
      %6107 = vmatprep.mubr.bf16.mxu0 0
      %6108 = vmatmul.mubr.bf16.gmra.mrb[0].mxu0 %v6034
      %v6109 = vpop.f32.mrb[0].mxu0
      %v6110 = vadd.f32 0.0, %v6109
      %v6111 = vpop.f32.mrb[0].mxu0
      %v6112 = vpop.f32.mrb[0].mxu0
      %v6113 = vadd.f32 0.0, %v6112
      %v6114 = vpop.f32.mrb[0].mxu0
      %6115 = vmatprep.mubr.bf16.mxu0 0
      %6116 = vmatmul.mubr.bf16.gmra.mrb[0].mxu0 %v6037
      %v6117 = vpop.f32.mrb[0].mxu0
      %v6118 = vadd.f32 0.0, %v6117
      %v6119 = vpop.f32.mrb[0].mxu0
      %v6120 = vpop.f32.mrb[0].mxu0
      %v6121 = vadd.f32 0.0, %v6120
      %v6122 = vpop.f32.mrb[0].mxu0
      %6123 = vmatprep.mubr.bf16.mxu0 0
      %6124 = vmatmul.mubr.bf16.gmra.mrb[0].mxu0 %v6040
      %v6125 = vpop.f32.mrb[0].mxu0
      %v6126 = vadd.f32 0.0, %v6125
      %v6127 = vpop.f32.mrb[0].mxu0
      %v6128 = vpop.f32.mrb[0].mxu0
      %v6129 = vadd.f32 0.0, %v6128
      %v6130 = vpop.f32.mrb[0].mxu0
      %6131 = vmatprep.mubr.bf16.mxu0 0
      %6132 = vmatmul.mubr.bf16.gmra.mrb[0].mxu0 %v6043
      %v6133 = vpop.f32.mrb[0].mxu0
      %v6134 = vadd.f32 0.0, %v6133
      %v6135 = vpop.f32.mrb[0].mxu0
      %v6136 = vpop.f32.mrb[0].mxu0
      %v6137 = vadd.f32 0.0, %v6136
      %v6138 = vpop.f32.mrb[0].mxu0
      %6139 = vmatprep.mubr.bf16.mxu0 0
      %6140 = vmatmul.mubr.bf16.gmra.mrb[0].mxu0 %v6046
      %v6141 = vpop.f32.mrb[0].mxu0
      %v6142 = vadd.f32 0.0, %v6141
      %v6143 = vpop.f32.mrb[0].mxu0
      %v6144 = vpop.f32.mrb[0].mxu0
      %v6145 = vadd.f32 0.0, %v6144
      %v6146 = vpop.f32.mrb[0].mxu0
      %6147 = vdwg.mxu0
      %v6148 = vadd.f32 %v5895, %v6086
      %v6149 = vadd.f32 %v5896, %v6089
      %v6150 = vadd.f32 %v5897, %v6094
      %v6151 = vadd.f32 %v5898, %v6097
      %v6152 = vadd.f32 %v5899, %v6102
      %v6153 = vadd.f32 %v5900, %v6105
      %v6154 = vadd.f32 %v5901, %v6110
      %v6155 = vadd.f32 %v5902, %v6113
      %v6156 = vadd.f32 %v5903, %v6118
      %v6157 = vadd.f32 %v5904, %v6121
      %v6158 = vadd.f32 %v5905, %v6126
      %v6159 = vadd.f32 %v5906, %v6129
      %v6160 = vadd.f32 %v5907, %v6134
      %v6161 = vadd.f32 %v5908, %v6137
      %v6162 = vadd.f32 %v5909, %v6142
      %v6163 = vadd.f32 %v5910, %v6145
      %v6164 = vld [vmem:[%s2] sm:$0x1]
      %v6166 = vlaneseq
      %v6167 = vshrl.u32 %v6166, 7
      %v6168 = vsub.s32 0, %v6167
      %v6169 = vrot.slane %v6164, %v6168
      %v6171 = vadd.f32 %v6148, %v6169
      %v6172 = vadd.f32 %v6149, %v6169
      %v6173 = vadd.f32 %v6150, %v6169
      %v6174 = vadd.f32 %v6151, %v6169
      %v6175 = vadd.f32 %v6152, %v6169
      %v6176 = vadd.f32 %v6153, %v6169
      %v6177 = vadd.f32 %v6154, %v6169
      %v6178 = vadd.f32 %v6155, %v6169
      %v6179 = vadd.f32 %v6156, %v6169
      %v6180 = vadd.f32 %v6157, %v6169
      %v6181 = vadd.f32 %v6158, %v6169
      %v6182 = vadd.f32 %v6159, %v6169
      %v6183 = vadd.f32 %v6160, %v6169
      %v6184 = vadd.f32 %v6161, %v6169
      %v6185 = vadd.f32 %v6162, %v6169
      %v6186 = vadd.f32 %v6163, %v6169
      %v6187 = vmax.f32 %v6171, 0.0
      %v6188 = vmax.f32 %v6172, 0.0
      %v6189 = vmax.f32 %v6173, 0.0
      %v6190 = vmax.f32 %v6174, 0.0
      %v6191 = vmax.f32 %v6175, 0.0
      %v6192 = vmax.f32 %v6176, 0.0
      %v6193 = vmax.f32 %v6177, 0.0
      %v6194 = vmax.f32 %v6178, 0.0
      %v6195 = vmax.f32 %v6179, 0.0
      %v6196 = vmax.f32 %v6180, 0.0
      %v6197 = vmax.f32 %v6181, 0.0
      %v6198 = vmax.f32 %v6182, 0.0
      %v6199 = vmax.f32 %v6183, 0.0
      %v6200 = vmax.f32 %v6184, 0.0
      %v6201 = vmax.f32 %v6185, 0.0
      %v6202 = vmax.f32 %v6186, 0.0
      %v6203 = vpack.c.bf16 %v6188, %v6187
      %v6204 = vpack.c.bf16 %v6190, %v6189
      %v6205 = vpack.c.bf16 %v6192, %v6191
      %v6206 = vpack.c.bf16 %v6194, %v6193
      %v6207 = vpack.c.bf16 %v6196, %v6195
      %v6208 = vpack.c.bf16 %v6198, %v6197
      %v6209 = vpack.c.bf16 %v6200, %v6199
      %v6210 = vpack.c.bf16 %v6202, %v6201
      %v6219 = vunpack.c.l.b16 %v6203
      %v6220 = vunpack.c.h.b16 %v6203
      %v6221 = vunpack.c.l.b16 %v6204
      %v6222 = vunpack.c.h.b16 %v6204
      %v6223 = vunpack.c.l.b16 %v6205
      %v6224 = vunpack.c.h.b16 %v6205
      %v6225 = vunpack.c.l.b16 %v6206
      %v6226 = vunpack.c.h.b16 %v6206
      %v6227 = vunpack.c.l.b16 %v6207
      %v6228 = vunpack.c.h.b16 %v6207
      %v6229 = vunpack.c.l.b16 %v6208
      %v6230 = vunpack.c.h.b16 %v6208
      %v6231 = vunpack.c.l.b16 %v6209
      %v6232 = vunpack.c.h.b16 %v6209
      %v6233 = vunpack.c.l.b16 %v6210
      %v6234 = vunpack.c.h.b16 %v6210
      %v6235 = vpack.c.b16 %v6219, %v6219
      %v6236 = vpack.c.b16 %v6220, %v6220
      %v6237 = vpack.c.b16 %v6221, %v6221
      %v6238 = vpack.c.b16 %v6222, %v6222
      %v6239 = vpack.c.b16 %v6223, %v6223
      %v6240 = vpack.c.b16 %v6224, %v6224
      %v6241 = vpack.c.b16 %v6225, %v6225
      %v6242 = vpack.c.b16 %v6226, %v6226
      %v6243 = vpack.c.b16 %v6227, %v6227
      %v6244 = vpack.c.b16 %v6228, %v6228
      %v6245 = vpack.c.b16 %v6229, %v6229
      %v6246 = vpack.c.b16 %v6230, %v6230
      %v6247 = vpack.c.b16 %v6231, %v6231
      %v6248 = vpack.c.b16 %v6232, %v6232
      %v6249 = vpack.c.b16 %v6233, %v6233
      %v6250 = vpack.c.b16 %v6234, %v6234
      %v6252 = vshrl.u32 %v6235, 16
      %v6254 = vrot.slane %v6252, 7
      %v6255 = vshll.u32 %v6235, 16
      %v6257 = vor.u32 %v6254, %v6255
      %v6258 = vrot.slane %v6254, 4
      %v6260 = vshrl.u32 %v6236, 16
      %v6262 = vrot.slane %v6260, 7
      %v6263 = vshll.u32 %v6236, 16
      %v6265 = vor.u32 %v6262, %v6263
      %v6266 = vsel %vm408, %v6258, %v6265
      %v6267 = vrot.slane %v6262, 4
      %v6269 = vshrl.u32 %v6237, 16
      %v6271 = vrot.slane %v6269, 7
      %v6272 = vshll.u32 %v6237, 16
      %v6274 = vor.u32 %v6271, %v6272
      %v6275 = vrot.slane %v6271, 4
      %v6277 = vshrl.u32 %v6238, 16
      %v6279 = vrot.slane %v6277, 7
      %v6280 = vshll.u32 %v6238, 16
      %v6282 = vor.u32 %v6279, %v6280
      %v6283 = vsel %vm408, %v6275, %v6282
      %v6284 = vrot.slane %v6279, 4
      %v6286 = vshrl.u32 %v6239, 16
      %v6288 = vrot.slane %v6286, 7
      %v6289 = vshll.u32 %v6239, 16
      %v6291 = vor.u32 %v6288, %v6289
      %v6292 = vrot.slane %v6288, 4
      %v6294 = vshrl.u32 %v6240, 16
      %v6296 = vrot.slane %v6294, 7
      %v6297 = vshll.u32 %v6240, 16
      %v6299 = vor.u32 %v6296, %v6297
      %v6300 = vsel %vm408, %v6292, %v6299
      %v6301 = vrot.slane %v6296, 4
      %v6303 = vshrl.u32 %v6241, 16
      %v6305 = vrot.slane %v6303, 7
      %v6306 = vshll.u32 %v6241, 16
      %v6308 = vor.u32 %v6305, %v6306
      %v6309 = vrot.slane %v6305, 4
      %v6311 = vshrl.u32 %v6242, 16
      %v6313 = vrot.slane %v6311, 7
      %v6314 = vshll.u32 %v6242, 16
      %v6316 = vor.u32 %v6313, %v6314
      %v6317 = vsel %vm408, %v6309, %v6316
      %v6318 = vrot.slane %v6313, 4
      %v6320 = vshrl.u32 %v6243, 16
      %v6322 = vrot.slane %v6320, 7
      %v6323 = vshll.u32 %v6243, 16
      %v6325 = vor.u32 %v6322, %v6323
      %v6326 = vrot.slane %v6322, 4
      %v6328 = vshrl.u32 %v6244, 16
      %v6330 = vrot.slane %v6328, 7
      %v6331 = vshll.u32 %v6244, 16
      %v6333 = vor.u32 %v6330, %v6331
      %v6334 = vsel %vm408, %v6326, %v6333
      %v6335 = vrot.slane %v6330, 4
      %v6337 = vshrl.u32 %v6245, 16
      %v6339 = vrot.slane %v6337, 7
      %v6340 = vshll.u32 %v6245, 16
      %v6342 = vor.u32 %v6339, %v6340
      %v6343 = vrot.slane %v6339, 4
      %v6345 = vshrl.u32 %v6246, 16
      %v6347 = vrot.slane %v6345, 7
      %v6348 = vshll.u32 %v6246, 16
      %v6350 = vor.u32 %v6347, %v6348
      %v6351 = vsel %vm408, %v6343, %v6350
      %v6352 = vrot.slane %v6347, 4
      %v6354 = vshrl.u32 %v6247, 16
      %v6356 = vrot.slane %v6354, 7
      %v6357 = vshll.u32 %v6247, 16
      %v6359 = vor.u32 %v6356, %v6357
      %v6360 = vrot.slane %v6356, 4
      %v6362 = vshrl.u32 %v6248, 16
      %v6364 = vrot.slane %v6362, 7
      %v6365 = vshll.u32 %v6248, 16
      %v6367 = vor.u32 %v6364, %v6365
      %v6368 = vsel %vm408, %v6360, %v6367
      %v6369 = vrot.slane %v6364, 4
      %v6371 = vshrl.u32 %v6249, 16
      %v6373 = vrot.slane %v6371, 7
      %v6374 = vshll.u32 %v6249, 16
      %v6376 = vor.u32 %v6373, %v6374
      %v6377 = vrot.slane %v6373, 4
      %v6379 = vshrl.u32 %v6250, 16
      %v6381 = vrot.slane %v6379, 7
      %v6382 = vshll.u32 %v6250, 16
      %v6384 = vor.u32 %v6381, %v6382
      %v6385 = vsel %vm408, %v6377, %v6384
      %v6386 = vrot.slane %v6381, 4
      %s6411 = scalar_lea.vmem [#allocation3], 108
      %v6412 = vld [vmem:[%s6411] sm:$0xf]
      %v6413 = vsel %vm3667, %v6257, %v6412
      %6414 = vst [vmem:[%s6411] sm:$0xf] %v6413
      %6415 = vst.msk [vmem:[%s6411 + $0x4] sm:$0xf] %vm844, %v6266
      %v6416 = vld [vmem:[%s6411 + $0x8] sm:$0x1]
      %v6417 = vsel %vm854, %v6267, %v6416
      %6418 = vst [vmem:[%s6411 + $0x8] sm:$0x1] %v6417
      %v6419 = vld [vmem:[%s6411 + $0xc] sm:$0xf]
      %v6420 = vsel %vm3667, %v6274, %v6419
      %6421 = vst [vmem:[%s6411 + $0xc] sm:$0xf] %v6420
      %6422 = vst.msk [vmem:[%s6411 + $0x10] sm:$0xf] %vm844, %v6283
      %v6423 = vld [vmem:[%s6411 + $0x14] sm:$0x1]
      %v6424 = vsel %vm854, %v6284, %v6423
      %6425 = vst [vmem:[%s6411 + $0x14] sm:$0x1] %v6424
      %v6426 = vld [vmem:[%s6411 + $0x18] sm:$0xf]
      %v6427 = vsel %vm3667, %v6291, %v6426
      %6428 = vst [vmem:[%s6411 + $0x18] sm:$0xf] %v6427
      %6429 = vst.msk [vmem:[%s6411 + $0x1c] sm:$0xf] %vm844, %v6300
      %v6430 = vld [vmem:[%s6411 + $0x20] sm:$0x1]
      %v6431 = vsel %vm854, %v6301, %v6430
      %6432 = vst [vmem:[%s6411 + $0x20] sm:$0x1] %v6431
      %v6433 = vld [vmem:[%s6411 + $0x24] sm:$0xf]
      %v6434 = vsel %vm3667, %v6308, %v6433
      %6435 = vst [vmem:[%s6411 + $0x24] sm:$0xf] %v6434
      %6436 = vst.msk [vmem:[%s6411 + $0x28] sm:$0xf] %vm844, %v6317
      %v6437 = vld [vmem:[%s6411 + $0x2c] sm:$0x1]
      %v6438 = vsel %vm854, %v6318, %v6437
      %6439 = vst [vmem:[%s6411 + $0x2c] sm:$0x1] %v6438
      %v6440 = vld [vmem:[%s6411 + $0x30] sm:$0xf]
      %v6441 = vsel %vm3667, %v6325, %v6440
      %6442 = vst [vmem:[%s6411 + $0x30] sm:$0xf] %v6441
      %6443 = vst.msk [vmem:[%s6411 + $0x34] sm:$0xf] %vm844, %v6334
      %v6444 = vld [vmem:[%s6411 + $0x38] sm:$0x1]
      %v6445 = vsel %vm854, %v6335, %v6444
      %6446 = vst [vmem:[%s6411 + $0x38] sm:$0x1] %v6445
      %v6447 = vld [vmem:[%s6411 + $0x3c] sm:$0xf]
      %v6448 = vsel %vm3667, %v6342, %v6447
      %6449 = vst [vmem:[%s6411 + $0x3c] sm:$0xf] %v6448
      %6450 = vst.msk [vmem:[%s6411 + $0x40] sm:$0xf] %vm844, %v6351
      %v6451 = vld [vmem:[%s6411 + $0x44] sm:$0x1]
      %v6452 = vsel %vm854, %v6352, %v6451
      %6453 = vst [vmem:[%s6411 + $0x44] sm:$0x1] %v6452
      %v6454 = vld [vmem:[%s6411 + $0x48] sm:$0xf]
      %v6455 = vsel %vm3667, %v6359, %v6454
      %6456 = vst [vmem:[%s6411 + $0x48] sm:$0xf] %v6455
      %6457 = vst.msk [vmem:[%s6411 + $0x4c] sm:$0xf] %vm844, %v6368
      %v6458 = vld [vmem:[%s6411 + $0x50] sm:$0x1]
      %v6459 = vsel %vm854, %v6369, %v6458
      %6460 = vst [vmem:[%s6411 + $0x50] sm:$0x1] %v6459
      %v6461 = vld [vmem:[%s6411 + $0x54] sm:$0xf]
      %v6462 = vsel %vm3667, %v6376, %v6461
      %6463 = vst [vmem:[%s6411 + $0x54] sm:$0xf] %v6462
      %6464 = vst.msk [vmem:[%s6411 + $0x58] sm:$0xf] %vm844, %v6385
      %v6465 = vld [vmem:[%s6411 + $0x5c] sm:$0x1]
      %v6466 = vsel %vm854, %v6386, %v6465
      %6467 = vst [vmem:[%s6411 + $0x5c] sm:$0x1] %v6466
      %v6468 = vld [vmem:[#allocation3] sm:$0xf]
      %v6469 = vld [vmem:[#allocation3 + $0x4] sm:$0xf]
      %v6470 = vld [vmem:[#allocation3 + $0xc] sm:$0xf]
      %v6471 = vld [vmem:[#allocation3 + $0x10] sm:$0xf]
      %v6472 = vld [vmem:[#allocation3 + $0x18] sm:$0xf]
      %v6473 = vld [vmem:[#allocation3 + $0x1c] sm:$0xf]
      %v6474 = vld [vmem:[#allocation3 + $0x24] sm:$0xf]
      %v6475 = vld [vmem:[#allocation3 + $0x28] sm:$0xf]
      %v6476 = vld [vmem:[#allocation3 + $0x30] sm:$0xf]
      %v6477 = vld [vmem:[#allocation3 + $0x34] sm:$0xf]
      %v6478 = vld [vmem:[#allocation3 + $0x3c] sm:$0xf]
      %v6479 = vld [vmem:[#allocation3 + $0x40] sm:$0xf]
      %v6480 = vld [vmem:[#allocation3 + $0x48] sm:$0xf]
      %v6481 = vld [vmem:[#allocation3 + $0x4c] sm:$0xf]
      %v6482 = vld [vmem:[#allocation3 + $0x54] sm:$0xf]
      %v6483 = vld [vmem:[#allocation3 + $0x58] sm:$0xf]
      %v6484 = vld [vmem:[%s3] sm:$0xf]
      %v6485 = vld [vmem:[#allocation3 + $0x8] sm:$0x1]
      %v6486 = vld [vmem:[#allocation3 + $0x14] sm:$0x1]
      %v6487 = vld [vmem:[#allocation3 + $0x20] sm:$0x1]
      %v6488 = vld [vmem:[#allocation3 + $0x2c] sm:$0x1]
      %v6489 = vld [vmem:[#allocation3 + $0x38] sm:$0x1]
      %v6490 = vld [vmem:[#allocation3 + $0x44] sm:$0x1]
      %v6491 = vld [vmem:[#allocation3 + $0x50] sm:$0x1]
      %v6492 = vld [vmem:[#allocation3 + $0x5c] sm:$0x1]
      %v6494 = vshrl.u32 %v6468, 16
      %v6496 = vrot.slane %v6494, 4
      %v6497 = vshll.u32 %v6468, 16
      %v6499 = vrot.slane %v6497, 5
      %v6500 = vor.u32 %v6496, %v6499
      %v6501 = vrot.slane %v6500, 4
      %v6503 = vshll.u32 %v6469, 16
      %v6505 = vrot.slane %v6503, 5
      %v6506 = vsel %vm991, %v6501, %v6505
      %v6507 = vshrl.u32 %v6469, 16
      %v6509 = vrot.slane %v6507, 4
      %v6510 = vor.u32 %v6509, %v6505
      %v6511 = vrot.slane %v6510, 4
      %v6513 = vshll.u32 %v6485, 16
      %v6515 = vrot.slane %v6513, 5
      %v6516 = vsel %vm991, %v6511, %v6515
      %v6518 = vshrl.u32 %v6470, 16
      %v6520 = vrot.slane %v6518, 4
      %v6521 = vshll.u32 %v6470, 16
      %v6523 = vrot.slane %v6521, 5
      %v6524 = vor.u32 %v6520, %v6523
      %v6525 = vrot.slane %v6524, 4
      %v6527 = vshll.u32 %v6471, 16
      %v6529 = vrot.slane %v6527, 5
      %v6530 = vsel %vm991, %v6525, %v6529
      %v6531 = vshrl.u32 %v6471, 16
      %v6533 = vrot.slane %v6531, 4
      %v6534 = vor.u32 %v6533, %v6529
      %v6535 = vrot.slane %v6534, 4
      %v6537 = vshll.u32 %v6486, 16
      %v6539 = vrot.slane %v6537, 5
      %v6540 = vsel %vm991, %v6535, %v6539
      %v6542 = vshrl.u32 %v6472, 16
      %v6544 = vrot.slane %v6542, 4
      %v6545 = vshll.u32 %v6472, 16
      %v6547 = vrot.slane %v6545, 5
      %v6548 = vor.u32 %v6544, %v6547
      %v6549 = vrot.slane %v6548, 4
      %v6551 = vshll.u32 %v6473, 16
      %v6553 = vrot.slane %v6551, 5
      %v6554 = vsel %vm991, %v6549, %v6553
      %v6555 = vshrl.u32 %v6473, 16
      %v6557 = vrot.slane %v6555, 4
      %v6558 = vor.u32 %v6557, %v6553
      %v6559 = vrot.slane %v6558, 4
      %v6561 = vshll.u32 %v6487, 16
      %v6563 = vrot.slane %v6561, 5
      %v6564 = vsel %vm991, %v6559, %v6563
      %v6566 = vshrl.u32 %v6474, 16
      %v6568 = vrot.slane %v6566, 4
      %v6569 = vshll.u32 %v6474, 16
      %v6571 = vrot.slane %v6569, 5
      %v6572 = vor.u32 %v6568, %v6571
      %v6573 = vrot.slane %v6572, 4
      %v6575 = vshll.u32 %v6475, 16
      %v6577 = vrot.slane %v6575, 5
      %v6578 = vsel %vm991, %v6573, %v6577
      %v6579 = vshrl.u32 %v6475, 16
      %v6581 = vrot.slane %v6579, 4
      %v6582 = vor.u32 %v6581, %v6577
      %v6583 = vrot.slane %v6582, 4
      %v6585 = vshll.u32 %v6488, 16
      %v6587 = vrot.slane %v6585, 5
      %v6588 = vsel %vm991, %v6583, %v6587
      %v6590 = vshrl.u32 %v6476, 16
      %v6592 = vrot.slane %v6590, 4
      %v6593 = vshll.u32 %v6476, 16
      %v6595 = vrot.slane %v6593, 5
      %v6596 = vor.u32 %v6592, %v6595
      %v6597 = vrot.slane %v6596, 4
      %v6599 = vshll.u32 %v6477, 16
      %v6601 = vrot.slane %v6599, 5
      %v6602 = vsel %vm991, %v6597, %v6601
      %v6603 = vshrl.u32 %v6477, 16
      %v6605 = vrot.slane %v6603, 4
      %v6606 = vor.u32 %v6605, %v6601
      %v6607 = vrot.slane %v6606, 4
      %v6609 = vshll.u32 %v6489, 16
      %v6611 = vrot.slane %v6609, 5
      %v6612 = vsel %vm991, %v6607, %v6611
      %v6614 = vshrl.u32 %v6478, 16
      %v6616 = vrot.slane %v6614, 4
      %v6617 = vshll.u32 %v6478, 16
      %v6619 = vrot.slane %v6617, 5
      %v6620 = vor.u32 %v6616, %v6619
      %v6621 = vrot.slane %v6620, 4
      %v6623 = vshll.u32 %v6479, 16
      %v6625 = vrot.slane %v6623, 5
      %v6626 = vsel %vm991, %v6621, %v6625
      %v6627 = vshrl.u32 %v6479, 16
      %v6629 = vrot.slane %v6627, 4
      %v6630 = vor.u32 %v6629, %v6625
      %v6631 = vrot.slane %v6630, 4
      %v6633 = vshll.u32 %v6490, 16
      %v6635 = vrot.slane %v6633, 5
      %v6636 = vsel %vm991, %v6631, %v6635
      %v6638 = vshrl.u32 %v6480, 16
      %v6640 = vrot.slane %v6638, 4
      %v6641 = vshll.u32 %v6480, 16
      %v6643 = vrot.slane %v6641, 5
      %v6644 = vor.u32 %v6640, %v6643
      %v6645 = vrot.slane %v6644, 4
      %v6647 = vshll.u32 %v6481, 16
      %v6649 = vrot.slane %v6647, 5
      %v6650 = vsel %vm991, %v6645, %v6649
      %v6651 = vshrl.u32 %v6481, 16
      %v6653 = vrot.slane %v6651, 4
      %v6654 = vor.u32 %v6653, %v6649
      %v6655 = vrot.slane %v6654, 4
      %v6657 = vshll.u32 %v6491, 16
      %v6659 = vrot.slane %v6657, 5
      %v6660 = vsel %vm991, %v6655, %v6659
      %v6662 = vshrl.u32 %v6482, 16
      %v6664 = vrot.slane %v6662, 4
      %v6665 = vshll.u32 %v6482, 16
      %v6667 = vrot.slane %v6665, 5
      %v6668 = vor.u32 %v6664, %v6667
      %v6669 = vrot.slane %v6668, 4
      %v6671 = vshll.u32 %v6483, 16
      %v6673 = vrot.slane %v6671, 5
      %v6674 = vsel %vm991, %v6669, %v6673
      %v6675 = vshrl.u32 %v6483, 16
      %v6677 = vrot.slane %v6675, 4
      %v6678 = vor.u32 %v6677, %v6673
      %v6679 = vrot.slane %v6678, 4
      %v6681 = vshll.u32 %v6492, 16
      %v6683 = vrot.slane %v6681, 5
      %v6684 = vsel %vm991, %v6679, %v6683
      %s6685 = scalar_lea.vmem %s3, 4
      %v6686 = vld [vmem:[%s6685] sm:$0xf]
      %v6687 = vunpack.c.l.b16 %v6506
      %v6688 = vunpack.c.l.b16 %v6516
      %v6689 = vunpack.c.l.b16 %v6530
      %v6690 = vunpack.c.l.b16 %v6540
      %v6691 = vunpack.c.l.b16 %v6554
      %v6692 = vunpack.c.l.b16 %v6564
      %v6693 = vunpack.c.l.b16 %v6578
      %v6694 = vunpack.c.l.b16 %v6588
      %v6695 = vunpack.c.l.b16 %v6602
      %v6696 = vunpack.c.l.b16 %v6612
      %v6697 = vunpack.c.l.b16 %v6626
      %v6698 = vunpack.c.l.b16 %v6636
      %v6699 = vunpack.c.l.b16 %v6650
      %v6700 = vunpack.c.l.b16 %v6660
      %v6701 = vunpack.c.l.b16 %v6674
      %v6702 = vunpack.c.l.b16 %v6684
      %v6703 = vpack.c.b16 %v6688, %v6687
      %v6704 = vpack.c.b16 %v6690, %v6689
      %v6705 = vpack.c.b16 %v6692, %v6691
      %v6706 = vpack.c.b16 %v6694, %v6693
      %v6707 = vpack.c.b16 %v6696, %v6695
      %v6708 = vpack.c.b16 %v6698, %v6697
      %v6709 = vpack.c.b16 %v6700, %v6699
      %v6710 = vpack.c.b16 %v6702, %v6701
      %vm6711 = vcmask 64512
      %v6713 = vsel %vm6711, %v6703, 0
      %v6716 = vsel %vm6711, %v6704, 0
      %v6719 = vsel %vm6711, %v6705, 0
      %v6722 = vsel %vm6711, %v6706, 0
      %v6725 = vsel %vm6711, %v6707, 0
      %v6728 = vsel %vm6711, %v6708, 0
      %v6731 = vsel %vm6711, %v6709, 0
      %v6734 = vsel %vm6711, %v6710, 0
      %vm6736 = vcmask 1043456
      %v6738 = vsel %vm6736, %v6686, 0
      %6740 = vmatprep.subr.bf16.mxu0 0
      %6741 = vmatpush1.bf16.msra.mxu0 %v6738
      %6742 = vmatprep.subr.bf16.mxu0 0
      %6743 = vmatpush1.bf16.msra.mxu0 0
      %6744 = vmatprep.subr.bf16.mxu0 0
      %6745 = vmatpush1.bf16.msra.mxu0 0
      %6746 = vmatprep.subr.bf16.mxu0 0
      %6747 = vmatpush1.bf16.msra.mxu0 0
      %6748 = vmatprep.subr.bf16.mxu0 0
      %6749 = vmatpush1.bf16.msra.mxu0 0
      %6750 = vmatprep.subr.bf16.mxu0 0
      %6751 = vmatpush1.bf16.msra.mxu0 0
      %6752 = vmatprep.subr.bf16.mxu0 0
      %6753 = vmatpush1.bf16.msra.mxu0 0
      %6754 = vmatprep.subr.bf16.mxu0 0
      %6755 = vmatpush1.bf16.msra.mxu0 0
      %6756 = vmatprep.subr.bf16.mxu0 0
      %6757 = vmatpush1.bf16.msra.mxu0 0
      %6758 = vmatprep.subr.bf16.mxu0 0
      %6759 = vmatpush1.bf16.msra.mxu0 0
      %6760 = vmatprep.subr.bf16.mxu0 0
      %6761 = vmatpush1.bf16.msra.mxu0 0
      %6762 = vmatprep.subr.bf16.mxu0 0
      %6763 = vmatpush1.bf16.msra.mxu0 0
      %6764 = vmatprep.subr.bf16.mxu0 0
      %6765 = vmatpush1.bf16.msra.mxu0 0
      %6766 = vmatprep.subr.bf16.mxu0 0
      %6767 = vmatpush1.bf16.msra.mxu0 0
      %6768 = vmatprep.subr.bf16.mxu0 0
      %6769 = vmatpush1.bf16.msra.mxu0 0
      %6770 = vmatprep.subr.bf16.mxu0 0
      %6771 = vmatpush1.bf16.msra.mxu0 0
      %6772 = vmatprep.mubr.bf16.mxu0 0
      %6773 = vmatmul.mubr.bf16.gmra.mrb[0].mxu0 %v6713
      %v6774 = vpop.f32.mrb[0].mxu0
      %v6775 = vadd.f32 0.0, %v6774
      %v6776 = vpop.f32.mrb[0].mxu0
      %v6777 = vpop.f32.mrb[0].mxu0
      %v6778 = vadd.f32 0.0, %v6777
      %v6779 = vpop.f32.mrb[0].mxu0
      %6780 = vmatprep.mubr.bf16.mxu0 0
      %6781 = vmatmul.mubr.bf16.gmra.mrb[0].mxu0 %v6716
      %v6782 = vpop.f32.mrb[0].mxu0
      %v6783 = vadd.f32 0.0, %v6782
      %v6784 = vpop.f32.mrb[0].mxu0
      %v6785 = vpop.f32.mrb[0].mxu0
      %v6786 = vadd.f32 0.0, %v6785
      %v6787 = vpop.f32.mrb[0].mxu0
      %6788 = vmatprep.mubr.bf16.mxu0 0
      %6789 = vmatmul.mubr.bf16.gmra.mrb[0].mxu0 %v6719
      %v6790 = vpop.f32.mrb[0].mxu0
      %v6791 = vadd.f32 0.0, %v6790
      %v6792 = vpop.f32.mrb[0].mxu0
      %v6793 = vpop.f32.mrb[0].mxu0
      %v6794 = vadd.f32 0.0, %v6793
      %v6795 = vpop.f32.mrb[0].mxu0
      %6796 = vmatprep.mubr.bf16.mxu0 0
      %6797 = vmatmul.mubr.bf16.gmra.mrb[0].mxu0 %v6722
      %v6798 = vpop.f32.mrb[0].mxu0
      %v6799 = vadd.f32 0.0, %v6798
      %v6800 = vpop.f32.mrb[0].mxu0
      %v6801 = vpop.f32.mrb[0].mxu0
      %v6802 = vadd.f32 0.0, %v6801
      %v6803 = vpop.f32.mrb[0].mxu0
      %6804 = vmatprep.mubr.bf16.mxu0 0
      %6805 = vmatmul.mubr.bf16.gmra.mrb[0].mxu0 %v6725
      %v6806 = vpop.f32.mrb[0].mxu0
      %v6807 = vadd.f32 0.0, %v6806
      %v6808 = vpop.f32.mrb[0].mxu0
      %v6809 = vpop.f32.mrb[0].mxu0
      %v6810 = vadd.f32 0.0, %v6809
      %v6811 = vpop.f32.mrb[0].mxu0
      %6812 = vmatprep.mubr.bf16.mxu0 0
      %6813 = vmatmul.mubr.bf16.gmra.mrb[0].mxu0 %v6728
      %v6814 = vpop.f32.mrb[0].mxu0
      %v6815 = vadd.f32 0.0, %v6814
      %v6816 = vpop.f32.mrb[0].mxu0
      %v6817 = vpop.f32.mrb[0].mxu0
      %v6818 = vadd.f32 0.0, %v6817
      %v6819 = vpop.f32.mrb[0].mxu0
      %6820 = vmatprep.mubr.bf16.mxu0 0
      %6821 = vmatmul.mubr.bf16.gmra.mrb[0].mxu0 %v6731
      %v6822 = vpop.f32.mrb[0].mxu0
      %v6823 = vadd.f32 0.0, %v6822
      %v6824 = vpop.f32.mrb[0].mxu0
      %v6825 = vpop.f32.mrb[0].mxu0
      %v6826 = vadd.f32 0.0, %v6825
      %v6827 = vpop.f32.mrb[0].mxu0
      %6828 = vmatprep.mubr.bf16.mxu0 0
      %6829 = vmatmul.mubr.bf16.gmra.mrb[0].mxu0 %v6734
      %v6830 = vpop.f32.mrb[0].mxu0
      %v6831 = vadd.f32 0.0, %v6830
      %v6832 = vpop.f32.mrb[0].mxu0
      %v6833 = vpop.f32.mrb[0].mxu0
      %v6834 = vadd.f32 0.0, %v6833
      %v6835 = vpop.f32.mrb[0].mxu0
      %6836 = vdwg.mxu0
      %v6853 = vunpack.c.l.b16 %v6468
      %v6854 = vunpack.c.l.b16 %v6469
      %v6855 = vunpack.c.l.b16 %v6470
      %v6856 = vunpack.c.l.b16 %v6471
      %v6857 = vunpack.c.l.b16 %v6472
      %v6858 = vunpack.c.l.b16 %v6473
      %v6859 = vunpack.c.l.b16 %v6474
      %v6860 = vunpack.c.l.b16 %v6475
      %v6861 = vunpack.c.l.b16 %v6476
      %v6862 = vunpack.c.l.b16 %v6477
      %v6863 = vunpack.c.l.b16 %v6478
      %v6864 = vunpack.c.l.b16 %v6479
      %v6865 = vunpack.c.l.b16 %v6480
      %v6866 = vunpack.c.l.b16 %v6481
      %v6867 = vunpack.c.l.b16 %v6482
      %v6868 = vunpack.c.l.b16 %v6483
      %v6869 = vpack.c.b16 %v6854, %v6853
      %v6870 = vpack.c.b16 %v6856, %v6855
      %v6871 = vpack.c.b16 %v6858, %v6857
      %v6872 = vpack.c.b16 %v6860, %v6859
      %v6873 = vpack.c.b16 %v6862, %v6861
      %v6874 = vpack.c.b16 %v6864, %v6863
      %v6875 = vpack.c.b16 %v6866, %v6865
      %v6876 = vpack.c.b16 %v6868, %v6867
      %v6878 = vsel %vm6711, %v6869, 0
      %v6881 = vsel %vm6711, %v6870, 0
      %v6884 = vsel %vm6711, %v6871, 0
      %v6887 = vsel %vm6711, %v6872, 0
      %v6890 = vsel %vm6711, %v6873, 0
      %v6893 = vsel %vm6711, %v6874, 0
      %v6896 = vsel %vm6711, %v6875, 0
      %v6899 = vsel %vm6711, %v6876, 0
      %v6902 = vsel %vm6736, %v6484, 0
      %6904 = vmatprep.subr.bf16.mxu0 0
      %6905 = vmatpush1.bf16.msra.mxu0 %v6902
      %6906 = vmatprep.subr.bf16.mxu0 0
      %6907 = vmatpush1.bf16.msra.mxu0 0
      %6908 = vmatprep.subr.bf16.mxu0 0
      %6909 = vmatpush1.bf16.msra.mxu0 0
      %6910 = vmatprep.subr.bf16.mxu0 0
      %6911 = vmatpush1.bf16.msra.mxu0 0
      %6912 = vmatprep.subr.bf16.mxu0 0
      %6913 = vmatpush1.bf16.msra.mxu0 0
      %6914 = vmatprep.subr.bf16.mxu0 0
      %6915 = vmatpush1.bf16.msra.mxu0 0
      %6916 = vmatprep.subr.bf16.mxu0 0
      %6917 = vmatpush1.bf16.msra.mxu0 0
      %6918 = vmatprep.subr.bf16.mxu0 0
      %6919 = vmatpush1.bf16.msra.mxu0 0
      %6920 = vmatprep.subr.bf16.mxu0 0
      %6921 = vmatpush1.bf16.msra.mxu0 0
      %6922 = vmatprep.subr.bf16.mxu0 0
      %6923 = vmatpush1.bf16.msra.mxu0 0
      %6924 = vmatprep.subr.bf16.mxu0 0
      %6925 = vmatpush1.bf16.msra.mxu0 0
      %6926 = vmatprep.subr.bf16.mxu0 0
      %6927 = vmatpush1.bf16.msra.mxu0 0
      %6928 = vmatprep.subr.bf16.mxu0 0
      %6929 = vmatpush1.bf16.msra.mxu0 0
      %6930 = vmatprep.subr.bf16.mxu0 0
      %6931 = vmatpush1.bf16.msra.mxu0 0
      %6932 = vmatprep.subr.bf16.mxu0 0
      %6933 = vmatpush1.bf16.msra.mxu0 0
      %6934 = vmatprep.subr.bf16.mxu0 0
      %6935 = vmatpush1.bf16.msra.mxu0 0
      %6936 = vmatprep.mubr.bf16.mxu0 0
      %6937 = vmatmul.mubr.bf16.gmra.mrb[0].mxu0 %v6878
      %v6938 = vpop.f32.mrb[0].mxu0
      %v6939 = vadd.f32 %v6775, %v6938
      %v6940 = vpop.f32.mrb[0].mxu0
      %v6941 = vpop.f32.mrb[0].mxu0
      %v6942 = vadd.f32 %v6778, %v6941
      %v6943 = vpop.f32.mrb[0].mxu0
      %6944 = vmatprep.mubr.bf16.mxu0 0
      %6945 = vmatmul.mubr.bf16.gmra.mrb[0].mxu0 %v6881
      %v6946 = vpop.f32.mrb[0].mxu0
      %v6947 = vadd.f32 %v6783, %v6946
      %v6948 = vpop.f32.mrb[0].mxu0
      %v6949 = vpop.f32.mrb[0].mxu0
      %v6950 = vadd.f32 %v6786, %v6949
      %v6951 = vpop.f32.mrb[0].mxu0
      %6952 = vmatprep.mubr.bf16.mxu0 0
      %6953 = vmatmul.mubr.bf16.gmra.mrb[0].mxu0 %v6884
      %v6954 = vpop.f32.mrb[0].mxu0
      %v6955 = vadd.f32 %v6791, %v6954
      %v6956 = vpop.f32.mrb[0].mxu0
      %v6957 = vpop.f32.mrb[0].mxu0
      %v6958 = vadd.f32 %v6794, %v6957
      %v6959 = vpop.f32.mrb[0].mxu0
      %6960 = vmatprep.mubr.bf16.mxu0 0
      %6961 = vmatmul.mubr.bf16.gmra.mrb[0].mxu0 %v6887
      %v6962 = vpop.f32.mrb[0].mxu0
      %v6963 = vadd.f32 %v6799, %v6962
      %v6964 = vpop.f32.mrb[0].mxu0
      %v6965 = vpop.f32.mrb[0].mxu0
      %v6966 = vadd.f32 %v6802, %v6965
      %v6967 = vpop.f32.mrb[0].mxu0
      %6968 = vmatprep.mubr.bf16.mxu0 0
      %6969 = vmatmul.mubr.bf16.gmra.mrb[0].mxu0 %v6890
      %v6970 = vpop.f32.mrb[0].mxu0
      %v6971 = vadd.f32 %v6807, %v6970
      %v6972 = vpop.f32.mrb[0].mxu0
      %v6973 = vpop.f32.mrb[0].mxu0
      %v6974 = vadd.f32 %v6810, %v6973
      %v6975 = vpop.f32.mrb[0].mxu0
      %6976 = vmatprep.mubr.bf16.mxu0 0
      %6977 = vmatmul.mubr.bf16.gmra.mrb[0].mxu0 %v6893
      %v6978 = vpop.f32.mrb[0].mxu0
      %v6979 = vadd.f32 %v6815, %v6978
      %v6980 = vpop.f32.mrb[0].mxu0
      %v6981 = vpop.f32.mrb[0].mxu0
      %v6982 = vadd.f32 %v6818, %v6981
      %v6983 = vpop.f32.mrb[0].mxu0
      %6984 = vmatprep.mubr.bf16.mxu0 0
      %6985 = vmatmul.mubr.bf16.gmra.mrb[0].mxu0 %v6896
      %v6986 = vpop.f32.mrb[0].mxu0
      %v6987 = vadd.f32 %v6823, %v6986
      %v6988 = vpop.f32.mrb[0].mxu0
      %v6989 = vpop.f32.mrb[0].mxu0
      %v6990 = vadd.f32 %v6826, %v6989
      %v6991 = vpop.f32.mrb[0].mxu0
      %6992 = vmatprep.mubr.bf16.mxu0 0
      %6993 = vmatmul.mubr.bf16.gmra.mrb[0].mxu0 %v6899
      %v6994 = vpop.f32.mrb[0].mxu0
      %v6995 = vadd.f32 %v6831, %v6994
      %v6996 = vpop.f32.mrb[0].mxu0
      %v6997 = vpop.f32.mrb[0].mxu0
      %v6998 = vadd.f32 %v6834, %v6997
      %v6999 = vpop.f32.mrb[0].mxu0
      %7000 = vdwg.mxu0
      %v7001 = vld [vmem:[#allocation3] sm:$0xe]
      %v7002 = vld [vmem:[#allocation3 + $0xc] sm:$0xe]
      %v7003 = vld [vmem:[#allocation3 + $0x18] sm:$0xe]
      %v7004 = vld [vmem:[#allocation3 + $0x24] sm:$0xe]
      %v7005 = vld [vmem:[#allocation3 + $0x30] sm:$0xe]
      %v7006 = vld [vmem:[#allocation3 + $0x3c] sm:$0xe]
      %v7007 = vld [vmem:[#allocation3 + $0x48] sm:$0xe]
      %v7008 = vld [vmem:[#allocation3 + $0x54] sm:$0xe]
      %v7025 = vrot.slane %v7001, 5
      %v7026 = vrot.slane %v7025, 4
      %v7027 = vrot.slane %v6469, 5
      %v7028 = vsel %vm1526, %v7026, %v7027
      %v7029 = vrot.slane %v7027, 4
      %v7030 = vrot.slane %v6485, 5
      %v7031 = vsel %vm1526, %v7029, %v7030
      %v7032 = vrot.slane %v7002, 5
      %v7033 = vrot.slane %v7032, 4
      %v7034 = vrot.slane %v6471, 5
      %v7035 = vsel %vm1526, %v7033, %v7034
      %v7036 = vrot.slane %v7034, 4
      %v7037 = vrot.slane %v6486, 5
      %v7038 = vsel %vm1526, %v7036, %v7037
      %v7039 = vrot.slane %v7003, 5
      %v7040 = vrot.slane %v7039, 4
      %v7041 = vrot.slane %v6473, 5
      %v7042 = vsel %vm1526, %v7040, %v7041
      %v7043 = vrot.slane %v7041, 4
      %v7044 = vrot.slane %v6487, 5
      %v7045 = vsel %vm1526, %v7043, %v7044
      %v7046 = vrot.slane %v7004, 5
      %v7047 = vrot.slane %v7046, 4
      %v7048 = vrot.slane %v6475, 5
      %v7049 = vsel %vm1526, %v7047, %v7048
      %v7050 = vrot.slane %v7048, 4
      %v7051 = vrot.slane %v6488, 5
      %v7052 = vsel %vm1526, %v7050, %v7051
      %v7053 = vrot.slane %v7005, 5
      %v7054 = vrot.slane %v7053, 4
      %v7055 = vrot.slane %v6477, 5
      %v7056 = vsel %vm1526, %v7054, %v7055
      %v7057 = vrot.slane %v7055, 4
      %v7058 = vrot.slane %v6489, 5
      %v7059 = vsel %vm1526, %v7057, %v7058
      %v7060 = vrot.slane %v7006, 5
      %v7061 = vrot.slane %v7060, 4
      %v7062 = vrot.slane %v6479, 5
      %v7063 = vsel %vm1526, %v7061, %v7062
      %v7064 = vrot.slane %v7062, 4
      %v7065 = vrot.slane %v6490, 5
      %v7066 = vsel %vm1526, %v7064, %v7065
      %v7067 = vrot.slane %v7007, 5
      %v7068 = vrot.slane %v7067, 4
      %v7069 = vrot.slane %v6481, 5
      %v7070 = vsel %vm1526, %v7068, %v7069
      %v7071 = vrot.slane %v7069, 4
      %v7072 = vrot.slane %v6491, 5
      %v7073 = vsel %vm1526, %v7071, %v7072
      %v7074 = vrot.slane %v7008, 5
      %v7075 = vrot.slane %v7074, 4
      %v7076 = vrot.slane %v6483, 5
      %v7077 = vsel %vm1526, %v7075, %v7076
      %v7078 = vrot.slane %v7076, 4
      %v7079 = vrot.slane %v6492, 5
      %v7080 = vsel %vm1526, %v7078, %v7079
      %s7081 = scalar_lea.vmem %s3, 8
      %v7082 = vld [vmem:[%s7081] sm:$0xf]
      %v7083 = vunpack.c.l.b16 %v7028
      %v7084 = vunpack.c.l.b16 %v7031
      %v7085 = vunpack.c.l.b16 %v7035
      %v7086 = vunpack.c.l.b16 %v7038
      %v7087 = vunpack.c.l.b16 %v7042
      %v7088 = vunpack.c.l.b16 %v7045
      %v7089 = vunpack.c.l.b16 %v7049
      %v7090 = vunpack.c.l.b16 %v7052
      %v7091 = vunpack.c.l.b16 %v7056
      %v7092 = vunpack.c.l.b16 %v7059
      %v7093 = vunpack.c.l.b16 %v7063
      %v7094 = vunpack.c.l.b16 %v7066
      %v7095 = vunpack.c.l.b16 %v7070
      %v7096 = vunpack.c.l.b16 %v7073
      %v7097 = vunpack.c.l.b16 %v7077
      %v7098 = vunpack.c.l.b16 %v7080
      %v7099 = vpack.c.b16 %v7084, %v7083
      %v7100 = vpack.c.b16 %v7086, %v7085
      %v7101 = vpack.c.b16 %v7088, %v7087
      %v7102 = vpack.c.b16 %v7090, %v7089
      %v7103 = vpack.c.b16 %v7092, %v7091
      %v7104 = vpack.c.b16 %v7094, %v7093
      %v7105 = vpack.c.b16 %v7096, %v7095
      %v7106 = vpack.c.b16 %v7098, %v7097
      %v7108 = vsel %vm6711, %v7099, 0
      %v7111 = vsel %vm6711, %v7100, 0
      %v7114 = vsel %vm6711, %v7101, 0
      %v7117 = vsel %vm6711, %v7102, 0
      %v7120 = vsel %vm6711, %v7103, 0
      %v7123 = vsel %vm6711, %v7104, 0
      %v7126 = vsel %vm6711, %v7105, 0
      %v7129 = vsel %vm6711, %v7106, 0
      %v7132 = vsel %vm6736, %v7082, 0
      %7134 = vmatprep.subr.bf16.mxu0 0
      %7135 = vmatpush1.bf16.msra.mxu0 %v7132
      %7136 = vmatprep.subr.bf16.mxu0 0
      %7137 = vmatpush1.bf16.msra.mxu0 0
      %7138 = vmatprep.subr.bf16.mxu0 0
      %7139 = vmatpush1.bf16.msra.mxu0 0
      %7140 = vmatprep.subr.bf16.mxu0 0
      %7141 = vmatpush1.bf16.msra.mxu0 0
      %7142 = vmatprep.subr.bf16.mxu0 0
      %7143 = vmatpush1.bf16.msra.mxu0 0
      %7144 = vmatprep.subr.bf16.mxu0 0
      %7145 = vmatpush1.bf16.msra.mxu0 0
      %7146 = vmatprep.subr.bf16.mxu0 0
      %7147 = vmatpush1.bf16.msra.mxu0 0
      %7148 = vmatprep.subr.bf16.mxu0 0
      %7149 = vmatpush1.bf16.msra.mxu0 0
      %7150 = vmatprep.subr.bf16.mxu0 0
      %7151 = vmatpush1.bf16.msra.mxu0 0
      %7152 = vmatprep.subr.bf16.mxu0 0
      %7153 = vmatpush1.bf16.msra.mxu0 0
      %7154 = vmatprep.subr.bf16.mxu0 0
      %7155 = vmatpush1.bf16.msra.mxu0 0
      %7156 = vmatprep.subr.bf16.mxu0 0
      %7157 = vmatpush1.bf16.msra.mxu0 0
      %7158 = vmatprep.subr.bf16.mxu0 0
      %7159 = vmatpush1.bf16.msra.mxu0 0
      %7160 = vmatprep.subr.bf16.mxu0 0
      %7161 = vmatpush1.bf16.msra.mxu0 0
      %7162 = vmatprep.subr.bf16.mxu0 0
      %7163 = vmatpush1.bf16.msra.mxu0 0
      %7164 = vmatprep.subr.bf16.mxu0 0
      %7165 = vmatpush1.bf16.msra.mxu0 0
      %7166 = vmatprep.mubr.bf16.mxu0 0
      %7167 = vmatmul.mubr.bf16.gmra.mrb[0].mxu0 %v7108
      %v7168 = vpop.f32.mrb[0].mxu0
      %v7169 = vadd.f32 0.0, %v7168
      %v7170 = vpop.f32.mrb[0].mxu0
      %v7171 = vpop.f32.mrb[0].mxu0
      %v7172 = vadd.f32 0.0, %v7171
      %v7173 = vpop.f32.mrb[0].mxu0
      %7174 = vmatprep.mubr.bf16.mxu0 0
      %7175 = vmatmul.mubr.bf16.gmra.mrb[0].mxu0 %v7111
      %v7176 = vpop.f32.mrb[0].mxu0
      %v7177 = vadd.f32 0.0, %v7176
      %v7178 = vpop.f32.mrb[0].mxu0
      %v7179 = vpop.f32.mrb[0].mxu0
      %v7180 = vadd.f32 0.0, %v7179
      %v7181 = vpop.f32.mrb[0].mxu0
      %7182 = vmatprep.mubr.bf16.mxu0 0
      %7183 = vmatmul.mubr.bf16.gmra.mrb[0].mxu0 %v7114
      %v7184 = vpop.f32.mrb[0].mxu0
      %v7185 = vadd.f32 0.0, %v7184
      %v7186 = vpop.f32.mrb[0].mxu0
      %v7187 = vpop.f32.mrb[0].mxu0
      %v7188 = vadd.f32 0.0, %v7187
      %v7189 = vpop.f32.mrb[0].mxu0
      %7190 = vmatprep.mubr.bf16.mxu0 0
      %7191 = vmatmul.mubr.bf16.gmra.mrb[0].mxu0 %v7117
      %v7192 = vpop.f32.mrb[0].mxu0
      %v7193 = vadd.f32 0.0, %v7192
      %v7194 = vpop.f32.mrb[0].mxu0
      %v7195 = vpop.f32.mrb[0].mxu0
      %v7196 = vadd.f32 0.0, %v7195
      %v7197 = vpop.f32.mrb[0].mxu0
      %7198 = vmatprep.mubr.bf16.mxu0 0
      %7199 = vmatmul.mubr.bf16.gmra.mrb[0].mxu0 %v7120
      %v7200 = vpop.f32.mrb[0].mxu0
      %v7201 = vadd.f32 0.0, %v7200
      %v7202 = vpop.f32.mrb[0].mxu0
      %v7203 = vpop.f32.mrb[0].mxu0
      %v7204 = vadd.f32 0.0, %v7203
      %v7205 = vpop.f32.mrb[0].mxu0
      %7206 = vmatprep.mubr.bf16.mxu0 0
      %7207 = vmatmul.mubr.bf16.gmra.mrb[0].mxu0 %v7123
      %v7208 = vpop.f32.mrb[0].mxu0
      %v7209 = vadd.f32 0.0, %v7208
      %v7210 = vpop.f32.mrb[0].mxu0
      %v7211 = vpop.f32.mrb[0].mxu0
      %v7212 = vadd.f32 0.0, %v7211
      %v7213 = vpop.f32.mrb[0].mxu0
      %7214 = vmatprep.mubr.bf16.mxu0 0
      %7215 = vmatmul.mubr.bf16.gmra.mrb[0].mxu0 %v7126
      %v7216 = vpop.f32.mrb[0].mxu0
      %v7217 = vadd.f32 0.0, %v7216
      %v7218 = vpop.f32.mrb[0].mxu0
      %v7219 = vpop.f32.mrb[0].mxu0
      %v7220 = vadd.f32 0.0, %v7219
      %v7221 = vpop.f32.mrb[0].mxu0
      %7222 = vmatprep.mubr.bf16.mxu0 0
      %7223 = vmatmul.mubr.bf16.gmra.mrb[0].mxu0 %v7129
      %v7224 = vpop.f32.mrb[0].mxu0
      %v7225 = vadd.f32 0.0, %v7224
      %v7226 = vpop.f32.mrb[0].mxu0
      %v7227 = vpop.f32.mrb[0].mxu0
      %v7228 = vadd.f32 0.0, %v7227
      %v7229 = vpop.f32.mrb[0].mxu0
      %7230 = vdwg.mxu0
      %v7231 = vadd.f32 %v6939, %v7169
      %v7232 = vadd.f32 %v6942, %v7172
      %v7233 = vadd.f32 %v6947, %v7177
      %v7234 = vadd.f32 %v6950, %v7180
      %v7235 = vadd.f32 %v6955, %v7185
      %v7236 = vadd.f32 %v6958, %v7188
      %v7237 = vadd.f32 %v6963, %v7193
      %v7238 = vadd.f32 %v6966, %v7196
      %v7239 = vadd.f32 %v6971, %v7201
      %v7240 = vadd.f32 %v6974, %v7204
      %v7241 = vadd.f32 %v6979, %v7209
      %v7242 = vadd.f32 %v6982, %v7212
      %v7243 = vadd.f32 %v6987, %v7217
      %v7244 = vadd.f32 %v6990, %v7220
      %v7245 = vadd.f32 %v6995, %v7225
      %v7246 = vadd.f32 %v6998, %v7228
      %v7247 = vld [vmem:[%s3665] sm:$0xf]
      %v7248 = vld [vmem:[%s3665 + $0x4] sm:$0xf]
      %v7249 = vld [vmem:[%s3665 + $0xc] sm:$0xf]
      %v7250 = vld [vmem:[%s3665 + $0x10] sm:$0xf]
      %v7251 = vld [vmem:[%s3665 + $0x18] sm:$0xf]
      %v7252 = vld [vmem:[%s3665 + $0x1c] sm:$0xf]
      %v7253 = vld [vmem:[%s3665 + $0x24] sm:$0xf]
      %v7254 = vld [vmem:[%s3665 + $0x28] sm:$0xf]
      %v7255 = vld [vmem:[%s3665 + $0x30] sm:$0xf]
      %v7256 = vld [vmem:[%s3665 + $0x34] sm:$0xf]
      %v7257 = vld [vmem:[%s3665 + $0x3c] sm:$0xf]
      %v7258 = vld [vmem:[%s3665 + $0x40] sm:$0xf]
      %v7259 = vld [vmem:[%s3665 + $0x48] sm:$0xf]
      %v7260 = vld [vmem:[%s3665 + $0x4c] sm:$0xf]
      %v7261 = vld [vmem:[%s3665 + $0x54] sm:$0xf]
      %v7262 = vld [vmem:[%s3665 + $0x58] sm:$0xf]
      %s7263 = scalar_lea.vmem %s3, 12
      %v7264 = vld [vmem:[%s7263] sm:$0xf]
      %v7281 = vunpack.c.l.b16 %v7247
      %v7282 = vunpack.c.l.b16 %v7248
      %v7283 = vunpack.c.l.b16 %v7249
      %v7284 = vunpack.c.l.b16 %v7250
      %v7285 = vunpack.c.l.b16 %v7251
      %v7286 = vunpack.c.l.b16 %v7252
      %v7287 = vunpack.c.l.b16 %v7253
      %v7288 = vunpack.c.l.b16 %v7254
      %v7289 = vunpack.c.l.b16 %v7255
      %v7290 = vunpack.c.l.b16 %v7256
      %v7291 = vunpack.c.l.b16 %v7257
      %v7292 = vunpack.c.l.b16 %v7258
      %v7293 = vunpack.c.l.b16 %v7259
      %v7294 = vunpack.c.l.b16 %v7260
      %v7295 = vunpack.c.l.b16 %v7261
      %v7296 = vunpack.c.l.b16 %v7262
      %v7297 = vpack.c.b16 %v7282, %v7281
      %v7298 = vpack.c.b16 %v7284, %v7283
      %v7299 = vpack.c.b16 %v7286, %v7285
      %v7300 = vpack.c.b16 %v7288, %v7287
      %v7301 = vpack.c.b16 %v7290, %v7289
      %v7302 = vpack.c.b16 %v7292, %v7291
      %v7303 = vpack.c.b16 %v7294, %v7293
      %v7304 = vpack.c.b16 %v7296, %v7295
      %v7306 = vsel %vm6711, %v7297, 0
      %v7309 = vsel %vm6711, %v7298, 0
      %v7312 = vsel %vm6711, %v7299, 0
      %v7315 = vsel %vm6711, %v7300, 0
      %v7318 = vsel %vm6711, %v7301, 0
      %v7321 = vsel %vm6711, %v7302, 0
      %v7324 = vsel %vm6711, %v7303, 0
      %v7327 = vsel %vm6711, %v7304, 0
      %v7330 = vsel %vm6736, %v7264, 0
      %7332 = vmatprep.subr.bf16.mxu0 0
      %7333 = vmatpush1.bf16.msra.mxu0 %v7330
      %7334 = vmatprep.subr.bf16.mxu0 0
      %7335 = vmatpush1.bf16.msra.mxu0 0
      %7336 = vmatprep.subr.bf16.mxu0 0
      %7337 = vmatpush1.bf16.msra.mxu0 0
      %7338 = vmatprep.subr.bf16.mxu0 0
      %7339 = vmatpush1.bf16.msra.mxu0 0
      %7340 = vmatprep.subr.bf16.mxu0 0
      %7341 = vmatpush1.bf16.msra.mxu0 0
      %7342 = vmatprep.subr.bf16.mxu0 0
      %7343 = vmatpush1.bf16.msra.mxu0 0
      %7344 = vmatprep.subr.bf16.mxu0 0
      %7345 = vmatpush1.bf16.msra.mxu0 0
      %7346 = vmatprep.subr.bf16.mxu0 0
      %7347 = vmatpush1.bf16.msra.mxu0 0
      %7348 = vmatprep.subr.bf16.mxu0 0
      %7349 = vmatpush1.bf16.msra.mxu0 0
      %7350 = vmatprep.subr.bf16.mxu0 0
      %7351 = vmatpush1.bf16.msra.mxu0 0
      %7352 = vmatprep.subr.bf16.mxu0 0
      %7353 = vmatpush1.bf16.msra.mxu0 0
      %7354 = vmatprep.subr.bf16.mxu0 0
      %7355 = vmatpush1.bf16.msra.mxu0 0
      %7356 = vmatprep.subr.bf16.mxu0 0
      %7357 = vmatpush1.bf16.msra.mxu0 0
      %7358 = vmatprep.subr.bf16.mxu0 0
      %7359 = vmatpush1.bf16.msra.mxu0 0
      %7360 = vmatprep.subr.bf16.mxu0 0
      %7361 = vmatpush1.bf16.msra.mxu0 0
      %7362 = vmatprep.subr.bf16.mxu0 0
      %7363 = vmatpush1.bf16.msra.mxu0 0
      %7364 = vmatprep.mubr.bf16.mxu0 0
      %7365 = vmatmul.mubr.bf16.gmra.mrb[0].mxu0 %v7306
      %v7366 = vpop.f32.mrb[0].mxu0
      %v7367 = vadd.f32 0.0, %v7366
      %v7368 = vpop.f32.mrb[0].mxu0
      %v7369 = vpop.f32.mrb[0].mxu0
      %v7370 = vadd.f32 0.0, %v7369
      %v7371 = vpop.f32.mrb[0].mxu0
      %7372 = vmatprep.mubr.bf16.mxu0 0
      %7373 = vmatmul.mubr.bf16.gmra.mrb[0].mxu0 %v7309
      %v7374 = vpop.f32.mrb[0].mxu0
      %v7375 = vadd.f32 0.0, %v7374
      %v7376 = vpop.f32.mrb[0].mxu0
      %v7377 = vpop.f32.mrb[0].mxu0
      %v7378 = vadd.f32 0.0, %v7377
      %v7379 = vpop.f32.mrb[0].mxu0
      %7380 = vmatprep.mubr.bf16.mxu0 0
      %7381 = vmatmul.mubr.bf16.gmra.mrb[0].mxu0 %v7312
      %v7382 = vpop.f32.mrb[0].mxu0
      %v7383 = vadd.f32 0.0, %v7382
      %v7384 = vpop.f32.mrb[0].mxu0
      %v7385 = vpop.f32.mrb[0].mxu0
      %v7386 = vadd.f32 0.0, %v7385
      %v7387 = vpop.f32.mrb[0].mxu0
      %7388 = vmatprep.mubr.bf16.mxu0 0
      %7389 = vmatmul.mubr.bf16.gmra.mrb[0].mxu0 %v7315
      %v7390 = vpop.f32.mrb[0].mxu0
      %v7391 = vadd.f32 0.0, %v7390
      %v7392 = vpop.f32.mrb[0].mxu0
      %v7393 = vpop.f32.mrb[0].mxu0
      %v7394 = vadd.f32 0.0, %v7393
      %v7395 = vpop.f32.mrb[0].mxu0
      %7396 = vmatprep.mubr.bf16.mxu0 0
      %7397 = vmatmul.mubr.bf16.gmra.mrb[0].mxu0 %v7318
      %v7398 = vpop.f32.mrb[0].mxu0
      %v7399 = vadd.f32 0.0, %v7398
      %v7400 = vpop.f32.mrb[0].mxu0
      %v7401 = vpop.f32.mrb[0].mxu0
      %v7402 = vadd.f32 0.0, %v7401
      %v7403 = vpop.f32.mrb[0].mxu0
      %7404 = vmatprep.mubr.bf16.mxu0 0
      %7405 = vmatmul.mubr.bf16.gmra.mrb[0].mxu0 %v7321
      %v7406 = vpop.f32.mrb[0].mxu0
      %v7407 = vadd.f32 0.0, %v7406
      %v7408 = vpop.f32.mrb[0].mxu0
      %v7409 = vpop.f32.mrb[0].mxu0
      %v7410 = vadd.f32 0.0, %v7409
      %v7411 = vpop.f32.mrb[0].mxu0
      %7412 = vmatprep.mubr.bf16.mxu0 0
      %7413 = vmatmul.mubr.bf16.gmra.mrb[0].mxu0 %v7324
      %v7414 = vpop.f32.mrb[0].mxu0
      %v7415 = vadd.f32 0.0, %v7414
      %v7416 = vpop.f32.mrb[0].mxu0
      %v7417 = vpop.f32.mrb[0].mxu0
      %v7418 = vadd.f32 0.0, %v7417
      %v7419 = vpop.f32.mrb[0].mxu0
      %7420 = vmatprep.mubr.bf16.mxu0 0
      %7421 = vmatmul.mubr.bf16.gmra.mrb[0].mxu0 %v7327
      %v7422 = vpop.f32.mrb[0].mxu0
      %v7423 = vadd.f32 0.0, %v7422
      %v7424 = vpop.f32.mrb[0].mxu0
      %v7425 = vpop.f32.mrb[0].mxu0
      %v7426 = vadd.f32 0.0, %v7425
      %v7427 = vpop.f32.mrb[0].mxu0
      %7428 = vdwg.mxu0
      %v7429 = vadd.f32 %v7231, %v7367
      %v7430 = vadd.f32 %v7232, %v7370
      %v7431 = vadd.f32 %v7233, %v7375
      %v7432 = vadd.f32 %v7234, %v7378
      %v7433 = vadd.f32 %v7235, %v7383
      %v7434 = vadd.f32 %v7236, %v7386
      %v7435 = vadd.f32 %v7237, %v7391
      %v7436 = vadd.f32 %v7238, %v7394
      %v7437 = vadd.f32 %v7239, %v7399
      %v7438 = vadd.f32 %v7240, %v7402
      %v7439 = vadd.f32 %v7241, %v7407
      %v7440 = vadd.f32 %v7242, %v7410
      %v7441 = vadd.f32 %v7243, %v7415
      %v7442 = vadd.f32 %v7244, %v7418
      %v7443 = vadd.f32 %v7245, %v7423
      %v7444 = vadd.f32 %v7246, %v7426
      %v7445 = vld [vmem:[%s3665] sm:$0xf]
      %v7446 = vld [vmem:[%s3665 + $0x4] sm:$0xf]
      %v7447 = vld [vmem:[%s3665 + $0x8] sm:$0x1]
      %v7448 = vld [vmem:[%s3665 + $0xc] sm:$0xf]
      %v7449 = vld [vmem:[%s3665 + $0x10] sm:$0xf]
      %v7450 = vld [vmem:[%s3665 + $0x14] sm:$0x1]
      %v7451 = vld [vmem:[%s3665 + $0x18] sm:$0xf]
      %v7452 = vld [vmem:[%s3665 + $0x1c] sm:$0xf]
      %v7453 = vld [vmem:[%s3665 + $0x20] sm:$0x1]
      %v7454 = vld [vmem:[%s3665 + $0x24] sm:$0xf]
      %v7455 = vld [vmem:[%s3665 + $0x28] sm:$0xf]
      %v7456 = vld [vmem:[%s3665 + $0x2c] sm:$0x1]
      %v7457 = vld [vmem:[%s3665 + $0x30] sm:$0xf]
      %v7458 = vld [vmem:[%s3665 + $0x34] sm:$0xf]
      %v7459 = vld [vmem:[%s3665 + $0x38] sm:$0x1]
      %v7460 = vld [vmem:[%s3665 + $0x3c] sm:$0xf]
      %v7461 = vld [vmem:[%s3665 + $0x40] sm:$0xf]
      %v7462 = vld [vmem:[%s3665 + $0x44] sm:$0x1]
      %v7463 = vld [vmem:[%s3665 + $0x48] sm:$0xf]
      %v7464 = vld [vmem:[%s3665 + $0x4c] sm:$0xf]
      %v7465 = vld [vmem:[%s3665 + $0x50] sm:$0x1]
      %v7466 = vld [vmem:[%s3665 + $0x54] sm:$0xf]
      %v7467 = vld [vmem:[%s3665 + $0x58] sm:$0xf]
      %v7468 = vld [vmem:[%s3665 + $0x5c] sm:$0x1]
      %v7470 = vshrl.u32 %v7445, 16
      %v7472 = vrot.slane %v7470, 4
      %v7473 = vshll.u32 %v7445, 16
      %v7475 = vrot.slane %v7473, 5
      %v7476 = vor.u32 %v7472, %v7475
      %v7477 = vrot.slane %v7476, 4
      %v7479 = vshll.u32 %v7446, 16
      %v7481 = vrot.slane %v7479, 5
      %v7482 = vsel %vm991, %v7477, %v7481
      %v7483 = vshrl.u32 %v7446, 16
      %v7485 = vrot.slane %v7483, 4
      %v7486 = vor.u32 %v7485, %v7481
      %v7487 = vrot.slane %v7486, 4
      %v7489 = vshll.u32 %v7447, 16
      %v7491 = vrot.slane %v7489, 5
      %v7492 = vsel %vm991, %v7487, %v7491
      %v7494 = vshrl.u32 %v7448, 16
      %v7496 = vrot.slane %v7494, 4
      %v7497 = vshll.u32 %v7448, 16
      %v7499 = vrot.slane %v7497, 5
      %v7500 = vor.u32 %v7496, %v7499
      %v7501 = vrot.slane %v7500, 4
      %v7503 = vshll.u32 %v7449, 16
      %v7505 = vrot.slane %v7503, 5
      %v7506 = vsel %vm991, %v7501, %v7505
      %v7507 = vshrl.u32 %v7449, 16
      %v7509 = vrot.slane %v7507, 4
      %v7510 = vor.u32 %v7509, %v7505
      %v7511 = vrot.slane %v7510, 4
      %v7513 = vshll.u32 %v7450, 16
      %v7515 = vrot.slane %v7513, 5
      %v7516 = vsel %vm991, %v7511, %v7515
      %v7518 = vshrl.u32 %v7451, 16
      %v7520 = vrot.slane %v7518, 4
      %v7521 = vshll.u32 %v7451, 16
      %v7523 = vrot.slane %v7521, 5
      %v7524 = vor.u32 %v7520, %v7523
      %v7525 = vrot.slane %v7524, 4
      %v7527 = vshll.u32 %v7452, 16
      %v7529 = vrot.slane %v7527, 5
      %v7530 = vsel %vm991, %v7525, %v7529
      %v7531 = vshrl.u32 %v7452, 16
      %v7533 = vrot.slane %v7531, 4
      %v7534 = vor.u32 %v7533, %v7529
      %v7535 = vrot.slane %v7534, 4
      %v7537 = vshll.u32 %v7453, 16
      %v7539 = vrot.slane %v7537, 5
      %v7540 = vsel %vm991, %v7535, %v7539
      %v7542 = vshrl.u32 %v7454, 16
      %v7544 = vrot.slane %v7542, 4
      %v7545 = vshll.u32 %v7454, 16
      %v7547 = vrot.slane %v7545, 5
      %v7548 = vor.u32 %v7544, %v7547
      %v7549 = vrot.slane %v7548, 4
      %v7551 = vshll.u32 %v7455, 16
      %v7553 = vrot.slane %v7551, 5
      %v7554 = vsel %vm991, %v7549, %v7553
      %v7555 = vshrl.u32 %v7455, 16
      %v7557 = vrot.slane %v7555, 4
      %v7558 = vor.u32 %v7557, %v7553
      %v7559 = vrot.slane %v7558, 4
      %v7561 = vshll.u32 %v7456, 16
      %v7563 = vrot.slane %v7561, 5
      %v7564 = vsel %vm991, %v7559, %v7563
      %v7566 = vshrl.u32 %v7457, 16
      %v7568 = vrot.slane %v7566, 4
      %v7569 = vshll.u32 %v7457, 16
      %v7571 = vrot.slane %v7569, 5
      %v7572 = vor.u32 %v7568, %v7571
      %v7573 = vrot.slane %v7572, 4
      %v7575 = vshll.u32 %v7458, 16
      %v7577 = vrot.slane %v7575, 5
      %v7578 = vsel %vm991, %v7573, %v7577
      %v7579 = vshrl.u32 %v7458, 16
      %v7581 = vrot.slane %v7579, 4
      %v7582 = vor.u32 %v7581, %v7577
      %v7583 = vrot.slane %v7582, 4
      %v7585 = vshll.u32 %v7459, 16
      %v7587 = vrot.slane %v7585, 5
      %v7588 = vsel %vm991, %v7583, %v7587
      %v7590 = vshrl.u32 %v7460, 16
      %v7592 = vrot.slane %v7590, 4
      %v7593 = vshll.u32 %v7460, 16
      %v7595 = vrot.slane %v7593, 5
      %v7596 = vor.u32 %v7592, %v7595
      %v7597 = vrot.slane %v7596, 4
      %v7599 = vshll.u32 %v7461, 16
      %v7601 = vrot.slane %v7599, 5
      %v7602 = vsel %vm991, %v7597, %v7601
      %v7603 = vshrl.u32 %v7461, 16
      %v7605 = vrot.slane %v7603, 4
      %v7606 = vor.u32 %v7605, %v7601
      %v7607 = vrot.slane %v7606, 4
      %v7609 = vshll.u32 %v7462, 16
      %v7611 = vrot.slane %v7609, 5
      %v7612 = vsel %vm991, %v7607, %v7611
      %v7614 = vshrl.u32 %v7463, 16
      %v7616 = vrot.slane %v7614, 4
      %v7617 = vshll.u32 %v7463, 16
      %v7619 = vrot.slane %v7617, 5
      %v7620 = vor.u32 %v7616, %v7619
      %v7621 = vrot.slane %v7620, 4
      %v7623 = vshll.u32 %v7464, 16
      %v7625 = vrot.slane %v7623, 5
      %v7626 = vsel %vm991, %v7621, %v7625
      %v7627 = vshrl.u32 %v7464, 16
      %v7629 = vrot.slane %v7627, 4
      %v7630 = vor.u32 %v7629, %v7625
      %v7631 = vrot.slane %v7630, 4
      %v7633 = vshll.u32 %v7465, 16
      %v7635 = vrot.slane %v7633, 5
      %v7636 = vsel %vm991, %v7631, %v7635
      %v7638 = vshrl.u32 %v7466, 16
      %v7640 = vrot.slane %v7638, 4
      %v7641 = vshll.u32 %v7466, 16
      %v7643 = vrot.slane %v7641, 5
      %v7644 = vor.u32 %v7640, %v7643
      %v7645 = vrot.slane %v7644, 4
      %v7647 = vshll.u32 %v7467, 16
      %v7649 = vrot.slane %v7647, 5
      %v7650 = vsel %vm991, %v7645, %v7649
      %v7651 = vshrl.u32 %v7467, 16
      %v7653 = vrot.slane %v7651, 4
      %v7654 = vor.u32 %v7653, %v7649
      %v7655 = vrot.slane %v7654, 4
      %v7657 = vshll.u32 %v7468, 16
      %v7659 = vrot.slane %v7657, 5
      %v7660 = vsel %vm991, %v7655, %v7659
      %s7661 = scalar_lea.vmem %s3, 16
      %v7662 = vld [vmem:[%s7661] sm:$0xf]
      %v7663 = vunpack.c.l.b16 %v7482
      %v7664 = vunpack.c.l.b16 %v7492
      %v7665 = vunpack.c.l.b16 %v7506
      %v7666 = vunpack.c.l.b16 %v7516
      %v7667 = vunpack.c.l.b16 %v7530
      %v7668 = vunpack.c.l.b16 %v7540
      %v7669 = vunpack.c.l.b16 %v7554
      %v7670 = vunpack.c.l.b16 %v7564
      %v7671 = vunpack.c.l.b16 %v7578
      %v7672 = vunpack.c.l.b16 %v7588
      %v7673 = vunpack.c.l.b16 %v7602
      %v7674 = vunpack.c.l.b16 %v7612
      %v7675 = vunpack.c.l.b16 %v7626
      %v7676 = vunpack.c.l.b16 %v7636
      %v7677 = vunpack.c.l.b16 %v7650
      %v7678 = vunpack.c.l.b16 %v7660
      %v7679 = vpack.c.b16 %v7664, %v7663
      %v7680 = vpack.c.b16 %v7666, %v7665
      %v7681 = vpack.c.b16 %v7668, %v7667
      %v7682 = vpack.c.b16 %v7670, %v7669
      %v7683 = vpack.c.b16 %v7672, %v7671
      %v7684 = vpack.c.b16 %v7674, %v7673
      %v7685 = vpack.c.b16 %v7676, %v7675
      %v7686 = vpack.c.b16 %v7678, %v7677
      %v7688 = vsel %vm6711, %v7679, 0
      %v7691 = vsel %vm6711, %v7680, 0
      %v7694 = vsel %vm6711, %v7681, 0
      %v7697 = vsel %vm6711, %v7682, 0
      %v7700 = vsel %vm6711, %v7683, 0
      %v7703 = vsel %vm6711, %v7684, 0
      %v7706 = vsel %vm6711, %v7685, 0
      %v7709 = vsel %vm6711, %v7686, 0
      %v7712 = vsel %vm6736, %v7662, 0
      %7714 = vmatprep.subr.bf16.mxu0 0
      %7715 = vmatpush1.bf16.msra.mxu0 %v7712
      %7716 = vmatprep.subr.bf16.mxu0 0
      %7717 = vmatpush1.bf16.msra.mxu0 0
      %7718 = vmatprep.subr.bf16.mxu0 0
      %7719 = vmatpush1.bf16.msra.mxu0 0
      %7720 = vmatprep.subr.bf16.mxu0 0
      %7721 = vmatpush1.bf16.msra.mxu0 0
      %7722 = vmatprep.subr.bf16.mxu0 0
      %7723 = vmatpush1.bf16.msra.mxu0 0
      %7724 = vmatprep.subr.bf16.mxu0 0
      %7725 = vmatpush1.bf16.msra.mxu0 0
      %7726 = vmatprep.subr.bf16.mxu0 0
      %7727 = vmatpush1.bf16.msra.mxu0 0
      %7728 = vmatprep.subr.bf16.mxu0 0
      %7729 = vmatpush1.bf16.msra.mxu0 0
      %7730 = vmatprep.subr.bf16.mxu0 0
      %7731 = vmatpush1.bf16.msra.mxu0 0
      %7732 = vmatprep.subr.bf16.mxu0 0
      %7733 = vmatpush1.bf16.msra.mxu0 0
      %7734 = vmatprep.subr.bf16.mxu0 0
      %7735 = vmatpush1.bf16.msra.mxu0 0
      %7736 = vmatprep.subr.bf16.mxu0 0
      %7737 = vmatpush1.bf16.msra.mxu0 0
      %7738 = vmatprep.subr.bf16.mxu0 0
      %7739 = vmatpush1.bf16.msra.mxu0 0
      %7740 = vmatprep.subr.bf16.mxu0 0
      %7741 = vmatpush1.bf16.msra.mxu0 0
      %7742 = vmatprep.subr.bf16.mxu0 0
      %7743 = vmatpush1.bf16.msra.mxu0 0
      %7744 = vmatprep.subr.bf16.mxu0 0
      %7745 = vmatpush1.bf16.msra.mxu0 0
      %7746 = vmatprep.mubr.bf16.mxu0 0
      %7747 = vmatmul.mubr.bf16.gmra.mrb[0].mxu0 %v7688
      %v7748 = vpop.f32.mrb[0].mxu0
      %v7749 = vadd.f32 0.0, %v7748
      %v7750 = vpop.f32.mrb[0].mxu0
      %v7751 = vpop.f32.mrb[0].mxu0
      %v7752 = vadd.f32 0.0, %v7751
      %v7753 = vpop.f32.mrb[0].mxu0
      %7754 = vmatprep.mubr.bf16.mxu0 0
      %7755 = vmatmul.mubr.bf16.gmra.mrb[0].mxu0 %v7691
      %v7756 = vpop.f32.mrb[0].mxu0
      %v7757 = vadd.f32 0.0, %v7756
      %v7758 = vpop.f32.mrb[0].mxu0
      %v7759 = vpop.f32.mrb[0].mxu0
      %v7760 = vadd.f32 0.0, %v7759
      %v7761 = vpop.f32.mrb[0].mxu0
      %7762 = vmatprep.mubr.bf16.mxu0 0
      %7763 = vmatmul.mubr.bf16.gmra.mrb[0].mxu0 %v7694
      %v7764 = vpop.f32.mrb[0].mxu0
      %v7765 = vadd.f32 0.0, %v7764
      %v7766 = vpop.f32.mrb[0].mxu0
      %v7767 = vpop.f32.mrb[0].mxu0
      %v7768 = vadd.f32 0.0, %v7767
      %v7769 = vpop.f32.mrb[0].mxu0
      %7770 = vmatprep.mubr.bf16.mxu0 0
      %7771 = vmatmul.mubr.bf16.gmra.mrb[0].mxu0 %v7697
      %v7772 = vpop.f32.mrb[0].mxu0
      %v7773 = vadd.f32 0.0, %v7772
      %v7774 = vpop.f32.mrb[0].mxu0
      %v7775 = vpop.f32.mrb[0].mxu0
      %v7776 = vadd.f32 0.0, %v7775
      %v7777 = vpop.f32.mrb[0].mxu0
      %7778 = vmatprep.mubr.bf16.mxu0 0
      %7779 = vmatmul.mubr.bf16.gmra.mrb[0].mxu0 %v7700
      %v7780 = vpop.f32.mrb[0].mxu0
      %v7781 = vadd.f32 0.0, %v7780
      %v7782 = vpop.f32.mrb[0].mxu0
      %v7783 = vpop.f32.mrb[0].mxu0
      %v7784 = vadd.f32 0.0, %v7783
      %v7785 = vpop.f32.mrb[0].mxu0
      %7786 = vmatprep.mubr.bf16.mxu0 0
      %7787 = vmatmul.mubr.bf16.gmra.mrb[0].mxu0 %v7703
      %v7788 = vpop.f32.mrb[0].mxu0
      %v7789 = vadd.f32 0.0, %v7788
      %v7790 = vpop.f32.mrb[0].mxu0
      %v7791 = vpop.f32.mrb[0].mxu0
      %v7792 = vadd.f32 0.0, %v7791
      %v7793 = vpop.f32.mrb[0].mxu0
      %7794 = vmatprep.mubr.bf16.mxu0 0
      %7795 = vmatmul.mubr.bf16.gmra.mrb[0].mxu0 %v7706
      %v7796 = vpop.f32.mrb[0].mxu0
      %v7797 = vadd.f32 0.0, %v7796
      %v7798 = vpop.f32.mrb[0].mxu0
      %v7799 = vpop.f32.mrb[0].mxu0
      %v7800 = vadd.f32 0.0, %v7799
      %v7801 = vpop.f32.mrb[0].mxu0
      %7802 = vmatprep.mubr.bf16.mxu0 0
      %7803 = vmatmul.mubr.bf16.gmra.mrb[0].mxu0 %v7709
      %v7804 = vpop.f32.mrb[0].mxu0
      %v7805 = vadd.f32 0.0, %v7804
      %v7806 = vpop.f32.mrb[0].mxu0
      %v7807 = vpop.f32.mrb[0].mxu0
      %v7808 = vadd.f32 0.0, %v7807
      %v7809 = vpop.f32.mrb[0].mxu0
      %7810 = vdwg.mxu0
      %v7811 = vadd.f32 %v7429, %v7749
      %v7812 = vadd.f32 %v7430, %v7752
      %v7813 = vadd.f32 %v7431, %v7757
      %v7814 = vadd.f32 %v7432, %v7760
      %v7815 = vadd.f32 %v7433, %v7765
      %v7816 = vadd.f32 %v7434, %v7768
      %v7817 = vadd.f32 %v7435, %v7773
      %v7818 = vadd.f32 %v7436, %v7776
      %v7819 = vadd.f32 %v7437, %v7781
      %v7820 = vadd.f32 %v7438, %v7784
      %v7821 = vadd.f32 %v7439, %v7789
      %v7822 = vadd.f32 %v7440, %v7792
      %v7823 = vadd.f32 %v7441, %v7797
      %v7824 = vadd.f32 %v7442, %v7800
      %v7825 = vadd.f32 %v7443, %v7805
      %v7826 = vadd.f32 %v7444, %v7808
      %v7827 = vld [vmem:[%s3665] sm:$0xe]
      %v7828 = vld [vmem:[%s3665 + $0xc] sm:$0xe]
      %v7829 = vld [vmem:[%s3665 + $0x18] sm:$0xe]
      %v7830 = vld [vmem:[%s3665 + $0x24] sm:$0xe]
      %v7831 = vld [vmem:[%s3665 + $0x30] sm:$0xe]
      %v7832 = vld [vmem:[%s3665 + $0x3c] sm:$0xe]
      %v7833 = vld [vmem:[%s3665 + $0x48] sm:$0xe]
      %v7834 = vld [vmem:[%s3665 + $0x54] sm:$0xe]
      %v7859 = vrot.slane %v7827, 5
      %v7860 = vrot.slane %v7859, 4
      %v7861 = vrot.slane %v7446, 5
      %v7862 = vsel %vm1526, %v7860, %v7861
      %v7863 = vrot.slane %v7861, 4
      %v7864 = vrot.slane %v7447, 5
      %v7865 = vsel %vm1526, %v7863, %v7864
      %v7866 = vrot.slane %v7828, 5
      %v7867 = vrot.slane %v7866, 4
      %v7868 = vrot.slane %v7449, 5
      %v7869 = vsel %vm1526, %v7867, %v7868
      %v7870 = vrot.slane %v7868, 4
      %v7871 = vrot.slane %v7450, 5
      %v7872 = vsel %vm1526, %v7870, %v7871
      %v7873 = vrot.slane %v7829, 5
      %v7874 = vrot.slane %v7873, 4
      %v7875 = vrot.slane %v7452, 5
      %v7876 = vsel %vm1526, %v7874, %v7875
      %v7877 = vrot.slane %v7875, 4
      %v7878 = vrot.slane %v7453, 5
      %v7879 = vsel %vm1526, %v7877, %v7878
      %v7880 = vrot.slane %v7830, 5
      %v7881 = vrot.slane %v7880, 4
      %v7882 = vrot.slane %v7455, 5
      %v7883 = vsel %vm1526, %v7881, %v7882
      %v7884 = vrot.slane %v7882, 4
      %v7885 = vrot.slane %v7456, 5
      %v7886 = vsel %vm1526, %v7884, %v7885
      %v7887 = vrot.slane %v7831, 5
      %v7888 = vrot.slane %v7887, 4
      %v7889 = vrot.slane %v7458, 5
      %v7890 = vsel %vm1526, %v7888, %v7889
      %v7891 = vrot.slane %v7889, 4
      %v7892 = vrot.slane %v7459, 5
      %v7893 = vsel %vm1526, %v7891, %v7892
      %v7894 = vrot.slane %v7832, 5
      %v7895 = vrot.slane %v7894, 4
      %v7896 = vrot.slane %v7461, 5
      %v7897 = vsel %vm1526, %v7895, %v7896
      %v7898 = vrot.slane %v7896, 4
      %v7899 = vrot.slane %v7462, 5
      %v7900 = vsel %vm1526, %v7898, %v7899
      %v7901 = vrot.slane %v7833, 5
      %v7902 = vrot.slane %v7901, 4
      %v7903 = vrot.slane %v7464, 5
      %v7904 = vsel %vm1526, %v7902, %v7903
      %v7905 = vrot.slane %v7903, 4
      %v7906 = vrot.slane %v7465, 5
      %v7907 = vsel %vm1526, %v7905, %v7906
      %v7908 = vrot.slane %v7834, 5
      %v7909 = vrot.slane %v7908, 4
      %v7910 = vrot.slane %v7467, 5
      %v7911 = vsel %vm1526, %v7909, %v7910
      %v7912 = vrot.slane %v7910, 4
      %v7913 = vrot.slane %v7468, 5
      %v7914 = vsel %vm1526, %v7912, %v7913
      %s7915 = scalar_lea.vmem %s3, 20
      %v7916 = vld [vmem:[%s7915] sm:$0xf]
      %v7917 = vunpack.c.l.b16 %v7862
      %v7918 = vunpack.c.l.b16 %v7865
      %v7919 = vunpack.c.l.b16 %v7869
      %v7920 = vunpack.c.l.b16 %v7872
      %v7921 = vunpack.c.l.b16 %v7876
      %v7922 = vunpack.c.l.b16 %v7879
      %v7923 = vunpack.c.l.b16 %v7883
      %v7924 = vunpack.c.l.b16 %v7886
      %v7925 = vunpack.c.l.b16 %v7890
      %v7926 = vunpack.c.l.b16 %v7893
      %v7927 = vunpack.c.l.b16 %v7897
      %v7928 = vunpack.c.l.b16 %v7900
      %v7929 = vunpack.c.l.b16 %v7904
      %v7930 = vunpack.c.l.b16 %v7907
      %v7931 = vunpack.c.l.b16 %v7911
      %v7932 = vunpack.c.l.b16 %v7914
      %v7933 = vpack.c.b16 %v7918, %v7917
      %v7934 = vpack.c.b16 %v7920, %v7919
      %v7935 = vpack.c.b16 %v7922, %v7921
      %v7936 = vpack.c.b16 %v7924, %v7923
      %v7937 = vpack.c.b16 %v7926, %v7925
      %v7938 = vpack.c.b16 %v7928, %v7927
      %v7939 = vpack.c.b16 %v7930, %v7929
      %v7940 = vpack.c.b16 %v7932, %v7931
      %v7942 = vsel %vm6711, %v7933, 0
      %v7945 = vsel %vm6711, %v7934, 0
      %v7948 = vsel %vm6711, %v7935, 0
      %v7951 = vsel %vm6711, %v7936, 0
      %v7954 = vsel %vm6711, %v7937, 0
      %v7957 = vsel %vm6711, %v7938, 0
      %v7960 = vsel %vm6711, %v7939, 0
      %v7963 = vsel %vm6711, %v7940, 0
      %v7966 = vsel %vm6736, %v7916, 0
      %7968 = vmatprep.subr.bf16.mxu0 0
      %7969 = vmatpush1.bf16.msra.mxu0 %v7966
      %7970 = vmatprep.subr.bf16.mxu0 0
      %7971 = vmatpush1.bf16.msra.mxu0 0
      %7972 = vmatprep.subr.bf16.mxu0 0
      %7973 = vmatpush1.bf16.msra.mxu0 0
      %7974 = vmatprep.subr.bf16.mxu0 0
      %7975 = vmatpush1.bf16.msra.mxu0 0
      %7976 = vmatprep.subr.bf16.mxu0 0
      %7977 = vmatpush1.bf16.msra.mxu0 0
      %7978 = vmatprep.subr.bf16.mxu0 0
      %7979 = vmatpush1.bf16.msra.mxu0 0
      %7980 = vmatprep.subr.bf16.mxu0 0
      %7981 = vmatpush1.bf16.msra.mxu0 0
      %7982 = vmatprep.subr.bf16.mxu0 0
      %7983 = vmatpush1.bf16.msra.mxu0 0
      %7984 = vmatprep.subr.bf16.mxu0 0
      %7985 = vmatpush1.bf16.msra.mxu0 0
      %7986 = vmatprep.subr.bf16.mxu0 0
      %7987 = vmatpush1.bf16.msra.mxu0 0
      %7988 = vmatprep.subr.bf16.mxu0 0
      %7989 = vmatpush1.bf16.msra.mxu0 0
      %7990 = vmatprep.subr.bf16.mxu0 0
      %7991 = vmatpush1.bf16.msra.mxu0 0
      %7992 = vmatprep.subr.bf16.mxu0 0
      %7993 = vmatpush1.bf16.msra.mxu0 0
      %7994 = vmatprep.subr.bf16.mxu0 0
      %7995 = vmatpush1.bf16.msra.mxu0 0
      %7996 = vmatprep.subr.bf16.mxu0 0
      %7997 = vmatpush1.bf16.msra.mxu0 0
      %7998 = vmatprep.subr.bf16.mxu0 0
      %7999 = vmatpush1.bf16.msra.mxu0 0
      %8000 = vmatprep.mubr.bf16.mxu0 0
      %8001 = vmatmul.mubr.bf16.gmra.mrb[0].mxu0 %v7942
      %v8002 = vpop.f32.mrb[0].mxu0
      %v8003 = vadd.f32 0.0, %v8002
      %v8004 = vpop.f32.mrb[0].mxu0
      %v8005 = vpop.f32.mrb[0].mxu0
      %v8006 = vadd.f32 0.0, %v8005
      %v8007 = vpop.f32.mrb[0].mxu0
      %8008 = vmatprep.mubr.bf16.mxu0 0
      %8009 = vmatmul.mubr.bf16.gmra.mrb[0].mxu0 %v7945
      %v8010 = vpop.f32.mrb[0].mxu0
      %v8011 = vadd.f32 0.0, %v8010
      %v8012 = vpop.f32.mrb[0].mxu0
      %v8013 = vpop.f32.mrb[0].mxu0
      %v8014 = vadd.f32 0.0, %v8013
      %v8015 = vpop.f32.mrb[0].mxu0
      %8016 = vmatprep.mubr.bf16.mxu0 0
      %8017 = vmatmul.mubr.bf16.gmra.mrb[0].mxu0 %v7948
      %v8018 = vpop.f32.mrb[0].mxu0
      %v8019 = vadd.f32 0.0, %v8018
      %v8020 = vpop.f32.mrb[0].mxu0
      %v8021 = vpop.f32.mrb[0].mxu0
      %v8022 = vadd.f32 0.0, %v8021
      %v8023 = vpop.f32.mrb[0].mxu0
      %8024 = vmatprep.mubr.bf16.mxu0 0
      %8025 = vmatmul.mubr.bf16.gmra.mrb[0].mxu0 %v7951
      %v8026 = vpop.f32.mrb[0].mxu0
      %v8027 = vadd.f32 0.0, %v8026
      %v8028 = vpop.f32.mrb[0].mxu0
      %v8029 = vpop.f32.mrb[0].mxu0
      %v8030 = vadd.f32 0.0, %v8029
      %v8031 = vpop.f32.mrb[0].mxu0
      %8032 = vmatprep.mubr.bf16.mxu0 0
      %8033 = vmatmul.mubr.bf16.gmra.mrb[0].mxu0 %v7954
      %v8034 = vpop.f32.mrb[0].mxu0
      %v8035 = vadd.f32 0.0, %v8034
      %v8036 = vpop.f32.mrb[0].mxu0
      %v8037 = vpop.f32.mrb[0].mxu0
      %v8038 = vadd.f32 0.0, %v8037
      %v8039 = vpop.f32.mrb[0].mxu0
      %8040 = vmatprep.mubr.bf16.mxu0 0
      %8041 = vmatmul.mubr.bf16.gmra.mrb[0].mxu0 %v7957
      %v8042 = vpop.f32.mrb[0].mxu0
      %v8043 = vadd.f32 0.0, %v8042
      %v8044 = vpop.f32.mrb[0].mxu0
      %v8045 = vpop.f32.mrb[0].mxu0
      %v8046 = vadd.f32 0.0, %v8045
      %v8047 = vpop.f32.mrb[0].mxu0
      %8048 = vmatprep.mubr.bf16.mxu0 0
      %8049 = vmatmul.mubr.bf16.gmra.mrb[0].mxu0 %v7960
      %v8050 = vpop.f32.mrb[0].mxu0
      %v8051 = vadd.f32 0.0, %v8050
      %v8052 = vpop.f32.mrb[0].mxu0
      %v8053 = vpop.f32.mrb[0].mxu0
      %v8054 = vadd.f32 0.0, %v8053
      %v8055 = vpop.f32.mrb[0].mxu0
      %8056 = vmatprep.mubr.bf16.mxu0 0
      %8057 = vmatmul.mubr.bf16.gmra.mrb[0].mxu0 %v7963
      %v8058 = vpop.f32.mrb[0].mxu0
      %v8059 = vadd.f32 0.0, %v8058
      %v8060 = vpop.f32.mrb[0].mxu0
      %v8061 = vpop.f32.mrb[0].mxu0
      %v8062 = vadd.f32 0.0, %v8061
      %v8063 = vpop.f32.mrb[0].mxu0
      %8064 = vdwg.mxu0
      %v8065 = vadd.f32 %v7811, %v8003
      %v8066 = vadd.f32 %v7812, %v8006
      %v8067 = vadd.f32 %v7813, %v8011
      %v8068 = vadd.f32 %v7814, %v8014
      %v8069 = vadd.f32 %v7815, %v8019
      %v8070 = vadd.f32 %v7816, %v8022
      %v8071 = vadd.f32 %v7817, %v8027
      %v8072 = vadd.f32 %v7818, %v8030
      %v8073 = vadd.f32 %v7819, %v8035
      %v8074 = vadd.f32 %v7820, %v8038
      %v8075 = vadd.f32 %v7821, %v8043
      %v8076 = vadd.f32 %v7822, %v8046
      %v8077 = vadd.f32 %v7823, %v8051
      %v8078 = vadd.f32 %v7824, %v8054
      %v8079 = vadd.f32 %v7825, %v8059
      %v8080 = vadd.f32 %v7826, %v8062
      %s8081 = scalar_lea.vmem [#allocation3], 24
      %v8082 = vld [vmem:[%s8081] sm:$0xf]
      %v8083 = vld [vmem:[%s8081 + $0x4] sm:$0xf]
      %v8084 = vld [vmem:[%s8081 + $0xc] sm:$0xf]
      %v8085 = vld [vmem:[%s8081 + $0x10] sm:$0xf]
      %v8086 = vld [vmem:[%s8081 + $0x18] sm:$0xf]
      %v8087 = vld [vmem:[%s8081 + $0x1c] sm:$0xf]
      %v8088 = vld [vmem:[%s8081 + $0x24] sm:$0xf]
      %v8089 = vld [vmem:[%s8081 + $0x28] sm:$0xf]
      %v8090 = vld [vmem:[%s8081 + $0x30] sm:$0xf]
      %v8091 = vld [vmem:[%s8081 + $0x34] sm:$0xf]
      %v8092 = vld [vmem:[%s8081 + $0x3c] sm:$0xf]
      %v8093 = vld [vmem:[%s8081 + $0x40] sm:$0xf]
      %v8094 = vld [vmem:[%s8081 + $0x48] sm:$0xf]
      %v8095 = vld [vmem:[%s8081 + $0x4c] sm:$0xf]
      %v8096 = vld [vmem:[%s8081 + $0x54] sm:$0xf]
      %v8097 = vld [vmem:[%s8081 + $0x58] sm:$0xf]
      %s8098 = scalar_lea.vmem %s3, 24
      %v8099 = vld [vmem:[%s8098] sm:$0xf]
      %v8116 = vunpack.c.l.b16 %v8082
      %v8117 = vunpack.c.l.b16 %v8083
      %v8118 = vunpack.c.l.b16 %v8084
      %v8119 = vunpack.c.l.b16 %v8085
      %v8120 = vunpack.c.l.b16 %v8086
      %v8121 = vunpack.c.l.b16 %v8087
      %v8122 = vunpack.c.l.b16 %v8088
      %v8123 = vunpack.c.l.b16 %v8089
      %v8124 = vunpack.c.l.b16 %v8090
      %v8125 = vunpack.c.l.b16 %v8091
      %v8126 = vunpack.c.l.b16 %v8092
      %v8127 = vunpack.c.l.b16 %v8093
      %v8128 = vunpack.c.l.b16 %v8094
      %v8129 = vunpack.c.l.b16 %v8095
      %v8130 = vunpack.c.l.b16 %v8096
      %v8131 = vunpack.c.l.b16 %v8097
      %v8132 = vpack.c.b16 %v8117, %v8116
      %v8133 = vpack.c.b16 %v8119, %v8118
      %v8134 = vpack.c.b16 %v8121, %v8120
      %v8135 = vpack.c.b16 %v8123, %v8122
      %v8136 = vpack.c.b16 %v8125, %v8124
      %v8137 = vpack.c.b16 %v8127, %v8126
      %v8138 = vpack.c.b16 %v8129, %v8128
      %v8139 = vpack.c.b16 %v8131, %v8130
      %v8141 = vsel %vm6711, %v8132, 0
      %v8144 = vsel %vm6711, %v8133, 0
      %v8147 = vsel %vm6711, %v8134, 0
      %v8150 = vsel %vm6711, %v8135, 0
      %v8153 = vsel %vm6711, %v8136, 0
      %v8156 = vsel %vm6711, %v8137, 0
      %v8159 = vsel %vm6711, %v8138, 0
      %v8162 = vsel %vm6711, %v8139, 0
      %v8165 = vsel %vm6736, %v8099, 0
      %8167 = vmatprep.subr.bf16.mxu0 0
      %8168 = vmatpush1.bf16.msra.mxu0 %v8165
      %8169 = vmatprep.subr.bf16.mxu0 0
      %8170 = vmatpush1.bf16.msra.mxu0 0
      %8171 = vmatprep.subr.bf16.mxu0 0
      %8172 = vmatpush1.bf16.msra.mxu0 0
      %8173 = vmatprep.subr.bf16.mxu0 0
      %8174 = vmatpush1.bf16.msra.mxu0 0
      %8175 = vmatprep.subr.bf16.mxu0 0
      %8176 = vmatpush1.bf16.msra.mxu0 0
      %8177 = vmatprep.subr.bf16.mxu0 0
      %8178 = vmatpush1.bf16.msra.mxu0 0
      %8179 = vmatprep.subr.bf16.mxu0 0
      %8180 = vmatpush1.bf16.msra.mxu0 0
      %8181 = vmatprep.subr.bf16.mxu0 0
      %8182 = vmatpush1.bf16.msra.mxu0 0
      %8183 = vmatprep.subr.bf16.mxu0 0
      %8184 = vmatpush1.bf16.msra.mxu0 0
      %8185 = vmatprep.subr.bf16.mxu0 0
      %8186 = vmatpush1.bf16.msra.mxu0 0
      %8187 = vmatprep.subr.bf16.mxu0 0
      %8188 = vmatpush1.bf16.msra.mxu0 0
      %8189 = vmatprep.subr.bf16.mxu0 0
      %8190 = vmatpush1.bf16.msra.mxu0 0
      %8191 = vmatprep.subr.bf16.mxu0 0
      %8192 = vmatpush1.bf16.msra.mxu0 0
      %8193 = vmatprep.subr.bf16.mxu0 0
      %8194 = vmatpush1.bf16.msra.mxu0 0
      %8195 = vmatprep.subr.bf16.mxu0 0
      %8196 = vmatpush1.bf16.msra.mxu0 0
      %8197 = vmatprep.subr.bf16.mxu0 0
      %8198 = vmatpush1.bf16.msra.mxu0 0
      %8199 = vmatprep.mubr.bf16.mxu0 0
      %8200 = vmatmul.mubr.bf16.gmra.mrb[0].mxu0 %v8141
      %v8201 = vpop.f32.mrb[0].mxu0
      %v8202 = vadd.f32 0.0, %v8201
      %v8203 = vpop.f32.mrb[0].mxu0
      %v8204 = vpop.f32.mrb[0].mxu0
      %v8205 = vadd.f32 0.0, %v8204
      %v8206 = vpop.f32.mrb[0].mxu0
      %8207 = vmatprep.mubr.bf16.mxu0 0
      %8208 = vmatmul.mubr.bf16.gmra.mrb[0].mxu0 %v8144
      %v8209 = vpop.f32.mrb[0].mxu0
      %v8210 = vadd.f32 0.0, %v8209
      %v8211 = vpop.f32.mrb[0].mxu0
      %v8212 = vpop.f32.mrb[0].mxu0
      %v8213 = vadd.f32 0.0, %v8212
      %v8214 = vpop.f32.mrb[0].mxu0
      %8215 = vmatprep.mubr.bf16.mxu0 0
      %8216 = vmatmul.mubr.bf16.gmra.mrb[0].mxu0 %v8147
      %v8217 = vpop.f32.mrb[0].mxu0
      %v8218 = vadd.f32 0.0, %v8217
      %v8219 = vpop.f32.mrb[0].mxu0
      %v8220 = vpop.f32.mrb[0].mxu0
      %v8221 = vadd.f32 0.0, %v8220
      %v8222 = vpop.f32.mrb[0].mxu0
      %8223 = vmatprep.mubr.bf16.mxu0 0
      %8224 = vmatmul.mubr.bf16.gmra.mrb[0].mxu0 %v8150
      %v8225 = vpop.f32.mrb[0].mxu0
      %v8226 = vadd.f32 0.0, %v8225
      %v8227 = vpop.f32.mrb[0].mxu0
      %v8228 = vpop.f32.mrb[0].mxu0
      %v8229 = vadd.f32 0.0, %v8228
      %v8230 = vpop.f32.mrb[0].mxu0
      %8231 = vmatprep.mubr.bf16.mxu0 0
      %8232 = vmatmul.mubr.bf16.gmra.mrb[0].mxu0 %v8153
      %v8233 = vpop.f32.mrb[0].mxu0
      %v8234 = vadd.f32 0.0, %v8233
      %v8235 = vpop.f32.mrb[0].mxu0
      %v8236 = vpop.f32.mrb[0].mxu0
      %v8237 = vadd.f32 0.0, %v8236
      %v8238 = vpop.f32.mrb[0].mxu0
      %8239 = vmatprep.mubr.bf16.mxu0 0
      %8240 = vmatmul.mubr.bf16.gmra.mrb[0].mxu0 %v8156
      %v8241 = vpop.f32.mrb[0].mxu0
      %v8242 = vadd.f32 0.0, %v8241
      %v8243 = vpop.f32.mrb[0].mxu0
      %v8244 = vpop.f32.mrb[0].mxu0
      %v8245 = vadd.f32 0.0, %v8244
      %v8246 = vpop.f32.mrb[0].mxu0
      %8247 = vmatprep.mubr.bf16.mxu0 0
      %8248 = vmatmul.mubr.bf16.gmra.mrb[0].mxu0 %v8159
      %v8249 = vpop.f32.mrb[0].mxu0
      %v8250 = vadd.f32 0.0, %v8249
      %v8251 = vpop.f32.mrb[0].mxu0
      %v8252 = vpop.f32.mrb[0].mxu0
      %v8253 = vadd.f32 0.0, %v8252
      %v8254 = vpop.f32.mrb[0].mxu0
      %8255 = vmatprep.mubr.bf16.mxu0 0
      %8256 = vmatmul.mubr.bf16.gmra.mrb[0].mxu0 %v8162
      %v8257 = vpop.f32.mrb[0].mxu0
      %v8258 = vadd.f32 0.0, %v8257
      %v8259 = vpop.f32.mrb[0].mxu0
      %v8260 = vpop.f32.mrb[0].mxu0
      %v8261 = vadd.f32 0.0, %v8260
      %v8262 = vpop.f32.mrb[0].mxu0
      %8263 = vdwg.mxu0
      %v8264 = vadd.f32 %v8065, %v8202
      %v8265 = vadd.f32 %v8066, %v8205
      %v8266 = vadd.f32 %v8067, %v8210
      %v8267 = vadd.f32 %v8068, %v8213
      %v8268 = vadd.f32 %v8069, %v8218
      %v8269 = vadd.f32 %v8070, %v8221
      %v8270 = vadd.f32 %v8071, %v8226
      %v8271 = vadd.f32 %v8072, %v8229
      %v8272 = vadd.f32 %v8073, %v8234
      %v8273 = vadd.f32 %v8074, %v8237
      %v8274 = vadd.f32 %v8075, %v8242
      %v8275 = vadd.f32 %v8076, %v8245
      %v8276 = vadd.f32 %v8077, %v8250
      %v8277 = vadd.f32 %v8078, %v8253
      %v8278 = vadd.f32 %v8079, %v8258
      %v8279 = vadd.f32 %v8080, %v8261
      %v8280 = vld [vmem:[%s8081] sm:$0xf]
      %v8281 = vld [vmem:[%s8081 + $0x4] sm:$0xf]
      %v8282 = vld [vmem:[%s8081 + $0x8] sm:$0x1]
      %v8283 = vld [vmem:[%s8081 + $0xc] sm:$0xf]
      %v8284 = vld [vmem:[%s8081 + $0x10] sm:$0xf]
      %v8285 = vld [vmem:[%s8081 + $0x14] sm:$0x1]
      %v8286 = vld [vmem:[%s8081 + $0x18] sm:$0xf]
      %v8287 = vld [vmem:[%s8081 + $0x1c] sm:$0xf]
      %v8288 = vld [vmem:[%s8081 + $0x20] sm:$0x1]
      %v8289 = vld [vmem:[%s8081 + $0x24] sm:$0xf]
      %v8290 = vld [vmem:[%s8081 + $0x28] sm:$0xf]
      %v8291 = vld [vmem:[%s8081 + $0x2c] sm:$0x1]
      %v8292 = vld [vmem:[%s8081 + $0x30] sm:$0xf]
      %v8293 = vld [vmem:[%s8081 + $0x34] sm:$0xf]
      %v8294 = vld [vmem:[%s8081 + $0x38] sm:$0x1]
      %v8295 = vld [vmem:[%s8081 + $0x3c] sm:$0xf]
      %v8296 = vld [vmem:[%s8081 + $0x40] sm:$0xf]
      %v8297 = vld [vmem:[%s8081 + $0x44] sm:$0x1]
      %v8298 = vld [vmem:[%s8081 + $0x48] sm:$0xf]
      %v8299 = vld [vmem:[%s8081 + $0x4c] sm:$0xf]
      %v8300 = vld [vmem:[%s8081 + $0x50] sm:$0x1]
      %v8301 = vld [vmem:[%s8081 + $0x54] sm:$0xf]
      %v8302 = vld [vmem:[%s8081 + $0x58] sm:$0xf]
      %v8303 = vld [vmem:[%s8081 + $0x5c] sm:$0x1]
      %v8305 = vshrl.u32 %v8280, 16
      %v8307 = vrot.slane %v8305, 4
      %v8308 = vshll.u32 %v8280, 16
      %v8310 = vrot.slane %v8308, 5
      %v8311 = vor.u32 %v8307, %v8310
      %v8312 = vrot.slane %v8311, 4
      %v8314 = vshll.u32 %v8281, 16
      %v8316 = vrot.slane %v8314, 5
      %v8317 = vsel %vm991, %v8312, %v8316
      %v8318 = vshrl.u32 %v8281, 16
      %v8320 = vrot.slane %v8318, 4
      %v8321 = vor.u32 %v8320, %v8316
      %v8322 = vrot.slane %v8321, 4
      %v8324 = vshll.u32 %v8282, 16
      %v8326 = vrot.slane %v8324, 5
      %v8327 = vsel %vm991, %v8322, %v8326
      %v8329 = vshrl.u32 %v8283, 16
      %v8331 = vrot.slane %v8329, 4
      %v8332 = vshll.u32 %v8283, 16
      %v8334 = vrot.slane %v8332, 5
      %v8335 = vor.u32 %v8331, %v8334
      %v8336 = vrot.slane %v8335, 4
      %v8338 = vshll.u32 %v8284, 16
      %v8340 = vrot.slane %v8338, 5
      %v8341 = vsel %vm991, %v8336, %v8340
      %v8342 = vshrl.u32 %v8284, 16
      %v8344 = vrot.slane %v8342, 4
      %v8345 = vor.u32 %v8344, %v8340
      %v8346 = vrot.slane %v8345, 4
      %v8348 = vshll.u32 %v8285, 16
      %v8350 = vrot.slane %v8348, 5
      %v8351 = vsel %vm991, %v8346, %v8350
      %v8353 = vshrl.u32 %v8286, 16
      %v8355 = vrot.slane %v8353, 4
      %v8356 = vshll.u32 %v8286, 16
      %v8358 = vrot.slane %v8356, 5
      %v8359 = vor.u32 %v8355, %v8358
      %v8360 = vrot.slane %v8359, 4
      %v8362 = vshll.u32 %v8287, 16
      %v8364 = vrot.slane %v8362, 5
      %v8365 = vsel %vm991, %v8360, %v8364
      %v8366 = vshrl.u32 %v8287, 16
      %v8368 = vrot.slane %v8366, 4
      %v8369 = vor.u32 %v8368, %v8364
      %v8370 = vrot.slane %v8369, 4
      %v8372 = vshll.u32 %v8288, 16
      %v8374 = vrot.slane %v8372, 5
      %v8375 = vsel %vm991, %v8370, %v8374
      %v8377 = vshrl.u32 %v8289, 16
      %v8379 = vrot.slane %v8377, 4
      %v8380 = vshll.u32 %v8289, 16
      %v8382 = vrot.slane %v8380, 5
      %v8383 = vor.u32 %v8379, %v8382
      %v8384 = vrot.slane %v8383, 4
      %v8386 = vshll.u32 %v8290, 16
      %v8388 = vrot.slane %v8386, 5
      %v8389 = vsel %vm991, %v8384, %v8388
      %v8390 = vshrl.u32 %v8290, 16
      %v8392 = vrot.slane %v8390, 4
      %v8393 = vor.u32 %v8392, %v8388
      %v8394 = vrot.slane %v8393, 4
      %v8396 = vshll.u32 %v8291, 16
      %v8398 = vrot.slane %v8396, 5
      %v8399 = vsel %vm991, %v8394, %v8398
      %v8401 = vshrl.u32 %v8292, 16
      %v8403 = vrot.slane %v8401, 4
      %v8404 = vshll.u32 %v8292, 16
      %v8406 = vrot.slane %v8404, 5
      %v8407 = vor.u32 %v8403, %v8406
      %v8408 = vrot.slane %v8407, 4
      %v8410 = vshll.u32 %v8293, 16
      %v8412 = vrot.slane %v8410, 5
      %v8413 = vsel %vm991, %v8408, %v8412
      %v8414 = vshrl.u32 %v8293, 16
      %v8416 = vrot.slane %v8414, 4
      %v8417 = vor.u32 %v8416, %v8412
      %v8418 = vrot.slane %v8417, 4
      %v8420 = vshll.u32 %v8294, 16
      %v8422 = vrot.slane %v8420, 5
      %v8423 = vsel %vm991, %v8418, %v8422
      %v8425 = vshrl.u32 %v8295, 16
      %v8427 = vrot.slane %v8425, 4
      %v8428 = vshll.u32 %v8295, 16
      %v8430 = vrot.slane %v8428, 5
      %v8431 = vor.u32 %v8427, %v8430
      %v8432 = vrot.slane %v8431, 4
      %v8434 = vshll.u32 %v8296, 16
      %v8436 = vrot.slane %v8434, 5
      %v8437 = vsel %vm991, %v8432, %v8436
      %v8438 = vshrl.u32 %v8296, 16
      %v8440 = vrot.slane %v8438, 4
      %v8441 = vor.u32 %v8440, %v8436
      %v8442 = vrot.slane %v8441, 4
      %v8444 = vshll.u32 %v8297, 16
      %v8446 = vrot.slane %v8444, 5
      %v8447 = vsel %vm991, %v8442, %v8446
      %v8449 = vshrl.u32 %v8298, 16
      %v8451 = vrot.slane %v8449, 4
      %v8452 = vshll.u32 %v8298, 16
      %v8454 = vrot.slane %v8452, 5
      %v8455 = vor.u32 %v8451, %v8454
      %v8456 = vrot.slane %v8455, 4
      %v8458 = vshll.u32 %v8299, 16
      %v8460 = vrot.slane %v8458, 5
      %v8461 = vsel %vm991, %v8456, %v8460
      %v8462 = vshrl.u32 %v8299, 16
      %v8464 = vrot.slane %v8462, 4
      %v8465 = vor.u32 %v8464, %v8460
      %v8466 = vrot.slane %v8465, 4
      %v8468 = vshll.u32 %v8300, 16
      %v8470 = vrot.slane %v8468, 5
      %v8471 = vsel %vm991, %v8466, %v8470
      %v8473 = vshrl.u32 %v8301, 16
      %v8475 = vrot.slane %v8473, 4
      %v8476 = vshll.u32 %v8301, 16
      %v8478 = vrot.slane %v8476, 5
      %v8479 = vor.u32 %v8475, %v8478
      %v8480 = vrot.slane %v8479, 4
      %v8482 = vshll.u32 %v8302, 16
      %v8484 = vrot.slane %v8482, 5
      %v8485 = vsel %vm991, %v8480, %v8484
      %v8486 = vshrl.u32 %v8302, 16
      %v8488 = vrot.slane %v8486, 4
      %v8489 = vor.u32 %v8488, %v8484
      %v8490 = vrot.slane %v8489, 4
      %v8492 = vshll.u32 %v8303, 16
      %v8494 = vrot.slane %v8492, 5
      %v8495 = vsel %vm991, %v8490, %v8494
      %s8496 = scalar_lea.vmem %s3, 28
      %v8497 = vld [vmem:[%s8496] sm:$0xf]
      %v8498 = vunpack.c.l.b16 %v8317
      %v8499 = vunpack.c.l.b16 %v8327
      %v8500 = vunpack.c.l.b16 %v8341
      %v8501 = vunpack.c.l.b16 %v8351
      %v8502 = vunpack.c.l.b16 %v8365
      %v8503 = vunpack.c.l.b16 %v8375
      %v8504 = vunpack.c.l.b16 %v8389
      %v8505 = vunpack.c.l.b16 %v8399
      %v8506 = vunpack.c.l.b16 %v8413
      %v8507 = vunpack.c.l.b16 %v8423
      %v8508 = vunpack.c.l.b16 %v8437
      %v8509 = vunpack.c.l.b16 %v8447
      %v8510 = vunpack.c.l.b16 %v8461
      %v8511 = vunpack.c.l.b16 %v8471
      %v8512 = vunpack.c.l.b16 %v8485
      %v8513 = vunpack.c.l.b16 %v8495
      %v8514 = vpack.c.b16 %v8499, %v8498
      %v8515 = vpack.c.b16 %v8501, %v8500
      %v8516 = vpack.c.b16 %v8503, %v8502
      %v8517 = vpack.c.b16 %v8505, %v8504
      %v8518 = vpack.c.b16 %v8507, %v8506
      %v8519 = vpack.c.b16 %v8509, %v8508
      %v8520 = vpack.c.b16 %v8511, %v8510
      %v8521 = vpack.c.b16 %v8513, %v8512
      %v8523 = vsel %vm6711, %v8514, 0
      %v8526 = vsel %vm6711, %v8515, 0
      %v8529 = vsel %vm6711, %v8516, 0
      %v8532 = vsel %vm6711, %v8517, 0
      %v8535 = vsel %vm6711, %v8518, 0
      %v8538 = vsel %vm6711, %v8519, 0
      %v8541 = vsel %vm6711, %v8520, 0
      %v8544 = vsel %vm6711, %v8521, 0
      %v8547 = vsel %vm6736, %v8497, 0
      %8549 = vmatprep.subr.bf16.mxu0 0
      %8550 = vmatpush1.bf16.msra.mxu0 %v8547
      %8551 = vmatprep.subr.bf16.mxu0 0
      %8552 = vmatpush1.bf16.msra.mxu0 0
      %8553 = vmatprep.subr.bf16.mxu0 0
      %8554 = vmatpush1.bf16.msra.mxu0 0
      %8555 = vmatprep.subr.bf16.mxu0 0
      %8556 = vmatpush1.bf16.msra.mxu0 0
      %8557 = vmatprep.subr.bf16.mxu0 0
      %8558 = vmatpush1.bf16.msra.mxu0 0
      %8559 = vmatprep.subr.bf16.mxu0 0
      %8560 = vmatpush1.bf16.msra.mxu0 0
      %8561 = vmatprep.subr.bf16.mxu0 0
      %8562 = vmatpush1.bf16.msra.mxu0 0
      %8563 = vmatprep.subr.bf16.mxu0 0
      %8564 = vmatpush1.bf16.msra.mxu0 0
      %8565 = vmatprep.subr.bf16.mxu0 0
      %8566 = vmatpush1.bf16.msra.mxu0 0
      %8567 = vmatprep.subr.bf16.mxu0 0
      %8568 = vmatpush1.bf16.msra.mxu0 0
      %8569 = vmatprep.subr.bf16.mxu0 0
      %8570 = vmatpush1.bf16.msra.mxu0 0
      %8571 = vmatprep.subr.bf16.mxu0 0
      %8572 = vmatpush1.bf16.msra.mxu0 0
      %8573 = vmatprep.subr.bf16.mxu0 0
      %8574 = vmatpush1.bf16.msra.mxu0 0
      %8575 = vmatprep.subr.bf16.mxu0 0
      %8576 = vmatpush1.bf16.msra.mxu0 0
      %8577 = vmatprep.subr.bf16.mxu0 0
      %8578 = vmatpush1.bf16.msra.mxu0 0
      %8579 = vmatprep.subr.bf16.mxu0 0
      %8580 = vmatpush1.bf16.msra.mxu0 0
      %8581 = vmatprep.mubr.bf16.mxu0 0
      %8582 = vmatmul.mubr.bf16.gmra.mrb[0].mxu0 %v8523
      %v8583 = vpop.f32.mrb[0].mxu0
      %v8584 = vadd.f32 0.0, %v8583
      %v8585 = vpop.f32.mrb[0].mxu0
      %v8586 = vpop.f32.mrb[0].mxu0
      %v8587 = vadd.f32 0.0, %v8586
      %v8588 = vpop.f32.mrb[0].mxu0
      %8589 = vmatprep.mubr.bf16.mxu0 0
      %8590 = vmatmul.mubr.bf16.gmra.mrb[0].mxu0 %v8526
      %v8591 = vpop.f32.mrb[0].mxu0
      %v8592 = vadd.f32 0.0, %v8591
      %v8593 = vpop.f32.mrb[0].mxu0
      %v8594 = vpop.f32.mrb[0].mxu0
      %v8595 = vadd.f32 0.0, %v8594
      %v8596 = vpop.f32.mrb[0].mxu0
      %8597 = vmatprep.mubr.bf16.mxu0 0
      %8598 = vmatmul.mubr.bf16.gmra.mrb[0].mxu0 %v8529
      %v8599 = vpop.f32.mrb[0].mxu0
      %v8600 = vadd.f32 0.0, %v8599
      %v8601 = vpop.f32.mrb[0].mxu0
      %v8602 = vpop.f32.mrb[0].mxu0
      %v8603 = vadd.f32 0.0, %v8602
      %v8604 = vpop.f32.mrb[0].mxu0
      %8605 = vmatprep.mubr.bf16.mxu0 0
      %8606 = vmatmul.mubr.bf16.gmra.mrb[0].mxu0 %v8532
      %v8607 = vpop.f32.mrb[0].mxu0
      %v8608 = vadd.f32 0.0, %v8607
      %v8609 = vpop.f32.mrb[0].mxu0
      %v8610 = vpop.f32.mrb[0].mxu0
      %v8611 = vadd.f32 0.0, %v8610
      %v8612 = vpop.f32.mrb[0].mxu0
      %8613 = vmatprep.mubr.bf16.mxu0 0
      %8614 = vmatmul.mubr.bf16.gmra.mrb[0].mxu0 %v8535
      %v8615 = vpop.f32.mrb[0].mxu0
      %v8616 = vadd.f32 0.0, %v8615
      %v8617 = vpop.f32.mrb[0].mxu0
      %v8618 = vpop.f32.mrb[0].mxu0
      %v8619 = vadd.f32 0.0, %v8618
      %v8620 = vpop.f32.mrb[0].mxu0
      %8621 = vmatprep.mubr.bf16.mxu0 0
      %8622 = vmatmul.mubr.bf16.gmra.mrb[0].mxu0 %v8538
      %v8623 = vpop.f32.mrb[0].mxu0
      %v8624 = vadd.f32 0.0, %v8623
      %v8625 = vpop.f32.mrb[0].mxu0
      %v8626 = vpop.f32.mrb[0].mxu0
      %v8627 = vadd.f32 0.0, %v8626
      %v8628 = vpop.f32.mrb[0].mxu0
      %8629 = vmatprep.mubr.bf16.mxu0 0
      %8630 = vmatmul.mubr.bf16.gmra.mrb[0].mxu0 %v8541
      %v8631 = vpop.f32.mrb[0].mxu0
      %v8632 = vadd.f32 0.0, %v8631
      %v8633 = vpop.f32.mrb[0].mxu0
      %v8634 = vpop.f32.mrb[0].mxu0
      %v8635 = vadd.f32 0.0, %v8634
      %v8636 = vpop.f32.mrb[0].mxu0
      %8637 = vmatprep.mubr.bf16.mxu0 0
      %8638 = vmatmul.mubr.bf16.gmra.mrb[0].mxu0 %v8544
      %v8639 = vpop.f32.mrb[0].mxu0
      %v8640 = vadd.f32 0.0, %v8639
      %v8641 = vpop.f32.mrb[0].mxu0
      %v8642 = vpop.f32.mrb[0].mxu0
      %v8643 = vadd.f32 0.0, %v8642
      %v8644 = vpop.f32.mrb[0].mxu0
      %8645 = vdwg.mxu0
      %v8646 = vadd.f32 %v8264, %v8584
      %v8647 = vadd.f32 %v8265, %v8587
      %v8648 = vadd.f32 %v8266, %v8592
      %v8649 = vadd.f32 %v8267, %v8595
      %v8650 = vadd.f32 %v8268, %v8600
      %v8651 = vadd.f32 %v8269, %v8603
      %v8652 = vadd.f32 %v8270, %v8608
      %v8653 = vadd.f32 %v8271, %v8611
      %v8654 = vadd.f32 %v8272, %v8616
      %v8655 = vadd.f32 %v8273, %v8619
      %v8656 = vadd.f32 %v8274, %v8624
      %v8657 = vadd.f32 %v8275, %v8627
      %v8658 = vadd.f32 %v8276, %v8632
      %v8659 = vadd.f32 %v8277, %v8635
      %v8660 = vadd.f32 %v8278, %v8640
      %v8661 = vadd.f32 %v8279, %v8643
      %v8662 = vld [vmem:[%s8081] sm:$0xe]
      %v8663 = vld [vmem:[%s8081 + $0xc] sm:$0xe]
      %v8664 = vld [vmem:[%s8081 + $0x18] sm:$0xe]
      %v8665 = vld [vmem:[%s8081 + $0x24] sm:$0xe]
      %v8666 = vld [vmem:[%s8081 + $0x30] sm:$0xe]
      %v8667 = vld [vmem:[%s8081 + $0x3c] sm:$0xe]
      %v8668 = vld [vmem:[%s8081 + $0x48] sm:$0xe]
      %v8669 = vld [vmem:[%s8081 + $0x54] sm:$0xe]
      %v8694 = vrot.slane %v8662, 5
      %v8695 = vrot.slane %v8694, 4
      %v8696 = vrot.slane %v8281, 5
      %v8697 = vsel %vm1526, %v8695, %v8696
      %v8698 = vrot.slane %v8696, 4
      %v8699 = vrot.slane %v8282, 5
      %v8700 = vsel %vm1526, %v8698, %v8699
      %v8701 = vrot.slane %v8663, 5
      %v8702 = vrot.slane %v8701, 4
      %v8703 = vrot.slane %v8284, 5
      %v8704 = vsel %vm1526, %v8702, %v8703
      %v8705 = vrot.slane %v8703, 4
      %v8706 = vrot.slane %v8285, 5
      %v8707 = vsel %vm1526, %v8705, %v8706
      %v8708 = vrot.slane %v8664, 5
      %v8709 = vrot.slane %v8708, 4
      %v8710 = vrot.slane %v8287, 5
      %v8711 = vsel %vm1526, %v8709, %v8710
      %v8712 = vrot.slane %v8710, 4
      %v8713 = vrot.slane %v8288, 5
      %v8714 = vsel %vm1526, %v8712, %v8713
      %v8715 = vrot.slane %v8665, 5
      %v8716 = vrot.slane %v8715, 4
      %v8717 = vrot.slane %v8290, 5
      %v8718 = vsel %vm1526, %v8716, %v8717
      %v8719 = vrot.slane %v8717, 4
      %v8720 = vrot.slane %v8291, 5
      %v8721 = vsel %vm1526, %v8719, %v8720
      %v8722 = vrot.slane %v8666, 5
      %v8723 = vrot.slane %v8722, 4
      %v8724 = vrot.slane %v8293, 5
      %v8725 = vsel %vm1526, %v8723, %v8724
      %v8726 = vrot.slane %v8724, 4
      %v8727 = vrot.slane %v8294, 5
      %v8728 = vsel %vm1526, %v8726, %v8727
      %v8729 = vrot.slane %v8667, 5
      %v8730 = vrot.slane %v8729, 4
      %v8731 = vrot.slane %v8296, 5
      %v8732 = vsel %vm1526, %v8730, %v8731
      %v8733 = vrot.slane %v8731, 4
      %v8734 = vrot.slane %v8297, 5
      %v8735 = vsel %vm1526, %v8733, %v8734
      %v8736 = vrot.slane %v8668, 5
      %v8737 = vrot.slane %v8736, 4
      %v8738 = vrot.slane %v8299, 5
      %v8739 = vsel %vm1526, %v8737, %v8738
      %v8740 = vrot.slane %v8738, 4
      %v8741 = vrot.slane %v8300, 5
      %v8742 = vsel %vm1526, %v8740, %v8741
      %v8743 = vrot.slane %v8669, 5
      %v8744 = vrot.slane %v8743, 4
      %v8745 = vrot.slane %v8302, 5
      %v8746 = vsel %vm1526, %v8744, %v8745
      %v8747 = vrot.slane %v8745, 4
      %v8748 = vrot.slane %v8303, 5
      %v8749 = vsel %vm1526, %v8747, %v8748
      %s8750 = scalar_lea.vmem %s3, 32
      %v8751 = vld [vmem:[%s8750] sm:$0xf]
      %v8752 = vunpack.c.l.b16 %v8697
      %v8753 = vunpack.c.l.b16 %v8700
      %v8754 = vunpack.c.l.b16 %v8704
      %v8755 = vunpack.c.l.b16 %v8707
      %v8756 = vunpack.c.l.b16 %v8711
      %v8757 = vunpack.c.l.b16 %v8714
      %v8758 = vunpack.c.l.b16 %v8718
      %v8759 = vunpack.c.l.b16 %v8721
      %v8760 = vunpack.c.l.b16 %v8725
      %v8761 = vunpack.c.l.b16 %v8728
      %v8762 = vunpack.c.l.b16 %v8732
      %v8763 = vunpack.c.l.b16 %v8735
      %v8764 = vunpack.c.l.b16 %v8739
      %v8765 = vunpack.c.l.b16 %v8742
      %v8766 = vunpack.c.l.b16 %v8746
      %v8767 = vunpack.c.l.b16 %v8749
      %v8768 = vpack.c.b16 %v8753, %v8752
      %v8769 = vpack.c.b16 %v8755, %v8754
      %v8770 = vpack.c.b16 %v8757, %v8756
      %v8771 = vpack.c.b16 %v8759, %v8758
      %v8772 = vpack.c.b16 %v8761, %v8760
      %v8773 = vpack.c.b16 %v8763, %v8762
      %v8774 = vpack.c.b16 %v8765, %v8764
      %v8775 = vpack.c.b16 %v8767, %v8766
      %v8777 = vsel %vm6711, %v8768, 0
      %v8780 = vsel %vm6711, %v8769, 0
      %v8783 = vsel %vm6711, %v8770, 0
      %v8786 = vsel %vm6711, %v8771, 0
      %v8789 = vsel %vm6711, %v8772, 0
      %v8792 = vsel %vm6711, %v8773, 0
      %v8795 = vsel %vm6711, %v8774, 0
      %v8798 = vsel %vm6711, %v8775, 0
      %v8801 = vsel %vm6736, %v8751, 0
      %8803 = vmatprep.subr.bf16.mxu0 0
      %8804 = vmatpush1.bf16.msra.mxu0 %v8801
      %8805 = vmatprep.subr.bf16.mxu0 0
      %8806 = vmatpush1.bf16.msra.mxu0 0
      %8807 = vmatprep.subr.bf16.mxu0 0
      %8808 = vmatpush1.bf16.msra.mxu0 0
      %8809 = vmatprep.subr.bf16.mxu0 0
      %8810 = vmatpush1.bf16.msra.mxu0 0
      %8811 = vmatprep.subr.bf16.mxu0 0
      %8812 = vmatpush1.bf16.msra.mxu0 0
      %8813 = vmatprep.subr.bf16.mxu0 0
      %8814 = vmatpush1.bf16.msra.mxu0 0
      %8815 = vmatprep.subr.bf16.mxu0 0
      %8816 = vmatpush1.bf16.msra.mxu0 0
      %8817 = vmatprep.subr.bf16.mxu0 0
      %8818 = vmatpush1.bf16.msra.mxu0 0
      %8819 = vmatprep.subr.bf16.mxu0 0
      %8820 = vmatpush1.bf16.msra.mxu0 0
      %8821 = vmatprep.subr.bf16.mxu0 0
      %8822 = vmatpush1.bf16.msra.mxu0 0
      %8823 = vmatprep.subr.bf16.mxu0 0
      %8824 = vmatpush1.bf16.msra.mxu0 0
      %8825 = vmatprep.subr.bf16.mxu0 0
      %8826 = vmatpush1.bf16.msra.mxu0 0
      %8827 = vmatprep.subr.bf16.mxu0 0
      %8828 = vmatpush1.bf16.msra.mxu0 0
      %8829 = vmatprep.subr.bf16.mxu0 0
      %8830 = vmatpush1.bf16.msra.mxu0 0
      %8831 = vmatprep.subr.bf16.mxu0 0
      %8832 = vmatpush1.bf16.msra.mxu0 0
      %8833 = vmatprep.subr.bf16.mxu0 0
      %8834 = vmatpush1.bf16.msra.mxu0 0
      %8835 = vmatprep.mubr.bf16.mxu0 0
      %8836 = vmatmul.mubr.bf16.gmra.mrb[0].mxu0 %v8777
      %v8837 = vpop.f32.mrb[0].mxu0
      %v8838 = vadd.f32 0.0, %v8837
      %v8839 = vpop.f32.mrb[0].mxu0
      %v8840 = vpop.f32.mrb[0].mxu0
      %v8841 = vadd.f32 0.0, %v8840
      %v8842 = vpop.f32.mrb[0].mxu0
      %8843 = vmatprep.mubr.bf16.mxu0 0
      %8844 = vmatmul.mubr.bf16.gmra.mrb[0].mxu0 %v8780
      %v8845 = vpop.f32.mrb[0].mxu0
      %v8846 = vadd.f32 0.0, %v8845
      %v8847 = vpop.f32.mrb[0].mxu0
      %v8848 = vpop.f32.mrb[0].mxu0
      %v8849 = vadd.f32 0.0, %v8848
      %v8850 = vpop.f32.mrb[0].mxu0
      %8851 = vmatprep.mubr.bf16.mxu0 0
      %8852 = vmatmul.mubr.bf16.gmra.mrb[0].mxu0 %v8783
      %v8853 = vpop.f32.mrb[0].mxu0
      %v8854 = vadd.f32 0.0, %v8853
      %v8855 = vpop.f32.mrb[0].mxu0
      %v8856 = vpop.f32.mrb[0].mxu0
      %v8857 = vadd.f32 0.0, %v8856
      %v8858 = vpop.f32.mrb[0].mxu0
      %8859 = vmatprep.mubr.bf16.mxu0 0
      %8860 = vmatmul.mubr.bf16.gmra.mrb[0].mxu0 %v8786
      %v8861 = vpop.f32.mrb[0].mxu0
      %v8862 = vadd.f32 0.0, %v8861
      %v8863 = vpop.f32.mrb[0].mxu0
      %v8864 = vpop.f32.mrb[0].mxu0
      %v8865 = vadd.f32 0.0, %v8864
      %v8866 = vpop.f32.mrb[0].mxu0
      %8867 = vmatprep.mubr.bf16.mxu0 0
      %8868 = vmatmul.mubr.bf16.gmra.mrb[0].mxu0 %v8789
      %v8869 = vpop.f32.mrb[0].mxu0
      %v8870 = vadd.f32 0.0, %v8869
      %v8871 = vpop.f32.mrb[0].mxu0
      %v8872 = vpop.f32.mrb[0].mxu0
      %v8873 = vadd.f32 0.0, %v8872
      %v8874 = vpop.f32.mrb[0].mxu0
      %8875 = vmatprep.mubr.bf16.mxu0 0
      %8876 = vmatmul.mubr.bf16.gmra.mrb[0].mxu0 %v8792
      %v8877 = vpop.f32.mrb[0].mxu0
      %v8878 = vadd.f32 0.0, %v8877
      %v8879 = vpop.f32.mrb[0].mxu0
      %v8880 = vpop.f32.mrb[0].mxu0
      %v8881 = vadd.f32 0.0, %v8880
      %v8882 = vpop.f32.mrb[0].mxu0
      %8883 = vmatprep.mubr.bf16.mxu0 0
      %8884 = vmatmul.mubr.bf16.gmra.mrb[0].mxu0 %v8795
      %v8885 = vpop.f32.mrb[0].mxu0
      %v8886 = vadd.f32 0.0, %v8885
      %v8887 = vpop.f32.mrb[0].mxu0
      %v8888 = vpop.f32.mrb[0].mxu0
      %v8889 = vadd.f32 0.0, %v8888
      %v8890 = vpop.f32.mrb[0].mxu0
      %8891 = vmatprep.mubr.bf16.mxu0 0
      %8892 = vmatmul.mubr.bf16.gmra.mrb[0].mxu0 %v8798
      %v8893 = vpop.f32.mrb[0].mxu0
      %v8894 = vadd.f32 0.0, %v8893
      %v8895 = vpop.f32.mrb[0].mxu0
      %v8896 = vpop.f32.mrb[0].mxu0
      %v8897 = vadd.f32 0.0, %v8896
      %v8898 = vpop.f32.mrb[0].mxu0
      %8899 = vdwg.mxu0
      %v8900 = vadd.f32 %v8646, %v8838
      %v8901 = vadd.f32 %v8647, %v8841
      %v8902 = vadd.f32 %v8648, %v8846
      %v8903 = vadd.f32 %v8649, %v8849
      %v8904 = vadd.f32 %v8650, %v8854
      %v8905 = vadd.f32 %v8651, %v8857
      %v8906 = vadd.f32 %v8652, %v8862
      %v8907 = vadd.f32 %v8653, %v8865
      %v8908 = vadd.f32 %v8654, %v8870
      %v8909 = vadd.f32 %v8655, %v8873
      %v8910 = vadd.f32 %v8656, %v8878
      %v8911 = vadd.f32 %v8657, %v8881
      %v8912 = vadd.f32 %v8658, %v8886
      %v8913 = vadd.f32 %v8659, %v8889
      %v8914 = vadd.f32 %v8660, %v8894
      %v8915 = vadd.f32 %v8661, %v8897
      %v8916 = vld [vmem:[%s246] sm:$0xf]
      %v8917 = vld [vmem:[%s246 + $0x4] sm:$0xf]
      %v8918 = vld [vmem:[%s246 + $0x8] sm:$0xf]
      %v8919 = vld [vmem:[%s246 + $0xc] sm:$0xf]
      %v8920 = vld [vmem:[%s246 + $0x10] sm:$0xf]
      %v8921 = vld [vmem:[%s246 + $0x14] sm:$0xf]
      %v8922 = vld [vmem:[%s246 + $0x18] sm:$0xf]
      %v8923 = vld [vmem:[%s246 + $0x1c] sm:$0xf]
      %v8924 = vld [vmem:[%s246 + $0x20] sm:$0xf]
      %v8925 = vld [vmem:[%s246 + $0x24] sm:$0xf]
      %v8926 = vld [vmem:[%s246 + $0x28] sm:$0xf]
      %v8927 = vld [vmem:[%s246 + $0x2c] sm:$0xf]
      %v8928 = vld [vmem:[%s246 + $0x30] sm:$0xf]
      %v8929 = vld [vmem:[%s246 + $0x34] sm:$0xf]
      %v8930 = vld [vmem:[%s246 + $0x38] sm:$0xf]
      %v8931 = vld [vmem:[%s246 + $0x3c] sm:$0xf]
      %v8932 = vld [vmem:[%s5] sm:$0x3]
      %v8949 = vunpack.c.l.b16 %v8916
      %v8950 = vunpack.c.l.b16 %v8917
      %v8951 = vunpack.c.l.b16 %v8918
      %v8952 = vunpack.c.l.b16 %v8919
      %v8953 = vunpack.c.l.b16 %v8920
      %v8954 = vunpack.c.l.b16 %v8921
      %v8955 = vunpack.c.l.b16 %v8922
      %v8956 = vunpack.c.l.b16 %v8923
      %v8957 = vunpack.c.l.b16 %v8924
      %v8958 = vunpack.c.l.b16 %v8925
      %v8959 = vunpack.c.l.b16 %v8926
      %v8960 = vunpack.c.l.b16 %v8927
      %v8961 = vunpack.c.l.b16 %v8928
      %v8962 = vunpack.c.l.b16 %v8929
      %v8963 = vunpack.c.l.b16 %v8930
      %v8964 = vunpack.c.l.b16 %v8931
      %v8965 = vpack.c.b16 %v8950, %v8949
      %v8966 = vpack.c.b16 %v8952, %v8951
      %v8967 = vpack.c.b16 %v8954, %v8953
      %v8968 = vpack.c.b16 %v8956, %v8955
      %v8969 = vpack.c.b16 %v8958, %v8957
      %v8970 = vpack.c.b16 %v8960, %v8959
      %v8971 = vpack.c.b16 %v8962, %v8961
      %v8972 = vpack.c.b16 %v8964, %v8963
      %v8974 = vsel %vm1210, %v8965, 0
      %v8977 = vsel %vm1210, %v8966, 0
      %v8980 = vsel %vm1210, %v8967, 0
      %v8983 = vsel %vm1210, %v8968, 0
      %v8986 = vsel %vm1210, %v8969, 0
      %v8989 = vsel %vm1210, %v8970, 0
      %v8992 = vsel %vm1210, %v8971, 0
      %v8995 = vsel %vm1210, %v8972, 0
      %v8998 = vsel %vm1235, %v8932, 0
      %9000 = vmatprep.subr.bf16.mxu0 0
      %9001 = vmatpush1.bf16.msra.mxu0 %v8998
      %9002 = vmatprep.subr.bf16.mxu0 0
      %9003 = vmatpush1.bf16.msra.mxu0 0
      %9004 = vmatprep.subr.bf16.mxu0 0
      %9005 = vmatpush1.bf16.msra.mxu0 0
      %9006 = vmatprep.subr.bf16.mxu0 0
      %9007 = vmatpush1.bf16.msra.mxu0 0
      %9008 = vmatprep.subr.bf16.mxu0 0
      %9009 = vmatpush1.bf16.msra.mxu0 0
      %9010 = vmatprep.subr.bf16.mxu0 0
      %9011 = vmatpush1.bf16.msra.mxu0 0
      %9012 = vmatprep.subr.bf16.mxu0 0
      %9013 = vmatpush1.bf16.msra.mxu0 0
      %9014 = vmatprep.subr.bf16.mxu0 0
      %9015 = vmatpush1.bf16.msra.mxu0 0
      %9016 = vmatprep.subr.bf16.mxu0 0
      %9017 = vmatpush1.bf16.msra.mxu0 0
      %9018 = vmatprep.subr.bf16.mxu0 0
      %9019 = vmatpush1.bf16.msra.mxu0 0
      %9020 = vmatprep.subr.bf16.mxu0 0
      %9021 = vmatpush1.bf16.msra.mxu0 0
      %9022 = vmatprep.subr.bf16.mxu0 0
      %9023 = vmatpush1.bf16.msra.mxu0 0
      %9024 = vmatprep.subr.bf16.mxu0 0
      %9025 = vmatpush1.bf16.msra.mxu0 0
      %9026 = vmatprep.subr.bf16.mxu0 0
      %9027 = vmatpush1.bf16.msra.mxu0 0
      %9028 = vmatprep.subr.bf16.mxu0 0
      %9029 = vmatpush1.bf16.msra.mxu0 0
      %9030 = vmatprep.subr.bf16.mxu0 0
      %9031 = vmatpush1.bf16.msra.mxu0 0
      %9032 = vmatprep.mubr.bf16.mxu0 0
      %9033 = vmatmul.mubr.bf16.gmra.mrb[0].mxu0 %v8974
      %v9034 = vpop.f32.mrb[0].mxu0
      %v9035 = vadd.f32 0.0, %v9034
      %v9036 = vpop.f32.mrb[0].mxu0
      %v9037 = vpop.f32.mrb[0].mxu0
      %v9038 = vadd.f32 0.0, %v9037
      %v9039 = vpop.f32.mrb[0].mxu0
      %9040 = vmatprep.mubr.bf16.mxu0 0
      %9041 = vmatmul.mubr.bf16.gmra.mrb[0].mxu0 %v8977
      %v9042 = vpop.f32.mrb[0].mxu0
      %v9043 = vadd.f32 0.0, %v9042
      %v9044 = vpop.f32.mrb[0].mxu0
      %v9045 = vpop.f32.mrb[0].mxu0
      %v9046 = vadd.f32 0.0, %v9045
      %v9047 = vpop.f32.mrb[0].mxu0
      %9048 = vmatprep.mubr.bf16.mxu0 0
      %9049 = vmatmul.mubr.bf16.gmra.mrb[0].mxu0 %v8980
      %v9050 = vpop.f32.mrb[0].mxu0
      %v9051 = vadd.f32 0.0, %v9050
      %v9052 = vpop.f32.mrb[0].mxu0
      %v9053 = vpop.f32.mrb[0].mxu0
      %v9054 = vadd.f32 0.0, %v9053
      %v9055 = vpop.f32.mrb[0].mxu0
      %9056 = vmatprep.mubr.bf16.mxu0 0
      %9057 = vmatmul.mubr.bf16.gmra.mrb[0].mxu0 %v8983
      %v9058 = vpop.f32.mrb[0].mxu0
      %v9059 = vadd.f32 0.0, %v9058
      %v9060 = vpop.f32.mrb[0].mxu0
      %v9061 = vpop.f32.mrb[0].mxu0
      %v9062 = vadd.f32 0.0, %v9061
      %v9063 = vpop.f32.mrb[0].mxu0
      %9064 = vmatprep.mubr.bf16.mxu0 0
      %9065 = vmatmul.mubr.bf16.gmra.mrb[0].mxu0 %v8986
      %v9066 = vpop.f32.mrb[0].mxu0
      %v9067 = vadd.f32 0.0, %v9066
      %v9068 = vpop.f32.mrb[0].mxu0
      %v9069 = vpop.f32.mrb[0].mxu0
      %v9070 = vadd.f32 0.0, %v9069
      %v9071 = vpop.f32.mrb[0].mxu0
      %9072 = vmatprep.mubr.bf16.mxu0 0
      %9073 = vmatmul.mubr.bf16.gmra.mrb[0].mxu0 %v8989
      %v9074 = vpop.f32.mrb[0].mxu0
      %v9075 = vadd.f32 0.0, %v9074
      %v9076 = vpop.f32.mrb[0].mxu0
      %v9077 = vpop.f32.mrb[0].mxu0
      %v9078 = vadd.f32 0.0, %v9077
      %v9079 = vpop.f32.mrb[0].mxu0
      %9080 = vmatprep.mubr.bf16.mxu0 0
      %9081 = vmatmul.mubr.bf16.gmra.mrb[0].mxu0 %v8992
      %v9082 = vpop.f32.mrb[0].mxu0
      %v9083 = vadd.f32 0.0, %v9082
      %v9084 = vpop.f32.mrb[0].mxu0
      %v9085 = vpop.f32.mrb[0].mxu0
      %v9086 = vadd.f32 0.0, %v9085
      %v9087 = vpop.f32.mrb[0].mxu0
      %9088 = vmatprep.mubr.bf16.mxu0 0
      %9089 = vmatmul.mubr.bf16.gmra.mrb[0].mxu0 %v8995
      %v9090 = vpop.f32.mrb[0].mxu0
      %v9091 = vadd.f32 0.0, %v9090
      %v9092 = vpop.f32.mrb[0].mxu0
      %v9093 = vpop.f32.mrb[0].mxu0
      %v9094 = vadd.f32 0.0, %v9093
      %v9095 = vpop.f32.mrb[0].mxu0
      %9096 = vdwg.mxu0
      %v9097 = vadd.f32 %v8900, %v9035
      %v9098 = vadd.f32 %v8901, %v9038
      %v9099 = vadd.f32 %v8902, %v9043
      %v9100 = vadd.f32 %v8903, %v9046
      %v9101 = vadd.f32 %v8904, %v9051
      %v9102 = vadd.f32 %v8905, %v9054
      %v9103 = vadd.f32 %v8906, %v9059
      %v9104 = vadd.f32 %v8907, %v9062
      %v9105 = vadd.f32 %v8908, %v9067
      %v9106 = vadd.f32 %v8909, %v9070
      %v9107 = vadd.f32 %v8910, %v9075
      %v9108 = vadd.f32 %v8911, %v9078
      %v9109 = vadd.f32 %v8912, %v9083
      %v9110 = vadd.f32 %v8913, %v9086
      %v9111 = vadd.f32 %v8914, %v9091
      %v9112 = vadd.f32 %v8915, %v9094
      %v9113 = vld [vmem:[%s4] sm:$0x1]
      %v9115 = vlaneseq
      %v9116 = vshrl.u32 %v9115, 7
      %v9117 = vsub.s32 0, %v9116
      %v9118 = vrot.slane %v9113, %v9117
      %v9120 = vadd.f32 %v9097, %v9118
      %v9121 = vadd.f32 %v9098, %v9118
      %v9122 = vadd.f32 %v9099, %v9118
      %v9123 = vadd.f32 %v9100, %v9118
      %v9124 = vadd.f32 %v9101, %v9118
      %v9125 = vadd.f32 %v9102, %v9118
      %v9126 = vadd.f32 %v9103, %v9118
      %v9127 = vadd.f32 %v9104, %v9118
      %v9128 = vadd.f32 %v9105, %v9118
      %v9129 = vadd.f32 %v9106, %v9118
      %v9130 = vadd.f32 %v9107, %v9118
      %v9131 = vadd.f32 %v9108, %v9118
      %v9132 = vadd.f32 %v9109, %v9118
      %v9133 = vadd.f32 %v9110, %v9118
      %v9134 = vadd.f32 %v9111, %v9118
      %v9135 = vadd.f32 %v9112, %v9118
      %v9136 = vmax.f32 %v9120, 0.0
      %v9137 = vmax.f32 %v9121, 0.0
      %v9138 = vmax.f32 %v9122, 0.0
      %v9139 = vmax.f32 %v9123, 0.0
      %v9140 = vmax.f32 %v9124, 0.0
      %v9141 = vmax.f32 %v9125, 0.0
      %v9142 = vmax.f32 %v9126, 0.0
      %v9143 = vmax.f32 %v9127, 0.0
      %v9144 = vmax.f32 %v9128, 0.0
      %v9145 = vmax.f32 %v9129, 0.0
      %v9146 = vmax.f32 %v9130, 0.0
      %v9147 = vmax.f32 %v9131, 0.0
      %v9148 = vmax.f32 %v9132, 0.0
      %v9149 = vmax.f32 %v9133, 0.0
      %v9150 = vmax.f32 %v9134, 0.0
      %v9151 = vmax.f32 %v9135, 0.0
      %v9152 = vpack.c.bf16 %v9137, %v9136
      %v9153 = vpack.c.bf16 %v9139, %v9138
      %v9154 = vpack.c.bf16 %v9141, %v9140
      %v9155 = vpack.c.bf16 %v9143, %v9142
      %v9156 = vpack.c.bf16 %v9145, %v9144
      %v9157 = vpack.c.bf16 %v9147, %v9146
      %v9158 = vpack.c.bf16 %v9149, %v9148
      %v9159 = vpack.c.bf16 %v9151, %v9150
      %v9168 = vunpack.c.l.b16 %v9152
      %v9169 = vunpack.c.h.b16 %v9152
      %v9170 = vunpack.c.l.b16 %v9153
      %v9171 = vunpack.c.h.b16 %v9153
      %v9172 = vunpack.c.l.b16 %v9154
      %v9173 = vunpack.c.h.b16 %v9154
      %v9174 = vunpack.c.l.b16 %v9155
      %v9175 = vunpack.c.h.b16 %v9155
      %v9176 = vunpack.c.l.b16 %v9156
      %v9177 = vunpack.c.h.b16 %v9156
      %v9178 = vunpack.c.l.b16 %v9157
      %v9179 = vunpack.c.h.b16 %v9157
      %v9180 = vunpack.c.l.b16 %v9158
      %v9181 = vunpack.c.h.b16 %v9158
      %v9182 = vunpack.c.l.b16 %v9159
      %v9183 = vunpack.c.h.b16 %v9159
      %v9184 = vpack.c.b16 %v9168, %v9168
      %v9185 = vpack.c.b16 %v9169, %v9169
      %v9186 = vpack.c.b16 %v9170, %v9170
      %v9187 = vpack.c.b16 %v9171, %v9171
      %v9188 = vpack.c.b16 %v9172, %v9172
      %v9189 = vpack.c.b16 %v9173, %v9173
      %v9190 = vpack.c.b16 %v9174, %v9174
      %v9191 = vpack.c.b16 %v9175, %v9175
      %v9192 = vpack.c.b16 %v9176, %v9176
      %v9193 = vpack.c.b16 %v9177, %v9177
      %v9194 = vpack.c.b16 %v9178, %v9178
      %v9195 = vpack.c.b16 %v9179, %v9179
      %v9196 = vpack.c.b16 %v9180, %v9180
      %v9197 = vpack.c.b16 %v9181, %v9181
      %v9198 = vpack.c.b16 %v9182, %v9182
      %v9199 = vpack.c.b16 %v9183, %v9183
      %9216 = vst.msk [vmem:[%s251] sm:$0xf] %vm844, %v9184
      %9217 = vst.msk [vmem:[%s251 + $0x4] sm:$0xf] %vm844, %v9185
      %9218 = vst.msk [vmem:[%s251 + $0x8] sm:$0xf] %vm844, %v9186
      %9219 = vst.msk [vmem:[%s251 + $0xc] sm:$0xf] %vm844, %v9187
      %9220 = vst.msk [vmem:[%s251 + $0x10] sm:$0xf] %vm844, %v9188
      %9221 = vst.msk [vmem:[%s251 + $0x14] sm:$0xf] %vm844, %v9189
      %9222 = vst.msk [vmem:[%s251 + $0x18] sm:$0xf] %vm844, %v9190
      %9223 = vst.msk [vmem:[%s251 + $0x1c] sm:$0xf] %vm844, %v9191
      %9224 = vst.msk [vmem:[%s251 + $0x20] sm:$0xf] %vm844, %v9192
      %9225 = vst.msk [vmem:[%s251 + $0x24] sm:$0xf] %vm844, %v9193
      %9226 = vst.msk [vmem:[%s251 + $0x28] sm:$0xf] %vm844, %v9194
      %9227 = vst.msk [vmem:[%s251 + $0x2c] sm:$0xf] %vm844, %v9195
      %9228 = vst.msk [vmem:[%s251 + $0x30] sm:$0xf] %vm844, %v9196
      %9229 = vst.msk [vmem:[%s251 + $0x34] sm:$0xf] %vm844, %v9197
      %9230 = vst.msk [vmem:[%s251 + $0x38] sm:$0xf] %vm844, %v9198
      %9231 = vst.msk [vmem:[%s251 + $0x3c] sm:$0xf] %vm844, %v9199
      %s9232 = scalar_lea.vmem [#allocation3], 96
      %v9233 = vld [vmem:[%s9232] sm:$0xf]
      %v9234 = vld [vmem:[%s9232 + $0x4] sm:$0xf]
      %v9235 = vld [vmem:[%s9232 + $0xc] sm:$0xf]
      %v9236 = vld [vmem:[%s9232 + $0x10] sm:$0xf]
      %v9237 = vld [vmem:[%s9232 + $0x18] sm:$0xf]
      %v9238 = vld [vmem:[%s9232 + $0x1c] sm:$0xf]
      %v9239 = vld [vmem:[%s9232 + $0x24] sm:$0xf]
      %v9240 = vld [vmem:[%s9232 + $0x28] sm:$0xf]
      %v9241 = vld [vmem:[%s9232 + $0x30] sm:$0xf]
      %v9242 = vld [vmem:[%s9232 + $0x34] sm:$0xf]
      %v9243 = vld [vmem:[%s9232 + $0x3c] sm:$0xf]
      %v9244 = vld [vmem:[%s9232 + $0x40] sm:$0xf]
      %v9245 = vld [vmem:[%s9232 + $0x48] sm:$0xf]
      %v9246 = vld [vmem:[%s9232 + $0x4c] sm:$0xf]
      %v9247 = vld [vmem:[%s9232 + $0x54] sm:$0xf]
      %v9248 = vld [vmem:[%s9232 + $0x58] sm:$0xf]
      %v9249 = vld [vmem:[%s3] sm:$0xf]
      %v9250 = vld [vmem:[%s9232 + $0x8] sm:$0x1]
      %v9251 = vld [vmem:[%s9232 + $0x14] sm:$0x1]
      %v9252 = vld [vmem:[%s9232 + $0x20] sm:$0x1]
      %v9253 = vld [vmem:[%s9232 + $0x2c] sm:$0x1]
      %v9254 = vld [vmem:[%s9232 + $0x38] sm:$0x1]
      %v9255 = vld [vmem:[%s9232 + $0x44] sm:$0x1]
      %v9256 = vld [vmem:[%s9232 + $0x50] sm:$0x1]
      %v9257 = vld [vmem:[%s9232 + $0x5c] sm:$0x1]
      %v9259 = vshrl.u32 %v9233, 16
      %v9261 = vrot.slane %v9259, 4
      %v9262 = vshll.u32 %v9233, 16
      %v9264 = vrot.slane %v9262, 5
      %v9265 = vor.u32 %v9261, %v9264
      %v9266 = vrot.slane %v9265, 4
      %v9268 = vshll.u32 %v9234, 16
      %v9270 = vrot.slane %v9268, 5
      %v9271 = vsel %vm991, %v9266, %v9270
      %v9272 = vshrl.u32 %v9234, 16
      %v9274 = vrot.slane %v9272, 4
      %v9275 = vor.u32 %v9274, %v9270
      %v9276 = vrot.slane %v9275, 4
      %v9278 = vshll.u32 %v9250, 16
      %v9280 = vrot.slane %v9278, 5
      %v9281 = vsel %vm991, %v9276, %v9280
      %v9283 = vshrl.u32 %v9235, 16
      %v9285 = vrot.slane %v9283, 4
      %v9286 = vshll.u32 %v9235, 16
      %v9288 = vrot.slane %v9286, 5
      %v9289 = vor.u32 %v9285, %v9288
      %v9290 = vrot.slane %v9289, 4
      %v9292 = vshll.u32 %v9236, 16
      %v9294 = vrot.slane %v9292, 5
      %v9295 = vsel %vm991, %v9290, %v9294
      %v9296 = vshrl.u32 %v9236, 16
      %v9298 = vrot.slane %v9296, 4
      %v9299 = vor.u32 %v9298, %v9294
      %v9300 = vrot.slane %v9299, 4
      %v9302 = vshll.u32 %v9251, 16
      %v9304 = vrot.slane %v9302, 5
      %v9305 = vsel %vm991, %v9300, %v9304
      %v9307 = vshrl.u32 %v9237, 16
      %v9309 = vrot.slane %v9307, 4
      %v9310 = vshll.u32 %v9237, 16
      %v9312 = vrot.slane %v9310, 5
      %v9313 = vor.u32 %v9309, %v9312
      %v9314 = vrot.slane %v9313, 4
      %v9316 = vshll.u32 %v9238, 16
      %v9318 = vrot.slane %v9316, 5
      %v9319 = vsel %vm991, %v9314, %v9318
      %v9320 = vshrl.u32 %v9238, 16
      %v9322 = vrot.slane %v9320, 4
      %v9323 = vor.u32 %v9322, %v9318
      %v9324 = vrot.slane %v9323, 4
      %v9326 = vshll.u32 %v9252, 16
      %v9328 = vrot.slane %v9326, 5
      %v9329 = vsel %vm991, %v9324, %v9328
      %v9331 = vshrl.u32 %v9239, 16
      %v9333 = vrot.slane %v9331, 4
      %v9334 = vshll.u32 %v9239, 16
      %v9336 = vrot.slane %v9334, 5
      %v9337 = vor.u32 %v9333, %v9336
      %v9338 = vrot.slane %v9337, 4
      %v9340 = vshll.u32 %v9240, 16
      %v9342 = vrot.slane %v9340, 5
      %v9343 = vsel %vm991, %v9338, %v9342
      %v9344 = vshrl.u32 %v9240, 16
      %v9346 = vrot.slane %v9344, 4
      %v9347 = vor.u32 %v9346, %v9342
      %v9348 = vrot.slane %v9347, 4
      %v9350 = vshll.u32 %v9253, 16
      %v9352 = vrot.slane %v9350, 5
      %v9353 = vsel %vm991, %v9348, %v9352
      %v9355 = vshrl.u32 %v9241, 16
      %v9357 = vrot.slane %v9355, 4
      %v9358 = vshll.u32 %v9241, 16
      %v9360 = vrot.slane %v9358, 5
      %v9361 = vor.u32 %v9357, %v9360
      %v9362 = vrot.slane %v9361, 4
      %v9364 = vshll.u32 %v9242, 16
      %v9366 = vrot.slane %v9364, 5
      %v9367 = vsel %vm991, %v9362, %v9366
      %v9368 = vshrl.u32 %v9242, 16
      %v9370 = vrot.slane %v9368, 4
      %v9371 = vor.u32 %v9370, %v9366
      %v9372 = vrot.slane %v9371, 4
      %v9374 = vshll.u32 %v9254, 16
      %v9376 = vrot.slane %v9374, 5
      %v9377 = vsel %vm991, %v9372, %v9376
      %v9379 = vshrl.u32 %v9243, 16
      %v9381 = vrot.slane %v9379, 4
      %v9382 = vshll.u32 %v9243, 16
      %v9384 = vrot.slane %v9382, 5
      %v9385 = vor.u32 %v9381, %v9384
      %v9386 = vrot.slane %v9385, 4
      %v9388 = vshll.u32 %v9244, 16
      %v9390 = vrot.slane %v9388, 5
      %v9391 = vsel %vm991, %v9386, %v9390
      %v9392 = vshrl.u32 %v9244, 16
      %v9394 = vrot.slane %v9392, 4
      %v9395 = vor.u32 %v9394, %v9390
      %v9396 = vrot.slane %v9395, 4
      %v9398 = vshll.u32 %v9255, 16
      %v9400 = vrot.slane %v9398, 5
      %v9401 = vsel %vm991, %v9396, %v9400
      %v9403 = vshrl.u32 %v9245, 16
      %v9405 = vrot.slane %v9403, 4
      %v9406 = vshll.u32 %v9245, 16
      %v9408 = vrot.slane %v9406, 5
      %v9409 = vor.u32 %v9405, %v9408
      %v9410 = vrot.slane %v9409, 4
      %v9412 = vshll.u32 %v9246, 16
      %v9414 = vrot.slane %v9412, 5
      %v9415 = vsel %vm991, %v9410, %v9414
      %v9416 = vshrl.u32 %v9246, 16
      %v9418 = vrot.slane %v9416, 4
      %v9419 = vor.u32 %v9418, %v9414
      %v9420 = vrot.slane %v9419, 4
      %v9422 = vshll.u32 %v9256, 16
      %v9424 = vrot.slane %v9422, 5
      %v9425 = vsel %vm991, %v9420, %v9424
      %v9427 = vshrl.u32 %v9247, 16
      %v9429 = vrot.slane %v9427, 4
      %v9430 = vshll.u32 %v9247, 16
      %v9432 = vrot.slane %v9430, 5
      %v9433 = vor.u32 %v9429, %v9432
      %v9434 = vrot.slane %v9433, 4
      %v9436 = vshll.u32 %v9248, 16
      %v9438 = vrot.slane %v9436, 5
      %v9439 = vsel %vm991, %v9434, %v9438
      %v9440 = vshrl.u32 %v9248, 16
      %v9442 = vrot.slane %v9440, 4
      %v9443 = vor.u32 %v9442, %v9438
      %v9444 = vrot.slane %v9443, 4
      %v9446 = vshll.u32 %v9257, 16
      %v9448 = vrot.slane %v9446, 5
      %v9449 = vsel %vm991, %v9444, %v9448
      %v9450 = vld [vmem:[%s6685] sm:$0xf]
      %v9451 = vunpack.c.l.b16 %v9271
      %v9452 = vunpack.c.l.b16 %v9281
      %v9453 = vunpack.c.l.b16 %v9295
      %v9454 = vunpack.c.l.b16 %v9305
      %v9455 = vunpack.c.l.b16 %v9319
      %v9456 = vunpack.c.l.b16 %v9329
      %v9457 = vunpack.c.l.b16 %v9343
      %v9458 = vunpack.c.l.b16 %v9353
      %v9459 = vunpack.c.l.b16 %v9367
      %v9460 = vunpack.c.l.b16 %v9377
      %v9461 = vunpack.c.l.b16 %v9391
      %v9462 = vunpack.c.l.b16 %v9401
      %v9463 = vunpack.c.l.b16 %v9415
      %v9464 = vunpack.c.l.b16 %v9425
      %v9465 = vunpack.c.l.b16 %v9439
      %v9466 = vunpack.c.l.b16 %v9449
      %v9467 = vpack.c.b16 %v9452, %v9451
      %v9468 = vpack.c.b16 %v9454, %v9453
      %v9469 = vpack.c.b16 %v9456, %v9455
      %v9470 = vpack.c.b16 %v9458, %v9457
      %v9471 = vpack.c.b16 %v9460, %v9459
      %v9472 = vpack.c.b16 %v9462, %v9461
      %v9473 = vpack.c.b16 %v9464, %v9463
      %v9474 = vpack.c.b16 %v9466, %v9465
      %v9476 = vsel %vm6711, %v9467, 0
      %v9479 = vsel %vm6711, %v9468, 0
      %v9482 = vsel %vm6711, %v9469, 0
      %v9485 = vsel %vm6711, %v9470, 0
      %v9488 = vsel %vm6711, %v9471, 0
      %v9491 = vsel %vm6711, %v9472, 0
      %v9494 = vsel %vm6711, %v9473, 0
      %v9497 = vsel %vm6711, %v9474, 0
      %v9500 = vsel %vm6736, %v9450, 0
      %9502 = vmatprep.subr.bf16.mxu0 0
      %9503 = vmatpush1.bf16.msra.mxu0 %v9500
      %9504 = vmatprep.subr.bf16.mxu0 0
      %9505 = vmatpush1.bf16.msra.mxu0 0
      %9506 = vmatprep.subr.bf16.mxu0 0
      %9507 = vmatpush1.bf16.msra.mxu0 0
      %9508 = vmatprep.subr.bf16.mxu0 0
      %9509 = vmatpush1.bf16.msra.mxu0 0
      %9510 = vmatprep.subr.bf16.mxu0 0
      %9511 = vmatpush1.bf16.msra.mxu0 0
      %9512 = vmatprep.subr.bf16.mxu0 0
      %9513 = vmatpush1.bf16.msra.mxu0 0
      %9514 = vmatprep.subr.bf16.mxu0 0
      %9515 = vmatpush1.bf16.msra.mxu0 0
      %9516 = vmatprep.subr.bf16.mxu0 0
      %9517 = vmatpush1.bf16.msra.mxu0 0
      %9518 = vmatprep.subr.bf16.mxu0 0
      %9519 = vmatpush1.bf16.msra.mxu0 0
      %9520 = vmatprep.subr.bf16.mxu0 0
      %9521 = vmatpush1.bf16.msra.mxu0 0
      %9522 = vmatprep.subr.bf16.mxu0 0
      %9523 = vmatpush1.bf16.msra.mxu0 0
      %9524 = vmatprep.subr.bf16.mxu0 0
      %9525 = vmatpush1.bf16.msra.mxu0 0
      %9526 = vmatprep.subr.bf16.mxu0 0
      %9527 = vmatpush1.bf16.msra.mxu0 0
      %9528 = vmatprep.subr.bf16.mxu0 0
      %9529 = vmatpush1.bf16.msra.mxu0 0
      %9530 = vmatprep.subr.bf16.mxu0 0
      %9531 = vmatpush1.bf16.msra.mxu0 0
      %9532 = vmatprep.subr.bf16.mxu0 0
      %9533 = vmatpush1.bf16.msra.mxu0 0
      %9534 = vmatprep.mubr.bf16.mxu0 0
      %9535 = vmatmul.mubr.bf16.gmra.mrb[0].mxu0 %v9476
      %v9536 = vpop.f32.mrb[0].mxu0
      %v9537 = vadd.f32 0.0, %v9536
      %v9538 = vpop.f32.mrb[0].mxu0
      %v9539 = vpop.f32.mrb[0].mxu0
      %v9540 = vadd.f32 0.0, %v9539
      %v9541 = vpop.f32.mrb[0].mxu0
      %9542 = vmatprep.mubr.bf16.mxu0 0
      %9543 = vmatmul.mubr.bf16.gmra.mrb[0].mxu0 %v9479
      %v9544 = vpop.f32.mrb[0].mxu0
      %v9545 = vadd.f32 0.0, %v9544
      %v9546 = vpop.f32.mrb[0].mxu0
      %v9547 = vpop.f32.mrb[0].mxu0
      %v9548 = vadd.f32 0.0, %v9547
      %v9549 = vpop.f32.mrb[0].mxu0
      %9550 = vmatprep.mubr.bf16.mxu0 0
      %9551 = vmatmul.mubr.bf16.gmra.mrb[0].mxu0 %v9482
      %v9552 = vpop.f32.mrb[0].mxu0
      %v9553 = vadd.f32 0.0, %v9552
      %v9554 = vpop.f32.mrb[0].mxu0
      %v9555 = vpop.f32.mrb[0].mxu0
      %v9556 = vadd.f32 0.0, %v9555
      %v9557 = vpop.f32.mrb[0].mxu0
      %9558 = vmatprep.mubr.bf16.mxu0 0
      %9559 = vmatmul.mubr.bf16.gmra.mrb[0].mxu0 %v9485
      %v9560 = vpop.f32.mrb[0].mxu0
      %v9561 = vadd.f32 0.0, %v9560
      %v9562 = vpop.f32.mrb[0].mxu0
      %v9563 = vpop.f32.mrb[0].mxu0
      %v9564 = vadd.f32 0.0, %v9563
      %v9565 = vpop.f32.mrb[0].mxu0
      %9566 = vmatprep.mubr.bf16.mxu0 0
      %9567 = vmatmul.mubr.bf16.gmra.mrb[0].mxu0 %v9488
      %v9568 = vpop.f32.mrb[0].mxu0
      %v9569 = vadd.f32 0.0, %v9568
      %v9570 = vpop.f32.mrb[0].mxu0
      %v9571 = vpop.f32.mrb[0].mxu0
      %v9572 = vadd.f32 0.0, %v9571
      %v9573 = vpop.f32.mrb[0].mxu0
      %9574 = vmatprep.mubr.bf16.mxu0 0
      %9575 = vmatmul.mubr.bf16.gmra.mrb[0].mxu0 %v9491
      %v9576 = vpop.f32.mrb[0].mxu0
      %v9577 = vadd.f32 0.0, %v9576
      %v9578 = vpop.f32.mrb[0].mxu0
      %v9579 = vpop.f32.mrb[0].mxu0
      %v9580 = vadd.f32 0.0, %v9579
      %v9581 = vpop.f32.mrb[0].mxu0
      %9582 = vmatprep.mubr.bf16.mxu0 0
      %9583 = vmatmul.mubr.bf16.gmra.mrb[0].mxu0 %v9494
      %v9584 = vpop.f32.mrb[0].mxu0
      %v9585 = vadd.f32 0.0, %v9584
      %v9586 = vpop.f32.mrb[0].mxu0
      %v9587 = vpop.f32.mrb[0].mxu0
      %v9588 = vadd.f32 0.0, %v9587
      %v9589 = vpop.f32.mrb[0].mxu0
      %9590 = vmatprep.mubr.bf16.mxu0 0
      %9591 = vmatmul.mubr.bf16.gmra.mrb[0].mxu0 %v9497
      %v9592 = vpop.f32.mrb[0].mxu0
      %v9593 = vadd.f32 0.0, %v9592
      %v9594 = vpop.f32.mrb[0].mxu0
      %v9595 = vpop.f32.mrb[0].mxu0
      %v9596 = vadd.f32 0.0, %v9595
      %v9597 = vpop.f32.mrb[0].mxu0
      %9598 = vdwg.mxu0
      %v9615 = vunpack.c.l.b16 %v9233
      %v9616 = vunpack.c.l.b16 %v9234
      %v9617 = vunpack.c.l.b16 %v9235
      %v9618 = vunpack.c.l.b16 %v9236
      %v9619 = vunpack.c.l.b16 %v9237
      %v9620 = vunpack.c.l.b16 %v9238
      %v9621 = vunpack.c.l.b16 %v9239
      %v9622 = vunpack.c.l.b16 %v9240
      %v9623 = vunpack.c.l.b16 %v9241
      %v9624 = vunpack.c.l.b16 %v9242
      %v9625 = vunpack.c.l.b16 %v9243
      %v9626 = vunpack.c.l.b16 %v9244
      %v9627 = vunpack.c.l.b16 %v9245
      %v9628 = vunpack.c.l.b16 %v9246
      %v9629 = vunpack.c.l.b16 %v9247
      %v9630 = vunpack.c.l.b16 %v9248
      %v9631 = vpack.c.b16 %v9616, %v9615
      %v9632 = vpack.c.b16 %v9618, %v9617
      %v9633 = vpack.c.b16 %v9620, %v9619
      %v9634 = vpack.c.b16 %v9622, %v9621
      %v9635 = vpack.c.b16 %v9624, %v9623
      %v9636 = vpack.c.b16 %v9626, %v9625
      %v9637 = vpack.c.b16 %v9628, %v9627
      %v9638 = vpack.c.b16 %v9630, %v9629
      %v9640 = vsel %vm6711, %v9631, 0
      %v9643 = vsel %vm6711, %v9632, 0
      %v9646 = vsel %vm6711, %v9633, 0
      %v9649 = vsel %vm6711, %v9634, 0
      %v9652 = vsel %vm6711, %v9635, 0
      %v9655 = vsel %vm6711, %v9636, 0
      %v9658 = vsel %vm6711, %v9637, 0
      %v9661 = vsel %vm6711, %v9638, 0
      %v9664 = vsel %vm6736, %v9249, 0
      %9666 = vmatprep.subr.bf16.mxu0 0
      %9667 = vmatpush1.bf16.msra.mxu0 %v9664
      %9668 = vmatprep.subr.bf16.mxu0 0
      %9669 = vmatpush1.bf16.msra.mxu0 0
      %9670 = vmatprep.subr.bf16.mxu0 0
      %9671 = vmatpush1.bf16.msra.mxu0 0
      %9672 = vmatprep.subr.bf16.mxu0 0
      %9673 = vmatpush1.bf16.msra.mxu0 0
      %9674 = vmatprep.subr.bf16.mxu0 0
      %9675 = vmatpush1.bf16.msra.mxu0 0
      %9676 = vmatprep.subr.bf16.mxu0 0
      %9677 = vmatpush1.bf16.msra.mxu0 0
      %9678 = vmatprep.subr.bf16.mxu0 0
      %9679 = vmatpush1.bf16.msra.mxu0 0
      %9680 = vmatprep.subr.bf16.mxu0 0
      %9681 = vmatpush1.bf16.msra.mxu0 0
      %9682 = vmatprep.subr.bf16.mxu0 0
      %9683 = vmatpush1.bf16.msra.mxu0 0
      %9684 = vmatprep.subr.bf16.mxu0 0
      %9685 = vmatpush1.bf16.msra.mxu0 0
      %9686 = vmatprep.subr.bf16.mxu0 0
      %9687 = vmatpush1.bf16.msra.mxu0 0
      %9688 = vmatprep.subr.bf16.mxu0 0
      %9689 = vmatpush1.bf16.msra.mxu0 0
      %9690 = vmatprep.subr.bf16.mxu0 0
      %9691 = vmatpush1.bf16.msra.mxu0 0
      %9692 = vmatprep.subr.bf16.mxu0 0
      %9693 = vmatpush1.bf16.msra.mxu0 0
      %9694 = vmatprep.subr.bf16.mxu0 0
      %9695 = vmatpush1.bf16.msra.mxu0 0
      %9696 = vmatprep.subr.bf16.mxu0 0
      %9697 = vmatpush1.bf16.msra.mxu0 0
      %9698 = vmatprep.mubr.bf16.mxu0 0
      %9699 = vmatmul.mubr.bf16.gmra.mrb[0].mxu0 %v9640
      %v9700 = vpop.f32.mrb[0].mxu0
      %v9701 = vadd.f32 %v9537, %v9700
      %v9702 = vpop.f32.mrb[0].mxu0
      %v9703 = vpop.f32.mrb[0].mxu0
      %v9704 = vadd.f32 %v9540, %v9703
      %v9705 = vpop.f32.mrb[0].mxu0
      %9706 = vmatprep.mubr.bf16.mxu0 0
      %9707 = vmatmul.mubr.bf16.gmra.mrb[0].mxu0 %v9643
      %v9708 = vpop.f32.mrb[0].mxu0
      %v9709 = vadd.f32 %v9545, %v9708
      %v9710 = vpop.f32.mrb[0].mxu0
      %v9711 = vpop.f32.mrb[0].mxu0
      %v9712 = vadd.f32 %v9548, %v9711
      %v9713 = vpop.f32.mrb[0].mxu0
      %9714 = vmatprep.mubr.bf16.mxu0 0
      %9715 = vmatmul.mubr.bf16.gmra.mrb[0].mxu0 %v9646
      %v9716 = vpop.f32.mrb[0].mxu0
      %v9717 = vadd.f32 %v9553, %v9716
      %v9718 = vpop.f32.mrb[0].mxu0
      %v9719 = vpop.f32.mrb[0].mxu0
      %v9720 = vadd.f32 %v9556, %v9719
      %v9721 = vpop.f32.mrb[0].mxu0
      %9722 = vmatprep.mubr.bf16.mxu0 0
      %9723 = vmatmul.mubr.bf16.gmra.mrb[0].mxu0 %v9649
      %v9724 = vpop.f32.mrb[0].mxu0
      %v9725 = vadd.f32 %v9561, %v9724
      %v9726 = vpop.f32.mrb[0].mxu0
      %v9727 = vpop.f32.mrb[0].mxu0
      %v9728 = vadd.f32 %v9564, %v9727
      %v9729 = vpop.f32.mrb[0].mxu0
      %9730 = vmatprep.mubr.bf16.mxu0 0
      %9731 = vmatmul.mubr.bf16.gmra.mrb[0].mxu0 %v9652
      %v9732 = vpop.f32.mrb[0].mxu0
      %v9733 = vadd.f32 %v9569, %v9732
      %v9734 = vpop.f32.mrb[0].mxu0
      %v9735 = vpop.f32.mrb[0].mxu0
      %v9736 = vadd.f32 %v9572, %v9735
      %v9737 = vpop.f32.mrb[0].mxu0
      %9738 = vmatprep.mubr.bf16.mxu0 0
      %9739 = vmatmul.mubr.bf16.gmra.mrb[0].mxu0 %v9655
      %v9740 = vpop.f32.mrb[0].mxu0
      %v9741 = vadd.f32 %v9577, %v9740
      %v9742 = vpop.f32.mrb[0].mxu0
      %v9743 = vpop.f32.mrb[0].mxu0
      %v9744 = vadd.f32 %v9580, %v9743
      %v9745 = vpop.f32.mrb[0].mxu0
      %9746 = vmatprep.mubr.bf16.mxu0 0
      %9747 = vmatmul.mubr.bf16.gmra.mrb[0].mxu0 %v9658
      %v9748 = vpop.f32.mrb[0].mxu0
      %v9749 = vadd.f32 %v9585, %v9748
      %v9750 = vpop.f32.mrb[0].mxu0
      %v9751 = vpop.f32.mrb[0].mxu0
      %v9752 = vadd.f32 %v9588, %v9751
      %v9753 = vpop.f32.mrb[0].mxu0
      %9754 = vmatprep.mubr.bf16.mxu0 0
      %9755 = vmatmul.mubr.bf16.gmra.mrb[0].mxu0 %v9661
      %v9756 = vpop.f32.mrb[0].mxu0
      %v9757 = vadd.f32 %v9593, %v9756
      %v9758 = vpop.f32.mrb[0].mxu0
      %v9759 = vpop.f32.mrb[0].mxu0
      %v9760 = vadd.f32 %v9596, %v9759
      %v9761 = vpop.f32.mrb[0].mxu0
      %9762 = vdwg.mxu0
      %v9763 = vld [vmem:[%s9232] sm:$0xe]
      %v9764 = vld [vmem:[%s9232 + $0xc] sm:$0xe]
      %v9765 = vld [vmem:[%s9232 + $0x18] sm:$0xe]
      %v9766 = vld [vmem:[%s9232 + $0x24] sm:$0xe]
      %v9767 = vld [vmem:[%s9232 + $0x30] sm:$0xe]
      %v9768 = vld [vmem:[%s9232 + $0x3c] sm:$0xe]
      %v9769 = vld [vmem:[%s9232 + $0x48] sm:$0xe]
      %v9770 = vld [vmem:[%s9232 + $0x54] sm:$0xe]
      %v9787 = vrot.slane %v9763, 5
      %v9788 = vrot.slane %v9787, 4
      %v9789 = vrot.slane %v9234, 5
      %v9790 = vsel %vm1526, %v9788, %v9789
      %v9791 = vrot.slane %v9789, 4
      %v9792 = vrot.slane %v9250, 5
      %v9793 = vsel %vm1526, %v9791, %v9792
      %v9794 = vrot.slane %v9764, 5
      %v9795 = vrot.slane %v9794, 4
      %v9796 = vrot.slane %v9236, 5
      %v9797 = vsel %vm1526, %v9795, %v9796
      %v9798 = vrot.slane %v9796, 4
      %v9799 = vrot.slane %v9251, 5
      %v9800 = vsel %vm1526, %v9798, %v9799
      %v9801 = vrot.slane %v9765, 5
      %v9802 = vrot.slane %v9801, 4
      %v9803 = vrot.slane %v9238, 5
      %v9804 = vsel %vm1526, %v9802, %v9803
      %v9805 = vrot.slane %v9803, 4
      %v9806 = vrot.slane %v9252, 5
      %v9807 = vsel %vm1526, %v9805, %v9806
      %v9808 = vrot.slane %v9766, 5
      %v9809 = vrot.slane %v9808, 4
      %v9810 = vrot.slane %v9240, 5
      %v9811 = vsel %vm1526, %v9809, %v9810
      %v9812 = vrot.slane %v9810, 4
      %v9813 = vrot.slane %v9253, 5
      %v9814 = vsel %vm1526, %v9812, %v9813
      %v9815 = vrot.slane %v9767, 5
      %v9816 = vrot.slane %v9815, 4
      %v9817 = vrot.slane %v9242, 5
      %v9818 = vsel %vm1526, %v9816, %v9817
      %v9819 = vrot.slane %v9817, 4
      %v9820 = vrot.slane %v9254, 5
      %v9821 = vsel %vm1526, %v9819, %v9820
      %v9822 = vrot.slane %v9768, 5
      %v9823 = vrot.slane %v9822, 4
      %v9824 = vrot.slane %v9244, 5
      %v9825 = vsel %vm1526, %v9823, %v9824
      %v9826 = vrot.slane %v9824, 4
      %v9827 = vrot.slane %v9255, 5
      %v9828 = vsel %vm1526, %v9826, %v9827
      %v9829 = vrot.slane %v9769, 5
      %v9830 = vrot.slane %v9829, 4
      %v9831 = vrot.slane %v9246, 5
      %v9832 = vsel %vm1526, %v9830, %v9831
      %v9833 = vrot.slane %v9831, 4
      %v9834 = vrot.slane %v9256, 5
      %v9835 = vsel %vm1526, %v9833, %v9834
      %v9836 = vrot.slane %v9770, 5
      %v9837 = vrot.slane %v9836, 4
      %v9838 = vrot.slane %v9248, 5
      %v9839 = vsel %vm1526, %v9837, %v9838
      %v9840 = vrot.slane %v9838, 4
      %v9841 = vrot.slane %v9257, 5
      %v9842 = vsel %vm1526, %v9840, %v9841
      %v9843 = vld [vmem:[%s7081] sm:$0xf]
      %v9844 = vunpack.c.l.b16 %v9790
      %v9845 = vunpack.c.l.b16 %v9793
      %v9846 = vunpack.c.l.b16 %v9797
      %v9847 = vunpack.c.l.b16 %v9800
      %v9848 = vunpack.c.l.b16 %v9804
      %v9849 = vunpack.c.l.b16 %v9807
      %v9850 = vunpack.c.l.b16 %v9811
      %v9851 = vunpack.c.l.b16 %v9814
      %v9852 = vunpack.c.l.b16 %v9818
      %v9853 = vunpack.c.l.b16 %v9821
      %v9854 = vunpack.c.l.b16 %v9825
      %v9855 = vunpack.c.l.b16 %v9828
      %v9856 = vunpack.c.l.b16 %v9832
      %v9857 = vunpack.c.l.b16 %v9835
      %v9858 = vunpack.c.l.b16 %v9839
      %v9859 = vunpack.c.l.b16 %v9842
      %v9860 = vpack.c.b16 %v9845, %v9844
      %v9861 = vpack.c.b16 %v9847, %v9846
      %v9862 = vpack.c.b16 %v9849, %v9848
      %v9863 = vpack.c.b16 %v9851, %v9850
      %v9864 = vpack.c.b16 %v9853, %v9852
      %v9865 = vpack.c.b16 %v9855, %v9854
      %v9866 = vpack.c.b16 %v9857, %v9856
      %v9867 = vpack.c.b16 %v9859, %v9858
      %v9869 = vsel %vm6711, %v9860, 0
      %v9872 = vsel %vm6711, %v9861, 0
      %v9875 = vsel %vm6711, %v9862, 0
      %v9878 = vsel %vm6711, %v9863, 0
      %v9881 = vsel %vm6711, %v9864, 0
      %v9884 = vsel %vm6711, %v9865, 0
      %v9887 = vsel %vm6711, %v9866, 0
      %v9890 = vsel %vm6711, %v9867, 0
      %v9893 = vsel %vm6736, %v9843, 0
      %9895 = vmatprep.subr.bf16.mxu0 0
      %9896 = vmatpush1.bf16.msra.mxu0 %v9893
      %9897 = vmatprep.subr.bf16.mxu0 0
      %9898 = vmatpush1.bf16.msra.mxu0 0
      %9899 = vmatprep.subr.bf16.mxu0 0
      %9900 = vmatpush1.bf16.msra.mxu0 0
      %9901 = vmatprep.subr.bf16.mxu0 0
      %9902 = vmatpush1.bf16.msra.mxu0 0
      %9903 = vmatprep.subr.bf16.mxu0 0
      %9904 = vmatpush1.bf16.msra.mxu0 0
      %9905 = vmatprep.subr.bf16.mxu0 0
      %9906 = vmatpush1.bf16.msra.mxu0 0
      %9907 = vmatprep.subr.bf16.mxu0 0
      %9908 = vmatpush1.bf16.msra.mxu0 0
      %9909 = vmatprep.subr.bf16.mxu0 0
      %9910 = vmatpush1.bf16.msra.mxu0 0
      %9911 = vmatprep.subr.bf16.mxu0 0
      %9912 = vmatpush1.bf16.msra.mxu0 0
      %9913 = vmatprep.subr.bf16.mxu0 0
      %9914 = vmatpush1.bf16.msra.mxu0 0
      %9915 = vmatprep.subr.bf16.mxu0 0
      %9916 = vmatpush1.bf16.msra.mxu0 0
      %9917 = vmatprep.subr.bf16.mxu0 0
      %9918 = vmatpush1.bf16.msra.mxu0 0
      %9919 = vmatprep.subr.bf16.mxu0 0
      %9920 = vmatpush1.bf16.msra.mxu0 0
      %9921 = vmatprep.subr.bf16.mxu0 0
      %9922 = vmatpush1.bf16.msra.mxu0 0
      %9923 = vmatprep.subr.bf16.mxu0 0
      %9924 = vmatpush1.bf16.msra.mxu0 0
      %9925 = vmatprep.subr.bf16.mxu0 0
      %9926 = vmatpush1.bf16.msra.mxu0 0
      %9927 = vmatprep.mubr.bf16.mxu0 0
      %9928 = vmatmul.mubr.bf16.gmra.mrb[0].mxu0 %v9869
      %v9929 = vpop.f32.mrb[0].mxu0
      %v9930 = vadd.f32 0.0, %v9929
      %v9931 = vpop.f32.mrb[0].mxu0
      %v9932 = vpop.f32.mrb[0].mxu0
      %v9933 = vadd.f32 0.0, %v9932
      %v9934 = vpop.f32.mrb[0].mxu0
      %9935 = vmatprep.mubr.bf16.mxu0 0
      %9936 = vmatmul.mubr.bf16.gmra.mrb[0].mxu0 %v9872
      %v9937 = vpop.f32.mrb[0].mxu0
      %v9938 = vadd.f32 0.0, %v9937
      %v9939 = vpop.f32.mrb[0].mxu0
      %v9940 = vpop.f32.mrb[0].mxu0
      %v9941 = vadd.f32 0.0, %v9940
      %v9942 = vpop.f32.mrb[0].mxu0
      %9943 = vmatprep.mubr.bf16.mxu0 0
      %9944 = vmatmul.mubr.bf16.gmra.mrb[0].mxu0 %v9875
      %v9945 = vpop.f32.mrb[0].mxu0
      %v9946 = vadd.f32 0.0, %v9945
      %v9947 = vpop.f32.mrb[0].mxu0
      %v9948 = vpop.f32.mrb[0].mxu0
      %v9949 = vadd.f32 0.0, %v9948
      %v9950 = vpop.f32.mrb[0].mxu0
      %9951 = vmatprep.mubr.bf16.mxu0 0
      %9952 = vmatmul.mubr.bf16.gmra.mrb[0].mxu0 %v9878
      %v9953 = vpop.f32.mrb[0].mxu0
      %v9954 = vadd.f32 0.0, %v9953
      %v9955 = vpop.f32.mrb[0].mxu0
      %v9956 = vpop.f32.mrb[0].mxu0
      %v9957 = vadd.f32 0.0, %v9956
      %v9958 = vpop.f32.mrb[0].mxu0
      %9959 = vmatprep.mubr.bf16.mxu0 0
      %9960 = vmatmul.mubr.bf16.gmra.mrb[0].mxu0 %v9881
      %v9961 = vpop.f32.mrb[0].mxu0
      %v9962 = vadd.f32 0.0, %v9961
      %v9963 = vpop.f32.mrb[0].mxu0
      %v9964 = vpop.f32.mrb[0].mxu0
      %v9965 = vadd.f32 0.0, %v9964
      %v9966 = vpop.f32.mrb[0].mxu0
      %9967 = vmatprep.mubr.bf16.mxu0 0
      %9968 = vmatmul.mubr.bf16.gmra.mrb[0].mxu0 %v9884
      %v9969 = vpop.f32.mrb[0].mxu0
      %v9970 = vadd.f32 0.0, %v9969
      %v9971 = vpop.f32.mrb[0].mxu0
      %v9972 = vpop.f32.mrb[0].mxu0
      %v9973 = vadd.f32 0.0, %v9972
      %v9974 = vpop.f32.mrb[0].mxu0
      %9975 = vmatprep.mubr.bf16.mxu0 0
      %9976 = vmatmul.mubr.bf16.gmra.mrb[0].mxu0 %v9887
      %v9977 = vpop.f32.mrb[0].mxu0
      %v9978 = vadd.f32 0.0, %v9977
      %v9979 = vpop.f32.mrb[0].mxu0
      %v9980 = vpop.f32.mrb[0].mxu0
      %v9981 = vadd.f32 0.0, %v9980
      %v9982 = vpop.f32.mrb[0].mxu0
      %9983 = vmatprep.mubr.bf16.mxu0 0
      %9984 = vmatmul.mubr.bf16.gmra.mrb[0].mxu0 %v9890
      %v9985 = vpop.f32.mrb[0].mxu0
      %v9986 = vadd.f32 0.0, %v9985
      %v9987 = vpop.f32.mrb[0].mxu0
      %v9988 = vpop.f32.mrb[0].mxu0
      %v9989 = vadd.f32 0.0, %v9988
      %v9990 = vpop.f32.mrb[0].mxu0
      %9991 = vdwg.mxu0
      %v9992 = vadd.f32 %v9701, %v9930
      %v9993 = vadd.f32 %v9704, %v9933
      %v9994 = vadd.f32 %v9709, %v9938
      %v9995 = vadd.f32 %v9712, %v9941
      %v9996 = vadd.f32 %v9717, %v9946
      %v9997 = vadd.f32 %v9720, %v9949
      %v9998 = vadd.f32 %v9725, %v9954
      %v9999 = vadd.f32 %v9728, %v9957
      %v10000 = vadd.f32 %v9733, %v9962
      %v10001 = vadd.f32 %v9736, %v9965
      %v10002 = vadd.f32 %v9741, %v9970
      %v10003 = vadd.f32 %v9744, %v9973
      %v10004 = vadd.f32 %v9749, %v9978
      %v10005 = vadd.f32 %v9752, %v9981
      %v10006 = vadd.f32 %v9757, %v9986
      %v10007 = vadd.f32 %v9760, %v9989
      %v10008 = vld [vmem:[%s6411] sm:$0xf]
      %v10009 = vld [vmem:[%s6411 + $0x4] sm:$0xf]
      %v10010 = vld [vmem:[%s6411 + $0xc] sm:$0xf]
      %v10011 = vld [vmem:[%s6411 + $0x10] sm:$0xf]
      %v10012 = vld [vmem:[%s6411 + $0x18] sm:$0xf]
      %v10013 = vld [vmem:[%s6411 + $0x1c] sm:$0xf]
      %v10014 = vld [vmem:[%s6411 + $0x24] sm:$0xf]
      %v10015 = vld [vmem:[%s6411 + $0x28] sm:$0xf]
      %v10016 = vld [vmem:[%s6411 + $0x30] sm:$0xf]
      %v10017 = vld [vmem:[%s6411 + $0x34] sm:$0xf]
      %v10018 = vld [vmem:[%s6411 + $0x3c] sm:$0xf]
      %v10019 = vld [vmem:[%s6411 + $0x40] sm:$0xf]
      %v10020 = vld [vmem:[%s6411 + $0x48] sm:$0xf]
      %v10021 = vld [vmem:[%s6411 + $0x4c] sm:$0xf]
      %v10022 = vld [vmem:[%s6411 + $0x54] sm:$0xf]
      %v10023 = vld [vmem:[%s6411 + $0x58] sm:$0xf]
      %v10024 = vld [vmem:[%s7263] sm:$0xf]
      %v10041 = vunpack.c.l.b16 %v10008
      %v10042 = vunpack.c.l.b16 %v10009
      %v10043 = vunpack.c.l.b16 %v10010
      %v10044 = vunpack.c.l.b16 %v10011
      %v10045 = vunpack.c.l.b16 %v10012
      %v10046 = vunpack.c.l.b16 %v10013
      %v10047 = vunpack.c.l.b16 %v10014
      %v10048 = vunpack.c.l.b16 %v10015
      %v10049 = vunpack.c.l.b16 %v10016
      %v10050 = vunpack.c.l.b16 %v10017
      %v10051 = vunpack.c.l.b16 %v10018
      %v10052 = vunpack.c.l.b16 %v10019
      %v10053 = vunpack.c.l.b16 %v10020
      %v10054 = vunpack.c.l.b16 %v10021
      %v10055 = vunpack.c.l.b16 %v10022
      %v10056 = vunpack.c.l.b16 %v10023
      %v10057 = vpack.c.b16 %v10042, %v10041
      %v10058 = vpack.c.b16 %v10044, %v10043
      %v10059 = vpack.c.b16 %v10046, %v10045
      %v10060 = vpack.c.b16 %v10048, %v10047
      %v10061 = vpack.c.b16 %v10050, %v10049
      %v10062 = vpack.c.b16 %v10052, %v10051
      %v10063 = vpack.c.b16 %v10054, %v10053
      %v10064 = vpack.c.b16 %v10056, %v10055
      %v10066 = vsel %vm6711, %v10057, 0
      %v10069 = vsel %vm6711, %v10058, 0
      %v10072 = vsel %vm6711, %v10059, 0
      %v10075 = vsel %vm6711, %v10060, 0
      %v10078 = vsel %vm6711, %v10061, 0
      %v10081 = vsel %vm6711, %v10062, 0
      %v10084 = vsel %vm6711, %v10063, 0
      %v10087 = vsel %vm6711, %v10064, 0
      %v10090 = vsel %vm6736, %v10024, 0
      %10092 = vmatprep.subr.bf16.mxu0 0
      %10093 = vmatpush1.bf16.msra.mxu0 %v10090
      %10094 = vmatprep.subr.bf16.mxu0 0
      %10095 = vmatpush1.bf16.msra.mxu0 0
      %10096 = vmatprep.subr.bf16.mxu0 0
      %10097 = vmatpush1.bf16.msra.mxu0 0
      %10098 = vmatprep.subr.bf16.mxu0 0
      %10099 = vmatpush1.bf16.msra.mxu0 0
      %10100 = vmatprep.subr.bf16.mxu0 0
      %10101 = vmatpush1.bf16.msra.mxu0 0
      %10102 = vmatprep.subr.bf16.mxu0 0
      %10103 = vmatpush1.bf16.msra.mxu0 0
      %10104 = vmatprep.subr.bf16.mxu0 0
      %10105 = vmatpush1.bf16.msra.mxu0 0
      %10106 = vmatprep.subr.bf16.mxu0 0
      %10107 = vmatpush1.bf16.msra.mxu0 0
      %10108 = vmatprep.subr.bf16.mxu0 0
      %10109 = vmatpush1.bf16.msra.mxu0 0
      %10110 = vmatprep.subr.bf16.mxu0 0
      %10111 = vmatpush1.bf16.msra.mxu0 0
      %10112 = vmatprep.subr.bf16.mxu0 0
      %10113 = vmatpush1.bf16.msra.mxu0 0
      %10114 = vmatprep.subr.bf16.mxu0 0
      %10115 = vmatpush1.bf16.msra.mxu0 0
      %10116 = vmatprep.subr.bf16.mxu0 0
      %10117 = vmatpush1.bf16.msra.mxu0 0
      %10118 = vmatprep.subr.bf16.mxu0 0
      %10119 = vmatpush1.bf16.msra.mxu0 0
      %10120 = vmatprep.subr.bf16.mxu0 0
      %10121 = vmatpush1.bf16.msra.mxu0 0
      %10122 = vmatprep.subr.bf16.mxu0 0
      %10123 = vmatpush1.bf16.msra.mxu0 0
      %10124 = vmatprep.mubr.bf16.mxu0 0
      %10125 = vmatmul.mubr.bf16.gmra.mrb[0].mxu0 %v10066
      %v10126 = vpop.f32.mrb[0].mxu0
      %v10127 = vadd.f32 0.0, %v10126
      %v10128 = vpop.f32.mrb[0].mxu0
      %v10129 = vpop.f32.mrb[0].mxu0
      %v10130 = vadd.f32 0.0, %v10129
      %v10131 = vpop.f32.mrb[0].mxu0
      %10132 = vmatprep.mubr.bf16.mxu0 0
      %10133 = vmatmul.mubr.bf16.gmra.mrb[0].mxu0 %v10069
      %v10134 = vpop.f32.mrb[0].mxu0
      %v10135 = vadd.f32 0.0, %v10134
      %v10136 = vpop.f32.mrb[0].mxu0
      %v10137 = vpop.f32.mrb[0].mxu0
      %v10138 = vadd.f32 0.0, %v10137
      %v10139 = vpop.f32.mrb[0].mxu0
      %10140 = vmatprep.mubr.bf16.mxu0 0
      %10141 = vmatmul.mubr.bf16.gmra.mrb[0].mxu0 %v10072
      %v10142 = vpop.f32.mrb[0].mxu0
      %v10143 = vadd.f32 0.0, %v10142
      %v10144 = vpop.f32.mrb[0].mxu0
      %v10145 = vpop.f32.mrb[0].mxu0
      %v10146 = vadd.f32 0.0, %v10145
      %v10147 = vpop.f32.mrb[0].mxu0
      %10148 = vmatprep.mubr.bf16.mxu0 0
      %10149 = vmatmul.mubr.bf16.gmra.mrb[0].mxu0 %v10075
      %v10150 = vpop.f32.mrb[0].mxu0
      %v10151 = vadd.f32 0.0, %v10150
      %v10152 = vpop.f32.mrb[0].mxu0
      %v10153 = vpop.f32.mrb[0].mxu0
      %v10154 = vadd.f32 0.0, %v10153
      %v10155 = vpop.f32.mrb[0].mxu0
      %10156 = vmatprep.mubr.bf16.mxu0 0
      %10157 = vmatmul.mubr.bf16.gmra.mrb[0].mxu0 %v10078
      %v10158 = vpop.f32.mrb[0].mxu0
      %v10159 = vadd.f32 0.0, %v10158
      %v10160 = vpop.f32.mrb[0].mxu0
      %v10161 = vpop.f32.mrb[0].mxu0
      %v10162 = vadd.f32 0.0, %v10161
      %v10163 = vpop.f32.mrb[0].mxu0
      %10164 = vmatprep.mubr.bf16.mxu0 0
      %10165 = vmatmul.mubr.bf16.gmra.mrb[0].mxu0 %v10081
      %v10166 = vpop.f32.mrb[0].mxu0
      %v10167 = vadd.f32 0.0, %v10166
      %v10168 = vpop.f32.mrb[0].mxu0
      %v10169 = vpop.f32.mrb[0].mxu0
      %v10170 = vadd.f32 0.0, %v10169
      %v10171 = vpop.f32.mrb[0].mxu0
      %10172 = vmatprep.mubr.bf16.mxu0 0
      %10173 = vmatmul.mubr.bf16.gmra.mrb[0].mxu0 %v10084
      %v10174 = vpop.f32.mrb[0].mxu0
      %v10175 = vadd.f32 0.0, %v10174
      %v10176 = vpop.f32.mrb[0].mxu0
      %v10177 = vpop.f32.mrb[0].mxu0
      %v10178 = vadd.f32 0.0, %v10177
      %v10179 = vpop.f32.mrb[0].mxu0
      %10180 = vmatprep.mubr.bf16.mxu0 0
      %10181 = vmatmul.mubr.bf16.gmra.mrb[0].mxu0 %v10087
      %v10182 = vpop.f32.mrb[0].mxu0
      %v10183 = vadd.f32 0.0, %v10182
      %v10184 = vpop.f32.mrb[0].mxu0
      %v10185 = vpop.f32.mrb[0].mxu0
      %v10186 = vadd.f32 0.0, %v10185
      %v10187 = vpop.f32.mrb[0].mxu0
      %10188 = vdwg.mxu0
      %v10189 = vadd.f32 %v9992, %v10127
      %v10190 = vadd.f32 %v9993, %v10130
      %v10191 = vadd.f32 %v9994, %v10135
      %v10192 = vadd.f32 %v9995, %v10138
      %v10193 = vadd.f32 %v9996, %v10143
      %v10194 = vadd.f32 %v9997, %v10146
      %v10195 = vadd.f32 %v9998, %v10151
      %v10196 = vadd.f32 %v9999, %v10154
      %v10197 = vadd.f32 %v10000, %v10159
      %v10198 = vadd.f32 %v10001, %v10162
      %v10199 = vadd.f32 %v10002, %v10167
      %v10200 = vadd.f32 %v10003, %v10170
      %v10201 = vadd.f32 %v10004, %v10175
      %v10202 = vadd.f32 %v10005, %v10178
      %v10203 = vadd.f32 %v10006, %v10183
      %v10204 = vadd.f32 %v10007, %v10186
      %v10205 = vld [vmem:[%s6411] sm:$0xf]
      %v10206 = vld [vmem:[%s6411 + $0x4] sm:$0xf]
      %v10207 = vld [vmem:[%s6411 + $0x8] sm:$0x1]
      %v10208 = vld [vmem:[%s6411 + $0xc] sm:$0xf]
      %v10209 = vld [vmem:[%s6411 + $0x10] sm:$0xf]
      %v10210 = vld [vmem:[%s6411 + $0x14] sm:$0x1]
      %v10211 = vld [vmem:[%s6411 + $0x18] sm:$0xf]
      %v10212 = vld [vmem:[%s6411 + $0x1c] sm:$0xf]
      %v10213 = vld [vmem:[%s6411 + $0x20] sm:$0x1]
      %v10214 = vld [vmem:[%s6411 + $0x24] sm:$0xf]
      %v10215 = vld [vmem:[%s6411 + $0x28] sm:$0xf]
      %v10216 = vld [vmem:[%s6411 + $0x2c] sm:$0x1]
      %v10217 = vld [vmem:[%s6411 + $0x30] sm:$0xf]
      %v10218 = vld [vmem:[%s6411 + $0x34] sm:$0xf]
      %v10219 = vld [vmem:[%s6411 + $0x38] sm:$0x1]
      %v10220 = vld [vmem:[%s6411 + $0x3c] sm:$0xf]
      %v10221 = vld [vmem:[%s6411 + $0x40] sm:$0xf]
      %v10222 = vld [vmem:[%s6411 + $0x44] sm:$0x1]
      %v10223 = vld [vmem:[%s6411 + $0x48] sm:$0xf]
      %v10224 = vld [vmem:[%s6411 + $0x4c] sm:$0xf]
      %v10225 = vld [vmem:[%s6411 + $0x50] sm:$0x1]
      %v10226 = vld [vmem:[%s6411 + $0x54] sm:$0xf]
      %v10227 = vld [vmem:[%s6411 + $0x58] sm:$0xf]
      %v10228 = vld [vmem:[%s6411 + $0x5c] sm:$0x1]
      %v10230 = vshrl.u32 %v10205, 16
      %v10232 = vrot.slane %v10230, 4
      %v10233 = vshll.u32 %v10205, 16
      %v10235 = vrot.slane %v10233, 5
      %v10236 = vor.u32 %v10232, %v10235
      %v10237 = vrot.slane %v10236, 4
      %v10239 = vshll.u32 %v10206, 16
      %v10241 = vrot.slane %v10239, 5
      %v10242 = vsel %vm991, %v10237, %v10241
      %v10243 = vshrl.u32 %v10206, 16
      %v10245 = vrot.slane %v10243, 4
      %v10246 = vor.u32 %v10245, %v10241
      %v10247 = vrot.slane %v10246, 4
      %v10249 = vshll.u32 %v10207, 16
      %v10251 = vrot.slane %v10249, 5
      %v10252 = vsel %vm991, %v10247, %v10251
      %v10254 = vshrl.u32 %v10208, 16
      %v10256 = vrot.slane %v10254, 4
      %v10257 = vshll.u32 %v10208, 16
      %v10259 = vrot.slane %v10257, 5
      %v10260 = vor.u32 %v10256, %v10259
      %v10261 = vrot.slane %v10260, 4
      %v10263 = vshll.u32 %v10209, 16
      %v10265 = vrot.slane %v10263, 5
      %v10266 = vsel %vm991, %v10261, %v10265
      %v10267 = vshrl.u32 %v10209, 16
      %v10269 = vrot.slane %v10267, 4
      %v10270 = vor.u32 %v10269, %v10265
      %v10271 = vrot.slane %v10270, 4
      %v10273 = vshll.u32 %v10210, 16
      %v10275 = vrot.slane %v10273, 5
      %v10276 = vsel %vm991, %v10271, %v10275
      %v10278 = vshrl.u32 %v10211, 16
      %v10280 = vrot.slane %v10278, 4
      %v10281 = vshll.u32 %v10211, 16
      %v10283 = vrot.slane %v10281, 5
      %v10284 = vor.u32 %v10280, %v10283
      %v10285 = vrot.slane %v10284, 4
      %v10287 = vshll.u32 %v10212, 16
      %v10289 = vrot.slane %v10287, 5
      %v10290 = vsel %vm991, %v10285, %v10289
      %v10291 = vshrl.u32 %v10212, 16
      %v10293 = vrot.slane %v10291, 4
      %v10294 = vor.u32 %v10293, %v10289
      %v10295 = vrot.slane %v10294, 4
      %v10297 = vshll.u32 %v10213, 16
      %v10299 = vrot.slane %v10297, 5
      %v10300 = vsel %vm991, %v10295, %v10299
      %v10302 = vshrl.u32 %v10214, 16
      %v10304 = vrot.slane %v10302, 4
      %v10305 = vshll.u32 %v10214, 16
      %v10307 = vrot.slane %v10305, 5
      %v10308 = vor.u32 %v10304, %v10307
      %v10309 = vrot.slane %v10308, 4
      %v10311 = vshll.u32 %v10215, 16
      %v10313 = vrot.slane %v10311, 5
      %v10314 = vsel %vm991, %v10309, %v10313
      %v10315 = vshrl.u32 %v10215, 16
      %v10317 = vrot.slane %v10315, 4
      %v10318 = vor.u32 %v10317, %v10313
      %v10319 = vrot.slane %v10318, 4
      %v10321 = vshll.u32 %v10216, 16
      %v10323 = vrot.slane %v10321, 5
      %v10324 = vsel %vm991, %v10319, %v10323
      %v10326 = vshrl.u32 %v10217, 16
      %v10328 = vrot.slane %v10326, 4
      %v10329 = vshll.u32 %v10217, 16
      %v10331 = vrot.slane %v10329, 5
      %v10332 = vor.u32 %v10328, %v10331
      %v10333 = vrot.slane %v10332, 4
      %v10335 = vshll.u32 %v10218, 16
      %v10337 = vrot.slane %v10335, 5
      %v10338 = vsel %vm991, %v10333, %v10337
      %v10339 = vshrl.u32 %v10218, 16
      %v10341 = vrot.slane %v10339, 4
      %v10342 = vor.u32 %v10341, %v10337
      %v10343 = vrot.slane %v10342, 4
      %v10345 = vshll.u32 %v10219, 16
      %v10347 = vrot.slane %v10345, 5
      %v10348 = vsel %vm991, %v10343, %v10347
      %v10350 = vshrl.u32 %v10220, 16
      %v10352 = vrot.slane %v10350, 4
      %v10353 = vshll.u32 %v10220, 16
      %v10355 = vrot.slane %v10353, 5
      %v10356 = vor.u32 %v10352, %v10355
      %v10357 = vrot.slane %v10356, 4
      %v10359 = vshll.u32 %v10221, 16
      %v10361 = vrot.slane %v10359, 5
      %v10362 = vsel %vm991, %v10357, %v10361
      %v10363 = vshrl.u32 %v10221, 16
      %v10365 = vrot.slane %v10363, 4
      %v10366 = vor.u32 %v10365, %v10361
      %v10367 = vrot.slane %v10366, 4
      %v10369 = vshll.u32 %v10222, 16
      %v10371 = vrot.slane %v10369, 5
      %v10372 = vsel %vm991, %v10367, %v10371
      %v10374 = vshrl.u32 %v10223, 16
      %v10376 = vrot.slane %v10374, 4
      %v10377 = vshll.u32 %v10223, 16
      %v10379 = vrot.slane %v10377, 5
      %v10380 = vor.u32 %v10376, %v10379
      %v10381 = vrot.slane %v10380, 4
      %v10383 = vshll.u32 %v10224, 16
      %v10385 = vrot.slane %v10383, 5
      %v10386 = vsel %vm991, %v10381, %v10385
      %v10387 = vshrl.u32 %v10224, 16
      %v10389 = vrot.slane %v10387, 4
      %v10390 = vor.u32 %v10389, %v10385
      %v10391 = vrot.slane %v10390, 4
      %v10393 = vshll.u32 %v10225, 16
      %v10395 = vrot.slane %v10393, 5
      %v10396 = vsel %vm991, %v10391, %v10395
      %v10398 = vshrl.u32 %v10226, 16
      %v10400 = vrot.slane %v10398, 4
      %v10401 = vshll.u32 %v10226, 16
      %v10403 = vrot.slane %v10401, 5
      %v10404 = vor.u32 %v10400, %v10403
      %v10405 = vrot.slane %v10404, 4
      %v10407 = vshll.u32 %v10227, 16
      %v10409 = vrot.slane %v10407, 5
      %v10410 = vsel %vm991, %v10405, %v10409
      %v10411 = vshrl.u32 %v10227, 16
      %v10413 = vrot.slane %v10411, 4
      %v10414 = vor.u32 %v10413, %v10409
      %v10415 = vrot.slane %v10414, 4
      %v10417 = vshll.u32 %v10228, 16
      %v10419 = vrot.slane %v10417, 5
      %v10420 = vsel %vm991, %v10415, %v10419
      %v10421 = vld [vmem:[%s7661] sm:$0xf]
      %v10422 = vunpack.c.l.b16 %v10242
      %v10423 = vunpack.c.l.b16 %v10252
      %v10424 = vunpack.c.l.b16 %v10266
      %v10425 = vunpack.c.l.b16 %v10276
      %v10426 = vunpack.c.l.b16 %v10290
      %v10427 = vunpack.c.l.b16 %v10300
      %v10428 = vunpack.c.l.b16 %v10314
      %v10429 = vunpack.c.l.b16 %v10324
      %v10430 = vunpack.c.l.b16 %v10338
      %v10431 = vunpack.c.l.b16 %v10348
      %v10432 = vunpack.c.l.b16 %v10362
      %v10433 = vunpack.c.l.b16 %v10372
      %v10434 = vunpack.c.l.b16 %v10386
      %v10435 = vunpack.c.l.b16 %v10396
      %v10436 = vunpack.c.l.b16 %v10410
      %v10437 = vunpack.c.l.b16 %v10420
      %v10438 = vpack.c.b16 %v10423, %v10422
      %v10439 = vpack.c.b16 %v10425, %v10424
      %v10440 = vpack.c.b16 %v10427, %v10426
      %v10441 = vpack.c.b16 %v10429, %v10428
      %v10442 = vpack.c.b16 %v10431, %v10430
      %v10443 = vpack.c.b16 %v10433, %v10432
      %v10444 = vpack.c.b16 %v10435, %v10434
      %v10445 = vpack.c.b16 %v10437, %v10436
      %v10447 = vsel %vm6711, %v10438, 0
      %v10450 = vsel %vm6711, %v10439, 0
      %v10453 = vsel %vm6711, %v10440, 0
      %v10456 = vsel %vm6711, %v10441, 0
      %v10459 = vsel %vm6711, %v10442, 0
      %v10462 = vsel %vm6711, %v10443, 0
      %v10465 = vsel %vm6711, %v10444, 0
      %v10468 = vsel %vm6711, %v10445, 0
      %v10471 = vsel %vm6736, %v10421, 0
      %10473 = vmatprep.subr.bf16.mxu0 0
      %10474 = vmatpush1.bf16.msra.mxu0 %v10471
      %10475 = vmatprep.subr.bf16.mxu0 0
      %10476 = vmatpush1.bf16.msra.mxu0 0
      %10477 = vmatprep.subr.bf16.mxu0 0
      %10478 = vmatpush1.bf16.msra.mxu0 0
      %10479 = vmatprep.subr.bf16.mxu0 0
      %10480 = vmatpush1.bf16.msra.mxu0 0
      %10481 = vmatprep.subr.bf16.mxu0 0
      %10482 = vmatpush1.bf16.msra.mxu0 0
      %10483 = vmatprep.subr.bf16.mxu0 0
      %10484 = vmatpush1.bf16.msra.mxu0 0
      %10485 = vmatprep.subr.bf16.mxu0 0
      %10486 = vmatpush1.bf16.msra.mxu0 0
      %10487 = vmatprep.subr.bf16.mxu0 0
      %10488 = vmatpush1.bf16.msra.mxu0 0
      %10489 = vmatprep.subr.bf16.mxu0 0
      %10490 = vmatpush1.bf16.msra.mxu0 0
      %10491 = vmatprep.subr.bf16.mxu0 0
      %10492 = vmatpush1.bf16.msra.mxu0 0
      %10493 = vmatprep.subr.bf16.mxu0 0
      %10494 = vmatpush1.bf16.msra.mxu0 0
      %10495 = vmatprep.subr.bf16.mxu0 0
      %10496 = vmatpush1.bf16.msra.mxu0 0
      %10497 = vmatprep.subr.bf16.mxu0 0
      %10498 = vmatpush1.bf16.msra.mxu0 0
      %10499 = vmatprep.subr.bf16.mxu0 0
      %10500 = vmatpush1.bf16.msra.mxu0 0
      %10501 = vmatprep.subr.bf16.mxu0 0
      %10502 = vmatpush1.bf16.msra.mxu0 0
      %10503 = vmatprep.subr.bf16.mxu0 0
      %10504 = vmatpush1.bf16.msra.mxu0 0
      %10505 = vmatprep.mubr.bf16.mxu0 0
      %10506 = vmatmul.mubr.bf16.gmra.mrb[0].mxu0 %v10447
      %v10507 = vpop.f32.mrb[0].mxu0
      %v10508 = vadd.f32 0.0, %v10507
      %v10509 = vpop.f32.mrb[0].mxu0
      %v10510 = vpop.f32.mrb[0].mxu0
      %v10511 = vadd.f32 0.0, %v10510
      %v10512 = vpop.f32.mrb[0].mxu0
      %10513 = vmatprep.mubr.bf16.mxu0 0
      %10514 = vmatmul.mubr.bf16.gmra.mrb[0].mxu0 %v10450
      %v10515 = vpop.f32.mrb[0].mxu0
      %v10516 = vadd.f32 0.0, %v10515
      %v10517 = vpop.f32.mrb[0].mxu0
      %v10518 = vpop.f32.mrb[0].mxu0
      %v10519 = vadd.f32 0.0, %v10518
      %v10520 = vpop.f32.mrb[0].mxu0
      %10521 = vmatprep.mubr.bf16.mxu0 0
      %10522 = vmatmul.mubr.bf16.gmra.mrb[0].mxu0 %v10453
      %v10523 = vpop.f32.mrb[0].mxu0
      %v10524 = vadd.f32 0.0, %v10523
      %v10525 = vpop.f32.mrb[0].mxu0
      %v10526 = vpop.f32.mrb[0].mxu0
      %v10527 = vadd.f32 0.0, %v10526
      %v10528 = vpop.f32.mrb[0].mxu0
      %10529 = vmatprep.mubr.bf16.mxu0 0
      %10530 = vmatmul.mubr.bf16.gmra.mrb[0].mxu0 %v10456
      %v10531 = vpop.f32.mrb[0].mxu0
      %v10532 = vadd.f32 0.0, %v10531
      %v10533 = vpop.f32.mrb[0].mxu0
      %v10534 = vpop.f32.mrb[0].mxu0
      %v10535 = vadd.f32 0.0, %v10534
      %v10536 = vpop.f32.mrb[0].mxu0
      %10537 = vmatprep.mubr.bf16.mxu0 0
      %10538 = vmatmul.mubr.bf16.gmra.mrb[0].mxu0 %v10459
      %v10539 = vpop.f32.mrb[0].mxu0
      %v10540 = vadd.f32 0.0, %v10539
      %v10541 = vpop.f32.mrb[0].mxu0
      %v10542 = vpop.f32.mrb[0].mxu0
      %v10543 = vadd.f32 0.0, %v10542
      %v10544 = vpop.f32.mrb[0].mxu0
      %10545 = vmatprep.mubr.bf16.mxu0 0
      %10546 = vmatmul.mubr.bf16.gmra.mrb[0].mxu0 %v10462
      %v10547 = vpop.f32.mrb[0].mxu0
      %v10548 = vadd.f32 0.0, %v10547
      %v10549 = vpop.f32.mrb[0].mxu0
      %v10550 = vpop.f32.mrb[0].mxu0
      %v10551 = vadd.f32 0.0, %v10550
      %v10552 = vpop.f32.mrb[0].mxu0
      %10553 = vmatprep.mubr.bf16.mxu0 0
      %10554 = vmatmul.mubr.bf16.gmra.mrb[0].mxu0 %v10465
      %v10555 = vpop.f32.mrb[0].mxu0
      %v10556 = vadd.f32 0.0, %v10555
      %v10557 = vpop.f32.mrb[0].mxu0
      %v10558 = vpop.f32.mrb[0].mxu0
      %v10559 = vadd.f32 0.0, %v10558
      %v10560 = vpop.f32.mrb[0].mxu0
      %10561 = vmatprep.mubr.bf16.mxu0 0
      %10562 = vmatmul.mubr.bf16.gmra.mrb[0].mxu0 %v10468
      %v10563 = vpop.f32.mrb[0].mxu0
      %v10564 = vadd.f32 0.0, %v10563
      %v10565 = vpop.f32.mrb[0].mxu0
      %v10566 = vpop.f32.mrb[0].mxu0
      %v10567 = vadd.f32 0.0, %v10566
      %v10568 = vpop.f32.mrb[0].mxu0
      %10569 = vdwg.mxu0
      %v10570 = vadd.f32 %v10189, %v10508
      %v10571 = vadd.f32 %v10190, %v10511
      %v10572 = vadd.f32 %v10191, %v10516
      %v10573 = vadd.f32 %v10192, %v10519
      %v10574 = vadd.f32 %v10193, %v10524
      %v10575 = vadd.f32 %v10194, %v10527
      %v10576 = vadd.f32 %v10195, %v10532
      %v10577 = vadd.f32 %v10196, %v10535
      %v10578 = vadd.f32 %v10197, %v10540
      %v10579 = vadd.f32 %v10198, %v10543
      %v10580 = vadd.f32 %v10199, %v10548
      %v10581 = vadd.f32 %v10200, %v10551
      %v10582 = vadd.f32 %v10201, %v10556
      %v10583 = vadd.f32 %v10202, %v10559
      %v10584 = vadd.f32 %v10203, %v10564
      %v10585 = vadd.f32 %v10204, %v10567
      %v10586 = vld [vmem:[%s6411] sm:$0xe]
      %v10587 = vld [vmem:[%s6411 + $0xc] sm:$0xe]
      %v10588 = vld [vmem:[%s6411 + $0x18] sm:$0xe]
      %v10589 = vld [vmem:[%s6411 + $0x24] sm:$0xe]
      %v10590 = vld [vmem:[%s6411 + $0x30] sm:$0xe]
      %v10591 = vld [vmem:[%s6411 + $0x3c] sm:$0xe]
      %v10592 = vld [vmem:[%s6411 + $0x48] sm:$0xe]
      %v10593 = vld [vmem:[%s6411 + $0x54] sm:$0xe]
      %v10618 = vrot.slane %v10586, 5
      %v10619 = vrot.slane %v10618, 4
      %v10620 = vrot.slane %v10206, 5
      %v10621 = vsel %vm1526, %v10619, %v10620
      %v10622 = vrot.slane %v10620, 4
      %v10623 = vrot.slane %v10207, 5
      %v10624 = vsel %vm1526, %v10622, %v10623
      %v10625 = vrot.slane %v10587, 5
      %v10626 = vrot.slane %v10625, 4
      %v10627 = vrot.slane %v10209, 5
      %v10628 = vsel %vm1526, %v10626, %v10627
      %v10629 = vrot.slane %v10627, 4
      %v10630 = vrot.slane %v10210, 5
      %v10631 = vsel %vm1526, %v10629, %v10630
      %v10632 = vrot.slane %v10588, 5
      %v10633 = vrot.slane %v10632, 4
      %v10634 = vrot.slane %v10212, 5
      %v10635 = vsel %vm1526, %v10633, %v10634
      %v10636 = vrot.slane %v10634, 4
      %v10637 = vrot.slane %v10213, 5
      %v10638 = vsel %vm1526, %v10636, %v10637
      %v10639 = vrot.slane %v10589, 5
      %v10640 = vrot.slane %v10639, 4
      %v10641 = vrot.slane %v10215, 5
      %v10642 = vsel %vm1526, %v10640, %v10641
      %v10643 = vrot.slane %v10641, 4
      %v10644 = vrot.slane %v10216, 5
      %v10645 = vsel %vm1526, %v10643, %v10644
      %v10646 = vrot.slane %v10590, 5
      %v10647 = vrot.slane %v10646, 4
      %v10648 = vrot.slane %v10218, 5
      %v10649 = vsel %vm1526, %v10647, %v10648
      %v10650 = vrot.slane %v10648, 4
      %v10651 = vrot.slane %v10219, 5
      %v10652 = vsel %vm1526, %v10650, %v10651
      %v10653 = vrot.slane %v10591, 5
      %v10654 = vrot.slane %v10653, 4
      %v10655 = vrot.slane %v10221, 5
      %v10656 = vsel %vm1526, %v10654, %v10655
      %v10657 = vrot.slane %v10655, 4
      %v10658 = vrot.slane %v10222, 5
      %v10659 = vsel %vm1526, %v10657, %v10658
      %v10660 = vrot.slane %v10592, 5
      %v10661 = vrot.slane %v10660, 4
      %v10662 = vrot.slane %v10224, 5
      %v10663 = vsel %vm1526, %v10661, %v10662
      %v10664 = vrot.slane %v10662, 4
      %v10665 = vrot.slane %v10225, 5
      %v10666 = vsel %vm1526, %v10664, %v10665
      %v10667 = vrot.slane %v10593, 5
      %v10668 = vrot.slane %v10667, 4
      %v10669 = vrot.slane %v10227, 5
      %v10670 = vsel %vm1526, %v10668, %v10669
      %v10671 = vrot.slane %v10669, 4
      %v10672 = vrot.slane %v10228, 5
      %v10673 = vsel %vm1526, %v10671, %v10672
      %v10674 = vld [vmem:[%s7915] sm:$0xf]
      %v10675 = vunpack.c.l.b16 %v10621
      %v10676 = vunpack.c.l.b16 %v10624
      %v10677 = vunpack.c.l.b16 %v10628
      %v10678 = vunpack.c.l.b16 %v10631
      %v10679 = vunpack.c.l.b16 %v10635
      %v10680 = vunpack.c.l.b16 %v10638
      %v10681 = vunpack.c.l.b16 %v10642
      %v10682 = vunpack.c.l.b16 %v10645
      %v10683 = vunpack.c.l.b16 %v10649
      %v10684 = vunpack.c.l.b16 %v10652
      %v10685 = vunpack.c.l.b16 %v10656
      %v10686 = vunpack.c.l.b16 %v10659
      %v10687 = vunpack.c.l.b16 %v10663
      %v10688 = vunpack.c.l.b16 %v10666
      %v10689 = vunpack.c.l.b16 %v10670
      %v10690 = vunpack.c.l.b16 %v10673
      %v10691 = vpack.c.b16 %v10676, %v10675
      %v10692 = vpack.c.b16 %v10678, %v10677
      %v10693 = vpack.c.b16 %v10680, %v10679
      %v10694 = vpack.c.b16 %v10682, %v10681
      %v10695 = vpack.c.b16 %v10684, %v10683
      %v10696 = vpack.c.b16 %v10686, %v10685
      %v10697 = vpack.c.b16 %v10688, %v10687
      %v10698 = vpack.c.b16 %v10690, %v10689
      %v10700 = vsel %vm6711, %v10691, 0
      %v10703 = vsel %vm6711, %v10692, 0
      %v10706 = vsel %vm6711, %v10693, 0
      %v10709 = vsel %vm6711, %v10694, 0
      %v10712 = vsel %vm6711, %v10695, 0
      %v10715 = vsel %vm6711, %v10696, 0
      %v10718 = vsel %vm6711, %v10697, 0
      %v10721 = vsel %vm6711, %v10698, 0
      %v10724 = vsel %vm6736, %v10674, 0
      %10726 = vmatprep.subr.bf16.mxu0 0
      %10727 = vmatpush1.bf16.msra.mxu0 %v10724
      %10728 = vmatprep.subr.bf16.mxu0 0
      %10729 = vmatpush1.bf16.msra.mxu0 0
      %10730 = vmatprep.subr.bf16.mxu0 0
      %10731 = vmatpush1.bf16.msra.mxu0 0
      %10732 = vmatprep.subr.bf16.mxu0 0
      %10733 = vmatpush1.bf16.msra.mxu0 0
      %10734 = vmatprep.subr.bf16.mxu0 0
      %10735 = vmatpush1.bf16.msra.mxu0 0
      %10736 = vmatprep.subr.bf16.mxu0 0
      %10737 = vmatpush1.bf16.msra.mxu0 0
      %10738 = vmatprep.subr.bf16.mxu0 0
      %10739 = vmatpush1.bf16.msra.mxu0 0
      %10740 = vmatprep.subr.bf16.mxu0 0
      %10741 = vmatpush1.bf16.msra.mxu0 0
      %10742 = vmatprep.subr.bf16.mxu0 0
      %10743 = vmatpush1.bf16.msra.mxu0 0
      %10744 = vmatprep.subr.bf16.mxu0 0
      %10745 = vmatpush1.bf16.msra.mxu0 0
      %10746 = vmatprep.subr.bf16.mxu0 0
      %10747 = vmatpush1.bf16.msra.mxu0 0
      %10748 = vmatprep.subr.bf16.mxu0 0
      %10749 = vmatpush1.bf16.msra.mxu0 0
      %10750 = vmatprep.subr.bf16.mxu0 0
      %10751 = vmatpush1.bf16.msra.mxu0 0
      %10752 = vmatprep.subr.bf16.mxu0 0
      %10753 = vmatpush1.bf16.msra.mxu0 0
      %10754 = vmatprep.subr.bf16.mxu0 0
      %10755 = vmatpush1.bf16.msra.mxu0 0
      %10756 = vmatprep.subr.bf16.mxu0 0
      %10757 = vmatpush1.bf16.msra.mxu0 0
      %10758 = vmatprep.mubr.bf16.mxu0 0
      %10759 = vmatmul.mubr.bf16.gmra.mrb[0].mxu0 %v10700
      %v10760 = vpop.f32.mrb[0].mxu0
      %v10761 = vadd.f32 0.0, %v10760
      %v10762 = vpop.f32.mrb[0].mxu0
      %v10763 = vpop.f32.mrb[0].mxu0
      %v10764 = vadd.f32 0.0, %v10763
      %v10765 = vpop.f32.mrb[0].mxu0
      %10766 = vmatprep.mubr.bf16.mxu0 0
      %10767 = vmatmul.mubr.bf16.gmra.mrb[0].mxu0 %v10703
      %v10768 = vpop.f32.mrb[0].mxu0
      %v10769 = vadd.f32 0.0, %v10768
      %v10770 = vpop.f32.mrb[0].mxu0
      %v10771 = vpop.f32.mrb[0].mxu0
      %v10772 = vadd.f32 0.0, %v10771
      %v10773 = vpop.f32.mrb[0].mxu0
      %10774 = vmatprep.mubr.bf16.mxu0 0
      %10775 = vmatmul.mubr.bf16.gmra.mrb[0].mxu0 %v10706
      %v10776 = vpop.f32.mrb[0].mxu0
      %v10777 = vadd.f32 0.0, %v10776
      %v10778 = vpop.f32.mrb[0].mxu0
      %v10779 = vpop.f32.mrb[0].mxu0
      %v10780 = vadd.f32 0.0, %v10779
      %v10781 = vpop.f32.mrb[0].mxu0
      %10782 = vmatprep.mubr.bf16.mxu0 0
      %10783 = vmatmul.mubr.bf16.gmra.mrb[0].mxu0 %v10709
      %v10784 = vpop.f32.mrb[0].mxu0
      %v10785 = vadd.f32 0.0, %v10784
      %v10786 = vpop.f32.mrb[0].mxu0
      %v10787 = vpop.f32.mrb[0].mxu0
      %v10788 = vadd.f32 0.0, %v10787
      %v10789 = vpop.f32.mrb[0].mxu0
      %10790 = vmatprep.mubr.bf16.mxu0 0
      %10791 = vmatmul.mubr.bf16.gmra.mrb[0].mxu0 %v10712
      %v10792 = vpop.f32.mrb[0].mxu0
      %v10793 = vadd.f32 0.0, %v10792
      %v10794 = vpop.f32.mrb[0].mxu0
      %v10795 = vpop.f32.mrb[0].mxu0
      %v10796 = vadd.f32 0.0, %v10795
      %v10797 = vpop.f32.mrb[0].mxu0
      %10798 = vmatprep.mubr.bf16.mxu0 0
      %10799 = vmatmul.mubr.bf16.gmra.mrb[0].mxu0 %v10715
      %v10800 = vpop.f32.mrb[0].mxu0
      %v10801 = vadd.f32 0.0, %v10800
      %v10802 = vpop.f32.mrb[0].mxu0
      %v10803 = vpop.f32.mrb[0].mxu0
      %v10804 = vadd.f32 0.0, %v10803
      %v10805 = vpop.f32.mrb[0].mxu0
      %10806 = vmatprep.mubr.bf16.mxu0 0
      %10807 = vmatmul.mubr.bf16.gmra.mrb[0].mxu0 %v10718
      %v10808 = vpop.f32.mrb[0].mxu0
      %v10809 = vadd.f32 0.0, %v10808
      %v10810 = vpop.f32.mrb[0].mxu0
      %v10811 = vpop.f32.mrb[0].mxu0
      %v10812 = vadd.f32 0.0, %v10811
      %v10813 = vpop.f32.mrb[0].mxu0
      %10814 = vmatprep.mubr.bf16.mxu0 0
      %10815 = vmatmul.mubr.bf16.gmra.mrb[0].mxu0 %v10721
      %v10816 = vpop.f32.mrb[0].mxu0
      %v10817 = vadd.f32 0.0, %v10816
      %v10818 = vpop.f32.mrb[0].mxu0
      %v10819 = vpop.f32.mrb[0].mxu0
      %v10820 = vadd.f32 0.0, %v10819
      %v10821 = vpop.f32.mrb[0].mxu0
      %10822 = vdwg.mxu0
      %v10823 = vadd.f32 %v10570, %v10761
      %v10824 = vadd.f32 %v10571, %v10764
      %v10825 = vadd.f32 %v10572, %v10769
      %v10826 = vadd.f32 %v10573, %v10772
      %v10827 = vadd.f32 %v10574, %v10777
      %v10828 = vadd.f32 %v10575, %v10780
      %v10829 = vadd.f32 %v10576, %v10785
      %v10830 = vadd.f32 %v10577, %v10788
      %v10831 = vadd.f32 %v10578, %v10793
      %v10832 = vadd.f32 %v10579, %v10796
      %v10833 = vadd.f32 %v10580, %v10801
      %v10834 = vadd.f32 %v10581, %v10804
      %v10835 = vadd.f32 %v10582, %v10809
      %v10836 = vadd.f32 %v10583, %v10812
      %v10837 = vadd.f32 %v10584, %v10817
      %v10838 = vadd.f32 %v10585, %v10820
      %s10839 = scalar_lea.vmem [#allocation3], 120
      %v10840 = vld [vmem:[%s10839] sm:$0xf]
      %v10841 = vld [vmem:[%s10839 + $0x4] sm:$0xf]
      %v10842 = vld [vmem:[%s10839 + $0xc] sm:$0xf]
      %v10843 = vld [vmem:[%s10839 + $0x10] sm:$0xf]
      %v10844 = vld [vmem:[%s10839 + $0x18] sm:$0xf]
      %v10845 = vld [vmem:[%s10839 + $0x1c] sm:$0xf]
      %v10846 = vld [vmem:[%s10839 + $0x24] sm:$0xf]
      %v10847 = vld [vmem:[%s10839 + $0x28] sm:$0xf]
      %v10848 = vld [vmem:[%s10839 + $0x30] sm:$0xf]
      %v10849 = vld [vmem:[%s10839 + $0x34] sm:$0xf]
      %v10850 = vld [vmem:[%s10839 + $0x3c] sm:$0xf]
      %v10851 = vld [vmem:[%s10839 + $0x40] sm:$0xf]
      %v10852 = vld [vmem:[%s10839 + $0x48] sm:$0xf]
      %v10853 = vld [vmem:[%s10839 + $0x4c] sm:$0xf]
      %v10854 = vld [vmem:[%s10839 + $0x54] sm:$0xf]
      %v10855 = vld [vmem:[%s10839 + $0x58] sm:$0xf]
      %v10856 = vld [vmem:[%s8098] sm:$0xf]
      %v10873 = vunpack.c.l.b16 %v10840
      %v10874 = vunpack.c.l.b16 %v10841
      %v10875 = vunpack.c.l.b16 %v10842
      %v10876 = vunpack.c.l.b16 %v10843
      %v10877 = vunpack.c.l.b16 %v10844
      %v10878 = vunpack.c.l.b16 %v10845
      %v10879 = vunpack.c.l.b16 %v10846
      %v10880 = vunpack.c.l.b16 %v10847
      %v10881 = vunpack.c.l.b16 %v10848
      %v10882 = vunpack.c.l.b16 %v10849
      %v10883 = vunpack.c.l.b16 %v10850
      %v10884 = vunpack.c.l.b16 %v10851
      %v10885 = vunpack.c.l.b16 %v10852
      %v10886 = vunpack.c.l.b16 %v10853
      %v10887 = vunpack.c.l.b16 %v10854
      %v10888 = vunpack.c.l.b16 %v10855
      %v10889 = vpack.c.b16 %v10874, %v10873
      %v10890 = vpack.c.b16 %v10876, %v10875
      %v10891 = vpack.c.b16 %v10878, %v10877
      %v10892 = vpack.c.b16 %v10880, %v10879
      %v10893 = vpack.c.b16 %v10882, %v10881
      %v10894 = vpack.c.b16 %v10884, %v10883
      %v10895 = vpack.c.b16 %v10886, %v10885
      %v10896 = vpack.c.b16 %v10888, %v10887
      %v10898 = vsel %vm6711, %v10889, 0
      %v10901 = vsel %vm6711, %v10890, 0
      %v10904 = vsel %vm6711, %v10891, 0
      %v10907 = vsel %vm6711, %v10892, 0
      %v10910 = vsel %vm6711, %v10893, 0
      %v10913 = vsel %vm6711, %v10894, 0
      %v10916 = vsel %vm6711, %v10895, 0
      %v10919 = vsel %vm6711, %v10896, 0
      %v10922 = vsel %vm6736, %v10856, 0
      %10924 = vmatprep.subr.bf16.mxu0 0
      %10925 = vmatpush1.bf16.msra.mxu0 %v10922
      %10926 = vmatprep.subr.bf16.mxu0 0
      %10927 = vmatpush1.bf16.msra.mxu0 0
      %10928 = vmatprep.subr.bf16.mxu0 0
      %10929 = vmatpush1.bf16.msra.mxu0 0
      %10930 = vmatprep.subr.bf16.mxu0 0
      %10931 = vmatpush1.bf16.msra.mxu0 0
      %10932 = vmatprep.subr.bf16.mxu0 0
      %10933 = vmatpush1.bf16.msra.mxu0 0
      %10934 = vmatprep.subr.bf16.mxu0 0
      %10935 = vmatpush1.bf16.msra.mxu0 0
      %10936 = vmatprep.subr.bf16.mxu0 0
      %10937 = vmatpush1.bf16.msra.mxu0 0
      %10938 = vmatprep.subr.bf16.mxu0 0
      %10939 = vmatpush1.bf16.msra.mxu0 0
      %10940 = vmatprep.subr.bf16.mxu0 0
      %10941 = vmatpush1.bf16.msra.mxu0 0
      %10942 = vmatprep.subr.bf16.mxu0 0
      %10943 = vmatpush1.bf16.msra.mxu0 0
      %10944 = vmatprep.subr.bf16.mxu0 0
      %10945 = vmatpush1.bf16.msra.mxu0 0
      %10946 = vmatprep.subr.bf16.mxu0 0
      %10947 = vmatpush1.bf16.msra.mxu0 0
      %10948 = vmatprep.subr.bf16.mxu0 0
      %10949 = vmatpush1.bf16.msra.mxu0 0
      %10950 = vmatprep.subr.bf16.mxu0 0
      %10951 = vmatpush1.bf16.msra.mxu0 0
      %10952 = vmatprep.subr.bf16.mxu0 0
      %10953 = vmatpush1.bf16.msra.mxu0 0
      %10954 = vmatprep.subr.bf16.mxu0 0
      %10955 = vmatpush1.bf16.msra.mxu0 0
      %10956 = vmatprep.mubr.bf16.mxu0 0
      %10957 = vmatmul.mubr.bf16.gmra.mrb[0].mxu0 %v10898
      %v10958 = vpop.f32.mrb[0].mxu0
      %v10959 = vadd.f32 0.0, %v10958
      %v10960 = vpop.f32.mrb[0].mxu0
      %v10961 = vpop.f32.mrb[0].mxu0
      %v10962 = vadd.f32 0.0, %v10961
      %v10963 = vpop.f32.mrb[0].mxu0
      %10964 = vmatprep.mubr.bf16.mxu0 0
      %10965 = vmatmul.mubr.bf16.gmra.mrb[0].mxu0 %v10901
      %v10966 = vpop.f32.mrb[0].mxu0
      %v10967 = vadd.f32 0.0, %v10966
      %v10968 = vpop.f32.mrb[0].mxu0
      %v10969 = vpop.f32.mrb[0].mxu0
      %v10970 = vadd.f32 0.0, %v10969
      %v10971 = vpop.f32.mrb[0].mxu0
      %10972 = vmatprep.mubr.bf16.mxu0 0
      %10973 = vmatmul.mubr.bf16.gmra.mrb[0].mxu0 %v10904
      %v10974 = vpop.f32.mrb[0].mxu0
      %v10975 = vadd.f32 0.0, %v10974
      %v10976 = vpop.f32.mrb[0].mxu0
      %v10977 = vpop.f32.mrb[0].mxu0
      %v10978 = vadd.f32 0.0, %v10977
      %v10979 = vpop.f32.mrb[0].mxu0
      %10980 = vmatprep.mubr.bf16.mxu0 0
      %10981 = vmatmul.mubr.bf16.gmra.mrb[0].mxu0 %v10907
      %v10982 = vpop.f32.mrb[0].mxu0
      %v10983 = vadd.f32 0.0, %v10982
      %v10984 = vpop.f32.mrb[0].mxu0
      %v10985 = vpop.f32.mrb[0].mxu0
      %v10986 = vadd.f32 0.0, %v10985
      %v10987 = vpop.f32.mrb[0].mxu0
      %10988 = vmatprep.mubr.bf16.mxu0 0
      %10989 = vmatmul.mubr.bf16.gmra.mrb[0].mxu0 %v10910
      %v10990 = vpop.f32.mrb[0].mxu0
      %v10991 = vadd.f32 0.0, %v10990
      %v10992 = vpop.f32.mrb[0].mxu0
      %v10993 = vpop.f32.mrb[0].mxu0
      %v10994 = vadd.f32 0.0, %v10993
      %v10995 = vpop.f32.mrb[0].mxu0
      %10996 = vmatprep.mubr.bf16.mxu0 0
      %10997 = vmatmul.mubr.bf16.gmra.mrb[0].mxu0 %v10913
      %v10998 = vpop.f32.mrb[0].mxu0
      %v10999 = vadd.f32 0.0, %v10998
      %v11000 = vpop.f32.mrb[0].mxu0
      %v11001 = vpop.f32.mrb[0].mxu0
      %v11002 = vadd.f32 0.0, %v11001
      %v11003 = vpop.f32.mrb[0].mxu0
      %11004 = vmatprep.mubr.bf16.mxu0 0
      %11005 = vmatmul.mubr.bf16.gmra.mrb[0].mxu0 %v10916
      %v11006 = vpop.f32.mrb[0].mxu0
      %v11007 = vadd.f32 0.0, %v11006
      %v11008 = vpop.f32.mrb[0].mxu0
      %v11009 = vpop.f32.mrb[0].mxu0
      %v11010 = vadd.f32 0.0, %v11009
      %v11011 = vpop.f32.mrb[0].mxu0
      %11012 = vmatprep.mubr.bf16.mxu0 0
      %11013 = vmatmul.mubr.bf16.gmra.mrb[0].mxu0 %v10919
      %v11014 = vpop.f32.mrb[0].mxu0
      %v11015 = vadd.f32 0.0, %v11014
      %v11016 = vpop.f32.mrb[0].mxu0
      %v11017 = vpop.f32.mrb[0].mxu0
      %v11018 = vadd.f32 0.0, %v11017
      %v11019 = vpop.f32.mrb[0].mxu0
      %11020 = vdwg.mxu0
      %v11021 = vadd.f32 %v10823, %v10959
      %v11022 = vadd.f32 %v10824, %v10962
      %v11023 = vadd.f32 %v10825, %v10967
      %v11024 = vadd.f32 %v10826, %v10970
      %v11025 = vadd.f32 %v10827, %v10975
      %v11026 = vadd.f32 %v10828, %v10978
      %v11027 = vadd.f32 %v10829, %v10983
      %v11028 = vadd.f32 %v10830, %v10986
      %v11029 = vadd.f32 %v10831, %v10991
      %v11030 = vadd.f32 %v10832, %v10994
      %v11031 = vadd.f32 %v10833, %v10999
      %v11032 = vadd.f32 %v10834, %v11002
      %v11033 = vadd.f32 %v10835, %v11007
      %v11034 = vadd.f32 %v10836, %v11010
      %v11035 = vadd.f32 %v10837, %v11015
      %v11036 = vadd.f32 %v10838, %v11018
      %v11037 = vld [vmem:[%s10839] sm:$0xf]
      %v11038 = vld [vmem:[%s10839 + $0x4] sm:$0xf]
      %v11039 = vld [vmem:[%s10839 + $0x8] sm:$0x1]
      %v11040 = vld [vmem:[%s10839 + $0xc] sm:$0xf]
      %v11041 = vld [vmem:[%s10839 + $0x10] sm:$0xf]
      %v11042 = vld [vmem:[%s10839 + $0x14] sm:$0x1]
      %v11043 = vld [vmem:[%s10839 + $0x18] sm:$0xf]
      %v11044 = vld [vmem:[%s10839 + $0x1c] sm:$0xf]
      %v11045 = vld [vmem:[%s10839 + $0x20] sm:$0x1]
      %v11046 = vld [vmem:[%s10839 + $0x24] sm:$0xf]
      %v11047 = vld [vmem:[%s10839 + $0x28] sm:$0xf]
      %v11048 = vld [vmem:[%s10839 + $0x2c] sm:$0x1]
      %v11049 = vld [vmem:[%s10839 + $0x30] sm:$0xf]
      %v11050 = vld [vmem:[%s10839 + $0x34] sm:$0xf]
      %v11051 = vld [vmem:[%s10839 + $0x38] sm:$0x1]
      %v11052 = vld [vmem:[%s10839 + $0x3c] sm:$0xf]
      %v11053 = vld [vmem:[%s10839 + $0x40] sm:$0xf]
      %v11054 = vld [vmem:[%s10839 + $0x44] sm:$0x1]
      %v11055 = vld [vmem:[%s10839 + $0x48] sm:$0xf]
      %v11056 = vld [vmem:[%s10839 + $0x4c] sm:$0xf]
      %v11057 = vld [vmem:[%s10839 + $0x50] sm:$0x1]
      %v11058 = vld [vmem:[%s10839 + $0x54] sm:$0xf]
      %v11059 = vld [vmem:[%s10839 + $0x58] sm:$0xf]
      %v11060 = vld [vmem:[%s10839 + $0x5c] sm:$0x1]
      %v11062 = vshrl.u32 %v11037, 16
      %v11064 = vrot.slane %v11062, 4
      %v11065 = vshll.u32 %v11037, 16
      %v11067 = vrot.slane %v11065, 5
      %v11068 = vor.u32 %v11064, %v11067
      %v11069 = vrot.slane %v11068, 4
      %v11071 = vshll.u32 %v11038, 16
      %v11073 = vrot.slane %v11071, 5
      %v11074 = vsel %vm991, %v11069, %v11073
      %v11075 = vshrl.u32 %v11038, 16
      %v11077 = vrot.slane %v11075, 4
      %v11078 = vor.u32 %v11077, %v11073
      %v11079 = vrot.slane %v11078, 4
      %v11081 = vshll.u32 %v11039, 16
      %v11083 = vrot.slane %v11081, 5
      %v11084 = vsel %vm991, %v11079, %v11083
      %v11086 = vshrl.u32 %v11040, 16
      %v11088 = vrot.slane %v11086, 4
      %v11089 = vshll.u32 %v11040, 16
      %v11091 = vrot.slane %v11089, 5
      %v11092 = vor.u32 %v11088, %v11091
      %v11093 = vrot.slane %v11092, 4
      %v11095 = vshll.u32 %v11041, 16
      %v11097 = vrot.slane %v11095, 5
      %v11098 = vsel %vm991, %v11093, %v11097
      %v11099 = vshrl.u32 %v11041, 16
      %v11101 = vrot.slane %v11099, 4
      %v11102 = vor.u32 %v11101, %v11097
      %v11103 = vrot.slane %v11102, 4
      %v11105 = vshll.u32 %v11042, 16
      %v11107 = vrot.slane %v11105, 5
      %v11108 = vsel %vm991, %v11103, %v11107
      %v11110 = vshrl.u32 %v11043, 16
      %v11112 = vrot.slane %v11110, 4
      %v11113 = vshll.u32 %v11043, 16
      %v11115 = vrot.slane %v11113, 5
      %v11116 = vor.u32 %v11112, %v11115
      %v11117 = vrot.slane %v11116, 4
      %v11119 = vshll.u32 %v11044, 16
      %v11121 = vrot.slane %v11119, 5
      %v11122 = vsel %vm991, %v11117, %v11121
      %v11123 = vshrl.u32 %v11044, 16
      %v11125 = vrot.slane %v11123, 4
      %v11126 = vor.u32 %v11125, %v11121
      %v11127 = vrot.slane %v11126, 4
      %v11129 = vshll.u32 %v11045, 16
      %v11131 = vrot.slane %v11129, 5
      %v11132 = vsel %vm991, %v11127, %v11131
      %v11134 = vshrl.u32 %v11046, 16
      %v11136 = vrot.slane %v11134, 4
      %v11137 = vshll.u32 %v11046, 16
      %v11139 = vrot.slane %v11137, 5
      %v11140 = vor.u32 %v11136, %v11139
      %v11141 = vrot.slane %v11140, 4
      %v11143 = vshll.u32 %v11047, 16
      %v11145 = vrot.slane %v11143, 5
      %v11146 = vsel %vm991, %v11141, %v11145
      %v11147 = vshrl.u32 %v11047, 16
      %v11149 = vrot.slane %v11147, 4
      %v11150 = vor.u32 %v11149, %v11145
      %v11151 = vrot.slane %v11150, 4
      %v11153 = vshll.u32 %v11048, 16
      %v11155 = vrot.slane %v11153, 5
      %v11156 = vsel %vm991, %v11151, %v11155
      %v11158 = vshrl.u32 %v11049, 16
      %v11160 = vrot.slane %v11158, 4
      %v11161 = vshll.u32 %v11049, 16
      %v11163 = vrot.slane %v11161, 5
      %v11164 = vor.u32 %v11160, %v11163
      %v11165 = vrot.slane %v11164, 4
      %v11167 = vshll.u32 %v11050, 16
      %v11169 = vrot.slane %v11167, 5
      %v11170 = vsel %vm991, %v11165, %v11169
      %v11171 = vshrl.u32 %v11050, 16
      %v11173 = vrot.slane %v11171, 4
      %v11174 = vor.u32 %v11173, %v11169
      %v11175 = vrot.slane %v11174, 4
      %v11177 = vshll.u32 %v11051, 16
      %v11179 = vrot.slane %v11177, 5
      %v11180 = vsel %vm991, %v11175, %v11179
      %v11182 = vshrl.u32 %v11052, 16
      %v11184 = vrot.slane %v11182, 4
      %v11185 = vshll.u32 %v11052, 16
      %v11187 = vrot.slane %v11185, 5
      %v11188 = vor.u32 %v11184, %v11187
      %v11189 = vrot.slane %v11188, 4
      %v11191 = vshll.u32 %v11053, 16
      %v11193 = vrot.slane %v11191, 5
      %v11194 = vsel %vm991, %v11189, %v11193
      %v11195 = vshrl.u32 %v11053, 16
      %v11197 = vrot.slane %v11195, 4
      %v11198 = vor.u32 %v11197, %v11193
      %v11199 = vrot.slane %v11198, 4
      %v11201 = vshll.u32 %v11054, 16
      %v11203 = vrot.slane %v11201, 5
      %v11204 = vsel %vm991, %v11199, %v11203
      %v11206 = vshrl.u32 %v11055, 16
      %v11208 = vrot.slane %v11206, 4
      %v11209 = vshll.u32 %v11055, 16
      %v11211 = vrot.slane %v11209, 5
      %v11212 = vor.u32 %v11208, %v11211
      %v11213 = vrot.slane %v11212, 4
      %v11215 = vshll.u32 %v11056, 16
      %v11217 = vrot.slane %v11215, 5
      %v11218 = vsel %vm991, %v11213, %v11217
      %v11219 = vshrl.u32 %v11056, 16
      %v11221 = vrot.slane %v11219, 4
      %v11222 = vor.u32 %v11221, %v11217
      %v11223 = vrot.slane %v11222, 4
      %v11225 = vshll.u32 %v11057, 16
      %v11227 = vrot.slane %v11225, 5
      %v11228 = vsel %vm991, %v11223, %v11227
      %v11230 = vshrl.u32 %v11058, 16
      %v11232 = vrot.slane %v11230, 4
      %v11233 = vshll.u32 %v11058, 16
      %v11235 = vrot.slane %v11233, 5
      %v11236 = vor.u32 %v11232, %v11235
      %v11237 = vrot.slane %v11236, 4
      %v11239 = vshll.u32 %v11059, 16
      %v11241 = vrot.slane %v11239, 5
      %v11242 = vsel %vm991, %v11237, %v11241
      %v11243 = vshrl.u32 %v11059, 16
      %v11245 = vrot.slane %v11243, 4
      %v11246 = vor.u32 %v11245, %v11241
      %v11247 = vrot.slane %v11246, 4
      %v11249 = vshll.u32 %v11060, 16
      %v11251 = vrot.slane %v11249, 5
      %v11252 = vsel %vm991, %v11247, %v11251
      %v11253 = vld [vmem:[%s8496] sm:$0xf]
      %v11254 = vunpack.c.l.b16 %v11074
      %v11255 = vunpack.c.l.b16 %v11084
      %v11256 = vunpack.c.l.b16 %v11098
      %v11257 = vunpack.c.l.b16 %v11108
      %v11258 = vunpack.c.l.b16 %v11122
      %v11259 = vunpack.c.l.b16 %v11132
      %v11260 = vunpack.c.l.b16 %v11146
      %v11261 = vunpack.c.l.b16 %v11156
      %v11262 = vunpack.c.l.b16 %v11170
      %v11263 = vunpack.c.l.b16 %v11180
      %v11264 = vunpack.c.l.b16 %v11194
      %v11265 = vunpack.c.l.b16 %v11204
      %v11266 = vunpack.c.l.b16 %v11218
      %v11267 = vunpack.c.l.b16 %v11228
      %v11268 = vunpack.c.l.b16 %v11242
      %v11269 = vunpack.c.l.b16 %v11252
      %v11270 = vpack.c.b16 %v11255, %v11254
      %v11271 = vpack.c.b16 %v11257, %v11256
      %v11272 = vpack.c.b16 %v11259, %v11258
      %v11273 = vpack.c.b16 %v11261, %v11260
      %v11274 = vpack.c.b16 %v11263, %v11262
      %v11275 = vpack.c.b16 %v11265, %v11264
      %v11276 = vpack.c.b16 %v11267, %v11266
      %v11277 = vpack.c.b16 %v11269, %v11268
      %v11279 = vsel %vm6711, %v11270, 0
      %v11282 = vsel %vm6711, %v11271, 0
      %v11285 = vsel %vm6711, %v11272, 0
      %v11288 = vsel %vm6711, %v11273, 0
      %v11291 = vsel %vm6711, %v11274, 0
      %v11294 = vsel %vm6711, %v11275, 0
      %v11297 = vsel %vm6711, %v11276, 0
      %v11300 = vsel %vm6711, %v11277, 0
      %v11303 = vsel %vm6736, %v11253, 0
      %11305 = vmatprep.subr.bf16.mxu0 0
      %11306 = vmatpush1.bf16.msra.mxu0 %v11303
      %11307 = vmatprep.subr.bf16.mxu0 0
      %11308 = vmatpush1.bf16.msra.mxu0 0
      %11309 = vmatprep.subr.bf16.mxu0 0
      %11310 = vmatpush1.bf16.msra.mxu0 0
      %11311 = vmatprep.subr.bf16.mxu0 0
      %11312 = vmatpush1.bf16.msra.mxu0 0
      %11313 = vmatprep.subr.bf16.mxu0 0
      %11314 = vmatpush1.bf16.msra.mxu0 0
      %11315 = vmatprep.subr.bf16.mxu0 0
      %11316 = vmatpush1.bf16.msra.mxu0 0
      %11317 = vmatprep.subr.bf16.mxu0 0
      %11318 = vmatpush1.bf16.msra.mxu0 0
      %11319 = vmatprep.subr.bf16.mxu0 0
      %11320 = vmatpush1.bf16.msra.mxu0 0
      %11321 = vmatprep.subr.bf16.mxu0 0
      %11322 = vmatpush1.bf16.msra.mxu0 0
      %11323 = vmatprep.subr.bf16.mxu0 0
      %11324 = vmatpush1.bf16.msra.mxu0 0
      %11325 = vmatprep.subr.bf16.mxu0 0
      %11326 = vmatpush1.bf16.msra.mxu0 0
      %11327 = vmatprep.subr.bf16.mxu0 0
      %11328 = vmatpush1.bf16.msra.mxu0 0
      %11329 = vmatprep.subr.bf16.mxu0 0
      %11330 = vmatpush1.bf16.msra.mxu0 0
      %11331 = vmatprep.subr.bf16.mxu0 0
      %11332 = vmatpush1.bf16.msra.mxu0 0
      %11333 = vmatprep.subr.bf16.mxu0 0
      %11334 = vmatpush1.bf16.msra.mxu0 0
      %11335 = vmatprep.subr.bf16.mxu0 0
      %11336 = vmatpush1.bf16.msra.mxu0 0
      %11337 = vmatprep.mubr.bf16.mxu0 0
      %11338 = vmatmul.mubr.bf16.gmra.mrb[0].mxu0 %v11279
      %v11339 = vpop.f32.mrb[0].mxu0
      %v11340 = vadd.f32 0.0, %v11339
      %v11341 = vpop.f32.mrb[0].mxu0
      %v11342 = vpop.f32.mrb[0].mxu0
      %v11343 = vadd.f32 0.0, %v11342
      %v11344 = vpop.f32.mrb[0].mxu0
      %11345 = vmatprep.mubr.bf16.mxu0 0
      %11346 = vmatmul.mubr.bf16.gmra.mrb[0].mxu0 %v11282
      %v11347 = vpop.f32.mrb[0].mxu0
      %v11348 = vadd.f32 0.0, %v11347
      %v11349 = vpop.f32.mrb[0].mxu0
      %v11350 = vpop.f32.mrb[0].mxu0
      %v11351 = vadd.f32 0.0, %v11350
      %v11352 = vpop.f32.mrb[0].mxu0
      %11353 = vmatprep.mubr.bf16.mxu0 0
      %11354 = vmatmul.mubr.bf16.gmra.mrb[0].mxu0 %v11285
      %v11355 = vpop.f32.mrb[0].mxu0
      %v11356 = vadd.f32 0.0, %v11355
      %v11357 = vpop.f32.mrb[0].mxu0
      %v11358 = vpop.f32.mrb[0].mxu0
      %v11359 = vadd.f32 0.0, %v11358
      %v11360 = vpop.f32.mrb[0].mxu0
      %11361 = vmatprep.mubr.bf16.mxu0 0
      %11362 = vmatmul.mubr.bf16.gmra.mrb[0].mxu0 %v11288
      %v11363 = vpop.f32.mrb[0].mxu0
      %v11364 = vadd.f32 0.0, %v11363
      %v11365 = vpop.f32.mrb[0].mxu0
      %v11366 = vpop.f32.mrb[0].mxu0
      %v11367 = vadd.f32 0.0, %v11366
      %v11368 = vpop.f32.mrb[0].mxu0
      %11369 = vmatprep.mubr.bf16.mxu0 0
      %11370 = vmatmul.mubr.bf16.gmra.mrb[0].mxu0 %v11291
      %v11371 = vpop.f32.mrb[0].mxu0
      %v11372 = vadd.f32 0.0, %v11371
      %v11373 = vpop.f32.mrb[0].mxu0
      %v11374 = vpop.f32.mrb[0].mxu0
      %v11375 = vadd.f32 0.0, %v11374
      %v11376 = vpop.f32.mrb[0].mxu0
      %11377 = vmatprep.mubr.bf16.mxu0 0
      %11378 = vmatmul.mubr.bf16.gmra.mrb[0].mxu0 %v11294
      %v11379 = vpop.f32.mrb[0].mxu0
      %v11380 = vadd.f32 0.0, %v11379
      %v11381 = vpop.f32.mrb[0].mxu0
      %v11382 = vpop.f32.mrb[0].mxu0
      %v11383 = vadd.f32 0.0, %v11382
      %v11384 = vpop.f32.mrb[0].mxu0
      %11385 = vmatprep.mubr.bf16.mxu0 0
      %11386 = vmatmul.mubr.bf16.gmra.mrb[0].mxu0 %v11297
      %v11387 = vpop.f32.mrb[0].mxu0
      %v11388 = vadd.f32 0.0, %v11387
      %v11389 = vpop.f32.mrb[0].mxu0
      %v11390 = vpop.f32.mrb[0].mxu0
      %v11391 = vadd.f32 0.0, %v11390
      %v11392 = vpop.f32.mrb[0].mxu0
      %11393 = vmatprep.mubr.bf16.mxu0 0
      %11394 = vmatmul.mubr.bf16.gmra.mrb[0].mxu0 %v11300
      %v11395 = vpop.f32.mrb[0].mxu0
      %v11396 = vadd.f32 0.0, %v11395
      %v11397 = vpop.f32.mrb[0].mxu0
      %v11398 = vpop.f32.mrb[0].mxu0
      %v11399 = vadd.f32 0.0, %v11398
      %v11400 = vpop.f32.mrb[0].mxu0
      %11401 = vdwg.mxu0
      %v11402 = vadd.f32 %v11021, %v11340
      %v11403 = vadd.f32 %v11022, %v11343
      %v11404 = vadd.f32 %v11023, %v11348
      %v11405 = vadd.f32 %v11024, %v11351
      %v11406 = vadd.f32 %v11025, %v11356
      %v11407 = vadd.f32 %v11026, %v11359
      %v11408 = vadd.f32 %v11027, %v11364
      %v11409 = vadd.f32 %v11028, %v11367
      %v11410 = vadd.f32 %v11029, %v11372
      %v11411 = vadd.f32 %v11030, %v11375
      %v11412 = vadd.f32 %v11031, %v11380
      %v11413 = vadd.f32 %v11032, %v11383
      %v11414 = vadd.f32 %v11033, %v11388
      %v11415 = vadd.f32 %v11034, %v11391
      %v11416 = vadd.f32 %v11035, %v11396
      %v11417 = vadd.f32 %v11036, %v11399
      %v11418 = vld [vmem:[%s10839] sm:$0xe]
      %v11419 = vld [vmem:[%s10839 + $0xc] sm:$0xe]
      %v11420 = vld [vmem:[%s10839 + $0x18] sm:$0xe]
      %v11421 = vld [vmem:[%s10839 + $0x24] sm:$0xe]
      %v11422 = vld [vmem:[%s10839 + $0x30] sm:$0xe]
      %v11423 = vld [vmem:[%s10839 + $0x3c] sm:$0xe]
      %v11424 = vld [vmem:[%s10839 + $0x48] sm:$0xe]
      %v11425 = vld [vmem:[%s10839 + $0x54] sm:$0xe]
      %v11450 = vrot.slane %v11418, 5
      %v11451 = vrot.slane %v11450, 4
      %v11452 = vrot.slane %v11038, 5
      %v11453 = vsel %vm1526, %v11451, %v11452
      %v11454 = vrot.slane %v11452, 4
      %v11455 = vrot.slane %v11039, 5
      %v11456 = vsel %vm1526, %v11454, %v11455
      %v11457 = vrot.slane %v11419, 5
      %v11458 = vrot.slane %v11457, 4
      %v11459 = vrot.slane %v11041, 5
      %v11460 = vsel %vm1526, %v11458, %v11459
      %v11461 = vrot.slane %v11459, 4
      %v11462 = vrot.slane %v11042, 5
      %v11463 = vsel %vm1526, %v11461, %v11462
      %v11464 = vrot.slane %v11420, 5
      %v11465 = vrot.slane %v11464, 4
      %v11466 = vrot.slane %v11044, 5
      %v11467 = vsel %vm1526, %v11465, %v11466
      %v11468 = vrot.slane %v11466, 4
      %v11469 = vrot.slane %v11045, 5
      %v11470 = vsel %vm1526, %v11468, %v11469
      %v11471 = vrot.slane %v11421, 5
      %v11472 = vrot.slane %v11471, 4
      %v11473 = vrot.slane %v11047, 5
      %v11474 = vsel %vm1526, %v11472, %v11473
      %v11475 = vrot.slane %v11473, 4
      %v11476 = vrot.slane %v11048, 5
      %v11477 = vsel %vm1526, %v11475, %v11476
      %v11478 = vrot.slane %v11422, 5
      %v11479 = vrot.slane %v11478, 4
      %v11480 = vrot.slane %v11050, 5
      %v11481 = vsel %vm1526, %v11479, %v11480
      %v11482 = vrot.slane %v11480, 4
      %v11483 = vrot.slane %v11051, 5
      %v11484 = vsel %vm1526, %v11482, %v11483
      %v11485 = vrot.slane %v11423, 5
      %v11486 = vrot.slane %v11485, 4
      %v11487 = vrot.slane %v11053, 5
      %v11488 = vsel %vm1526, %v11486, %v11487
      %v11489 = vrot.slane %v11487, 4
      %v11490 = vrot.slane %v11054, 5
      %v11491 = vsel %vm1526, %v11489, %v11490
      %v11492 = vrot.slane %v11424, 5
      %v11493 = vrot.slane %v11492, 4
      %v11494 = vrot.slane %v11056, 5
      %v11495 = vsel %vm1526, %v11493, %v11494
      %v11496 = vrot.slane %v11494, 4
      %v11497 = vrot.slane %v11057, 5
      %v11498 = vsel %vm1526, %v11496, %v11497
      %v11499 = vrot.slane %v11425, 5
      %v11500 = vrot.slane %v11499, 4
      %v11501 = vrot.slane %v11059, 5
      %v11502 = vsel %vm1526, %v11500, %v11501
      %v11503 = vrot.slane %v11501, 4
      %v11504 = vrot.slane %v11060, 5
      %v11505 = vsel %vm1526, %v11503, %v11504
      %v11506 = vld [vmem:[%s8750] sm:$0xf]
      %v11507 = vunpack.c.l.b16 %v11453
      %v11508 = vunpack.c.l.b16 %v11456
      %v11509 = vunpack.c.l.b16 %v11460
      %v11510 = vunpack.c.l.b16 %v11463
      %v11511 = vunpack.c.l.b16 %v11467
      %v11512 = vunpack.c.l.b16 %v11470
      %v11513 = vunpack.c.l.b16 %v11474
      %v11514 = vunpack.c.l.b16 %v11477
      %v11515 = vunpack.c.l.b16 %v11481
      %v11516 = vunpack.c.l.b16 %v11484
      %v11517 = vunpack.c.l.b16 %v11488
      %v11518 = vunpack.c.l.b16 %v11491
      %v11519 = vunpack.c.l.b16 %v11495
      %v11520 = vunpack.c.l.b16 %v11498
      %v11521 = vunpack.c.l.b16 %v11502
      %v11522 = vunpack.c.l.b16 %v11505
      %v11523 = vpack.c.b16 %v11508, %v11507
      %v11524 = vpack.c.b16 %v11510, %v11509
      %v11525 = vpack.c.b16 %v11512, %v11511
      %v11526 = vpack.c.b16 %v11514, %v11513
      %v11527 = vpack.c.b16 %v11516, %v11515
      %v11528 = vpack.c.b16 %v11518, %v11517
      %v11529 = vpack.c.b16 %v11520, %v11519
      %v11530 = vpack.c.b16 %v11522, %v11521
      %v11532 = vsel %vm6711, %v11523, 0
      %v11535 = vsel %vm6711, %v11524, 0
      %v11538 = vsel %vm6711, %v11525, 0
      %v11541 = vsel %vm6711, %v11526, 0
      %v11544 = vsel %vm6711, %v11527, 0
      %v11547 = vsel %vm6711, %v11528, 0
      %v11550 = vsel %vm6711, %v11529, 0
      %v11553 = vsel %vm6711, %v11530, 0
      %v11556 = vsel %vm6736, %v11506, 0
      %11558 = vmatprep.subr.bf16.mxu0 0
      %11559 = vmatpush1.bf16.msra.mxu0 %v11556
      %11560 = vmatprep.subr.bf16.mxu0 0
      %11561 = vmatpush1.bf16.msra.mxu0 0
      %11562 = vmatprep.subr.bf16.mxu0 0
      %11563 = vmatpush1.bf16.msra.mxu0 0
      %11564 = vmatprep.subr.bf16.mxu0 0
      %11565 = vmatpush1.bf16.msra.mxu0 0
      %11566 = vmatprep.subr.bf16.mxu0 0
      %11567 = vmatpush1.bf16.msra.mxu0 0
      %11568 = vmatprep.subr.bf16.mxu0 0
      %11569 = vmatpush1.bf16.msra.mxu0 0
      %11570 = vmatprep.subr.bf16.mxu0 0
      %11571 = vmatpush1.bf16.msra.mxu0 0
      %11572 = vmatprep.subr.bf16.mxu0 0
      %11573 = vmatpush1.bf16.msra.mxu0 0
      %11574 = vmatprep.subr.bf16.mxu0 0
      %11575 = vmatpush1.bf16.msra.mxu0 0
      %11576 = vmatprep.subr.bf16.mxu0 0
      %11577 = vmatpush1.bf16.msra.mxu0 0
      %11578 = vmatprep.subr.bf16.mxu0 0
      %11579 = vmatpush1.bf16.msra.mxu0 0
      %11580 = vmatprep.subr.bf16.mxu0 0
      %11581 = vmatpush1.bf16.msra.mxu0 0
      %11582 = vmatprep.subr.bf16.mxu0 0
      %11583 = vmatpush1.bf16.msra.mxu0 0
      %11584 = vmatprep.subr.bf16.mxu0 0
      %11585 = vmatpush1.bf16.msra.mxu0 0
      %11586 = vmatprep.subr.bf16.mxu0 0
      %11587 = vmatpush1.bf16.msra.mxu0 0
      %11588 = vmatprep.subr.bf16.mxu0 0
      %11589 = vmatpush1.bf16.msra.mxu0 0
      %11590 = vmatprep.mubr.bf16.mxu0 0
      %11591 = vmatmul.mubr.bf16.gmra.mrb[0].mxu0 %v11532
      %v11592 = vpop.f32.mrb[0].mxu0
      %v11593 = vadd.f32 0.0, %v11592
      %v11594 = vpop.f32.mrb[0].mxu0
      %v11595 = vpop.f32.mrb[0].mxu0
      %v11596 = vadd.f32 0.0, %v11595
      %v11597 = vpop.f32.mrb[0].mxu0
      %11598 = vmatprep.mubr.bf16.mxu0 0
      %11599 = vmatmul.mubr.bf16.gmra.mrb[0].mxu0 %v11535
      %v11600 = vpop.f32.mrb[0].mxu0
      %v11601 = vadd.f32 0.0, %v11600
      %v11602 = vpop.f32.mrb[0].mxu0
      %v11603 = vpop.f32.mrb[0].mxu0
      %v11604 = vadd.f32 0.0, %v11603
      %v11605 = vpop.f32.mrb[0].mxu0
      %11606 = vmatprep.mubr.bf16.mxu0 0
      %11607 = vmatmul.mubr.bf16.gmra.mrb[0].mxu0 %v11538
      %v11608 = vpop.f32.mrb[0].mxu0
      %v11609 = vadd.f32 0.0, %v11608
      %v11610 = vpop.f32.mrb[0].mxu0
      %v11611 = vpop.f32.mrb[0].mxu0
      %v11612 = vadd.f32 0.0, %v11611
      %v11613 = vpop.f32.mrb[0].mxu0
      %11614 = vmatprep.mubr.bf16.mxu0 0
      %11615 = vmatmul.mubr.bf16.gmra.mrb[0].mxu0 %v11541
      %v11616 = vpop.f32.mrb[0].mxu0
      %v11617 = vadd.f32 0.0, %v11616
      %v11618 = vpop.f32.mrb[0].mxu0
      %v11619 = vpop.f32.mrb[0].mxu0
      %v11620 = vadd.f32 0.0, %v11619
      %v11621 = vpop.f32.mrb[0].mxu0
      %11622 = vmatprep.mubr.bf16.mxu0 0
      %11623 = vmatmul.mubr.bf16.gmra.mrb[0].mxu0 %v11544
      %v11624 = vpop.f32.mrb[0].mxu0
      %v11625 = vadd.f32 0.0, %v11624
      %v11626 = vpop.f32.mrb[0].mxu0
      %v11627 = vpop.f32.mrb[0].mxu0
      %v11628 = vadd.f32 0.0, %v11627
      %v11629 = vpop.f32.mrb[0].mxu0
      %11630 = vmatprep.mubr.bf16.mxu0 0
      %11631 = vmatmul.mubr.bf16.gmra.mrb[0].mxu0 %v11547
      %v11632 = vpop.f32.mrb[0].mxu0
      %v11633 = vadd.f32 0.0, %v11632
      %v11634 = vpop.f32.mrb[0].mxu0
      %v11635 = vpop.f32.mrb[0].mxu0
      %v11636 = vadd.f32 0.0, %v11635
      %v11637 = vpop.f32.mrb[0].mxu0
      %11638 = vmatprep.mubr.bf16.mxu0 0
      %11639 = vmatmul.mubr.bf16.gmra.mrb[0].mxu0 %v11550
      %v11640 = vpop.f32.mrb[0].mxu0
      %v11641 = vadd.f32 0.0, %v11640
      %v11642 = vpop.f32.mrb[0].mxu0
      %v11643 = vpop.f32.mrb[0].mxu0
      %v11644 = vadd.f32 0.0, %v11643
      %v11645 = vpop.f32.mrb[0].mxu0
      %11646 = vmatprep.mubr.bf16.mxu0 0
      %11647 = vmatmul.mubr.bf16.gmra.mrb[0].mxu0 %v11553
      %v11648 = vpop.f32.mrb[0].mxu0
      %v11649 = vadd.f32 0.0, %v11648
      %v11650 = vpop.f32.mrb[0].mxu0
      %v11651 = vpop.f32.mrb[0].mxu0
      %v11652 = vadd.f32 0.0, %v11651
      %v11653 = vpop.f32.mrb[0].mxu0
      %11654 = vdwg.mxu0
      %v11655 = vadd.f32 %v11402, %v11593
      %v11656 = vadd.f32 %v11403, %v11596
      %v11657 = vadd.f32 %v11404, %v11601
      %v11658 = vadd.f32 %v11405, %v11604
      %v11659 = vadd.f32 %v11406, %v11609
      %v11660 = vadd.f32 %v11407, %v11612
      %v11661 = vadd.f32 %v11408, %v11617
      %v11662 = vadd.f32 %v11409, %v11620
      %v11663 = vadd.f32 %v11410, %v11625
      %v11664 = vadd.f32 %v11411, %v11628
      %v11665 = vadd.f32 %v11412, %v11633
      %v11666 = vadd.f32 %v11413, %v11636
      %v11667 = vadd.f32 %v11414, %v11641
      %v11668 = vadd.f32 %v11415, %v11644
      %v11669 = vadd.f32 %v11416, %v11649
      %v11670 = vadd.f32 %v11417, %v11652
      %s11671 = scalar_lea.vmem %s246, 64
      %v11672 = vld [vmem:[%s11671] sm:$0xf]
      %v11673 = vld [vmem:[%s11671 + $0x4] sm:$0xf]
      %v11674 = vld [vmem:[%s11671 + $0x8] sm:$0xf]
      %v11675 = vld [vmem:[%s11671 + $0xc] sm:$0xf]
      %v11676 = vld [vmem:[%s11671 + $0x10] sm:$0xf]
      %v11677 = vld [vmem:[%s11671 + $0x14] sm:$0xf]
      %v11678 = vld [vmem:[%s11671 + $0x18] sm:$0xf]
      %v11679 = vld [vmem:[%s11671 + $0x1c] sm:$0xf]
      %v11680 = vld [vmem:[%s11671 + $0x20] sm:$0xf]
      %v11681 = vld [vmem:[%s11671 + $0x24] sm:$0xf]
      %v11682 = vld [vmem:[%s11671 + $0x28] sm:$0xf]
      %v11683 = vld [vmem:[%s11671 + $0x2c] sm:$0xf]
      %v11684 = vld [vmem:[%s11671 + $0x30] sm:$0xf]
      %v11685 = vld [vmem:[%s11671 + $0x34] sm:$0xf]
      %v11686 = vld [vmem:[%s11671 + $0x38] sm:$0xf]
      %v11687 = vld [vmem:[%s11671 + $0x3c] sm:$0xf]
      %v11688 = vld [vmem:[%s5] sm:$0x3]
      %v11705 = vunpack.c.l.b16 %v11672
      %v11706 = vunpack.c.l.b16 %v11673
      %v11707 = vunpack.c.l.b16 %v11674
      %v11708 = vunpack.c.l.b16 %v11675
      %v11709 = vunpack.c.l.b16 %v11676
      %v11710 = vunpack.c.l.b16 %v11677
      %v11711 = vunpack.c.l.b16 %v11678
      %v11712 = vunpack.c.l.b16 %v11679
      %v11713 = vunpack.c.l.b16 %v11680
      %v11714 = vunpack.c.l.b16 %v11681
      %v11715 = vunpack.c.l.b16 %v11682
      %v11716 = vunpack.c.l.b16 %v11683
      %v11717 = vunpack.c.l.b16 %v11684
      %v11718 = vunpack.c.l.b16 %v11685
      %v11719 = vunpack.c.l.b16 %v11686
      %v11720 = vunpack.c.l.b16 %v11687
      %v11721 = vpack.c.b16 %v11706, %v11705
      %v11722 = vpack.c.b16 %v11708, %v11707
      %v11723 = vpack.c.b16 %v11710, %v11709
      %v11724 = vpack.c.b16 %v11712, %v11711
      %v11725 = vpack.c.b16 %v11714, %v11713
      %v11726 = vpack.c.b16 %v11716, %v11715
      %v11727 = vpack.c.b16 %v11718, %v11717
      %v11728 = vpack.c.b16 %v11720, %v11719
      %v11730 = vsel %vm1210, %v11721, 0
      %v11733 = vsel %vm1210, %v11722, 0
      %v11736 = vsel %vm1210, %v11723, 0
      %v11739 = vsel %vm1210, %v11724, 0
      %v11742 = vsel %vm1210, %v11725, 0
      %v11745 = vsel %vm1210, %v11726, 0
      %v11748 = vsel %vm1210, %v11727, 0
      %v11751 = vsel %vm1210, %v11728, 0
      %v11754 = vsel %vm1235, %v11688, 0
      %11756 = vmatprep.subr.bf16.mxu0 0
      %11757 = vmatpush1.bf16.msra.mxu0 %v11754
      %11758 = vmatprep.subr.bf16.mxu0 0
      %11759 = vmatpush1.bf16.msra.mxu0 0
      %11760 = vmatprep.subr.bf16.mxu0 0
      %11761 = vmatpush1.bf16.msra.mxu0 0
      %11762 = vmatprep.subr.bf16.mxu0 0
      %11763 = vmatpush1.bf16.msra.mxu0 0
      %11764 = vmatprep.subr.bf16.mxu0 0
      %11765 = vmatpush1.bf16.msra.mxu0 0
      %11766 = vmatprep.subr.bf16.mxu0 0
      %11767 = vmatpush1.bf16.msra.mxu0 0
      %11768 = vmatprep.subr.bf16.mxu0 0
      %11769 = vmatpush1.bf16.msra.mxu0 0
      %11770 = vmatprep.subr.bf16.mxu0 0
      %11771 = vmatpush1.bf16.msra.mxu0 0
      %11772 = vmatprep.subr.bf16.mxu0 0
      %11773 = vmatpush1.bf16.msra.mxu0 0
      %11774 = vmatprep.subr.bf16.mxu0 0
      %11775 = vmatpush1.bf16.msra.mxu0 0
      %11776 = vmatprep.subr.bf16.mxu0 0
      %11777 = vmatpush1.bf16.msra.mxu0 0
      %11778 = vmatprep.subr.bf16.mxu0 0
      %11779 = vmatpush1.bf16.msra.mxu0 0
      %11780 = vmatprep.subr.bf16.mxu0 0
      %11781 = vmatpush1.bf16.msra.mxu0 0
      %11782 = vmatprep.subr.bf16.mxu0 0
      %11783 = vmatpush1.bf16.msra.mxu0 0
      %11784 = vmatprep.subr.bf16.mxu0 0
      %11785 = vmatpush1.bf16.msra.mxu0 0
      %11786 = vmatprep.subr.bf16.mxu0 0
      %11787 = vmatpush1.bf16.msra.mxu0 0
      %11788 = vmatprep.mubr.bf16.mxu0 0
      %11789 = vmatmul.mubr.bf16.gmra.mrb[0].mxu0 %v11730
      %v11790 = vpop.f32.mrb[0].mxu0
      %v11791 = vadd.f32 0.0, %v11790
      %v11792 = vpop.f32.mrb[0].mxu0
      %v11793 = vpop.f32.mrb[0].mxu0
      %v11794 = vadd.f32 0.0, %v11793
      %v11795 = vpop.f32.mrb[0].mxu0
      %11796 = vmatprep.mubr.bf16.mxu0 0
      %11797 = vmatmul.mubr.bf16.gmra.mrb[0].mxu0 %v11733
      %v11798 = vpop.f32.mrb[0].mxu0
      %v11799 = vadd.f32 0.0, %v11798
      %v11800 = vpop.f32.mrb[0].mxu0
      %v11801 = vpop.f32.mrb[0].mxu0
      %v11802 = vadd.f32 0.0, %v11801
      %v11803 = vpop.f32.mrb[0].mxu0
      %11804 = vmatprep.mubr.bf16.mxu0 0
      %11805 = vmatmul.mubr.bf16.gmra.mrb[0].mxu0 %v11736
      %v11806 = vpop.f32.mrb[0].mxu0
      %v11807 = vadd.f32 0.0, %v11806
      %v11808 = vpop.f32.mrb[0].mxu0
      %v11809 = vpop.f32.mrb[0].mxu0
      %v11810 = vadd.f32 0.0, %v11809
      %v11811 = vpop.f32.mrb[0].mxu0
      %11812 = vmatprep.mubr.bf16.mxu0 0
      %11813 = vmatmul.mubr.bf16.gmra.mrb[0].mxu0 %v11739
      %v11814 = vpop.f32.mrb[0].mxu0
      %v11815 = vadd.f32 0.0, %v11814
      %v11816 = vpop.f32.mrb[0].mxu0
      %v11817 = vpop.f32.mrb[0].mxu0
      %v11818 = vadd.f32 0.0, %v11817
      %v11819 = vpop.f32.mrb[0].mxu0
      %11820 = vmatprep.mubr.bf16.mxu0 0
      %11821 = vmatmul.mubr.bf16.gmra.mrb[0].mxu0 %v11742
      %v11822 = vpop.f32.mrb[0].mxu0
      %v11823 = vadd.f32 0.0, %v11822
      %v11824 = vpop.f32.mrb[0].mxu0
      %v11825 = vpop.f32.mrb[0].mxu0
      %v11826 = vadd.f32 0.0, %v11825
      %v11827 = vpop.f32.mrb[0].mxu0
      %11828 = vmatprep.mubr.bf16.mxu0 0
      %11829 = vmatmul.mubr.bf16.gmra.mrb[0].mxu0 %v11745
      %v11830 = vpop.f32.mrb[0].mxu0
      %v11831 = vadd.f32 0.0, %v11830
      %v11832 = vpop.f32.mrb[0].mxu0
      %v11833 = vpop.f32.mrb[0].mxu0
      %v11834 = vadd.f32 0.0, %v11833
      %v11835 = vpop.f32.mrb[0].mxu0
      %11836 = vmatprep.mubr.bf16.mxu0 0
      %11837 = vmatmul.mubr.bf16.gmra.mrb[0].mxu0 %v11748
      %v11838 = vpop.f32.mrb[0].mxu0
      %v11839 = vadd.f32 0.0, %v11838
      %v11840 = vpop.f32.mrb[0].mxu0
      %v11841 = vpop.f32.mrb[0].mxu0
      %v11842 = vadd.f32 0.0, %v11841
      %v11843 = vpop.f32.mrb[0].mxu0
      %11844 = vmatprep.mubr.bf16.mxu0 0
      %11845 = vmatmul.mubr.bf16.gmra.mrb[0].mxu0 %v11751
      %v11846 = vpop.f32.mrb[0].mxu0
      %v11847 = vadd.f32 0.0, %v11846
      %v11848 = vpop.f32.mrb[0].mxu0
      %v11849 = vpop.f32.mrb[0].mxu0
      %v11850 = vadd.f32 0.0, %v11849
      %v11851 = vpop.f32.mrb[0].mxu0
      %11852 = vdwg.mxu0
      %v11853 = vadd.f32 %v11655, %v11791
      %v11854 = vadd.f32 %v11656, %v11794
      %v11855 = vadd.f32 %v11657, %v11799
      %v11856 = vadd.f32 %v11658, %v11802
      %v11857 = vadd.f32 %v11659, %v11807
      %v11858 = vadd.f32 %v11660, %v11810
      %v11859 = vadd.f32 %v11661, %v11815
      %v11860 = vadd.f32 %v11662, %v11818
      %v11861 = vadd.f32 %v11663, %v11823
      %v11862 = vadd.f32 %v11664, %v11826
      %v11863 = vadd.f32 %v11665, %v11831
      %v11864 = vadd.f32 %v11666, %v11834
      %v11865 = vadd.f32 %v11667, %v11839
      %v11866 = vadd.f32 %v11668, %v11842
      %v11867 = vadd.f32 %v11669, %v11847
      %v11868 = vadd.f32 %v11670, %v11850
      %v11869 = vld [vmem:[%s4] sm:$0x1]
      %v11871 = vlaneseq
      %v11872 = vshrl.u32 %v11871, 7
      %v11873 = vsub.s32 0, %v11872
      %v11874 = vrot.slane %v11869, %v11873
      %v11876 = vadd.f32 %v11853, %v11874
      %v11877 = vadd.f32 %v11854, %v11874
      %v11878 = vadd.f32 %v11855, %v11874
      %v11879 = vadd.f32 %v11856, %v11874
      %v11880 = vadd.f32 %v11857, %v11874
      %v11881 = vadd.f32 %v11858, %v11874
      %v11882 = vadd.f32 %v11859, %v11874
      %v11883 = vadd.f32 %v11860, %v11874
      %v11884 = vadd.f32 %v11861, %v11874
      %v11885 = vadd.f32 %v11862, %v11874
      %v11886 = vadd.f32 %v11863, %v11874
      %v11887 = vadd.f32 %v11864, %v11874
      %v11888 = vadd.f32 %v11865, %v11874
      %v11889 = vadd.f32 %v11866, %v11874
      %v11890 = vadd.f32 %v11867, %v11874
      %v11891 = vadd.f32 %v11868, %v11874
      %v11892 = vmax.f32 %v11876, 0.0
      %v11893 = vmax.f32 %v11877, 0.0
      %v11894 = vmax.f32 %v11878, 0.0
      %v11895 = vmax.f32 %v11879, 0.0
      %v11896 = vmax.f32 %v11880, 0.0
      %v11897 = vmax.f32 %v11881, 0.0
      %v11898 = vmax.f32 %v11882, 0.0
      %v11899 = vmax.f32 %v11883, 0.0
      %v11900 = vmax.f32 %v11884, 0.0
      %v11901 = vmax.f32 %v11885, 0.0
      %v11902 = vmax.f32 %v11886, 0.0
      %v11903 = vmax.f32 %v11887, 0.0
      %v11904 = vmax.f32 %v11888, 0.0
      %v11905 = vmax.f32 %v11889, 0.0
      %v11906 = vmax.f32 %v11890, 0.0
      %v11907 = vmax.f32 %v11891, 0.0
      %v11908 = vpack.c.bf16 %v11893, %v11892
      %v11909 = vpack.c.bf16 %v11895, %v11894
      %v11910 = vpack.c.bf16 %v11897, %v11896
      %v11911 = vpack.c.bf16 %v11899, %v11898
      %v11912 = vpack.c.bf16 %v11901, %v11900
      %v11913 = vpack.c.bf16 %v11903, %v11902
      %v11914 = vpack.c.bf16 %v11905, %v11904
      %v11915 = vpack.c.bf16 %v11907, %v11906
      %v11924 = vunpack.c.l.b16 %v11908
      %v11925 = vunpack.c.h.b16 %v11908
      %v11926 = vunpack.c.l.b16 %v11909
      %v11927 = vunpack.c.h.b16 %v11909
      %v11928 = vunpack.c.l.b16 %v11910
      %v11929 = vunpack.c.h.b16 %v11910
      %v11930 = vunpack.c.l.b16 %v11911
      %v11931 = vunpack.c.h.b16 %v11911
      %v11932 = vunpack.c.l.b16 %v11912
      %v11933 = vunpack.c.h.b16 %v11912
      %v11934 = vunpack.c.l.b16 %v11913
      %v11935 = vunpack.c.h.b16 %v11913
      %v11936 = vunpack.c.l.b16 %v11914
      %v11937 = vunpack.c.h.b16 %v11914
      %v11938 = vunpack.c.l.b16 %v11915
      %v11939 = vunpack.c.h.b16 %v11915
      %v11940 = vpack.c.b16 %v11924, %v11924
      %v11941 = vpack.c.b16 %v11925, %v11925
      %v11942 = vpack.c.b16 %v11926, %v11926
      %v11943 = vpack.c.b16 %v11927, %v11927
      %v11944 = vpack.c.b16 %v11928, %v11928
      %v11945 = vpack.c.b16 %v11929, %v11929
      %v11946 = vpack.c.b16 %v11930, %v11930
      %v11947 = vpack.c.b16 %v11931, %v11931
      %v11948 = vpack.c.b16 %v11932, %v11932
      %v11949 = vpack.c.b16 %v11933, %v11933
      %v11950 = vpack.c.b16 %v11934, %v11934
      %v11951 = vpack.c.b16 %v11935, %v11935
      %v11952 = vpack.c.b16 %v11936, %v11936
      %v11953 = vpack.c.b16 %v11937, %v11937
      %v11954 = vpack.c.b16 %v11938, %v11938
      %v11955 = vpack.c.b16 %v11939, %v11939
      %s11972 = scalar_lea.vmem %s251, 64
      %11973 = vst.msk [vmem:[%s11972] sm:$0xf] %vm844, %v11940
      %11974 = vst.msk [vmem:[%s11972 + $0x4] sm:$0xf] %vm844, %v11941
      %11975 = vst.msk [vmem:[%s11972 + $0x8] sm:$0xf] %vm844, %v11942
      %11976 = vst.msk [vmem:[%s11972 + $0xc] sm:$0xf] %vm844, %v11943
      %11977 = vst.msk [vmem:[%s11972 + $0x10] sm:$0xf] %vm844, %v11944
      %11978 = vst.msk [vmem:[%s11972 + $0x14] sm:$0xf] %vm844, %v11945
      %11979 = vst.msk [vmem:[%s11972 + $0x18] sm:$0xf] %vm844, %v11946
      %11980 = vst.msk [vmem:[%s11972 + $0x1c] sm:$0xf] %vm844, %v11947
      %11981 = vst.msk [vmem:[%s11972 + $0x20] sm:$0xf] %vm844, %v11948
      %11982 = vst.msk [vmem:[%s11972 + $0x24] sm:$0xf] %vm844, %v11949
      %11983 = vst.msk [vmem:[%s11972 + $0x28] sm:$0xf] %vm844, %v11950
      %11984 = vst.msk [vmem:[%s11972 + $0x2c] sm:$0xf] %vm844, %v11951
      %11985 = vst.msk [vmem:[%s11972 + $0x30] sm:$0xf] %vm844, %v11952
      %11986 = vst.msk [vmem:[%s11972 + $0x34] sm:$0xf] %vm844, %v11953
      %11987 = vst.msk [vmem:[%s11972 + $0x38] sm:$0xf] %vm844, %v11954
      %11988 = vst.msk [vmem:[%s11972 + $0x3c] sm:$0xf] %vm844, %v11955
      %p11989 = scmp.lt.s32.totalorder %s17, 1
      %s11990 = scalar_select %p11989, %s17, 1
      %s11991 = smul.addr %s11990, 32
      %s11992 = smul.addr %s11991, 4
      %s11993 = scalar_lea.vmem %s6, %s11992
      // Predicated region
      $region45: #{tpu_custom_call.1} parent=43 // pred_check
        %p11994 = pneg %p166
      $region46: #{tpu_custom_call.1} parent=43 // pred_check_branch
        %11996 = sbr.rel (%p11994) target = $region48
      $region47: #{tpu_custom_call.1} parent=43 // pred_region
        _
      $region48: #{tpu_custom_call.1} parent=43 // pred_fallthru
        _
    $region44: #{tpu_custom_call.1} parent=5 // pred_fallthru
      _
    %p11997 = scmp.le.s32.totalorder 2, %s12
    // Predicated region
    $region49: #{tpu_custom_call.1} parent=5 // pred_check
      %p11998 = pneg %p11997
    $region50: #{tpu_custom_call.1} parent=5 // pred_check_branch
      %12000 = sbr.rel (%p11998) target = $region52
    $region51: #{tpu_custom_call.1} parent=5 // pred_region
      %s12001 = ssub.s32 %s12, 2
      // Predicated region
      $region53: #{tpu_custom_call.1} parent=51 // pred_check
        %p12002 = pneg %p172
      $region54: #{tpu_custom_call.1} parent=51 // pred_check_branch
        %12004 = sbr.rel (%p12002) target = $region56
      $region55: #{tpu_custom_call.1} parent=51 // pred_region
        %p12005 = scmp.lt.s32.totalorder %s18, 1
        %s12006 = scalar_select %p12005, %s18, 1
        %s12007 = smul.addr %s12006, 32
        %s12008 = smul.addr %s12007, 4
        %s12009 = scalar_lea.vmem %s6, %s12008
      $region56: #{tpu_custom_call.1} parent=51 // pred_fallthru
        _
    $region52: #{tpu_custom_call.1} parent=5 // pred_fallthru
      _
  $region6: #{tpu_custom_call.1} parent=0 // loop_footer
    %s16 = sadd.s32 1, %s12
  $region7: #{tpu_custom_call.1} parent=0 // loop_footer_branch
    %11 = sbr.rel target = $region3
  $region8: #{tpu_custom_call.1} parent=0 // loop_exit
    _

</llo_original>
